<compile_context>
chip_gen: v7x
topology: tpu7x:2x2x1
jax: 0.10.0
libtpu: 0.0.40
codegen_flags: <defaults>
</compile_context>

<pallas_src>
import jax
import jax.numpy as jnp
import numpy as np
from jax.experimental import pallas as pl
from jax.experimental.pallas import tpu as pltpu

NEGATIVE_SLOPE = 0.08553692


# --------------------------- Pallas kernel -------------------------------- #
def _conv_kernel(x_ref, w_ref, b_ref, o_ref):
    """One batch per grid step.

    x_ref : (1, OH, KH*C*Wp)   pre-expanded padded input rows for this batch
    w_ref : (KH*C*Wp, OC*OW)   flattened W-banded (Toeplitz) weights (resident)
    b_ref : (1, OC*OW)         bias, replicated over ow
    o_ref : (1, OH, OC*OW)
    """
    acc = jnp.dot(x_ref[0], w_ref[...], preferred_element_type=jnp.float32)
    v = acc + b_ref[...]                                   # (OH, OC*OW)
    o_ref[0] = jnp.where(v > 0, v, v * NEGATIVE_SLOPE).astype(o_ref.dtype)


def _conv_pallas(xcol, wflat, bias2, *, OH):
    N, _, KCW = xcol.shape
    _, OCOW = wflat.shape
    return pl.pallas_call(
        _conv_kernel,
        out_shape=jax.ShapeDtypeStruct((N, OH, OCOW), jnp.float32),
        grid_spec=pltpu.PrefetchScalarGridSpec(
            num_scalar_prefetch=0,
            grid=(N,),
            in_specs=[
                pl.BlockSpec((1, OH, KCW), lambda n: (n, 0, 0)),
                # Constant block index -> weights DMA'd once, VMEM-resident.
                pl.BlockSpec((KCW, OCOW), lambda n: (0, 0)),
                pl.BlockSpec((1, OCOW), lambda n: (0, 0)),
            ],
            out_specs=pl.BlockSpec((1, OH, OCOW), lambda n: (n, 0, 0)),
        ),
        compiler_params=pltpu.CompilerParams(
            dimension_semantics=("parallel",),          # v7x: one batch per TC
            vmem_limit_bytes=32 * 1024 * 1024,          # padded weights ~7.6MB x2 buffers fits
        ),
    )(xcol, wflat, bias2)


# ----------------- Conv2d + LeakyReLU wrapper (NCHW, pad=1) ---------------- #
def conv_leaky_forward(x, w, b):
    """x: (N, C, H, W), w: (OC, C, KH, KW), b: (OC,)  ->  (N, OC, OH, OW)."""
    N, C, H, W = x.shape
    OC, _, KH, KW = w.shape
    pad = 1
    Hp, Wp = H + 2 * pad, W + 2 * pad
    OH = Hp - KH + 1
    OW = Wp - KW + 1
    assert OH > 0 and OW > 0

    # Pad spatially, fold channels into the lane axis:
    #   xr[n, h, c*Wp + w'] = x_pad[n, c, h, w']
    x_pad = jnp.pad(x, ((0, 0), (0, 0), (pad, pad), (pad, pad)))
    xr = x_pad.transpose(0, 2, 1, 3).reshape(N, Hp, C * Wp).astype(jnp.float32)

    # Pre-expand the vertical (kh) sliding window so the kernel needs no
    # unaligned sublane slices:
    #   xcol[n, oh, kh*C*Wp + cw] = xr[n, oh + kh, cw]          (~1.3 MB total)
    xcol = jnp.stack([xr[:, kh:kh + OH, :] for kh in range(KH)], axis=2)
    xcol = xcol.reshape(N, OH, KH * C * Wp)

    # W-banded (Toeplitz) weights: Wb[kh, c*Wp+w', oc*OW+ow] = w[oc,c,kh,w'-ow]
    # (zero outside 0 <= w'-ow < KW) so the MXU performs the kw sliding window.
    cols = [jnp.pad(w, ((0, 0), (0, 0), (0, 0), (ow, Wp - KW - ow)))
            for ow in range(OW)]
    Wb = jnp.stack(cols, axis=-1)                       # (OC, C, KH, Wp, OW)
    Wb = Wb.transpose(2, 1, 3, 0, 4).reshape(KH, C * Wp, OC * OW)
    wflat = Wb.reshape(KH * C * Wp, OC * OW).astype(jnp.float32)

    bias2 = jnp.repeat(b.astype(jnp.float32), OW).reshape(1, OC * OW)

    out_flat = _conv_pallas(xcol, wflat, bias2, OH=OH)   # (N, OH, OC*OW)
    return out_flat.reshape(N, OH, OC, OW).transpose(0, 2, 1, 3)  # NCHW


if __name__ == "__main__":
    key = jax.random.PRNGKey(0)
    k_x, k_w, k_b = jax.random.split(key, 3)

    # kernel_size=56 with padding=1 requires H, W >= 54; keep shapes small.
    N, C, H, W = 2, 4, 64, 64
    OC, KH, KW = 2, 56, 56

    x = jax.random.normal(k_x, (N, C, H, W), dtype=jnp.float32)
    fan_in = C * KH * KW
    w = jax.random.normal(k_w, (OC, C, KH, KW), dtype=jnp.float32) / np.sqrt(fan_in)
    b = jax.random.normal(k_b, (OC,), dtype=jnp.float32) * 0.01

    fwd = jax.jit(conv_leaky_forward)
    out = jax.block_until_ready(fwd(x, w, b))

    # Reference (plain XLA) check of conv + leaky-relu semantics.
    ref = jax.lax.conv_general_dilated(
        x, w, window_strides=(1, 1), padding=((1, 1), (1, 1)),
        dimension_numbers=("NCHW", "OIHW", "NCHW"))
    ref = ref + b[None, :, None, None]
    ref = jnp.where(ref > 0, ref, ref * NEGATIVE_SLOPE)
    np.testing.assert_allclose(np.asarray(out), np.asarray(ref), rtol=2e-3, atol=2e-3)

    assert out.shape == (N, OC, H + 2 - KH + 1, W + 2 - KW + 1)
    print("KERNEL_OK")
</pallas_src>

<mosaic_0001>
module attributes {stable_mosaic.version = 11 : i64} {
  func.func @_conv_kernel(%arg0: i32, %arg1: memref<1x11x14784xf32, #tpu.memory_space<vmem>>, %arg2: memref<14784x22xf32, #tpu.memory_space<vmem>>, %arg3: memref<1x22xf32, #tpu.memory_space<vmem>>, %arg4: memref<1x11x22xf32, #tpu.memory_space<vmem>>) attributes {dimension_semantics = [#tpu.dimension_semantics<parallel>], iteration_bounds = array<i64: 2>, scalar_prefetch = 0 : i64, scratch_operands = 0 : i64, tpu.core_type = #tpu.core_type<tc>, window_params = [{transform_indices = @transform_0, window_bounds = array<i64: 1, 11, 14784>}, {pipeline_mode = #tpu.pipeline_mode<synchronous>, transform_indices = @transform_1, window_bounds = array<i64: 14784, 22>}, {pipeline_mode = #tpu.pipeline_mode<synchronous>, transform_indices = @transform_2, window_bounds = array<i64: 1, 22>}, {transform_indices = @transform_3, window_bounds = array<i64: 1, 11, 22>}]} {
    %c0 = arith.constant 0 : index
    %c0_0 = arith.constant 0 : index
    %c0_1 = arith.constant 0 : index
    %0 = vector.load %arg1[%c0, %c0_0, %c0_1] : memref<1x11x14784xf32, #tpu.memory_space<vmem>>, vector<1x11x14784xf32>
    %1 = vector.shape_cast %0 : vector<1x11x14784xf32> to vector<11x14784xf32>
    %c0_2 = arith.constant 0 : index
    %c0_3 = arith.constant 0 : index
    %2 = vector.load %arg2[%c0_2, %c0_3] : memref<14784x22xf32, #tpu.memory_space<vmem>>, vector<14784x22xf32>
    %cst = arith.constant dense<0.000000e+00> : vector<11x22xf32>
    %3 = tpu.matmul %1, %2, %cst {dimension_numbers = #tpu.dot_dimension_numbers<[1], [0], [0], [1], [0, 0, 1, 1], [], []>} : vector<11x14784xf32>, vector<14784x22xf32>, vector<11x22xf32> -> vector<11x22xf32>
    %c0_4 = arith.constant 0 : index
    %c0_5 = arith.constant 0 : index
    %4 = vector.load %arg3[%c0_4, %c0_5] : memref<1x22xf32, #tpu.memory_space<vmem>>, vector<1x22xf32>
    %5 = vector.broadcast %4 : vector<1x22xf32> to vector<11x22xf32>
    %6 = arith.addf %3, %5 : vector<11x22xf32>
    %cst_6 = arith.constant 0.000000e+00 : f32
    %7 = vector.broadcast %cst_6 : f32 to vector<11x22xf32>
    %8 = arith.cmpf ogt, %6, %7 : vector<11x22xf32>
    %cst_7 = arith.constant 0.0855369195 : f32
    %9 = vector.broadcast %cst_7 : f32 to vector<11x22xf32>
    %10 = arith.mulf %6, %9 : vector<11x22xf32>
    %11 = arith.select %8, %6, %10 : vector<11x22xi1>, vector<11x22xf32>
    %c0_8 = arith.constant 0 : index
    %c0_9 = arith.constant 0 : index
    %c0_10 = arith.constant 0 : index
    %12 = vector.load %arg4[%c0_8, %c0_9, %c0_10] : memref<1x11x22xf32, #tpu.memory_space<vmem>>, vector<1x11x22xf32>
    %13 = vector.shape_cast %12 : vector<1x11x22xf32> to vector<11x22xf32>
    %14 = vector.shape_cast %11 : vector<11x22xf32> to vector<1x11x22xf32>
    tpu.vector_store %arg4[%c0_8, %c0_9, %c0_10], %14 {strides = array<i32>} : memref<1x11x22xf32, #tpu.memory_space<vmem>>, vector<1x11x22xf32>,
    return
  }
  func.func @transform_0(%arg0: i32) -> (i32, i32, i32) {
    %c0_i32 = arith.constant 0 : i32
    %c0_i32_0 = arith.constant 0 : i32
    %c0_i32_1 = arith.constant 0 : i32
    return %arg0, %c0_i32, %c0_i32_0 : i32, i32, i32
  }
  func.func @transform_1(%arg0: i32) -> (i32, i32) {
    %c0_i32 = arith.constant 0 : i32
    %c0_i32_0 = arith.constant 0 : i32
    %c0_i32_1 = arith.constant 0 : i32
    return %c0_i32, %c0_i32_0 : i32, i32
  }
  func.func @transform_2(%arg0: i32) -> (i32, i32) {
    %c0_i32 = arith.constant 0 : i32
    %c0_i32_0 = arith.constant 0 : i32
    %c0_i32_1 = arith.constant 0 : i32
    return %c0_i32, %c0_i32_0 : i32, i32
  }
  func.func @transform_3(%arg0: i32) -> (i32, i32, i32) {
    %c0_i32 = arith.constant 0 : i32
    %c0_i32_0 = arith.constant 0 : i32
    %c0_i32_1 = arith.constant 0 : i32
    return %arg0, %c0_i32, %c0_i32_0 : i32, i32, i32
  }
}

</mosaic_0001>

<llo_original>
// kernel: conv_leaky_forward.1
$region0: #{conv_leaky_forward.1}
  #allocation0 [shape = 'u32[]', space=smem, size = 0x4, offset = 0x4, fixed_abs, tag = 'smem constant byte address 0x4 - core index']
  #allocation1 [shape = 'u32[144,128]{1,0:T(1,128)}', space=vmem, size = 0x12000, scoped, tag = 'internal scratch']
  %s0 = inlined_call_operand.vmem [shape: f32[2,11,14784], index: 0, kind: input, shape index: {}]
  %s1 = inlined_call_operand.vmem [shape: f32[14784,22], index: 1, kind: input, shape index: {}]
  %s2 = inlined_call_operand.vmem [shape: f32[1,22], index: 2, kind: input, shape index: {}]
  %s3 = inlined_call_operand.vmem [shape: f32[2,11,22], index: 3, kind: output, shape index: {}]
  %s4 = sld [smem:[#allocation0]]
  $region45: #{conv_leaky_forward.1} parent=0
    _
  %s6 = ssub.s32 1, %s4
  %s7 = scalar_select 0, %s6, %s4
  loop: start=0, step=1, limit=4
  $region2: #{conv_leaky_forward.1} parent=0 // loop_pre_header
    _
  $region3: #{conv_leaky_forward.1} parent=0 // loop_header
    %s9 = sphi 0, %s13
    %p10 = scmp.ge.s32.totalorder %s9, 4
    %s19 = sphi 0, %s21
    %s22 = sphi 0, %s19
    %s23 = sphi 0, %s22
    %s39 = sphi 0, %s23
    %s43 = sphi 0, %s43
    %s45 = sphi 0, %s43
    %s46 = sphi 0, %s45
    %s60 = sphi 0, %s46
    %s64 = sphi 0, %s64
    %s66 = sphi 0, %s64
    %s67 = sphi 0, %s66
    %s81 = sphi 0, %s67
    %s87 = sphi 0, %s89
    %s90 = sphi 0, %s87
    %s91 = sphi 0, %s90
    %s107 = sphi 0, %s91
  $region4: #{conv_leaky_forward.1} parent=0 // loop_header_branch
    %12 = sbr.rel (%p10) target = $region8
  $region5: #{conv_leaky_forward.1} parent=0 // loop_body
    %s14 = ssub.s32 %s9, 1
    %s15 = ssub.s32 %s9, 2
    %s16 = sadd.s32 %s9, 1
    %s17 = ssub.s32 %s9, %s16
    %p18 = scmp.eq.s32.totalorder %s17, 0
    %s20 = sadd.s32 %s19, 1
    %s21 = scalar_select %p18, %s19, %s20
    %p24 = pneg %p18
    %p25 = scmp.eq.s32.totalorder %s9, 1
    %p26 = por %p24, %p25
    %p27 = scmp.ne.s32.totalorder %s19, %s22
    %p28 = scmp.eq.s32.totalorder %s9, 0
    %p29 = por %p27, %p28
    %p30 = scmp.ne.s32.totalorder %s19, %s22
    %p31 = scmp.eq.s32.totalorder %s14, 1
    %p32 = por %p30, %p31
    %p33 = scmp.ne.s32.totalorder %s22, %s23
    %p34 = scmp.eq.s32.totalorder %s14, 0
    %p35 = por %p33, %p34
    %p36 = scmp.ne.s32.totalorder %s22, %s23
    %p37 = scmp.eq.s32.totalorder %s15, 1
    %p38 = por %p36, %p37
    %p40 = scmp.ne.s32.totalorder %s23, %s39
    %p41 = scmp.eq.s32.totalorder %s15, 0
    %p42 = por %p40, %p41
    %s44 = sadd.s32 %s43, 1
    %p47 = scmp.eq.s32.totalorder %s9, 1
    %p48 = scmp.ne.s32.totalorder %s43, %s45
    %p49 = scmp.eq.s32.totalorder %s9, 0
    %p50 = por %p48, %p49
    %p51 = scmp.ne.s32.totalorder %s43, %s45
    %p52 = scmp.eq.s32.totalorder %s14, 1
    %p53 = por %p51, %p52
    %p54 = scmp.ne.s32.totalorder %s45, %s46
    %p55 = scmp.eq.s32.totalorder %s14, 0
    %p56 = por %p54, %p55
    %p57 = scmp.ne.s32.totalorder %s45, %s46
    %p58 = scmp.eq.s32.totalorder %s15, 1
    %p59 = por %p57, %p58
    %p61 = scmp.ne.s32.totalorder %s46, %s60
    %p62 = scmp.eq.s32.totalorder %s15, 0
    %p63 = por %p61, %p62
    %s65 = sadd.s32 %s64, 1
    %p68 = scmp.eq.s32.totalorder %s9, 1
    %p69 = scmp.ne.s32.totalorder %s64, %s66
    %p70 = scmp.eq.s32.totalorder %s9, 0
    %p71 = por %p69, %p70
    %p72 = scmp.ne.s32.totalorder %s64, %s66
    %p73 = scmp.eq.s32.totalorder %s14, 1
    %p74 = por %p72, %p73
    %p75 = scmp.ne.s32.totalorder %s66, %s67
    %p76 = scmp.eq.s32.totalorder %s14, 0
    %p77 = por %p75, %p76
    %p78 = scmp.ne.s32.totalorder %s66, %s67
    %p79 = scmp.eq.s32.totalorder %s15, 1
    %p80 = por %p78, %p79
    %p82 = scmp.ne.s32.totalorder %s67, %s81
    %p83 = scmp.eq.s32.totalorder %s15, 0
    %p84 = por %p82, %p83
    %s85 = ssub.s32 %s9, %s16
    %p86 = scmp.eq.s32.totalorder %s85, 0
    %s88 = sadd.s32 %s87, 1
    %s89 = scalar_select %p86, %s87, %s88
    %p92 = pneg %p86
    %p93 = scmp.eq.s32.totalorder %s9, 1
    %p94 = por %p92, %p93
    %p95 = scmp.ne.s32.totalorder %s87, %s90
    %p96 = scmp.eq.s32.totalorder %s9, 0
    %p97 = por %p95, %p96
    %p98 = scmp.ne.s32.totalorder %s87, %s90
    %p99 = scmp.eq.s32.totalorder %s14, 1
    %p100 = por %p98, %p99
    %p101 = scmp.ne.s32.totalorder %s90, %s91
    %p102 = scmp.eq.s32.totalorder %s14, 0
    %p103 = por %p101, %p102
    %p104 = scmp.ne.s32.totalorder %s90, %s91
    %p105 = scmp.eq.s32.totalorder %s15, 1
    %p106 = por %p104, %p105
    %p108 = scmp.ne.s32.totalorder %s91, %s107
    %p109 = scmp.eq.s32.totalorder %s15, 0
    %p110 = por %p108, %p109
    %p111 = scmp.le.s32.totalorder 1, %s9
    %p112 = scmp.lt.s32.totalorder %s9, 3
    %p113 = pnand %p111, %p112
    %p114 = pneg %p113
    // Predicated region
    $region9: #{conv_leaky_forward.1} parent=5 // pred_check
      _
    $region10: #{conv_leaky_forward.1} parent=5 // pred_check_branch
      %116 = sbr.rel (%p113) target = $region12
    $region11: #{conv_leaky_forward.1} parent=5 // pred_region
      %s117 = ssub.s32 %s9, 1
      // Predicated region
      $region13: #{conv_leaky_forward.1} parent=11 // pred_check
        %p118 = pneg %p56
      $region14: #{conv_leaky_forward.1} parent=11 // pred_check_branch
        %120 = sbr.rel (%p118) target = $region16
      $region15: #{conv_leaky_forward.1} parent=11 // pred_region
        _
      $region16: #{conv_leaky_forward.1} parent=11 // pred_fallthru
        _
      // Predicated region
      $region17: #{conv_leaky_forward.1} parent=11 // pred_check
        %p121 = pneg %p77
      $region18: #{conv_leaky_forward.1} parent=11 // pred_check_branch
        %123 = sbr.rel (%p121) target = $region20
      $region19: #{conv_leaky_forward.1} parent=11 // pred_region
        _
      $region20: #{conv_leaky_forward.1} parent=11 // pred_fallthru
        _
    $region12: #{conv_leaky_forward.1} parent=5 // pred_fallthru
      _
    %p124 = scmp.lt.s32.totalorder %s9, 2
    // Predicated region
    $region21: #{conv_leaky_forward.1} parent=5 // pred_check
      %p125 = pneg %p124
    $region22: #{conv_leaky_forward.1} parent=5 // pred_check_branch
      %127 = sbr.rel (%p125) target = $region24
    $region23: #{conv_leaky_forward.1} parent=5 // pred_region
      // Predicated region
      $region25: #{conv_leaky_forward.1} parent=23 // pred_check
        %p128 = pneg %p29
      $region26: #{conv_leaky_forward.1} parent=23 // pred_check_branch
        %130 = sbr.rel (%p128) target = $region28
      $region27: #{conv_leaky_forward.1} parent=23 // pred_region
        %p131 = scmp.lt.s32.totalorder %s9, 1
        %s132 = scalar_select %p131, %s9, 1
        %s133 = smul.addr %s132, 232
        %s134 = smul.addr %s133, 8
        %s135 = scalar_lea.vmem %s0, %s134
      $region28: #{conv_leaky_forward.1} parent=23 // pred_fallthru
        _
    $region24: #{conv_leaky_forward.1} parent=5 // pred_fallthru
      _
    %p136 = scmp.le.s32.totalorder 1, %s9
    %p137 = scmp.lt.s32.totalorder %s9, 3
    %p138 = pnand %p136, %p137
    %p139 = pneg %p138
    // Predicated region
    $region29: #{conv_leaky_forward.1} parent=5 // pred_check
      _
    $region30: #{conv_leaky_forward.1} parent=5 // pred_check_branch
      %141 = sbr.rel (%p138) target = $region32
    $region31: #{conv_leaky_forward.1} parent=5 // pred_region
      %s142 = ssub.s32 %s9, 1
      %p143 = scmp.lt.s32.totalorder %s14, 1
      %s144 = scalar_select %p143, %s14, 1
      %s145 = smul.addr %s144, 232
      %s146 = smul.addr %s145, 8
      %s147 = scalar_lea.vmem %s0, %s146
      %p148 = pneg %p35
      %p149 = pneg %p32
      %p150 = pneg %p56
      %p151 = pneg %p53
      %p152 = pneg %p77
      %p153 = pneg %p74
      %p154 = pneg %p103
      %p155 = pneg %p100
      %p156 = scmp.lt.s32.totalorder %s14, 1
      %s157 = scalar_select %p156, %s14, 1
      %s158 = smul.addr %s157, 2
      %s159 = smul.addr %s158, 8
      %s160 = scalar_lea.vmem %s3, %s159
      %p161 = scmp.lt.s32.totalorder %s14, 1
      %s162 = scalar_select %p161, %s14, 1
      %s163 = smul.addr %s162, 232
      %s164 = smul.addr %s163, 8
      %s165 = scalar_lea.vmem %s0, %s164
      %p166 = scmp.lt.s32.totalorder %s14, 1
      %s167 = scalar_select %p166, %s14, 1
      %s168 = smul.addr %s167, 2
      %s169 = smul.addr %s168, 8
      %s170 = scalar_lea.vmem %s3, %s169
      %v171 = vld [vmem:[%s165] sm:$0xff]
      %v172 = vld [vmem:[%s165 + $0x8] sm:$0xff]
      %v173 = vld [vmem:[%s165 + $0x10] sm:$0xff]
      %v174 = vld [vmem:[%s165 + $0x18] sm:$0xff]
      %v175 = vld [vmem:[%s165 + $0x20] sm:$0xff]
      %v176 = vld [vmem:[%s165 + $0x28] sm:$0xff]
      %v177 = vld [vmem:[%s165 + $0x30] sm:$0xff]
      %v178 = vld [vmem:[%s165 + $0x38] sm:$0xff]
      %v179 = vld [vmem:[%s165 + $0x40] sm:$0xff]
      %v180 = vld [vmem:[%s165 + $0x48] sm:$0xff]
      %v181 = vld [vmem:[%s165 + $0x50] sm:$0xff]
      %v182 = vld [vmem:[%s165 + $0x58] sm:$0xff]
      %v183 = vld [vmem:[%s165 + $0x60] sm:$0xff]
      %v184 = vld [vmem:[%s165 + $0x68] sm:$0xff]
      %v185 = vld [vmem:[%s165 + $0x70] sm:$0xff]
      %v186 = vld [vmem:[%s165 + $0x78] sm:$0xff]
      %v187 = vld [vmem:[%s165 + $0x80] sm:$0xff]
      %v188 = vld [vmem:[%s165 + $0x88] sm:$0xff]
      %v189 = vld [vmem:[%s165 + $0x90] sm:$0xff]
      %v190 = vld [vmem:[%s165 + $0x98] sm:$0xff]
      %v191 = vld [vmem:[%s165 + $0xa0] sm:$0xff]
      %v192 = vld [vmem:[%s165 + $0xa8] sm:$0xff]
      %v193 = vld [vmem:[%s165 + $0xb0] sm:$0xff]
      %v194 = vld [vmem:[%s165 + $0xb8] sm:$0xff]
      %v195 = vld [vmem:[%s165 + $0xc0] sm:$0xff]
      %v196 = vld [vmem:[%s165 + $0xc8] sm:$0xff]
      %v197 = vld [vmem:[%s165 + $0xd0] sm:$0xff]
      %v198 = vld [vmem:[%s165 + $0xd8] sm:$0xff]
      %v199 = vld [vmem:[%s165 + $0xe0] sm:$0xff]
      %v200 = vld [vmem:[%s165 + $0xe8] sm:$0xff]
      %v201 = vld [vmem:[%s165 + $0xf0] sm:$0xff]
      %v202 = vld [vmem:[%s165 + $0xf8] sm:$0xff]
      %v203 = vld [vmem:[%s165 + $0x100] sm:$0xff]
      %v204 = vld [vmem:[%s165 + $0x108] sm:$0xff]
      %v205 = vld [vmem:[%s165 + $0x110] sm:$0xff]
      %v206 = vld [vmem:[%s165 + $0x118] sm:$0xff]
      %v207 = vld [vmem:[%s165 + $0x120] sm:$0xff]
      %v208 = vld [vmem:[%s165 + $0x128] sm:$0xff]
      %v209 = vld [vmem:[%s165 + $0x130] sm:$0xff]
      %v210 = vld [vmem:[%s165 + $0x138] sm:$0xff]
      %v211 = vld [vmem:[%s165 + $0x140] sm:$0xff]
      %v212 = vld [vmem:[%s165 + $0x148] sm:$0xff]
      %v213 = vld [vmem:[%s165 + $0x150] sm:$0xff]
      %v214 = vld [vmem:[%s165 + $0x158] sm:$0xff]
      %v215 = vld [vmem:[%s165 + $0x160] sm:$0xff]
      %v216 = vld [vmem:[%s165 + $0x168] sm:$0xff]
      %v217 = vld [vmem:[%s165 + $0x170] sm:$0xff]
      %v218 = vld [vmem:[%s165 + $0x178] sm:$0xff]
      %v219 = vld [vmem:[%s165 + $0x180] sm:$0xff]
      %v220 = vld [vmem:[%s165 + $0x188] sm:$0xff]
      %v221 = vld [vmem:[%s165 + $0x190] sm:$0xff]
      %v222 = vld [vmem:[%s165 + $0x198] sm:$0xff]
      %v223 = vld [vmem:[%s165 + $0x1a0] sm:$0xff]
      %v224 = vld [vmem:[%s165 + $0x1a8] sm:$0xff]
      %v225 = vld [vmem:[%s165 + $0x1b0] sm:$0xff]
      %v226 = vld [vmem:[%s165 + $0x1b8] sm:$0xff]
      %v227 = vld [vmem:[%s165 + $0x1c0] sm:$0xff]
      %v228 = vld [vmem:[%s165 + $0x1c8] sm:$0xff]
      %v229 = vld [vmem:[%s165 + $0x1d0] sm:$0xff]
      %v230 = vld [vmem:[%s165 + $0x1d8] sm:$0xff]
      %v231 = vld [vmem:[%s165 + $0x1e0] sm:$0xff]
      %v232 = vld [vmem:[%s165 + $0x1e8] sm:$0xff]
      %v233 = vld [vmem:[%s165 + $0x1f0] sm:$0xff]
      %v234 = vld [vmem:[%s165 + $0x1f8] sm:$0xff]
      %v235 = vld [vmem:[%s165 + $0x200] sm:$0xff]
      %v236 = vld [vmem:[%s165 + $0x208] sm:$0xff]
      %v237 = vld [vmem:[%s165 + $0x210] sm:$0xff]
      %v238 = vld [vmem:[%s165 + $0x218] sm:$0xff]
      %v239 = vld [vmem:[%s165 + $0x220] sm:$0xff]
      %v240 = vld [vmem:[%s165 + $0x228] sm:$0xff]
      %v241 = vld [vmem:[%s165 + $0x230] sm:$0xff]
      %v242 = vld [vmem:[%s165 + $0x238] sm:$0xff]
      %v243 = vld [vmem:[%s165 + $0x240] sm:$0xff]
      %v244 = vld [vmem:[%s165 + $0x248] sm:$0xff]
      %v245 = vld [vmem:[%s165 + $0x250] sm:$0xff]
      %v246 = vld [vmem:[%s165 + $0x258] sm:$0xff]
      %v247 = vld [vmem:[%s165 + $0x260] sm:$0xff]
      %v248 = vld [vmem:[%s165 + $0x268] sm:$0xff]
      %v249 = vld [vmem:[%s165 + $0x270] sm:$0xff]
      %v250 = vld [vmem:[%s165 + $0x278] sm:$0xff]
      %v251 = vld [vmem:[%s165 + $0x280] sm:$0xff]
      %v252 = vld [vmem:[%s165 + $0x288] sm:$0xff]
      %v253 = vld [vmem:[%s165 + $0x290] sm:$0xff]
      %v254 = vld [vmem:[%s165 + $0x298] sm:$0xff]
      %v255 = vld [vmem:[%s165 + $0x2a0] sm:$0xff]
      %v256 = vld [vmem:[%s165 + $0x2a8] sm:$0xff]
      %v257 = vld [vmem:[%s165 + $0x2b0] sm:$0xff]
      %v258 = vld [vmem:[%s165 + $0x2b8] sm:$0xff]
      %v259 = vld [vmem:[%s165 + $0x2c0] sm:$0xff]
      %v260 = vld [vmem:[%s165 + $0x2c8] sm:$0xff]
      %v261 = vld [vmem:[%s165 + $0x2d0] sm:$0xff]
      %v262 = vld [vmem:[%s165 + $0x2d8] sm:$0xff]
      %v263 = vld [vmem:[%s165 + $0x2e0] sm:$0xff]
      %v264 = vld [vmem:[%s165 + $0x2e8] sm:$0xff]
      %v265 = vld [vmem:[%s165 + $0x2f0] sm:$0xff]
      %v266 = vld [vmem:[%s165 + $0x2f8] sm:$0xff]
      %v267 = vld [vmem:[%s165 + $0x300] sm:$0xff]
      %v268 = vld [vmem:[%s165 + $0x308] sm:$0xff]
      %v269 = vld [vmem:[%s165 + $0x310] sm:$0xff]
      %v270 = vld [vmem:[%s165 + $0x318] sm:$0xff]
      %v271 = vld [vmem:[%s165 + $0x320] sm:$0xff]
      %v272 = vld [vmem:[%s165 + $0x328] sm:$0xff]
      %v273 = vld [vmem:[%s165 + $0x330] sm:$0xff]
      %v274 = vld [vmem:[%s165 + $0x338] sm:$0xff]
      %v275 = vld [vmem:[%s165 + $0x340] sm:$0xff]
      %v276 = vld [vmem:[%s165 + $0x348] sm:$0xff]
      %v277 = vld [vmem:[%s165 + $0x350] sm:$0xff]
      %v278 = vld [vmem:[%s165 + $0x358] sm:$0xff]
      %v279 = vld [vmem:[%s165 + $0x360] sm:$0xff]
      %v280 = vld [vmem:[%s165 + $0x368] sm:$0xff]
      %v281 = vld [vmem:[%s165 + $0x370] sm:$0xff]
      %v282 = vld [vmem:[%s165 + $0x378] sm:$0xff]
      %v283 = vld [vmem:[%s165 + $0x380] sm:$0xff]
      %v284 = vld [vmem:[%s165 + $0x388] sm:$0xff]
      %v285 = vld [vmem:[%s165 + $0x390] sm:$0xff]
      %v286 = vld [vmem:[%s165 + $0x398] sm:$0xff]
      %v287 = vld [vmem:[%s165 + $0x3a0] sm:$0x7]
      %v288 = vld [vmem:[%s165 + $0x3a8] sm:$0x7]
      %v289 = vld [vmem:[%s165 + $0x3b0] sm:$0x7]
      %v290 = vld [vmem:[%s165 + $0x3b8] sm:$0x7]
      %v291 = vld [vmem:[%s165 + $0x3c0] sm:$0x7]
      %v292 = vld [vmem:[%s165 + $0x3c8] sm:$0x7]
      %v293 = vld [vmem:[%s165 + $0x3d0] sm:$0x7]
      %v294 = vld [vmem:[%s165 + $0x3d8] sm:$0x7]
      %v295 = vld [vmem:[%s165 + $0x3e0] sm:$0x7]
      %v296 = vld [vmem:[%s165 + $0x3e8] sm:$0x7]
      %v297 = vld [vmem:[%s165 + $0x3f0] sm:$0x7]
      %v298 = vld [vmem:[%s165 + $0x3f8] sm:$0x7]
      %v299 = vld [vmem:[%s165 + $0x400] sm:$0x7]
      %v300 = vld [vmem:[%s165 + $0x408] sm:$0x7]
      %v301 = vld [vmem:[%s165 + $0x410] sm:$0x7]
      %v302 = vld [vmem:[%s165 + $0x418] sm:$0x7]
      %v303 = vld [vmem:[%s165 + $0x420] sm:$0x7]
      %v304 = vld [vmem:[%s165 + $0x428] sm:$0x7]
      %v305 = vld [vmem:[%s165 + $0x430] sm:$0x7]
      %v306 = vld [vmem:[%s165 + $0x438] sm:$0x7]
      %v307 = vld [vmem:[%s165 + $0x440] sm:$0x7]
      %v308 = vld [vmem:[%s165 + $0x448] sm:$0x7]
      %v309 = vld [vmem:[%s165 + $0x450] sm:$0x7]
      %v310 = vld [vmem:[%s165 + $0x458] sm:$0x7]
      %v311 = vld [vmem:[%s165 + $0x460] sm:$0x7]
      %v312 = vld [vmem:[%s165 + $0x468] sm:$0x7]
      %v313 = vld [vmem:[%s165 + $0x470] sm:$0x7]
      %v314 = vld [vmem:[%s165 + $0x478] sm:$0x7]
      %v315 = vld [vmem:[%s165 + $0x480] sm:$0x7]
      %v316 = vld [vmem:[%s165 + $0x488] sm:$0x7]
      %v317 = vld [vmem:[%s165 + $0x490] sm:$0x7]
      %v318 = vld [vmem:[%s165 + $0x498] sm:$0x7]
      %v319 = vld [vmem:[%s165 + $0x4a0] sm:$0x7]
      %v320 = vld [vmem:[%s165 + $0x4a8] sm:$0x7]
      %v321 = vld [vmem:[%s165 + $0x4b0] sm:$0x7]
      %v322 = vld [vmem:[%s165 + $0x4b8] sm:$0x7]
      %v323 = vld [vmem:[%s165 + $0x4c0] sm:$0x7]
      %v324 = vld [vmem:[%s165 + $0x4c8] sm:$0x7]
      %v325 = vld [vmem:[%s165 + $0x4d0] sm:$0x7]
      %v326 = vld [vmem:[%s165 + $0x4d8] sm:$0x7]
      %v327 = vld [vmem:[%s165 + $0x4e0] sm:$0x7]
      %v328 = vld [vmem:[%s165 + $0x4e8] sm:$0x7]
      %v329 = vld [vmem:[%s165 + $0x4f0] sm:$0x7]
      %v330 = vld [vmem:[%s165 + $0x4f8] sm:$0x7]
      %v331 = vld [vmem:[%s165 + $0x500] sm:$0x7]
      %v332 = vld [vmem:[%s165 + $0x508] sm:$0x7]
      %v333 = vld [vmem:[%s165 + $0x510] sm:$0x7]
      %v334 = vld [vmem:[%s165 + $0x518] sm:$0x7]
      %v335 = vld [vmem:[%s165 + $0x520] sm:$0x7]
      %v336 = vld [vmem:[%s165 + $0x528] sm:$0x7]
      %v337 = vld [vmem:[%s165 + $0x530] sm:$0x7]
      %v338 = vld [vmem:[%s165 + $0x538] sm:$0x7]
      %v339 = vld [vmem:[%s165 + $0x540] sm:$0x7]
      %v340 = vld [vmem:[%s165 + $0x548] sm:$0x7]
      %v341 = vld [vmem:[%s165 + $0x550] sm:$0x7]
      %v342 = vld [vmem:[%s165 + $0x558] sm:$0x7]
      %v343 = vld [vmem:[%s165 + $0x560] sm:$0x7]
      %v344 = vld [vmem:[%s165 + $0x568] sm:$0x7]
      %v345 = vld [vmem:[%s165 + $0x570] sm:$0x7]
      %v346 = vld [vmem:[%s165 + $0x578] sm:$0x7]
      %v347 = vld [vmem:[%s165 + $0x580] sm:$0x7]
      %v348 = vld [vmem:[%s165 + $0x588] sm:$0x7]
      %v349 = vld [vmem:[%s165 + $0x590] sm:$0x7]
      %v350 = vld [vmem:[%s165 + $0x598] sm:$0x7]
      %v351 = vld [vmem:[%s165 + $0x5a0] sm:$0x7]
      %v352 = vld [vmem:[%s165 + $0x5a8] sm:$0x7]
      %v353 = vld [vmem:[%s165 + $0x5b0] sm:$0x7]
      %v354 = vld [vmem:[%s165 + $0x5b8] sm:$0x7]
      %v355 = vld [vmem:[%s165 + $0x5c0] sm:$0x7]
      %v356 = vld [vmem:[%s165 + $0x5c8] sm:$0x7]
      %v357 = vld [vmem:[%s165 + $0x5d0] sm:$0x7]
      %v358 = vld [vmem:[%s165 + $0x5d8] sm:$0x7]
      %v359 = vld [vmem:[%s165 + $0x5e0] sm:$0x7]
      %v360 = vld [vmem:[%s165 + $0x5e8] sm:$0x7]
      %v361 = vld [vmem:[%s165 + $0x5f0] sm:$0x7]
      %v362 = vld [vmem:[%s165 + $0x5f8] sm:$0x7]
      %v363 = vld [vmem:[%s165 + $0x600] sm:$0x7]
      %v364 = vld [vmem:[%s165 + $0x608] sm:$0x7]
      %v365 = vld [vmem:[%s165 + $0x610] sm:$0x7]
      %v366 = vld [vmem:[%s165 + $0x618] sm:$0x7]
      %v367 = vld [vmem:[%s165 + $0x620] sm:$0x7]
      %v368 = vld [vmem:[%s165 + $0x628] sm:$0x7]
      %v369 = vld [vmem:[%s165 + $0x630] sm:$0x7]
      %v370 = vld [vmem:[%s165 + $0x638] sm:$0x7]
      %v371 = vld [vmem:[%s165 + $0x640] sm:$0x7]
      %v372 = vld [vmem:[%s165 + $0x648] sm:$0x7]
      %v373 = vld [vmem:[%s165 + $0x650] sm:$0x7]
      %v374 = vld [vmem:[%s165 + $0x658] sm:$0x7]
      %v375 = vld [vmem:[%s165 + $0x660] sm:$0x7]
      %v376 = vld [vmem:[%s165 + $0x668] sm:$0x7]
      %v377 = vld [vmem:[%s165 + $0x670] sm:$0x7]
      %v378 = vld [vmem:[%s165 + $0x678] sm:$0x7]
      %v379 = vld [vmem:[%s165 + $0x680] sm:$0x7]
      %v380 = vld [vmem:[%s165 + $0x688] sm:$0x7]
      %v381 = vld [vmem:[%s165 + $0x690] sm:$0x7]
      %v382 = vld [vmem:[%s165 + $0x698] sm:$0x7]
      %v383 = vld [vmem:[%s165 + $0x6a0] sm:$0x7]
      %v384 = vld [vmem:[%s165 + $0x6a8] sm:$0x7]
      %v385 = vld [vmem:[%s165 + $0x6b0] sm:$0x7]
      %v386 = vld [vmem:[%s165 + $0x6b8] sm:$0x7]
      %v387 = vld [vmem:[%s165 + $0x6c0] sm:$0x7]
      %v388 = vld [vmem:[%s165 + $0x6c8] sm:$0x7]
      %v389 = vld [vmem:[%s165 + $0x6d0] sm:$0x7]
      %v390 = vld [vmem:[%s165 + $0x6d8] sm:$0x7]
      %v391 = vld [vmem:[%s165 + $0x6e0] sm:$0x7]
      %v392 = vld [vmem:[%s165 + $0x6e8] sm:$0x7]
      %v393 = vld [vmem:[%s165 + $0x6f0] sm:$0x7]
      %v394 = vld [vmem:[%s165 + $0x6f8] sm:$0x7]
      %v395 = vld [vmem:[%s165 + $0x700] sm:$0x7]
      %v396 = vld [vmem:[%s165 + $0x708] sm:$0x7]
      %v397 = vld [vmem:[%s165 + $0x710] sm:$0x7]
      %v398 = vld [vmem:[%s165 + $0x718] sm:$0x7]
      %v399 = vld [vmem:[%s165 + $0x720] sm:$0x7]
      %v400 = vld [vmem:[%s165 + $0x728] sm:$0x7]
      %v401 = vld [vmem:[%s165 + $0x730] sm:$0x7]
      %v402 = vld [vmem:[%s165 + $0x738] sm:$0x7]
      %v403 = vld [vmem:[%s1] sm:$0xff]
      %v404 = vld [vmem:[%s1 + $0x8] sm:$0xff]
      %v405 = vld [vmem:[%s1 + $0x10] sm:$0xff]
      %v406 = vld [vmem:[%s1 + $0x18] sm:$0xff]
      %v407 = vld [vmem:[%s1 + $0x20] sm:$0xff]
      %v408 = vld [vmem:[%s1 + $0x28] sm:$0xff]
      %v409 = vld [vmem:[%s1 + $0x30] sm:$0xff]
      %v410 = vld [vmem:[%s1 + $0x38] sm:$0xff]
      %v411 = vld [vmem:[%s1 + $0x40] sm:$0xff]
      %v412 = vld [vmem:[%s1 + $0x48] sm:$0xff]
      %v413 = vld [vmem:[%s1 + $0x50] sm:$0xff]
      %v414 = vld [vmem:[%s1 + $0x58] sm:$0xff]
      %v415 = vld [vmem:[%s1 + $0x60] sm:$0xff]
      %v416 = vld [vmem:[%s1 + $0x68] sm:$0xff]
      %v417 = vld [vmem:[%s1 + $0x70] sm:$0xff]
      %v418 = vld [vmem:[%s1 + $0x78] sm:$0xff]
      %v419 = vld [vmem:[%s1 + $0x80] sm:$0xff]
      %v420 = vld [vmem:[%s1 + $0x88] sm:$0xff]
      %v421 = vld [vmem:[%s1 + $0x90] sm:$0xff]
      %v422 = vld [vmem:[%s1 + $0x98] sm:$0xff]
      %v423 = vld [vmem:[%s1 + $0xa0] sm:$0xff]
      %v424 = vld [vmem:[%s1 + $0xa8] sm:$0xff]
      %v425 = vld [vmem:[%s1 + $0xb0] sm:$0xff]
      %v426 = vld [vmem:[%s1 + $0xb8] sm:$0xff]
      %v427 = vld [vmem:[%s1 + $0xc0] sm:$0xff]
      %v428 = vld [vmem:[%s1 + $0xc8] sm:$0xff]
      %v429 = vld [vmem:[%s1 + $0xd0] sm:$0xff]
      %v430 = vld [vmem:[%s1 + $0xd8] sm:$0xff]
      %v431 = vld [vmem:[%s1 + $0xe0] sm:$0xff]
      %v432 = vld [vmem:[%s1 + $0xe8] sm:$0xff]
      %v433 = vld [vmem:[%s1 + $0xf0] sm:$0xff]
      %v434 = vld [vmem:[%s1 + $0xf8] sm:$0xff]
      %v435 = vld [vmem:[%s1 + $0x100] sm:$0xff]
      %v436 = vld [vmem:[%s1 + $0x108] sm:$0xff]
      %v437 = vld [vmem:[%s1 + $0x110] sm:$0xff]
      %v438 = vld [vmem:[%s1 + $0x118] sm:$0xff]
      %v439 = vld [vmem:[%s1 + $0x120] sm:$0xff]
      %v440 = vld [vmem:[%s1 + $0x128] sm:$0xff]
      %v441 = vld [vmem:[%s1 + $0x130] sm:$0xff]
      %v442 = vld [vmem:[%s1 + $0x138] sm:$0xff]
      %v443 = vld [vmem:[%s1 + $0x140] sm:$0xff]
      %v444 = vld [vmem:[%s1 + $0x148] sm:$0xff]
      %v445 = vld [vmem:[%s1 + $0x150] sm:$0xff]
      %v446 = vld [vmem:[%s1 + $0x158] sm:$0xff]
      %v447 = vld [vmem:[%s1 + $0x160] sm:$0xff]
      %v448 = vld [vmem:[%s1 + $0x168] sm:$0xff]
      %v449 = vld [vmem:[%s1 + $0x170] sm:$0xff]
      %v450 = vld [vmem:[%s1 + $0x178] sm:$0xff]
      %v451 = vld [vmem:[%s1 + $0x180] sm:$0xff]
      %v452 = vld [vmem:[%s1 + $0x188] sm:$0xff]
      %v453 = vld [vmem:[%s1 + $0x190] sm:$0xff]
      %v454 = vld [vmem:[%s1 + $0x198] sm:$0xff]
      %v455 = vld [vmem:[%s1 + $0x1a0] sm:$0xff]
      %v456 = vld [vmem:[%s1 + $0x1a8] sm:$0xff]
      %v457 = vld [vmem:[%s1 + $0x1b0] sm:$0xff]
      %v458 = vld [vmem:[%s1 + $0x1b8] sm:$0xff]
      %v459 = vld [vmem:[%s1 + $0x1c0] sm:$0xff]
      %v460 = vld [vmem:[%s1 + $0x1c8] sm:$0xff]
      %v461 = vld [vmem:[%s1 + $0x1d0] sm:$0xff]
      %v462 = vld [vmem:[%s1 + $0x1d8] sm:$0xff]
      %v463 = vld [vmem:[%s1 + $0x1e0] sm:$0xff]
      %v464 = vld [vmem:[%s1 + $0x1e8] sm:$0xff]
      %v465 = vld [vmem:[%s1 + $0x1f0] sm:$0xff]
      %v466 = vld [vmem:[%s1 + $0x1f8] sm:$0xff]
      %v467 = vld [vmem:[%s1 + $0x200] sm:$0xff]
      %v468 = vld [vmem:[%s1 + $0x208] sm:$0xff]
      %v469 = vld [vmem:[%s1 + $0x210] sm:$0xff]
      %v470 = vld [vmem:[%s1 + $0x218] sm:$0xff]
      %v471 = vld [vmem:[%s1 + $0x220] sm:$0xff]
      %v472 = vld [vmem:[%s1 + $0x228] sm:$0xff]
      %v473 = vld [vmem:[%s1 + $0x230] sm:$0xff]
      %v474 = vld [vmem:[%s1 + $0x238] sm:$0xff]
      %v475 = vld [vmem:[%s1 + $0x240] sm:$0xff]
      %v476 = vld [vmem:[%s1 + $0x248] sm:$0xff]
      %v477 = vld [vmem:[%s1 + $0x250] sm:$0xff]
      %v478 = vld [vmem:[%s1 + $0x258] sm:$0xff]
      %v479 = vld [vmem:[%s1 + $0x260] sm:$0xff]
      %v480 = vld [vmem:[%s1 + $0x268] sm:$0xff]
      %v481 = vld [vmem:[%s1 + $0x270] sm:$0xff]
      %v482 = vld [vmem:[%s1 + $0x278] sm:$0xff]
      %v483 = vld [vmem:[%s1 + $0x280] sm:$0xff]
      %v484 = vld [vmem:[%s1 + $0x288] sm:$0xff]
      %v485 = vld [vmem:[%s1 + $0x290] sm:$0xff]
      %v486 = vld [vmem:[%s1 + $0x298] sm:$0xff]
      %v487 = vld [vmem:[%s1 + $0x2a0] sm:$0xff]
      %v488 = vld [vmem:[%s1 + $0x2a8] sm:$0xff]
      %v489 = vld [vmem:[%s1 + $0x2b0] sm:$0xff]
      %v490 = vld [vmem:[%s1 + $0x2b8] sm:$0xff]
      %v491 = vld [vmem:[%s1 + $0x2c0] sm:$0xff]
      %v492 = vld [vmem:[%s1 + $0x2c8] sm:$0xff]
      %v493 = vld [vmem:[%s1 + $0x2d0] sm:$0xff]
      %v494 = vld [vmem:[%s1 + $0x2d8] sm:$0xff]
      %v495 = vld [vmem:[%s1 + $0x2e0] sm:$0xff]
      %v496 = vld [vmem:[%s1 + $0x2e8] sm:$0xff]
      %v497 = vld [vmem:[%s1 + $0x2f0] sm:$0xff]
      %v498 = vld [vmem:[%s1 + $0x2f8] sm:$0xff]
      %v499 = vld [vmem:[%s1 + $0x300] sm:$0xff]
      %v500 = vld [vmem:[%s1 + $0x308] sm:$0xff]
      %v501 = vld [vmem:[%s1 + $0x310] sm:$0xff]
      %v502 = vld [vmem:[%s1 + $0x318] sm:$0xff]
      %v503 = vld [vmem:[%s1 + $0x320] sm:$0xff]
      %v504 = vld [vmem:[%s1 + $0x328] sm:$0xff]
      %v505 = vld [vmem:[%s1 + $0x330] sm:$0xff]
      %v506 = vld [vmem:[%s1 + $0x338] sm:$0xff]
      %v507 = vld [vmem:[%s1 + $0x340] sm:$0xff]
      %v508 = vld [vmem:[%s1 + $0x348] sm:$0xff]
      %v509 = vld [vmem:[%s1 + $0x350] sm:$0xff]
      %v510 = vld [vmem:[%s1 + $0x358] sm:$0xff]
      %v511 = vld [vmem:[%s1 + $0x360] sm:$0xff]
      %v512 = vld [vmem:[%s1 + $0x368] sm:$0xff]
      %v513 = vld [vmem:[%s1 + $0x370] sm:$0xff]
      %v514 = vld [vmem:[%s1 + $0x378] sm:$0xff]
      %v515 = vld [vmem:[%s1 + $0x380] sm:$0xff]
      %v516 = vld [vmem:[%s1 + $0x388] sm:$0xff]
      %v517 = vld [vmem:[%s1 + $0x390] sm:$0xff]
      %v518 = vld [vmem:[%s1 + $0x398] sm:$0xff]
      %v519 = vld [vmem:[%s1 + $0x3a0] sm:$0xff]
      %v520 = vld [vmem:[%s1 + $0x3a8] sm:$0xff]
      %v521 = vld [vmem:[%s1 + $0x3b0] sm:$0xff]
      %v522 = vld [vmem:[%s1 + $0x3b8] sm:$0xff]
      %v523 = vld [vmem:[%s1 + $0x3c0] sm:$0xff]
      %v524 = vld [vmem:[%s1 + $0x3c8] sm:$0xff]
      %v525 = vld [vmem:[%s1 + $0x3d0] sm:$0xff]
      %v526 = vld [vmem:[%s1 + $0x3d8] sm:$0xff]
      %v527 = vld [vmem:[%s1 + $0x3e0] sm:$0xff]
      %v528 = vld [vmem:[%s1 + $0x3e8] sm:$0xff]
      %v529 = vld [vmem:[%s1 + $0x3f0] sm:$0xff]
      %v530 = vld [vmem:[%s1 + $0x3f8] sm:$0xff]
      %v531 = vld [vmem:[%s1 + $0x400] sm:$0xff]
      %v532 = vld [vmem:[%s1 + $0x408] sm:$0xff]
      %v533 = vld [vmem:[%s1 + $0x410] sm:$0xff]
      %v534 = vld [vmem:[%s1 + $0x418] sm:$0xff]
      %v535 = vld [vmem:[%s1 + $0x420] sm:$0xff]
      %v536 = vld [vmem:[%s1 + $0x428] sm:$0xff]
      %v537 = vld [vmem:[%s1 + $0x430] sm:$0xff]
      %v538 = vld [vmem:[%s1 + $0x438] sm:$0xff]
      %v539 = vld [vmem:[%s1 + $0x440] sm:$0xff]
      %v540 = vld [vmem:[%s1 + $0x448] sm:$0xff]
      %v541 = vld [vmem:[%s1 + $0x450] sm:$0xff]
      %v542 = vld [vmem:[%s1 + $0x458] sm:$0xff]
      %v543 = vld [vmem:[%s1 + $0x460] sm:$0xff]
      %v544 = vld [vmem:[%s1 + $0x468] sm:$0xff]
      %v545 = vld [vmem:[%s1 + $0x470] sm:$0xff]
      %v546 = vld [vmem:[%s1 + $0x478] sm:$0xff]
      %v547 = vld [vmem:[%s1 + $0x480] sm:$0xff]
      %v548 = vld [vmem:[%s1 + $0x488] sm:$0xff]
      %v549 = vld [vmem:[%s1 + $0x490] sm:$0xff]
      %v550 = vld [vmem:[%s1 + $0x498] sm:$0xff]
      %v551 = vld [vmem:[%s1 + $0x4a0] sm:$0xff]
      %v552 = vld [vmem:[%s1 + $0x4a8] sm:$0xff]
      %v553 = vld [vmem:[%s1 + $0x4b0] sm:$0xff]
      %v554 = vld [vmem:[%s1 + $0x4b8] sm:$0xff]
      %v555 = vld [vmem:[%s1 + $0x4c0] sm:$0xff]
      %v556 = vld [vmem:[%s1 + $0x4c8] sm:$0xff]
      %v557 = vld [vmem:[%s1 + $0x4d0] sm:$0xff]
      %v558 = vld [vmem:[%s1 + $0x4d8] sm:$0xff]
      %v559 = vld [vmem:[%s1 + $0x4e0] sm:$0xff]
      %v560 = vld [vmem:[%s1 + $0x4e8] sm:$0xff]
      %v561 = vld [vmem:[%s1 + $0x4f0] sm:$0xff]
      %v562 = vld [vmem:[%s1 + $0x4f8] sm:$0xff]
      %v563 = vld [vmem:[%s1 + $0x500] sm:$0xff]
      %v564 = vld [vmem:[%s1 + $0x508] sm:$0xff]
      %v565 = vld [vmem:[%s1 + $0x510] sm:$0xff]
      %v566 = vld [vmem:[%s1 + $0x518] sm:$0xff]
      %v567 = vld [vmem:[%s1 + $0x520] sm:$0xff]
      %v568 = vld [vmem:[%s1 + $0x528] sm:$0xff]
      %v569 = vld [vmem:[%s1 + $0x530] sm:$0xff]
      %v570 = vld [vmem:[%s1 + $0x538] sm:$0xff]
      %v571 = vld [vmem:[%s1 + $0x540] sm:$0xff]
      %v572 = vld [vmem:[%s1 + $0x548] sm:$0xff]
      %v573 = vld [vmem:[%s1 + $0x550] sm:$0xff]
      %v574 = vld [vmem:[%s1 + $0x558] sm:$0xff]
      %v575 = vld [vmem:[%s1 + $0x560] sm:$0xff]
      %v576 = vld [vmem:[%s1 + $0x568] sm:$0xff]
      %v577 = vld [vmem:[%s1 + $0x570] sm:$0xff]
      %v578 = vld [vmem:[%s1 + $0x578] sm:$0xff]
      %v579 = vld [vmem:[%s1 + $0x580] sm:$0xff]
      %v580 = vld [vmem:[%s1 + $0x588] sm:$0xff]
      %v581 = vld [vmem:[%s1 + $0x590] sm:$0xff]
      %v582 = vld [vmem:[%s1 + $0x598] sm:$0xff]
      %v583 = vld [vmem:[%s1 + $0x5a0] sm:$0xff]
      %v584 = vld [vmem:[%s1 + $0x5a8] sm:$0xff]
      %v585 = vld [vmem:[%s1 + $0x5b0] sm:$0xff]
      %v586 = vld [vmem:[%s1 + $0x5b8] sm:$0xff]
      %v587 = vld [vmem:[%s1 + $0x5c0] sm:$0xff]
      %v588 = vld [vmem:[%s1 + $0x5c8] sm:$0xff]
      %v589 = vld [vmem:[%s1 + $0x5d0] sm:$0xff]
      %v590 = vld [vmem:[%s1 + $0x5d8] sm:$0xff]
      %v591 = vld [vmem:[%s1 + $0x5e0] sm:$0xff]
      %v592 = vld [vmem:[%s1 + $0x5e8] sm:$0xff]
      %v593 = vld [vmem:[%s1 + $0x5f0] sm:$0xff]
      %v594 = vld [vmem:[%s1 + $0x5f8] sm:$0xff]
      %v595 = vld [vmem:[%s1 + $0x600] sm:$0xff]
      %v596 = vld [vmem:[%s1 + $0x608] sm:$0xff]
      %v597 = vld [vmem:[%s1 + $0x610] sm:$0xff]
      %v598 = vld [vmem:[%s1 + $0x618] sm:$0xff]
      %v599 = vld [vmem:[%s1 + $0x620] sm:$0xff]
      %v600 = vld [vmem:[%s1 + $0x628] sm:$0xff]
      %v601 = vld [vmem:[%s1 + $0x630] sm:$0xff]
      %v602 = vld [vmem:[%s1 + $0x638] sm:$0xff]
      %v603 = vld [vmem:[%s1 + $0x640] sm:$0xff]
      %v604 = vld [vmem:[%s1 + $0x648] sm:$0xff]
      %v605 = vld [vmem:[%s1 + $0x650] sm:$0xff]
      %v606 = vld [vmem:[%s1 + $0x658] sm:$0xff]
      %v607 = vld [vmem:[%s1 + $0x660] sm:$0xff]
      %v608 = vld [vmem:[%s1 + $0x668] sm:$0xff]
      %v609 = vld [vmem:[%s1 + $0x670] sm:$0xff]
      %v610 = vld [vmem:[%s1 + $0x678] sm:$0xff]
      %v611 = vld [vmem:[%s1 + $0x680] sm:$0xff]
      %v612 = vld [vmem:[%s1 + $0x688] sm:$0xff]
      %v613 = vld [vmem:[%s1 + $0x690] sm:$0xff]
      %v614 = vld [vmem:[%s1 + $0x698] sm:$0xff]
      %v615 = vld [vmem:[%s1 + $0x6a0] sm:$0xff]
      %v616 = vld [vmem:[%s1 + $0x6a8] sm:$0xff]
      %v617 = vld [vmem:[%s1 + $0x6b0] sm:$0xff]
      %v618 = vld [vmem:[%s1 + $0x6b8] sm:$0xff]
      %v619 = vld [vmem:[%s1 + $0x6c0] sm:$0xff]
      %v620 = vld [vmem:[%s1 + $0x6c8] sm:$0xff]
      %v621 = vld [vmem:[%s1 + $0x6d0] sm:$0xff]
      %v622 = vld [vmem:[%s1 + $0x6d8] sm:$0xff]
      %v623 = vld [vmem:[%s1 + $0x6e0] sm:$0xff]
      %v624 = vld [vmem:[%s1 + $0x6e8] sm:$0xff]
      %v625 = vld [vmem:[%s1 + $0x6f0] sm:$0xff]
      %v626 = vld [vmem:[%s1 + $0x6f8] sm:$0xff]
      %v627 = vld [vmem:[%s1 + $0x700] sm:$0xff]
      %v628 = vld [vmem:[%s1 + $0x708] sm:$0xff]
      %v629 = vld [vmem:[%s1 + $0x710] sm:$0xff]
      %v630 = vld [vmem:[%s1 + $0x718] sm:$0xff]
      %v631 = vld [vmem:[%s1 + $0x720] sm:$0xff]
      %v632 = vld [vmem:[%s1 + $0x728] sm:$0xff]
      %v633 = vld [vmem:[%s1 + $0x730] sm:$0xff]
      %v634 = vld [vmem:[%s1 + $0x738] sm:$0xff]
      %v635 = vld [vmem:[%s1 + $0x740] sm:$0xff]
      %v636 = vld [vmem:[%s1 + $0x748] sm:$0xff]
      %v637 = vld [vmem:[%s1 + $0x750] sm:$0xff]
      %v638 = vld [vmem:[%s1 + $0x758] sm:$0xff]
      %v639 = vld [vmem:[%s1 + $0x760] sm:$0xff]
      %v640 = vld [vmem:[%s1 + $0x768] sm:$0xff]
      %v641 = vld [vmem:[%s1 + $0x770] sm:$0xff]
      %v642 = vld [vmem:[%s1 + $0x778] sm:$0xff]
      %v643 = vld [vmem:[%s1 + $0x780] sm:$0xff]
      %v644 = vld [vmem:[%s1 + $0x788] sm:$0xff]
      %v645 = vld [vmem:[%s1 + $0x790] sm:$0xff]
      %v646 = vld [vmem:[%s1 + $0x798] sm:$0xff]
      %v647 = vld [vmem:[%s1 + $0x7a0] sm:$0xff]
      %v648 = vld [vmem:[%s1 + $0x7a8] sm:$0xff]
      %v649 = vld [vmem:[%s1 + $0x7b0] sm:$0xff]
      %v650 = vld [vmem:[%s1 + $0x7b8] sm:$0xff]
      %v651 = vld [vmem:[%s1 + $0x7c0] sm:$0xff]
      %v652 = vld [vmem:[%s1 + $0x7c8] sm:$0xff]
      %v653 = vld [vmem:[%s1 + $0x7d0] sm:$0xff]
      %v654 = vld [vmem:[%s1 + $0x7d8] sm:$0xff]
      %v655 = vld [vmem:[%s1 + $0x7e0] sm:$0xff]
      %v656 = vld [vmem:[%s1 + $0x7e8] sm:$0xff]
      %v657 = vld [vmem:[%s1 + $0x7f0] sm:$0xff]
      %v658 = vld [vmem:[%s1 + $0x7f8] sm:$0xff]
      %v659 = vld [vmem:[%s1 + $0x800] sm:$0xff]
      %v660 = vld [vmem:[%s1 + $0x808] sm:$0xff]
      %v661 = vld [vmem:[%s1 + $0x810] sm:$0xff]
      %v662 = vld [vmem:[%s1 + $0x818] sm:$0xff]
      %v663 = vld [vmem:[%s1 + $0x820] sm:$0xff]
      %v664 = vld [vmem:[%s1 + $0x828] sm:$0xff]
      %v665 = vld [vmem:[%s1 + $0x830] sm:$0xff]
      %v666 = vld [vmem:[%s1 + $0x838] sm:$0xff]
      %v667 = vld [vmem:[%s1 + $0x840] sm:$0xff]
      %v668 = vld [vmem:[%s1 + $0x848] sm:$0xff]
      %v669 = vld [vmem:[%s1 + $0x850] sm:$0xff]
      %v670 = vld [vmem:[%s1 + $0x858] sm:$0xff]
      %v671 = vld [vmem:[%s1 + $0x860] sm:$0xff]
      %v672 = vld [vmem:[%s1 + $0x868] sm:$0xff]
      %v673 = vld [vmem:[%s1 + $0x870] sm:$0xff]
      %v674 = vld [vmem:[%s1 + $0x878] sm:$0xff]
      %v675 = vld [vmem:[%s1 + $0x880] sm:$0xff]
      %v676 = vld [vmem:[%s1 + $0x888] sm:$0xff]
      %v677 = vld [vmem:[%s1 + $0x890] sm:$0xff]
      %v678 = vld [vmem:[%s1 + $0x898] sm:$0xff]
      %v679 = vld [vmem:[%s1 + $0x8a0] sm:$0xff]
      %v680 = vld [vmem:[%s1 + $0x8a8] sm:$0xff]
      %v681 = vld [vmem:[%s1 + $0x8b0] sm:$0xff]
      %v682 = vld [vmem:[%s1 + $0x8b8] sm:$0xff]
      %v683 = vld [vmem:[%s1 + $0x8c0] sm:$0xff]
      %v684 = vld [vmem:[%s1 + $0x8c8] sm:$0xff]
      %v685 = vld [vmem:[%s1 + $0x8d0] sm:$0xff]
      %v686 = vld [vmem:[%s1 + $0x8d8] sm:$0xff]
      %v687 = vld [vmem:[%s1 + $0x8e0] sm:$0xff]
      %v688 = vld [vmem:[%s1 + $0x8e8] sm:$0xff]
      %v689 = vld [vmem:[%s1 + $0x8f0] sm:$0xff]
      %v690 = vld [vmem:[%s1 + $0x8f8] sm:$0xff]
      %v691 = vld [vmem:[%s1 + $0x900] sm:$0xff]
      %v692 = vld [vmem:[%s1 + $0x908] sm:$0xff]
      %v693 = vld [vmem:[%s1 + $0x910] sm:$0xff]
      %v694 = vld [vmem:[%s1 + $0x918] sm:$0xff]
      %v695 = vld [vmem:[%s1 + $0x920] sm:$0xff]
      %v696 = vld [vmem:[%s1 + $0x928] sm:$0xff]
      %v697 = vld [vmem:[%s1 + $0x930] sm:$0xff]
      %v698 = vld [vmem:[%s1 + $0x938] sm:$0xff]
      %v699 = vld [vmem:[%s1 + $0x940] sm:$0xff]
      %v700 = vld [vmem:[%s1 + $0x948] sm:$0xff]
      %v701 = vld [vmem:[%s1 + $0x950] sm:$0xff]
      %v702 = vld [vmem:[%s1 + $0x958] sm:$0xff]
      %v703 = vld [vmem:[%s1 + $0x960] sm:$0xff]
      %v704 = vld [vmem:[%s1 + $0x968] sm:$0xff]
      %v705 = vld [vmem:[%s1 + $0x970] sm:$0xff]
      %v706 = vld [vmem:[%s1 + $0x978] sm:$0xff]
      %v707 = vld [vmem:[%s1 + $0x980] sm:$0xff]
      %v708 = vld [vmem:[%s1 + $0x988] sm:$0xff]
      %v709 = vld [vmem:[%s1 + $0x990] sm:$0xff]
      %v710 = vld [vmem:[%s1 + $0x998] sm:$0xff]
      %v711 = vld [vmem:[%s1 + $0x9a0] sm:$0xff]
      %v712 = vld [vmem:[%s1 + $0x9a8] sm:$0xff]
      %v713 = vld [vmem:[%s1 + $0x9b0] sm:$0xff]
      %v714 = vld [vmem:[%s1 + $0x9b8] sm:$0xff]
      %v715 = vld [vmem:[%s1 + $0x9c0] sm:$0xff]
      %v716 = vld [vmem:[%s1 + $0x9c8] sm:$0xff]
      %v717 = vld [vmem:[%s1 + $0x9d0] sm:$0xff]
      %v718 = vld [vmem:[%s1 + $0x9d8] sm:$0xff]
      %v719 = vld [vmem:[%s1 + $0x9e0] sm:$0xff]
      %v720 = vld [vmem:[%s1 + $0x9e8] sm:$0xff]
      %v721 = vld [vmem:[%s1 + $0x9f0] sm:$0xff]
      %v722 = vld [vmem:[%s1 + $0x9f8] sm:$0xff]
      %v723 = vld [vmem:[%s1 + $0xa00] sm:$0xff]
      %v724 = vld [vmem:[%s1 + $0xa08] sm:$0xff]
      %v725 = vld [vmem:[%s1 + $0xa10] sm:$0xff]
      %v726 = vld [vmem:[%s1 + $0xa18] sm:$0xff]
      %v727 = vld [vmem:[%s1 + $0xa20] sm:$0xff]
      %v728 = vld [vmem:[%s1 + $0xa28] sm:$0xff]
      %v729 = vld [vmem:[%s1 + $0xa30] sm:$0xff]
      %v730 = vld [vmem:[%s1 + $0xa38] sm:$0xff]
      %v731 = vld [vmem:[%s1 + $0xa40] sm:$0xff]
      %v732 = vld [vmem:[%s1 + $0xa48] sm:$0xff]
      %v733 = vld [vmem:[%s1 + $0xa50] sm:$0xff]
      %v734 = vld [vmem:[%s1 + $0xa58] sm:$0xff]
      %v735 = vld [vmem:[%s1 + $0xa60] sm:$0xff]
      %v736 = vld [vmem:[%s1 + $0xa68] sm:$0xff]
      %v737 = vld [vmem:[%s1 + $0xa70] sm:$0xff]
      %v738 = vld [vmem:[%s1 + $0xa78] sm:$0xff]
      %v739 = vld [vmem:[%s1 + $0xa80] sm:$0xff]
      %v740 = vld [vmem:[%s1 + $0xa88] sm:$0xff]
      %v741 = vld [vmem:[%s1 + $0xa90] sm:$0xff]
      %v742 = vld [vmem:[%s1 + $0xa98] sm:$0xff]
      %v743 = vld [vmem:[%s1 + $0xaa0] sm:$0xff]
      %v744 = vld [vmem:[%s1 + $0xaa8] sm:$0xff]
      %v745 = vld [vmem:[%s1 + $0xab0] sm:$0xff]
      %v746 = vld [vmem:[%s1 + $0xab8] sm:$0xff]
      %v747 = vld [vmem:[%s1 + $0xac0] sm:$0xff]
      %v748 = vld [vmem:[%s1 + $0xac8] sm:$0xff]
      %v749 = vld [vmem:[%s1 + $0xad0] sm:$0xff]
      %v750 = vld [vmem:[%s1 + $0xad8] sm:$0xff]
      %v751 = vld [vmem:[%s1 + $0xae0] sm:$0xff]
      %v752 = vld [vmem:[%s1 + $0xae8] sm:$0xff]
      %v753 = vld [vmem:[%s1 + $0xaf0] sm:$0xff]
      %v754 = vld [vmem:[%s1 + $0xaf8] sm:$0xff]
      %v755 = vld [vmem:[%s1 + $0xb00] sm:$0xff]
      %v756 = vld [vmem:[%s1 + $0xb08] sm:$0xff]
      %v757 = vld [vmem:[%s1 + $0xb10] sm:$0xff]
      %v758 = vld [vmem:[%s1 + $0xb18] sm:$0xff]
      %v759 = vld [vmem:[%s1 + $0xb20] sm:$0xff]
      %v760 = vld [vmem:[%s1 + $0xb28] sm:$0xff]
      %v761 = vld [vmem:[%s1 + $0xb30] sm:$0xff]
      %v762 = vld [vmem:[%s1 + $0xb38] sm:$0xff]
      %v763 = vld [vmem:[%s1 + $0xb40] sm:$0xff]
      %v764 = vld [vmem:[%s1 + $0xb48] sm:$0xff]
      %v765 = vld [vmem:[%s1 + $0xb50] sm:$0xff]
      %v766 = vld [vmem:[%s1 + $0xb58] sm:$0xff]
      %v767 = vld [vmem:[%s1 + $0xb60] sm:$0xff]
      %v768 = vld [vmem:[%s1 + $0xb68] sm:$0xff]
      %v769 = vld [vmem:[%s1 + $0xb70] sm:$0xff]
      %v770 = vld [vmem:[%s1 + $0xb78] sm:$0xff]
      %v771 = vld [vmem:[%s1 + $0xb80] sm:$0xff]
      %v772 = vld [vmem:[%s1 + $0xb88] sm:$0xff]
      %v773 = vld [vmem:[%s1 + $0xb90] sm:$0xff]
      %v774 = vld [vmem:[%s1 + $0xb98] sm:$0xff]
      %v775 = vld [vmem:[%s1 + $0xba0] sm:$0xff]
      %v776 = vld [vmem:[%s1 + $0xba8] sm:$0xff]
      %v777 = vld [vmem:[%s1 + $0xbb0] sm:$0xff]
      %v778 = vld [vmem:[%s1 + $0xbb8] sm:$0xff]
      %v779 = vld [vmem:[%s1 + $0xbc0] sm:$0xff]
      %v780 = vld [vmem:[%s1 + $0xbc8] sm:$0xff]
      %v781 = vld [vmem:[%s1 + $0xbd0] sm:$0xff]
      %v782 = vld [vmem:[%s1 + $0xbd8] sm:$0xff]
      %v783 = vld [vmem:[%s1 + $0xbe0] sm:$0xff]
      %v784 = vld [vmem:[%s1 + $0xbe8] sm:$0xff]
      %v785 = vld [vmem:[%s1 + $0xbf0] sm:$0xff]
      %v786 = vld [vmem:[%s1 + $0xbf8] sm:$0xff]
      %v787 = vld [vmem:[%s1 + $0xc00] sm:$0xff]
      %v788 = vld [vmem:[%s1 + $0xc08] sm:$0xff]
      %v789 = vld [vmem:[%s1 + $0xc10] sm:$0xff]
      %v790 = vld [vmem:[%s1 + $0xc18] sm:$0xff]
      %v791 = vld [vmem:[%s1 + $0xc20] sm:$0xff]
      %v792 = vld [vmem:[%s1 + $0xc28] sm:$0xff]
      %v793 = vld [vmem:[%s1 + $0xc30] sm:$0xff]
      %v794 = vld [vmem:[%s1 + $0xc38] sm:$0xff]
      %v795 = vld [vmem:[%s1 + $0xc40] sm:$0xff]
      %v796 = vld [vmem:[%s1 + $0xc48] sm:$0xff]
      %v797 = vld [vmem:[%s1 + $0xc50] sm:$0xff]
      %v798 = vld [vmem:[%s1 + $0xc58] sm:$0xff]
      %v799 = vld [vmem:[%s1 + $0xc60] sm:$0xff]
      %v800 = vld [vmem:[%s1 + $0xc68] sm:$0xff]
      %v801 = vld [vmem:[%s1 + $0xc70] sm:$0xff]
      %v802 = vld [vmem:[%s1 + $0xc78] sm:$0xff]
      %v803 = vld [vmem:[%s1 + $0xc80] sm:$0xff]
      %v804 = vld [vmem:[%s1 + $0xc88] sm:$0xff]
      %v805 = vld [vmem:[%s1 + $0xc90] sm:$0xff]
      %v806 = vld [vmem:[%s1 + $0xc98] sm:$0xff]
      %v807 = vld [vmem:[%s1 + $0xca0] sm:$0xff]
      %v808 = vld [vmem:[%s1 + $0xca8] sm:$0xff]
      %v809 = vld [vmem:[%s1 + $0xcb0] sm:$0xff]
      %v810 = vld [vmem:[%s1 + $0xcb8] sm:$0xff]
      %v811 = vld [vmem:[%s1 + $0xcc0] sm:$0xff]
      %v812 = vld [vmem:[%s1 + $0xcc8] sm:$0xff]
      %v813 = vld [vmem:[%s1 + $0xcd0] sm:$0xff]
      %v814 = vld [vmem:[%s1 + $0xcd8] sm:$0xff]
      %v815 = vld [vmem:[%s1 + $0xce0] sm:$0xff]
      %v816 = vld [vmem:[%s1 + $0xce8] sm:$0xff]
      %v817 = vld [vmem:[%s1 + $0xcf0] sm:$0xff]
      %v818 = vld [vmem:[%s1 + $0xcf8] sm:$0xff]
      %v819 = vld [vmem:[%s1 + $0xd00] sm:$0xff]
      %v820 = vld [vmem:[%s1 + $0xd08] sm:$0xff]
      %v821 = vld [vmem:[%s1 + $0xd10] sm:$0xff]
      %v822 = vld [vmem:[%s1 + $0xd18] sm:$0xff]
      %v823 = vld [vmem:[%s1 + $0xd20] sm:$0xff]
      %v824 = vld [vmem:[%s1 + $0xd28] sm:$0xff]
      %v825 = vld [vmem:[%s1 + $0xd30] sm:$0xff]
      %v826 = vld [vmem:[%s1 + $0xd38] sm:$0xff]
      %v827 = vld [vmem:[%s1 + $0xd40] sm:$0xff]
      %v828 = vld [vmem:[%s1 + $0xd48] sm:$0xff]
      %v829 = vld [vmem:[%s1 + $0xd50] sm:$0xff]
      %v830 = vld [vmem:[%s1 + $0xd58] sm:$0xff]
      %v831 = vld [vmem:[%s1 + $0xd60] sm:$0xff]
      %v832 = vld [vmem:[%s1 + $0xd68] sm:$0xff]
      %v833 = vld [vmem:[%s1 + $0xd70] sm:$0xff]
      %v834 = vld [vmem:[%s1 + $0xd78] sm:$0xff]
      %v835 = vld [vmem:[%s1 + $0xd80] sm:$0xff]
      %v836 = vld [vmem:[%s1 + $0xd88] sm:$0xff]
      %v837 = vld [vmem:[%s1 + $0xd90] sm:$0xff]
      %v838 = vld [vmem:[%s1 + $0xd98] sm:$0xff]
      %v839 = vld [vmem:[%s1 + $0xda0] sm:$0xff]
      %v840 = vld [vmem:[%s1 + $0xda8] sm:$0xff]
      %v841 = vld [vmem:[%s1 + $0xdb0] sm:$0xff]
      %v842 = vld [vmem:[%s1 + $0xdb8] sm:$0xff]
      %v843 = vld [vmem:[%s1 + $0xdc0] sm:$0xff]
      %v844 = vld [vmem:[%s1 + $0xdc8] sm:$0xff]
      %v845 = vld [vmem:[%s1 + $0xdd0] sm:$0xff]
      %v846 = vld [vmem:[%s1 + $0xdd8] sm:$0xff]
      %v847 = vld [vmem:[%s1 + $0xde0] sm:$0xff]
      %v848 = vld [vmem:[%s1 + $0xde8] sm:$0xff]
      %v849 = vld [vmem:[%s1 + $0xdf0] sm:$0xff]
      %v850 = vld [vmem:[%s1 + $0xdf8] sm:$0xff]
      %v851 = vld [vmem:[%s1 + $0xe00] sm:$0xff]
      %v852 = vld [vmem:[%s1 + $0xe08] sm:$0xff]
      %v853 = vld [vmem:[%s1 + $0xe10] sm:$0xff]
      %v854 = vld [vmem:[%s1 + $0xe18] sm:$0xff]
      %v855 = vld [vmem:[%s1 + $0xe20] sm:$0xff]
      %v856 = vld [vmem:[%s1 + $0xe28] sm:$0xff]
      %v857 = vld [vmem:[%s1 + $0xe30] sm:$0xff]
      %v858 = vld [vmem:[%s1 + $0xe38] sm:$0xff]
      %v859 = vld [vmem:[%s1 + $0xe40] sm:$0xff]
      %v860 = vld [vmem:[%s1 + $0xe48] sm:$0xff]
      %v861 = vld [vmem:[%s1 + $0xe50] sm:$0xff]
      %v862 = vld [vmem:[%s1 + $0xe58] sm:$0xff]
      %v863 = vld [vmem:[%s1 + $0xe60] sm:$0xff]
      %v864 = vld [vmem:[%s1 + $0xe68] sm:$0xff]
      %v865 = vld [vmem:[%s1 + $0xe70] sm:$0xff]
      %v866 = vld [vmem:[%s1 + $0xe78] sm:$0xff]
      %v867 = vld [vmem:[%s1 + $0xe80] sm:$0xff]
      %v868 = vld [vmem:[%s1 + $0xe88] sm:$0xff]
      %v869 = vld [vmem:[%s1 + $0xe90] sm:$0xff]
      %v870 = vld [vmem:[%s1 + $0xe98] sm:$0xff]
      %v871 = vld [vmem:[%s1 + $0xea0] sm:$0xff]
      %v872 = vld [vmem:[%s1 + $0xea8] sm:$0xff]
      %v873 = vld [vmem:[%s1 + $0xeb0] sm:$0xff]
      %v874 = vld [vmem:[%s1 + $0xeb8] sm:$0xff]
      %v875 = vld [vmem:[%s1 + $0xec0] sm:$0xff]
      %v876 = vld [vmem:[%s1 + $0xec8] sm:$0xff]
      %v877 = vld [vmem:[%s1 + $0xed0] sm:$0xff]
      %v878 = vld [vmem:[%s1 + $0xed8] sm:$0xff]
      %v879 = vld [vmem:[%s1 + $0xee0] sm:$0xff]
      %v880 = vld [vmem:[%s1 + $0xee8] sm:$0xff]
      %v881 = vld [vmem:[%s1 + $0xef0] sm:$0xff]
      %v882 = vld [vmem:[%s1 + $0xef8] sm:$0xff]
      %v883 = vld [vmem:[%s1 + $0xf00] sm:$0xff]
      %v884 = vld [vmem:[%s1 + $0xf08] sm:$0xff]
      %v885 = vld [vmem:[%s1 + $0xf10] sm:$0xff]
      %v886 = vld [vmem:[%s1 + $0xf18] sm:$0xff]
      %v887 = vld [vmem:[%s1 + $0xf20] sm:$0xff]
      %v888 = vld [vmem:[%s1 + $0xf28] sm:$0xff]
      %v889 = vld [vmem:[%s1 + $0xf30] sm:$0xff]
      %v890 = vld [vmem:[%s1 + $0xf38] sm:$0xff]
      %v891 = vld [vmem:[%s1 + $0xf40] sm:$0xff]
      %v892 = vld [vmem:[%s1 + $0xf48] sm:$0xff]
      %v893 = vld [vmem:[%s1 + $0xf50] sm:$0xff]
      %v894 = vld [vmem:[%s1 + $0xf58] sm:$0xff]
      %v895 = vld [vmem:[%s1 + $0xf60] sm:$0xff]
      %v896 = vld [vmem:[%s1 + $0xf68] sm:$0xff]
      %v897 = vld [vmem:[%s1 + $0xf70] sm:$0xff]
      %v898 = vld [vmem:[%s1 + $0xf78] sm:$0xff]
      %v899 = vld [vmem:[%s1 + $0xf80] sm:$0xff]
      %v900 = vld [vmem:[%s1 + $0xf88] sm:$0xff]
      %v901 = vld [vmem:[%s1 + $0xf90] sm:$0xff]
      %v902 = vld [vmem:[%s1 + $0xf98] sm:$0xff]
      %v903 = vld [vmem:[%s1 + $0xfa0] sm:$0xff]
      %v904 = vld [vmem:[%s1 + $0xfa8] sm:$0xff]
      %v905 = vld [vmem:[%s1 + $0xfb0] sm:$0xff]
      %v906 = vld [vmem:[%s1 + $0xfb8] sm:$0xff]
      %v907 = vld [vmem:[%s1 + $0xfc0] sm:$0xff]
      %v908 = vld [vmem:[%s1 + $0xfc8] sm:$0xff]
      %v909 = vld [vmem:[%s1 + $0xfd0] sm:$0xff]
      %v910 = vld [vmem:[%s1 + $0xfd8] sm:$0xff]
      %v911 = vld [vmem:[%s1 + $0xfe0] sm:$0xff]
      %v912 = vld [vmem:[%s1 + $0xfe8] sm:$0xff]
      %v913 = vld [vmem:[%s1 + $0xff0] sm:$0xff]
      %v914 = vld [vmem:[%s1 + $0xff8] sm:$0xff]
      %v915 = vld [vmem:[%s1 + $0x1000] sm:$0xff]
      %v916 = vld [vmem:[%s1 + $0x1008] sm:$0xff]
      %v917 = vld [vmem:[%s1 + $0x1010] sm:$0xff]
      %v918 = vld [vmem:[%s1 + $0x1018] sm:$0xff]
      %v919 = vld [vmem:[%s1 + $0x1020] sm:$0xff]
      %v920 = vld [vmem:[%s1 + $0x1028] sm:$0xff]
      %v921 = vld [vmem:[%s1 + $0x1030] sm:$0xff]
      %v922 = vld [vmem:[%s1 + $0x1038] sm:$0xff]
      %v923 = vld [vmem:[%s1 + $0x1040] sm:$0xff]
      %v924 = vld [vmem:[%s1 + $0x1048] sm:$0xff]
      %v925 = vld [vmem:[%s1 + $0x1050] sm:$0xff]
      %v926 = vld [vmem:[%s1 + $0x1058] sm:$0xff]
      %v927 = vld [vmem:[%s1 + $0x1060] sm:$0xff]
      %v928 = vld [vmem:[%s1 + $0x1068] sm:$0xff]
      %v929 = vld [vmem:[%s1 + $0x1070] sm:$0xff]
      %v930 = vld [vmem:[%s1 + $0x1078] sm:$0xff]
      %v931 = vld [vmem:[%s1 + $0x1080] sm:$0xff]
      %v932 = vld [vmem:[%s1 + $0x1088] sm:$0xff]
      %v933 = vld [vmem:[%s1 + $0x1090] sm:$0xff]
      %v934 = vld [vmem:[%s1 + $0x1098] sm:$0xff]
      %v935 = vld [vmem:[%s1 + $0x10a0] sm:$0xff]
      %v936 = vld [vmem:[%s1 + $0x10a8] sm:$0xff]
      %v937 = vld [vmem:[%s1 + $0x10b0] sm:$0xff]
      %v938 = vld [vmem:[%s1 + $0x10b8] sm:$0xff]
      %v939 = vld [vmem:[%s1 + $0x10c0] sm:$0xff]
      %v940 = vld [vmem:[%s1 + $0x10c8] sm:$0xff]
      %v941 = vld [vmem:[%s1 + $0x10d0] sm:$0xff]
      %v942 = vld [vmem:[%s1 + $0x10d8] sm:$0xff]
      %v943 = vld [vmem:[%s1 + $0x10e0] sm:$0xff]
      %v944 = vld [vmem:[%s1 + $0x10e8] sm:$0xff]
      %v945 = vld [vmem:[%s1 + $0x10f0] sm:$0xff]
      %v946 = vld [vmem:[%s1 + $0x10f8] sm:$0xff]
      %v947 = vld [vmem:[%s1 + $0x1100] sm:$0xff]
      %v948 = vld [vmem:[%s1 + $0x1108] sm:$0xff]
      %v949 = vld [vmem:[%s1 + $0x1110] sm:$0xff]
      %v950 = vld [vmem:[%s1 + $0x1118] sm:$0xff]
      %v951 = vld [vmem:[%s1 + $0x1120] sm:$0xff]
      %v952 = vld [vmem:[%s1 + $0x1128] sm:$0xff]
      %v953 = vld [vmem:[%s1 + $0x1130] sm:$0xff]
      %v954 = vld [vmem:[%s1 + $0x1138] sm:$0xff]
      %v955 = vld [vmem:[%s1 + $0x1140] sm:$0xff]
      %v956 = vld [vmem:[%s1 + $0x1148] sm:$0xff]
      %v957 = vld [vmem:[%s1 + $0x1150] sm:$0xff]
      %v958 = vld [vmem:[%s1 + $0x1158] sm:$0xff]
      %v959 = vld [vmem:[%s1 + $0x1160] sm:$0xff]
      %v960 = vld [vmem:[%s1 + $0x1168] sm:$0xff]
      %v961 = vld [vmem:[%s1 + $0x1170] sm:$0xff]
      %v962 = vld [vmem:[%s1 + $0x1178] sm:$0xff]
      %v963 = vld [vmem:[%s1 + $0x1180] sm:$0xff]
      %v964 = vld [vmem:[%s1 + $0x1188] sm:$0xff]
      %v965 = vld [vmem:[%s1 + $0x1190] sm:$0xff]
      %v966 = vld [vmem:[%s1 + $0x1198] sm:$0xff]
      %v967 = vld [vmem:[%s1 + $0x11a0] sm:$0xff]
      %v968 = vld [vmem:[%s1 + $0x11a8] sm:$0xff]
      %v969 = vld [vmem:[%s1 + $0x11b0] sm:$0xff]
      %v970 = vld [vmem:[%s1 + $0x11b8] sm:$0xff]
      %v971 = vld [vmem:[%s1 + $0x11c0] sm:$0xff]
      %v972 = vld [vmem:[%s1 + $0x11c8] sm:$0xff]
      %v973 = vld [vmem:[%s1 + $0x11d0] sm:$0xff]
      %v974 = vld [vmem:[%s1 + $0x11d8] sm:$0xff]
      %v975 = vld [vmem:[%s1 + $0x11e0] sm:$0xff]
      %v976 = vld [vmem:[%s1 + $0x11e8] sm:$0xff]
      %v977 = vld [vmem:[%s1 + $0x11f0] sm:$0xff]
      %v978 = vld [vmem:[%s1 + $0x11f8] sm:$0xff]
      %v979 = vld [vmem:[%s1 + $0x1200] sm:$0xff]
      %v980 = vld [vmem:[%s1 + $0x1208] sm:$0xff]
      %v981 = vld [vmem:[%s1 + $0x1210] sm:$0xff]
      %v982 = vld [vmem:[%s1 + $0x1218] sm:$0xff]
      %v983 = vld [vmem:[%s1 + $0x1220] sm:$0xff]
      %v984 = vld [vmem:[%s1 + $0x1228] sm:$0xff]
      %v985 = vld [vmem:[%s1 + $0x1230] sm:$0xff]
      %v986 = vld [vmem:[%s1 + $0x1238] sm:$0xff]
      %v987 = vld [vmem:[%s1 + $0x1240] sm:$0xff]
      %v988 = vld [vmem:[%s1 + $0x1248] sm:$0xff]
      %v989 = vld [vmem:[%s1 + $0x1250] sm:$0xff]
      %v990 = vld [vmem:[%s1 + $0x1258] sm:$0xff]
      %v991 = vld [vmem:[%s1 + $0x1260] sm:$0xff]
      %v992 = vld [vmem:[%s1 + $0x1268] sm:$0xff]
      %v993 = vld [vmem:[%s1 + $0x1270] sm:$0xff]
      %v994 = vld [vmem:[%s1 + $0x1278] sm:$0xff]
      %v995 = vld [vmem:[%s1 + $0x1280] sm:$0xff]
      %v996 = vld [vmem:[%s1 + $0x1288] sm:$0xff]
      %v997 = vld [vmem:[%s1 + $0x1290] sm:$0xff]
      %v998 = vld [vmem:[%s1 + $0x1298] sm:$0xff]
      %v999 = vld [vmem:[%s1 + $0x12a0] sm:$0xff]
      %v1000 = vld [vmem:[%s1 + $0x12a8] sm:$0xff]
      %v1001 = vld [vmem:[%s1 + $0x12b0] sm:$0xff]
      %v1002 = vld [vmem:[%s1 + $0x12b8] sm:$0xff]
      %v1003 = vld [vmem:[%s1 + $0x12c0] sm:$0xff]
      %v1004 = vld [vmem:[%s1 + $0x12c8] sm:$0xff]
      %v1005 = vld [vmem:[%s1 + $0x12d0] sm:$0xff]
      %v1006 = vld [vmem:[%s1 + $0x12d8] sm:$0xff]
      %v1007 = vld [vmem:[%s1 + $0x12e0] sm:$0xff]
      %v1008 = vld [vmem:[%s1 + $0x12e8] sm:$0xff]
      %v1009 = vld [vmem:[%s1 + $0x12f0] sm:$0xff]
      %v1010 = vld [vmem:[%s1 + $0x12f8] sm:$0xff]
      %v1011 = vld [vmem:[%s1 + $0x1300] sm:$0xff]
      %v1012 = vld [vmem:[%s1 + $0x1308] sm:$0xff]
      %v1013 = vld [vmem:[%s1 + $0x1310] sm:$0xff]
      %v1014 = vld [vmem:[%s1 + $0x1318] sm:$0xff]
      %v1015 = vld [vmem:[%s1 + $0x1320] sm:$0xff]
      %v1016 = vld [vmem:[%s1 + $0x1328] sm:$0xff]
      %v1017 = vld [vmem:[%s1 + $0x1330] sm:$0xff]
      %v1018 = vld [vmem:[%s1 + $0x1338] sm:$0xff]
      %v1019 = vld [vmem:[%s1 + $0x1340] sm:$0xff]
      %v1020 = vld [vmem:[%s1 + $0x1348] sm:$0xff]
      %v1021 = vld [vmem:[%s1 + $0x1350] sm:$0xff]
      %v1022 = vld [vmem:[%s1 + $0x1358] sm:$0xff]
      %v1023 = vld [vmem:[%s1 + $0x1360] sm:$0xff]
      %v1024 = vld [vmem:[%s1 + $0x1368] sm:$0xff]
      %v1025 = vld [vmem:[%s1 + $0x1370] sm:$0xff]
      %v1026 = vld [vmem:[%s1 + $0x1378] sm:$0xff]
      %v1027 = vld [vmem:[%s1 + $0x1380] sm:$0xff]
      %v1028 = vld [vmem:[%s1 + $0x1388] sm:$0xff]
      %v1029 = vld [vmem:[%s1 + $0x1390] sm:$0xff]
      %v1030 = vld [vmem:[%s1 + $0x1398] sm:$0xff]
      %v1031 = vld [vmem:[%s1 + $0x13a0] sm:$0xff]
      %v1032 = vld [vmem:[%s1 + $0x13a8] sm:$0xff]
      %v1033 = vld [vmem:[%s1 + $0x13b0] sm:$0xff]
      %v1034 = vld [vmem:[%s1 + $0x13b8] sm:$0xff]
      %v1035 = vld [vmem:[%s1 + $0x13c0] sm:$0xff]
      %v1036 = vld [vmem:[%s1 + $0x13c8] sm:$0xff]
      %v1037 = vld [vmem:[%s1 + $0x13d0] sm:$0xff]
      %v1038 = vld [vmem:[%s1 + $0x13d8] sm:$0xff]
      %v1039 = vld [vmem:[%s1 + $0x13e0] sm:$0xff]
      %v1040 = vld [vmem:[%s1 + $0x13e8] sm:$0xff]
      %v1041 = vld [vmem:[%s1 + $0x13f0] sm:$0xff]
      %v1042 = vld [vmem:[%s1 + $0x13f8] sm:$0xff]
      %v1043 = vld [vmem:[%s1 + $0x1400] sm:$0xff]
      %v1044 = vld [vmem:[%s1 + $0x1408] sm:$0xff]
      %v1045 = vld [vmem:[%s1 + $0x1410] sm:$0xff]
      %v1046 = vld [vmem:[%s1 + $0x1418] sm:$0xff]
      %v1047 = vld [vmem:[%s1 + $0x1420] sm:$0xff]
      %v1048 = vld [vmem:[%s1 + $0x1428] sm:$0xff]
      %v1049 = vld [vmem:[%s1 + $0x1430] sm:$0xff]
      %v1050 = vld [vmem:[%s1 + $0x1438] sm:$0xff]
      %v1051 = vld [vmem:[%s1 + $0x1440] sm:$0xff]
      %v1052 = vld [vmem:[%s1 + $0x1448] sm:$0xff]
      %v1053 = vld [vmem:[%s1 + $0x1450] sm:$0xff]
      %v1054 = vld [vmem:[%s1 + $0x1458] sm:$0xff]
      %v1055 = vld [vmem:[%s1 + $0x1460] sm:$0xff]
      %v1056 = vld [vmem:[%s1 + $0x1468] sm:$0xff]
      %v1057 = vld [vmem:[%s1 + $0x1470] sm:$0xff]
      %v1058 = vld [vmem:[%s1 + $0x1478] sm:$0xff]
      %v1059 = vld [vmem:[%s1 + $0x1480] sm:$0xff]
      %v1060 = vld [vmem:[%s1 + $0x1488] sm:$0xff]
      %v1061 = vld [vmem:[%s1 + $0x1490] sm:$0xff]
      %v1062 = vld [vmem:[%s1 + $0x1498] sm:$0xff]
      %v1063 = vld [vmem:[%s1 + $0x14a0] sm:$0xff]
      %v1064 = vld [vmem:[%s1 + $0x14a8] sm:$0xff]
      %v1065 = vld [vmem:[%s1 + $0x14b0] sm:$0xff]
      %v1066 = vld [vmem:[%s1 + $0x14b8] sm:$0xff]
      %v1067 = vld [vmem:[%s1 + $0x14c0] sm:$0xff]
      %v1068 = vld [vmem:[%s1 + $0x14c8] sm:$0xff]
      %v1069 = vld [vmem:[%s1 + $0x14d0] sm:$0xff]
      %v1070 = vld [vmem:[%s1 + $0x14d8] sm:$0xff]
      %v1071 = vld [vmem:[%s1 + $0x14e0] sm:$0xff]
      %v1072 = vld [vmem:[%s1 + $0x14e8] sm:$0xff]
      %v1073 = vld [vmem:[%s1 + $0x14f0] sm:$0xff]
      %v1074 = vld [vmem:[%s1 + $0x14f8] sm:$0xff]
      %v1075 = vld [vmem:[%s1 + $0x1500] sm:$0xff]
      %v1076 = vld [vmem:[%s1 + $0x1508] sm:$0xff]
      %v1077 = vld [vmem:[%s1 + $0x1510] sm:$0xff]
      %v1078 = vld [vmem:[%s1 + $0x1518] sm:$0xff]
      %v1079 = vld [vmem:[%s1 + $0x1520] sm:$0xff]
      %v1080 = vld [vmem:[%s1 + $0x1528] sm:$0xff]
      %v1081 = vld [vmem:[%s1 + $0x1530] sm:$0xff]
      %v1082 = vld [vmem:[%s1 + $0x1538] sm:$0xff]
      %v1083 = vld [vmem:[%s1 + $0x1540] sm:$0xff]
      %v1084 = vld [vmem:[%s1 + $0x1548] sm:$0xff]
      %v1085 = vld [vmem:[%s1 + $0x1550] sm:$0xff]
      %v1086 = vld [vmem:[%s1 + $0x1558] sm:$0xff]
      %v1087 = vld [vmem:[%s1 + $0x1560] sm:$0xff]
      %v1088 = vld [vmem:[%s1 + $0x1568] sm:$0xff]
      %v1089 = vld [vmem:[%s1 + $0x1570] sm:$0xff]
      %v1090 = vld [vmem:[%s1 + $0x1578] sm:$0xff]
      %v1091 = vld [vmem:[%s1 + $0x1580] sm:$0xff]
      %v1092 = vld [vmem:[%s1 + $0x1588] sm:$0xff]
      %v1093 = vld [vmem:[%s1 + $0x1590] sm:$0xff]
      %v1094 = vld [vmem:[%s1 + $0x1598] sm:$0xff]
      %v1095 = vld [vmem:[%s1 + $0x15a0] sm:$0xff]
      %v1096 = vld [vmem:[%s1 + $0x15a8] sm:$0xff]
      %v1097 = vld [vmem:[%s1 + $0x15b0] sm:$0xff]
      %v1098 = vld [vmem:[%s1 + $0x15b8] sm:$0xff]
      %v1099 = vld [vmem:[%s1 + $0x15c0] sm:$0xff]
      %v1100 = vld [vmem:[%s1 + $0x15c8] sm:$0xff]
      %v1101 = vld [vmem:[%s1 + $0x15d0] sm:$0xff]
      %v1102 = vld [vmem:[%s1 + $0x15d8] sm:$0xff]
      %v1103 = vld [vmem:[%s1 + $0x15e0] sm:$0xff]
      %v1104 = vld [vmem:[%s1 + $0x15e8] sm:$0xff]
      %v1105 = vld [vmem:[%s1 + $0x15f0] sm:$0xff]
      %v1106 = vld [vmem:[%s1 + $0x15f8] sm:$0xff]
      %v1107 = vld [vmem:[%s1 + $0x1600] sm:$0xff]
      %v1108 = vld [vmem:[%s1 + $0x1608] sm:$0xff]
      %v1109 = vld [vmem:[%s1 + $0x1610] sm:$0xff]
      %v1110 = vld [vmem:[%s1 + $0x1618] sm:$0xff]
      %v1111 = vld [vmem:[%s1 + $0x1620] sm:$0xff]
      %v1112 = vld [vmem:[%s1 + $0x1628] sm:$0xff]
      %v1113 = vld [vmem:[%s1 + $0x1630] sm:$0xff]
      %v1114 = vld [vmem:[%s1 + $0x1638] sm:$0xff]
      %v1115 = vld [vmem:[%s1 + $0x1640] sm:$0xff]
      %v1116 = vld [vmem:[%s1 + $0x1648] sm:$0xff]
      %v1117 = vld [vmem:[%s1 + $0x1650] sm:$0xff]
      %v1118 = vld [vmem:[%s1 + $0x1658] sm:$0xff]
      %v1119 = vld [vmem:[%s1 + $0x1660] sm:$0xff]
      %v1120 = vld [vmem:[%s1 + $0x1668] sm:$0xff]
      %v1121 = vld [vmem:[%s1 + $0x1670] sm:$0xff]
      %v1122 = vld [vmem:[%s1 + $0x1678] sm:$0xff]
      %v1123 = vld [vmem:[%s1 + $0x1680] sm:$0xff]
      %v1124 = vld [vmem:[%s1 + $0x1688] sm:$0xff]
      %v1125 = vld [vmem:[%s1 + $0x1690] sm:$0xff]
      %v1126 = vld [vmem:[%s1 + $0x1698] sm:$0xff]
      %v1127 = vld [vmem:[%s1 + $0x16a0] sm:$0xff]
      %v1128 = vld [vmem:[%s1 + $0x16a8] sm:$0xff]
      %v1129 = vld [vmem:[%s1 + $0x16b0] sm:$0xff]
      %v1130 = vld [vmem:[%s1 + $0x16b8] sm:$0xff]
      %v1131 = vld [vmem:[%s1 + $0x16c0] sm:$0xff]
      %v1132 = vld [vmem:[%s1 + $0x16c8] sm:$0xff]
      %v1133 = vld [vmem:[%s1 + $0x16d0] sm:$0xff]
      %v1134 = vld [vmem:[%s1 + $0x16d8] sm:$0xff]
      %v1135 = vld [vmem:[%s1 + $0x16e0] sm:$0xff]
      %v1136 = vld [vmem:[%s1 + $0x16e8] sm:$0xff]
      %v1137 = vld [vmem:[%s1 + $0x16f0] sm:$0xff]
      %v1138 = vld [vmem:[%s1 + $0x16f8] sm:$0xff]
      %v1139 = vld [vmem:[%s1 + $0x1700] sm:$0xff]
      %v1140 = vld [vmem:[%s1 + $0x1708] sm:$0xff]
      %v1141 = vld [vmem:[%s1 + $0x1710] sm:$0xff]
      %v1142 = vld [vmem:[%s1 + $0x1718] sm:$0xff]
      %v1143 = vld [vmem:[%s1 + $0x1720] sm:$0xff]
      %v1144 = vld [vmem:[%s1 + $0x1728] sm:$0xff]
      %v1145 = vld [vmem:[%s1 + $0x1730] sm:$0xff]
      %v1146 = vld [vmem:[%s1 + $0x1738] sm:$0xff]
      %v1147 = vld [vmem:[%s1 + $0x1740] sm:$0xff]
      %v1148 = vld [vmem:[%s1 + $0x1748] sm:$0xff]
      %v1149 = vld [vmem:[%s1 + $0x1750] sm:$0xff]
      %v1150 = vld [vmem:[%s1 + $0x1758] sm:$0xff]
      %v1151 = vld [vmem:[%s1 + $0x1760] sm:$0xff]
      %v1152 = vld [vmem:[%s1 + $0x1768] sm:$0xff]
      %v1153 = vld [vmem:[%s1 + $0x1770] sm:$0xff]
      %v1154 = vld [vmem:[%s1 + $0x1778] sm:$0xff]
      %v1155 = vld [vmem:[%s1 + $0x1780] sm:$0xff]
      %v1156 = vld [vmem:[%s1 + $0x1788] sm:$0xff]
      %v1157 = vld [vmem:[%s1 + $0x1790] sm:$0xff]
      %v1158 = vld [vmem:[%s1 + $0x1798] sm:$0xff]
      %v1159 = vld [vmem:[%s1 + $0x17a0] sm:$0xff]
      %v1160 = vld [vmem:[%s1 + $0x17a8] sm:$0xff]
      %v1161 = vld [vmem:[%s1 + $0x17b0] sm:$0xff]
      %v1162 = vld [vmem:[%s1 + $0x17b8] sm:$0xff]
      %v1163 = vld [vmem:[%s1 + $0x17c0] sm:$0xff]
      %v1164 = vld [vmem:[%s1 + $0x17c8] sm:$0xff]
      %v1165 = vld [vmem:[%s1 + $0x17d0] sm:$0xff]
      %v1166 = vld [vmem:[%s1 + $0x17d8] sm:$0xff]
      %v1167 = vld [vmem:[%s1 + $0x17e0] sm:$0xff]
      %v1168 = vld [vmem:[%s1 + $0x17e8] sm:$0xff]
      %v1169 = vld [vmem:[%s1 + $0x17f0] sm:$0xff]
      %v1170 = vld [vmem:[%s1 + $0x17f8] sm:$0xff]
      %v1171 = vld [vmem:[%s1 + $0x1800] sm:$0xff]
      %v1172 = vld [vmem:[%s1 + $0x1808] sm:$0xff]
      %v1173 = vld [vmem:[%s1 + $0x1810] sm:$0xff]
      %v1174 = vld [vmem:[%s1 + $0x1818] sm:$0xff]
      %v1175 = vld [vmem:[%s1 + $0x1820] sm:$0xff]
      %v1176 = vld [vmem:[%s1 + $0x1828] sm:$0xff]
      %v1177 = vld [vmem:[%s1 + $0x1830] sm:$0xff]
      %v1178 = vld [vmem:[%s1 + $0x1838] sm:$0xff]
      %v1179 = vld [vmem:[%s1 + $0x1840] sm:$0xff]
      %v1180 = vld [vmem:[%s1 + $0x1848] sm:$0xff]
      %v1181 = vld [vmem:[%s1 + $0x1850] sm:$0xff]
      %v1182 = vld [vmem:[%s1 + $0x1858] sm:$0xff]
      %v1183 = vld [vmem:[%s1 + $0x1860] sm:$0xff]
      %v1184 = vld [vmem:[%s1 + $0x1868] sm:$0xff]
      %v1185 = vld [vmem:[%s1 + $0x1870] sm:$0xff]
      %v1186 = vld [vmem:[%s1 + $0x1878] sm:$0xff]
      %v1187 = vld [vmem:[%s1 + $0x1880] sm:$0xff]
      %v1188 = vld [vmem:[%s1 + $0x1888] sm:$0xff]
      %v1189 = vld [vmem:[%s1 + $0x1890] sm:$0xff]
      %v1190 = vld [vmem:[%s1 + $0x1898] sm:$0xff]
      %v1191 = vld [vmem:[%s1 + $0x18a0] sm:$0xff]
      %v1192 = vld [vmem:[%s1 + $0x18a8] sm:$0xff]
      %v1193 = vld [vmem:[%s1 + $0x18b0] sm:$0xff]
      %v1194 = vld [vmem:[%s1 + $0x18b8] sm:$0xff]
      %v1195 = vld [vmem:[%s1 + $0x18c0] sm:$0xff]
      %v1196 = vld [vmem:[%s1 + $0x18c8] sm:$0xff]
      %v1197 = vld [vmem:[%s1 + $0x18d0] sm:$0xff]
      %v1198 = vld [vmem:[%s1 + $0x18d8] sm:$0xff]
      %v1199 = vld [vmem:[%s1 + $0x18e0] sm:$0xff]
      %v1200 = vld [vmem:[%s1 + $0x18e8] sm:$0xff]
      %v1201 = vld [vmem:[%s1 + $0x18f0] sm:$0xff]
      %v1202 = vld [vmem:[%s1 + $0x18f8] sm:$0xff]
      %v1203 = vld [vmem:[%s1 + $0x1900] sm:$0xff]
      %v1204 = vld [vmem:[%s1 + $0x1908] sm:$0xff]
      %v1205 = vld [vmem:[%s1 + $0x1910] sm:$0xff]
      %v1206 = vld [vmem:[%s1 + $0x1918] sm:$0xff]
      %v1207 = vld [vmem:[%s1 + $0x1920] sm:$0xff]
      %v1208 = vld [vmem:[%s1 + $0x1928] sm:$0xff]
      %v1209 = vld [vmem:[%s1 + $0x1930] sm:$0xff]
      %v1210 = vld [vmem:[%s1 + $0x1938] sm:$0xff]
      %v1211 = vld [vmem:[%s1 + $0x1940] sm:$0xff]
      %v1212 = vld [vmem:[%s1 + $0x1948] sm:$0xff]
      %v1213 = vld [vmem:[%s1 + $0x1950] sm:$0xff]
      %v1214 = vld [vmem:[%s1 + $0x1958] sm:$0xff]
      %v1215 = vld [vmem:[%s1 + $0x1960] sm:$0xff]
      %v1216 = vld [vmem:[%s1 + $0x1968] sm:$0xff]
      %v1217 = vld [vmem:[%s1 + $0x1970] sm:$0xff]
      %v1218 = vld [vmem:[%s1 + $0x1978] sm:$0xff]
      %v1219 = vld [vmem:[%s1 + $0x1980] sm:$0xff]
      %v1220 = vld [vmem:[%s1 + $0x1988] sm:$0xff]
      %v1221 = vld [vmem:[%s1 + $0x1990] sm:$0xff]
      %v1222 = vld [vmem:[%s1 + $0x1998] sm:$0xff]
      %v1223 = vld [vmem:[%s1 + $0x19a0] sm:$0xff]
      %v1224 = vld [vmem:[%s1 + $0x19a8] sm:$0xff]
      %v1225 = vld [vmem:[%s1 + $0x19b0] sm:$0xff]
      %v1226 = vld [vmem:[%s1 + $0x19b8] sm:$0xff]
      %v1227 = vld [vmem:[%s1 + $0x19c0] sm:$0xff]
      %v1228 = vld [vmem:[%s1 + $0x19c8] sm:$0xff]
      %v1229 = vld [vmem:[%s1 + $0x19d0] sm:$0xff]
      %v1230 = vld [vmem:[%s1 + $0x19d8] sm:$0xff]
      %v1231 = vld [vmem:[%s1 + $0x19e0] sm:$0xff]
      %v1232 = vld [vmem:[%s1 + $0x19e8] sm:$0xff]
      %v1233 = vld [vmem:[%s1 + $0x19f0] sm:$0xff]
      %v1234 = vld [vmem:[%s1 + $0x19f8] sm:$0xff]
      %v1235 = vld [vmem:[%s1 + $0x1a00] sm:$0xff]
      %v1236 = vld [vmem:[%s1 + $0x1a08] sm:$0xff]
      %v1237 = vld [vmem:[%s1 + $0x1a10] sm:$0xff]
      %v1238 = vld [vmem:[%s1 + $0x1a18] sm:$0xff]
      %v1239 = vld [vmem:[%s1 + $0x1a20] sm:$0xff]
      %v1240 = vld [vmem:[%s1 + $0x1a28] sm:$0xff]
      %v1241 = vld [vmem:[%s1 + $0x1a30] sm:$0xff]
      %v1242 = vld [vmem:[%s1 + $0x1a38] sm:$0xff]
      %v1243 = vld [vmem:[%s1 + $0x1a40] sm:$0xff]
      %v1244 = vld [vmem:[%s1 + $0x1a48] sm:$0xff]
      %v1245 = vld [vmem:[%s1 + $0x1a50] sm:$0xff]
      %v1246 = vld [vmem:[%s1 + $0x1a58] sm:$0xff]
      %v1247 = vld [vmem:[%s1 + $0x1a60] sm:$0xff]
      %v1248 = vld [vmem:[%s1 + $0x1a68] sm:$0xff]
      %v1249 = vld [vmem:[%s1 + $0x1a70] sm:$0xff]
      %v1250 = vld [vmem:[%s1 + $0x1a78] sm:$0xff]
      %v1251 = vld [vmem:[%s1 + $0x1a80] sm:$0xff]
      %v1252 = vld [vmem:[%s1 + $0x1a88] sm:$0xff]
      %v1253 = vld [vmem:[%s1 + $0x1a90] sm:$0xff]
      %v1254 = vld [vmem:[%s1 + $0x1a98] sm:$0xff]
      %v1255 = vld [vmem:[%s1 + $0x1aa0] sm:$0xff]
      %v1256 = vld [vmem:[%s1 + $0x1aa8] sm:$0xff]
      %v1257 = vld [vmem:[%s1 + $0x1ab0] sm:$0xff]
      %v1258 = vld [vmem:[%s1 + $0x1ab8] sm:$0xff]
      %v1259 = vld [vmem:[%s1 + $0x1ac0] sm:$0xff]
      %v1260 = vld [vmem:[%s1 + $0x1ac8] sm:$0xff]
      %v1261 = vld [vmem:[%s1 + $0x1ad0] sm:$0xff]
      %v1262 = vld [vmem:[%s1 + $0x1ad8] sm:$0xff]
      %v1263 = vld [vmem:[%s1 + $0x1ae0] sm:$0xff]
      %v1264 = vld [vmem:[%s1 + $0x1ae8] sm:$0xff]
      %v1265 = vld [vmem:[%s1 + $0x1af0] sm:$0xff]
      %v1266 = vld [vmem:[%s1 + $0x1af8] sm:$0xff]
      %v1267 = vld [vmem:[%s1 + $0x1b00] sm:$0xff]
      %v1268 = vld [vmem:[%s1 + $0x1b08] sm:$0xff]
      %v1269 = vld [vmem:[%s1 + $0x1b10] sm:$0xff]
      %v1270 = vld [vmem:[%s1 + $0x1b18] sm:$0xff]
      %v1271 = vld [vmem:[%s1 + $0x1b20] sm:$0xff]
      %v1272 = vld [vmem:[%s1 + $0x1b28] sm:$0xff]
      %v1273 = vld [vmem:[%s1 + $0x1b30] sm:$0xff]
      %v1274 = vld [vmem:[%s1 + $0x1b38] sm:$0xff]
      %v1275 = vld [vmem:[%s1 + $0x1b40] sm:$0xff]
      %v1276 = vld [vmem:[%s1 + $0x1b48] sm:$0xff]
      %v1277 = vld [vmem:[%s1 + $0x1b50] sm:$0xff]
      %v1278 = vld [vmem:[%s1 + $0x1b58] sm:$0xff]
      %v1279 = vld [vmem:[%s1 + $0x1b60] sm:$0xff]
      %v1280 = vld [vmem:[%s1 + $0x1b68] sm:$0xff]
      %v1281 = vld [vmem:[%s1 + $0x1b70] sm:$0xff]
      %v1282 = vld [vmem:[%s1 + $0x1b78] sm:$0xff]
      %v1283 = vld [vmem:[%s1 + $0x1b80] sm:$0xff]
      %v1284 = vld [vmem:[%s1 + $0x1b88] sm:$0xff]
      %v1285 = vld [vmem:[%s1 + $0x1b90] sm:$0xff]
      %v1286 = vld [vmem:[%s1 + $0x1b98] sm:$0xff]
      %v1287 = vld [vmem:[%s1 + $0x1ba0] sm:$0xff]
      %v1288 = vld [vmem:[%s1 + $0x1ba8] sm:$0xff]
      %v1289 = vld [vmem:[%s1 + $0x1bb0] sm:$0xff]
      %v1290 = vld [vmem:[%s1 + $0x1bb8] sm:$0xff]
      %v1291 = vld [vmem:[%s1 + $0x1bc0] sm:$0xff]
      %v1292 = vld [vmem:[%s1 + $0x1bc8] sm:$0xff]
      %v1293 = vld [vmem:[%s1 + $0x1bd0] sm:$0xff]
      %v1294 = vld [vmem:[%s1 + $0x1bd8] sm:$0xff]
      %v1295 = vld [vmem:[%s1 + $0x1be0] sm:$0xff]
      %v1296 = vld [vmem:[%s1 + $0x1be8] sm:$0xff]
      %v1297 = vld [vmem:[%s1 + $0x1bf0] sm:$0xff]
      %v1298 = vld [vmem:[%s1 + $0x1bf8] sm:$0xff]
      %v1299 = vld [vmem:[%s1 + $0x1c00] sm:$0xff]
      %v1300 = vld [vmem:[%s1 + $0x1c08] sm:$0xff]
      %v1301 = vld [vmem:[%s1 + $0x1c10] sm:$0xff]
      %v1302 = vld [vmem:[%s1 + $0x1c18] sm:$0xff]
      %v1303 = vld [vmem:[%s1 + $0x1c20] sm:$0xff]
      %v1304 = vld [vmem:[%s1 + $0x1c28] sm:$0xff]
      %v1305 = vld [vmem:[%s1 + $0x1c30] sm:$0xff]
      %v1306 = vld [vmem:[%s1 + $0x1c38] sm:$0xff]
      %v1307 = vld [vmem:[%s1 + $0x1c40] sm:$0xff]
      %v1308 = vld [vmem:[%s1 + $0x1c48] sm:$0xff]
      %v1309 = vld [vmem:[%s1 + $0x1c50] sm:$0xff]
      %v1310 = vld [vmem:[%s1 + $0x1c58] sm:$0xff]
      %v1311 = vld [vmem:[%s1 + $0x1c60] sm:$0xff]
      %v1312 = vld [vmem:[%s1 + $0x1c68] sm:$0xff]
      %v1313 = vld [vmem:[%s1 + $0x1c70] sm:$0xff]
      %v1314 = vld [vmem:[%s1 + $0x1c78] sm:$0xff]
      %v1315 = vld [vmem:[%s1 + $0x1c80] sm:$0xff]
      %v1316 = vld [vmem:[%s1 + $0x1c88] sm:$0xff]
      %v1317 = vld [vmem:[%s1 + $0x1c90] sm:$0xff]
      %v1318 = vld [vmem:[%s1 + $0x1c98] sm:$0xff]
      %v1319 = vld [vmem:[%s1 + $0x1ca0] sm:$0xff]
      %v1320 = vld [vmem:[%s1 + $0x1ca8] sm:$0xff]
      %v1321 = vld [vmem:[%s1 + $0x1cb0] sm:$0xff]
      %v1322 = vld [vmem:[%s1 + $0x1cb8] sm:$0xff]
      %v1323 = vld [vmem:[%s1 + $0x1cc0] sm:$0xff]
      %v1324 = vld [vmem:[%s1 + $0x1cc8] sm:$0xff]
      %v1325 = vld [vmem:[%s1 + $0x1cd0] sm:$0xff]
      %v1326 = vld [vmem:[%s1 + $0x1cd8] sm:$0xff]
      %v1327 = vld [vmem:[%s1 + $0x1ce0] sm:$0xff]
      %v1328 = vld [vmem:[%s1 + $0x1ce8] sm:$0xff]
      %v1329 = vld [vmem:[%s1 + $0x1cf0] sm:$0xff]
      %v1330 = vld [vmem:[%s1 + $0x1cf8] sm:$0xff]
      %v1331 = vld [vmem:[%s1 + $0x1d00] sm:$0xff]
      %v1332 = vld [vmem:[%s1 + $0x1d08] sm:$0xff]
      %v1333 = vld [vmem:[%s1 + $0x1d10] sm:$0xff]
      %v1334 = vld [vmem:[%s1 + $0x1d18] sm:$0xff]
      %v1335 = vld [vmem:[%s1 + $0x1d20] sm:$0xff]
      %v1336 = vld [vmem:[%s1 + $0x1d28] sm:$0xff]
      %v1337 = vld [vmem:[%s1 + $0x1d30] sm:$0xff]
      %v1338 = vld [vmem:[%s1 + $0x1d38] sm:$0xff]
      %v1339 = vld [vmem:[%s1 + $0x1d40] sm:$0xff]
      %v1340 = vld [vmem:[%s1 + $0x1d48] sm:$0xff]
      %v1341 = vld [vmem:[%s1 + $0x1d50] sm:$0xff]
      %v1342 = vld [vmem:[%s1 + $0x1d58] sm:$0xff]
      %v1343 = vld [vmem:[%s1 + $0x1d60] sm:$0xff]
      %v1344 = vld [vmem:[%s1 + $0x1d68] sm:$0xff]
      %v1345 = vld [vmem:[%s1 + $0x1d70] sm:$0xff]
      %v1346 = vld [vmem:[%s1 + $0x1d78] sm:$0xff]
      %v1347 = vld [vmem:[%s1 + $0x1d80] sm:$0xff]
      %v1348 = vld [vmem:[%s1 + $0x1d88] sm:$0xff]
      %v1349 = vld [vmem:[%s1 + $0x1d90] sm:$0xff]
      %v1350 = vld [vmem:[%s1 + $0x1d98] sm:$0xff]
      %v1351 = vld [vmem:[%s1 + $0x1da0] sm:$0xff]
      %v1352 = vld [vmem:[%s1 + $0x1da8] sm:$0xff]
      %v1353 = vld [vmem:[%s1 + $0x1db0] sm:$0xff]
      %v1354 = vld [vmem:[%s1 + $0x1db8] sm:$0xff]
      %v1355 = vld [vmem:[%s1 + $0x1dc0] sm:$0xff]
      %v1356 = vld [vmem:[%s1 + $0x1dc8] sm:$0xff]
      %v1357 = vld [vmem:[%s1 + $0x1dd0] sm:$0xff]
      %v1358 = vld [vmem:[%s1 + $0x1dd8] sm:$0xff]
      %v1359 = vld [vmem:[%s1 + $0x1de0] sm:$0xff]
      %v1360 = vld [vmem:[%s1 + $0x1de8] sm:$0xff]
      %v1361 = vld [vmem:[%s1 + $0x1df0] sm:$0xff]
      %v1362 = vld [vmem:[%s1 + $0x1df8] sm:$0xff]
      %v1363 = vld [vmem:[%s1 + $0x1e00] sm:$0xff]
      %v1364 = vld [vmem:[%s1 + $0x1e08] sm:$0xff]
      %v1365 = vld [vmem:[%s1 + $0x1e10] sm:$0xff]
      %v1366 = vld [vmem:[%s1 + $0x1e18] sm:$0xff]
      %v1367 = vld [vmem:[%s1 + $0x1e20] sm:$0xff]
      %v1368 = vld [vmem:[%s1 + $0x1e28] sm:$0xff]
      %v1369 = vld [vmem:[%s1 + $0x1e30] sm:$0xff]
      %v1370 = vld [vmem:[%s1 + $0x1e38] sm:$0xff]
      %v1371 = vld [vmem:[%s1 + $0x1e40] sm:$0xff]
      %v1372 = vld [vmem:[%s1 + $0x1e48] sm:$0xff]
      %v1373 = vld [vmem:[%s1 + $0x1e50] sm:$0xff]
      %v1374 = vld [vmem:[%s1 + $0x1e58] sm:$0xff]
      %v1375 = vld [vmem:[%s1 + $0x1e60] sm:$0xff]
      %v1376 = vld [vmem:[%s1 + $0x1e68] sm:$0xff]
      %v1377 = vld [vmem:[%s1 + $0x1e70] sm:$0xff]
      %v1378 = vld [vmem:[%s1 + $0x1e78] sm:$0xff]
      %v1379 = vld [vmem:[%s1 + $0x1e80] sm:$0xff]
      %v1380 = vld [vmem:[%s1 + $0x1e88] sm:$0xff]
      %v1381 = vld [vmem:[%s1 + $0x1e90] sm:$0xff]
      %v1382 = vld [vmem:[%s1 + $0x1e98] sm:$0xff]
      %v1383 = vld [vmem:[%s1 + $0x1ea0] sm:$0xff]
      %v1384 = vld [vmem:[%s1 + $0x1ea8] sm:$0xff]
      %v1385 = vld [vmem:[%s1 + $0x1eb0] sm:$0xff]
      %v1386 = vld [vmem:[%s1 + $0x1eb8] sm:$0xff]
      %v1387 = vld [vmem:[%s1 + $0x1ec0] sm:$0xff]
      %v1388 = vld [vmem:[%s1 + $0x1ec8] sm:$0xff]
      %v1389 = vld [vmem:[%s1 + $0x1ed0] sm:$0xff]
      %v1390 = vld [vmem:[%s1 + $0x1ed8] sm:$0xff]
      %v1391 = vld [vmem:[%s1 + $0x1ee0] sm:$0xff]
      %v1392 = vld [vmem:[%s1 + $0x1ee8] sm:$0xff]
      %v1393 = vld [vmem:[%s1 + $0x1ef0] sm:$0xff]
      %v1394 = vld [vmem:[%s1 + $0x1ef8] sm:$0xff]
      %v1395 = vld [vmem:[%s1 + $0x1f00] sm:$0xff]
      %v1396 = vld [vmem:[%s1 + $0x1f08] sm:$0xff]
      %v1397 = vld [vmem:[%s1 + $0x1f10] sm:$0xff]
      %v1398 = vld [vmem:[%s1 + $0x1f18] sm:$0xff]
      %v1399 = vld [vmem:[%s1 + $0x1f20] sm:$0xff]
      %v1400 = vld [vmem:[%s1 + $0x1f28] sm:$0xff]
      %v1401 = vld [vmem:[%s1 + $0x1f30] sm:$0xff]
      %v1402 = vld [vmem:[%s1 + $0x1f38] sm:$0xff]
      %v1403 = vld [vmem:[%s1 + $0x1f40] sm:$0xff]
      %v1404 = vld [vmem:[%s1 + $0x1f48] sm:$0xff]
      %v1405 = vld [vmem:[%s1 + $0x1f50] sm:$0xff]
      %v1406 = vld [vmem:[%s1 + $0x1f58] sm:$0xff]
      %v1407 = vld [vmem:[%s1 + $0x1f60] sm:$0xff]
      %v1408 = vld [vmem:[%s1 + $0x1f68] sm:$0xff]
      %v1409 = vld [vmem:[%s1 + $0x1f70] sm:$0xff]
      %v1410 = vld [vmem:[%s1 + $0x1f78] sm:$0xff]
      %v1411 = vld [vmem:[%s1 + $0x1f80] sm:$0xff]
      %v1412 = vld [vmem:[%s1 + $0x1f88] sm:$0xff]
      %v1413 = vld [vmem:[%s1 + $0x1f90] sm:$0xff]
      %v1414 = vld [vmem:[%s1 + $0x1f98] sm:$0xff]
      %v1415 = vld [vmem:[%s1 + $0x1fa0] sm:$0xff]
      %v1416 = vld [vmem:[%s1 + $0x1fa8] sm:$0xff]
      %v1417 = vld [vmem:[%s1 + $0x1fb0] sm:$0xff]
      %v1418 = vld [vmem:[%s1 + $0x1fb8] sm:$0xff]
      %v1419 = vld [vmem:[%s1 + $0x1fc0] sm:$0xff]
      %v1420 = vld [vmem:[%s1 + $0x1fc8] sm:$0xff]
      %v1421 = vld [vmem:[%s1 + $0x1fd0] sm:$0xff]
      %v1422 = vld [vmem:[%s1 + $0x1fd8] sm:$0xff]
      %v1423 = vld [vmem:[%s1 + $0x1fe0] sm:$0xff]
      %v1424 = vld [vmem:[%s1 + $0x1fe8] sm:$0xff]
      %v1425 = vld [vmem:[%s1 + $0x1ff0] sm:$0xff]
      %v1426 = vld [vmem:[%s1 + $0x1ff8] sm:$0xff]
      %v1427 = vld [vmem:[%s1 + $0x2000] sm:$0xff]
      %v1428 = vld [vmem:[%s1 + $0x2008] sm:$0xff]
      %v1429 = vld [vmem:[%s1 + $0x2010] sm:$0xff]
      %v1430 = vld [vmem:[%s1 + $0x2018] sm:$0xff]
      %v1431 = vld [vmem:[%s1 + $0x2020] sm:$0xff]
      %v1432 = vld [vmem:[%s1 + $0x2028] sm:$0xff]
      %v1433 = vld [vmem:[%s1 + $0x2030] sm:$0xff]
      %v1434 = vld [vmem:[%s1 + $0x2038] sm:$0xff]
      %v1435 = vld [vmem:[%s1 + $0x2040] sm:$0xff]
      %v1436 = vld [vmem:[%s1 + $0x2048] sm:$0xff]
      %v1437 = vld [vmem:[%s1 + $0x2050] sm:$0xff]
      %v1438 = vld [vmem:[%s1 + $0x2058] sm:$0xff]
      %v1439 = vld [vmem:[%s1 + $0x2060] sm:$0xff]
      %v1440 = vld [vmem:[%s1 + $0x2068] sm:$0xff]
      %v1441 = vld [vmem:[%s1 + $0x2070] sm:$0xff]
      %v1442 = vld [vmem:[%s1 + $0x2078] sm:$0xff]
      %v1443 = vld [vmem:[%s1 + $0x2080] sm:$0xff]
      %v1444 = vld [vmem:[%s1 + $0x2088] sm:$0xff]
      %v1445 = vld [vmem:[%s1 + $0x2090] sm:$0xff]
      %v1446 = vld [vmem:[%s1 + $0x2098] sm:$0xff]
      %v1447 = vld [vmem:[%s1 + $0x20a0] sm:$0xff]
      %v1448 = vld [vmem:[%s1 + $0x20a8] sm:$0xff]
      %v1449 = vld [vmem:[%s1 + $0x20b0] sm:$0xff]
      %v1450 = vld [vmem:[%s1 + $0x20b8] sm:$0xff]
      %v1451 = vld [vmem:[%s1 + $0x20c0] sm:$0xff]
      %v1452 = vld [vmem:[%s1 + $0x20c8] sm:$0xff]
      %v1453 = vld [vmem:[%s1 + $0x20d0] sm:$0xff]
      %v1454 = vld [vmem:[%s1 + $0x20d8] sm:$0xff]
      %v1455 = vld [vmem:[%s1 + $0x20e0] sm:$0xff]
      %v1456 = vld [vmem:[%s1 + $0x20e8] sm:$0xff]
      %v1457 = vld [vmem:[%s1 + $0x20f0] sm:$0xff]
      %v1458 = vld [vmem:[%s1 + $0x20f8] sm:$0xff]
      %v1459 = vld [vmem:[%s1 + $0x2100] sm:$0xff]
      %v1460 = vld [vmem:[%s1 + $0x2108] sm:$0xff]
      %v1461 = vld [vmem:[%s1 + $0x2110] sm:$0xff]
      %v1462 = vld [vmem:[%s1 + $0x2118] sm:$0xff]
      %v1463 = vld [vmem:[%s1 + $0x2120] sm:$0xff]
      %v1464 = vld [vmem:[%s1 + $0x2128] sm:$0xff]
      %v1465 = vld [vmem:[%s1 + $0x2130] sm:$0xff]
      %v1466 = vld [vmem:[%s1 + $0x2138] sm:$0xff]
      %v1467 = vld [vmem:[%s1 + $0x2140] sm:$0xff]
      %v1468 = vld [vmem:[%s1 + $0x2148] sm:$0xff]
      %v1469 = vld [vmem:[%s1 + $0x2150] sm:$0xff]
      %v1470 = vld [vmem:[%s1 + $0x2158] sm:$0xff]
      %v1471 = vld [vmem:[%s1 + $0x2160] sm:$0xff]
      %v1472 = vld [vmem:[%s1 + $0x2168] sm:$0xff]
      %v1473 = vld [vmem:[%s1 + $0x2170] sm:$0xff]
      %v1474 = vld [vmem:[%s1 + $0x2178] sm:$0xff]
      %v1475 = vld [vmem:[%s1 + $0x2180] sm:$0xff]
      %v1476 = vld [vmem:[%s1 + $0x2188] sm:$0xff]
      %v1477 = vld [vmem:[%s1 + $0x2190] sm:$0xff]
      %v1478 = vld [vmem:[%s1 + $0x2198] sm:$0xff]
      %v1479 = vld [vmem:[%s1 + $0x21a0] sm:$0xff]
      %v1480 = vld [vmem:[%s1 + $0x21a8] sm:$0xff]
      %v1481 = vld [vmem:[%s1 + $0x21b0] sm:$0xff]
      %v1482 = vld [vmem:[%s1 + $0x21b8] sm:$0xff]
      %v1483 = vld [vmem:[%s1 + $0x21c0] sm:$0xff]
      %v1484 = vld [vmem:[%s1 + $0x21c8] sm:$0xff]
      %v1485 = vld [vmem:[%s1 + $0x21d0] sm:$0xff]
      %v1486 = vld [vmem:[%s1 + $0x21d8] sm:$0xff]
      %v1487 = vld [vmem:[%s1 + $0x21e0] sm:$0xff]
      %v1488 = vld [vmem:[%s1 + $0x21e8] sm:$0xff]
      %v1489 = vld [vmem:[%s1 + $0x21f0] sm:$0xff]
      %v1490 = vld [vmem:[%s1 + $0x21f8] sm:$0xff]
      %v1491 = vld [vmem:[%s1 + $0x2200] sm:$0xff]
      %v1492 = vld [vmem:[%s1 + $0x2208] sm:$0xff]
      %v1493 = vld [vmem:[%s1 + $0x2210] sm:$0xff]
      %v1494 = vld [vmem:[%s1 + $0x2218] sm:$0xff]
      %v1495 = vld [vmem:[%s1 + $0x2220] sm:$0xff]
      %v1496 = vld [vmem:[%s1 + $0x2228] sm:$0xff]
      %v1497 = vld [vmem:[%s1 + $0x2230] sm:$0xff]
      %v1498 = vld [vmem:[%s1 + $0x2238] sm:$0xff]
      %v1499 = vld [vmem:[%s1 + $0x2240] sm:$0xff]
      %v1500 = vld [vmem:[%s1 + $0x2248] sm:$0xff]
      %v1501 = vld [vmem:[%s1 + $0x2250] sm:$0xff]
      %v1502 = vld [vmem:[%s1 + $0x2258] sm:$0xff]
      %v1503 = vld [vmem:[%s1 + $0x2260] sm:$0xff]
      %v1504 = vld [vmem:[%s1 + $0x2268] sm:$0xff]
      %v1505 = vld [vmem:[%s1 + $0x2270] sm:$0xff]
      %v1506 = vld [vmem:[%s1 + $0x2278] sm:$0xff]
      %v1507 = vld [vmem:[%s1 + $0x2280] sm:$0xff]
      %v1508 = vld [vmem:[%s1 + $0x2288] sm:$0xff]
      %v1509 = vld [vmem:[%s1 + $0x2290] sm:$0xff]
      %v1510 = vld [vmem:[%s1 + $0x2298] sm:$0xff]
      %v1511 = vld [vmem:[%s1 + $0x22a0] sm:$0xff]
      %v1512 = vld [vmem:[%s1 + $0x22a8] sm:$0xff]
      %v1513 = vld [vmem:[%s1 + $0x22b0] sm:$0xff]
      %v1514 = vld [vmem:[%s1 + $0x22b8] sm:$0xff]
      %v1515 = vld [vmem:[%s1 + $0x22c0] sm:$0xff]
      %v1516 = vld [vmem:[%s1 + $0x22c8] sm:$0xff]
      %v1517 = vld [vmem:[%s1 + $0x22d0] sm:$0xff]
      %v1518 = vld [vmem:[%s1 + $0x22d8] sm:$0xff]
      %v1519 = vld [vmem:[%s1 + $0x22e0] sm:$0xff]
      %v1520 = vld [vmem:[%s1 + $0x22e8] sm:$0xff]
      %v1521 = vld [vmem:[%s1 + $0x22f0] sm:$0xff]
      %v1522 = vld [vmem:[%s1 + $0x22f8] sm:$0xff]
      %v1523 = vld [vmem:[%s1 + $0x2300] sm:$0xff]
      %v1524 = vld [vmem:[%s1 + $0x2308] sm:$0xff]
      %v1525 = vld [vmem:[%s1 + $0x2310] sm:$0xff]
      %v1526 = vld [vmem:[%s1 + $0x2318] sm:$0xff]
      %v1527 = vld [vmem:[%s1 + $0x2320] sm:$0xff]
      %v1528 = vld [vmem:[%s1 + $0x2328] sm:$0xff]
      %v1529 = vld [vmem:[%s1 + $0x2330] sm:$0xff]
      %v1530 = vld [vmem:[%s1 + $0x2338] sm:$0xff]
      %v1531 = vld [vmem:[%s1 + $0x2340] sm:$0xff]
      %v1532 = vld [vmem:[%s1 + $0x2348] sm:$0xff]
      %v1533 = vld [vmem:[%s1 + $0x2350] sm:$0xff]
      %v1534 = vld [vmem:[%s1 + $0x2358] sm:$0xff]
      %v1535 = vld [vmem:[%s1 + $0x2360] sm:$0xff]
      %v1536 = vld [vmem:[%s1 + $0x2368] sm:$0xff]
      %v1537 = vld [vmem:[%s1 + $0x2370] sm:$0xff]
      %v1538 = vld [vmem:[%s1 + $0x2378] sm:$0xff]
      %v1539 = vld [vmem:[%s1 + $0x2380] sm:$0xff]
      %v1540 = vld [vmem:[%s1 + $0x2388] sm:$0xff]
      %v1541 = vld [vmem:[%s1 + $0x2390] sm:$0xff]
      %v1542 = vld [vmem:[%s1 + $0x2398] sm:$0xff]
      %v1543 = vld [vmem:[%s1 + $0x23a0] sm:$0xff]
      %v1544 = vld [vmem:[%s1 + $0x23a8] sm:$0xff]
      %v1545 = vld [vmem:[%s1 + $0x23b0] sm:$0xff]
      %v1546 = vld [vmem:[%s1 + $0x23b8] sm:$0xff]
      %v1547 = vld [vmem:[%s1 + $0x23c0] sm:$0xff]
      %v1548 = vld [vmem:[%s1 + $0x23c8] sm:$0xff]
      %v1549 = vld [vmem:[%s1 + $0x23d0] sm:$0xff]
      %v1550 = vld [vmem:[%s1 + $0x23d8] sm:$0xff]
      %v1551 = vld [vmem:[%s1 + $0x23e0] sm:$0xff]
      %v1552 = vld [vmem:[%s1 + $0x23e8] sm:$0xff]
      %v1553 = vld [vmem:[%s1 + $0x23f0] sm:$0xff]
      %v1554 = vld [vmem:[%s1 + $0x23f8] sm:$0xff]
      %v1555 = vld [vmem:[%s1 + $0x2400] sm:$0xff]
      %v1556 = vld [vmem:[%s1 + $0x2408] sm:$0xff]
      %v1557 = vld [vmem:[%s1 + $0x2410] sm:$0xff]
      %v1558 = vld [vmem:[%s1 + $0x2418] sm:$0xff]
      %v1559 = vld [vmem:[%s1 + $0x2420] sm:$0xff]
      %v1560 = vld [vmem:[%s1 + $0x2428] sm:$0xff]
      %v1561 = vld [vmem:[%s1 + $0x2430] sm:$0xff]
      %v1562 = vld [vmem:[%s1 + $0x2438] sm:$0xff]
      %v1563 = vld [vmem:[%s1 + $0x2440] sm:$0xff]
      %v1564 = vld [vmem:[%s1 + $0x2448] sm:$0xff]
      %v1565 = vld [vmem:[%s1 + $0x2450] sm:$0xff]
      %v1566 = vld [vmem:[%s1 + $0x2458] sm:$0xff]
      %v1567 = vld [vmem:[%s1 + $0x2460] sm:$0xff]
      %v1568 = vld [vmem:[%s1 + $0x2468] sm:$0xff]
      %v1569 = vld [vmem:[%s1 + $0x2470] sm:$0xff]
      %v1570 = vld [vmem:[%s1 + $0x2478] sm:$0xff]
      %v1571 = vld [vmem:[%s1 + $0x2480] sm:$0xff]
      %v1572 = vld [vmem:[%s1 + $0x2488] sm:$0xff]
      %v1573 = vld [vmem:[%s1 + $0x2490] sm:$0xff]
      %v1574 = vld [vmem:[%s1 + $0x2498] sm:$0xff]
      %v1575 = vld [vmem:[%s1 + $0x24a0] sm:$0xff]
      %v1576 = vld [vmem:[%s1 + $0x24a8] sm:$0xff]
      %v1577 = vld [vmem:[%s1 + $0x24b0] sm:$0xff]
      %v1578 = vld [vmem:[%s1 + $0x24b8] sm:$0xff]
      %v1579 = vld [vmem:[%s1 + $0x24c0] sm:$0xff]
      %v1580 = vld [vmem:[%s1 + $0x24c8] sm:$0xff]
      %v1581 = vld [vmem:[%s1 + $0x24d0] sm:$0xff]
      %v1582 = vld [vmem:[%s1 + $0x24d8] sm:$0xff]
      %v1583 = vld [vmem:[%s1 + $0x24e0] sm:$0xff]
      %v1584 = vld [vmem:[%s1 + $0x24e8] sm:$0xff]
      %v1585 = vld [vmem:[%s1 + $0x24f0] sm:$0xff]
      %v1586 = vld [vmem:[%s1 + $0x24f8] sm:$0xff]
      %v1587 = vld [vmem:[%s1 + $0x2500] sm:$0xff]
      %v1588 = vld [vmem:[%s1 + $0x2508] sm:$0xff]
      %v1589 = vld [vmem:[%s1 + $0x2510] sm:$0xff]
      %v1590 = vld [vmem:[%s1 + $0x2518] sm:$0xff]
      %v1591 = vld [vmem:[%s1 + $0x2520] sm:$0xff]
      %v1592 = vld [vmem:[%s1 + $0x2528] sm:$0xff]
      %v1593 = vld [vmem:[%s1 + $0x2530] sm:$0xff]
      %v1594 = vld [vmem:[%s1 + $0x2538] sm:$0xff]
      %v1595 = vld [vmem:[%s1 + $0x2540] sm:$0xff]
      %v1596 = vld [vmem:[%s1 + $0x2548] sm:$0xff]
      %v1597 = vld [vmem:[%s1 + $0x2550] sm:$0xff]
      %v1598 = vld [vmem:[%s1 + $0x2558] sm:$0xff]
      %v1599 = vld [vmem:[%s1 + $0x2560] sm:$0xff]
      %v1600 = vld [vmem:[%s1 + $0x2568] sm:$0xff]
      %v1601 = vld [vmem:[%s1 + $0x2570] sm:$0xff]
      %v1602 = vld [vmem:[%s1 + $0x2578] sm:$0xff]
      %v1603 = vld [vmem:[%s1 + $0x2580] sm:$0xff]
      %v1604 = vld [vmem:[%s1 + $0x2588] sm:$0xff]
      %v1605 = vld [vmem:[%s1 + $0x2590] sm:$0xff]
      %v1606 = vld [vmem:[%s1 + $0x2598] sm:$0xff]
      %v1607 = vld [vmem:[%s1 + $0x25a0] sm:$0xff]
      %v1608 = vld [vmem:[%s1 + $0x25a8] sm:$0xff]
      %v1609 = vld [vmem:[%s1 + $0x25b0] sm:$0xff]
      %v1610 = vld [vmem:[%s1 + $0x25b8] sm:$0xff]
      %v1611 = vld [vmem:[%s1 + $0x25c0] sm:$0xff]
      %v1612 = vld [vmem:[%s1 + $0x25c8] sm:$0xff]
      %v1613 = vld [vmem:[%s1 + $0x25d0] sm:$0xff]
      %v1614 = vld [vmem:[%s1 + $0x25d8] sm:$0xff]
      %v1615 = vld [vmem:[%s1 + $0x25e0] sm:$0xff]
      %v1616 = vld [vmem:[%s1 + $0x25e8] sm:$0xff]
      %v1617 = vld [vmem:[%s1 + $0x25f0] sm:$0xff]
      %v1618 = vld [vmem:[%s1 + $0x25f8] sm:$0xff]
      %v1619 = vld [vmem:[%s1 + $0x2600] sm:$0xff]
      %v1620 = vld [vmem:[%s1 + $0x2608] sm:$0xff]
      %v1621 = vld [vmem:[%s1 + $0x2610] sm:$0xff]
      %v1622 = vld [vmem:[%s1 + $0x2618] sm:$0xff]
      %v1623 = vld [vmem:[%s1 + $0x2620] sm:$0xff]
      %v1624 = vld [vmem:[%s1 + $0x2628] sm:$0xff]
      %v1625 = vld [vmem:[%s1 + $0x2630] sm:$0xff]
      %v1626 = vld [vmem:[%s1 + $0x2638] sm:$0xff]
      %v1627 = vld [vmem:[%s1 + $0x2640] sm:$0xff]
      %v1628 = vld [vmem:[%s1 + $0x2648] sm:$0xff]
      %v1629 = vld [vmem:[%s1 + $0x2650] sm:$0xff]
      %v1630 = vld [vmem:[%s1 + $0x2658] sm:$0xff]
      %v1631 = vld [vmem:[%s1 + $0x2660] sm:$0xff]
      %v1632 = vld [vmem:[%s1 + $0x2668] sm:$0xff]
      %v1633 = vld [vmem:[%s1 + $0x2670] sm:$0xff]
      %v1634 = vld [vmem:[%s1 + $0x2678] sm:$0xff]
      %v1635 = vld [vmem:[%s1 + $0x2680] sm:$0xff]
      %v1636 = vld [vmem:[%s1 + $0x2688] sm:$0xff]
      %v1637 = vld [vmem:[%s1 + $0x2690] sm:$0xff]
      %v1638 = vld [vmem:[%s1 + $0x2698] sm:$0xff]
      %v1639 = vld [vmem:[%s1 + $0x26a0] sm:$0xff]
      %v1640 = vld [vmem:[%s1 + $0x26a8] sm:$0xff]
      %v1641 = vld [vmem:[%s1 + $0x26b0] sm:$0xff]
      %v1642 = vld [vmem:[%s1 + $0x26b8] sm:$0xff]
      %v1643 = vld [vmem:[%s1 + $0x26c0] sm:$0xff]
      %v1644 = vld [vmem:[%s1 + $0x26c8] sm:$0xff]
      %v1645 = vld [vmem:[%s1 + $0x26d0] sm:$0xff]
      %v1646 = vld [vmem:[%s1 + $0x26d8] sm:$0xff]
      %v1647 = vld [vmem:[%s1 + $0x26e0] sm:$0xff]
      %v1648 = vld [vmem:[%s1 + $0x26e8] sm:$0xff]
      %v1649 = vld [vmem:[%s1 + $0x26f0] sm:$0xff]
      %v1650 = vld [vmem:[%s1 + $0x26f8] sm:$0xff]
      %v1651 = vld [vmem:[%s1 + $0x2700] sm:$0xff]
      %v1652 = vld [vmem:[%s1 + $0x2708] sm:$0xff]
      %v1653 = vld [vmem:[%s1 + $0x2710] sm:$0xff]
      %v1654 = vld [vmem:[%s1 + $0x2718] sm:$0xff]
      %v1655 = vld [vmem:[%s1 + $0x2720] sm:$0xff]
      %v1656 = vld [vmem:[%s1 + $0x2728] sm:$0xff]
      %v1657 = vld [vmem:[%s1 + $0x2730] sm:$0xff]
      %v1658 = vld [vmem:[%s1 + $0x2738] sm:$0xff]
      %v1659 = vld [vmem:[%s1 + $0x2740] sm:$0xff]
      %v1660 = vld [vmem:[%s1 + $0x2748] sm:$0xff]
      %v1661 = vld [vmem:[%s1 + $0x2750] sm:$0xff]
      %v1662 = vld [vmem:[%s1 + $0x2758] sm:$0xff]
      %v1663 = vld [vmem:[%s1 + $0x2760] sm:$0xff]
      %v1664 = vld [vmem:[%s1 + $0x2768] sm:$0xff]
      %v1665 = vld [vmem:[%s1 + $0x2770] sm:$0xff]
      %v1666 = vld [vmem:[%s1 + $0x2778] sm:$0xff]
      %v1667 = vld [vmem:[%s1 + $0x2780] sm:$0xff]
      %v1668 = vld [vmem:[%s1 + $0x2788] sm:$0xff]
      %v1669 = vld [vmem:[%s1 + $0x2790] sm:$0xff]
      %v1670 = vld [vmem:[%s1 + $0x2798] sm:$0xff]
      %v1671 = vld [vmem:[%s1 + $0x27a0] sm:$0xff]
      %v1672 = vld [vmem:[%s1 + $0x27a8] sm:$0xff]
      %v1673 = vld [vmem:[%s1 + $0x27b0] sm:$0xff]
      %v1674 = vld [vmem:[%s1 + $0x27b8] sm:$0xff]
      %v1675 = vld [vmem:[%s1 + $0x27c0] sm:$0xff]
      %v1676 = vld [vmem:[%s1 + $0x27c8] sm:$0xff]
      %v1677 = vld [vmem:[%s1 + $0x27d0] sm:$0xff]
      %v1678 = vld [vmem:[%s1 + $0x27d8] sm:$0xff]
      %v1679 = vld [vmem:[%s1 + $0x27e0] sm:$0xff]
      %v1680 = vld [vmem:[%s1 + $0x27e8] sm:$0xff]
      %v1681 = vld [vmem:[%s1 + $0x27f0] sm:$0xff]
      %v1682 = vld [vmem:[%s1 + $0x27f8] sm:$0xff]
      %v1683 = vld [vmem:[%s1 + $0x2800] sm:$0xff]
      %v1684 = vld [vmem:[%s1 + $0x2808] sm:$0xff]
      %v1685 = vld [vmem:[%s1 + $0x2810] sm:$0xff]
      %v1686 = vld [vmem:[%s1 + $0x2818] sm:$0xff]
      %v1687 = vld [vmem:[%s1 + $0x2820] sm:$0xff]
      %v1688 = vld [vmem:[%s1 + $0x2828] sm:$0xff]
      %v1689 = vld [vmem:[%s1 + $0x2830] sm:$0xff]
      %v1690 = vld [vmem:[%s1 + $0x2838] sm:$0xff]
      %v1691 = vld [vmem:[%s1 + $0x2840] sm:$0xff]
      %v1692 = vld [vmem:[%s1 + $0x2848] sm:$0xff]
      %v1693 = vld [vmem:[%s1 + $0x2850] sm:$0xff]
      %v1694 = vld [vmem:[%s1 + $0x2858] sm:$0xff]
      %v1695 = vld [vmem:[%s1 + $0x2860] sm:$0xff]
      %v1696 = vld [vmem:[%s1 + $0x2868] sm:$0xff]
      %v1697 = vld [vmem:[%s1 + $0x2870] sm:$0xff]
      %v1698 = vld [vmem:[%s1 + $0x2878] sm:$0xff]
      %v1699 = vld [vmem:[%s1 + $0x2880] sm:$0xff]
      %v1700 = vld [vmem:[%s1 + $0x2888] sm:$0xff]
      %v1701 = vld [vmem:[%s1 + $0x2890] sm:$0xff]
      %v1702 = vld [vmem:[%s1 + $0x2898] sm:$0xff]
      %v1703 = vld [vmem:[%s1 + $0x28a0] sm:$0xff]
      %v1704 = vld [vmem:[%s1 + $0x28a8] sm:$0xff]
      %v1705 = vld [vmem:[%s1 + $0x28b0] sm:$0xff]
      %v1706 = vld [vmem:[%s1 + $0x28b8] sm:$0xff]
      %v1707 = vld [vmem:[%s1 + $0x28c0] sm:$0xff]
      %v1708 = vld [vmem:[%s1 + $0x28c8] sm:$0xff]
      %v1709 = vld [vmem:[%s1 + $0x28d0] sm:$0xff]
      %v1710 = vld [vmem:[%s1 + $0x28d8] sm:$0xff]
      %v1711 = vld [vmem:[%s1 + $0x28e0] sm:$0xff]
      %v1712 = vld [vmem:[%s1 + $0x28e8] sm:$0xff]
      %v1713 = vld [vmem:[%s1 + $0x28f0] sm:$0xff]
      %v1714 = vld [vmem:[%s1 + $0x28f8] sm:$0xff]
      %v1715 = vld [vmem:[%s1 + $0x2900] sm:$0xff]
      %v1716 = vld [vmem:[%s1 + $0x2908] sm:$0xff]
      %v1717 = vld [vmem:[%s1 + $0x2910] sm:$0xff]
      %v1718 = vld [vmem:[%s1 + $0x2918] sm:$0xff]
      %v1719 = vld [vmem:[%s1 + $0x2920] sm:$0xff]
      %v1720 = vld [vmem:[%s1 + $0x2928] sm:$0xff]
      %v1721 = vld [vmem:[%s1 + $0x2930] sm:$0xff]
      %v1722 = vld [vmem:[%s1 + $0x2938] sm:$0xff]
      %v1723 = vld [vmem:[%s1 + $0x2940] sm:$0xff]
      %v1724 = vld [vmem:[%s1 + $0x2948] sm:$0xff]
      %v1725 = vld [vmem:[%s1 + $0x2950] sm:$0xff]
      %v1726 = vld [vmem:[%s1 + $0x2958] sm:$0xff]
      %v1727 = vld [vmem:[%s1 + $0x2960] sm:$0xff]
      %v1728 = vld [vmem:[%s1 + $0x2968] sm:$0xff]
      %v1729 = vld [vmem:[%s1 + $0x2970] sm:$0xff]
      %v1730 = vld [vmem:[%s1 + $0x2978] sm:$0xff]
      %v1731 = vld [vmem:[%s1 + $0x2980] sm:$0xff]
      %v1732 = vld [vmem:[%s1 + $0x2988] sm:$0xff]
      %v1733 = vld [vmem:[%s1 + $0x2990] sm:$0xff]
      %v1734 = vld [vmem:[%s1 + $0x2998] sm:$0xff]
      %v1735 = vld [vmem:[%s1 + $0x29a0] sm:$0xff]
      %v1736 = vld [vmem:[%s1 + $0x29a8] sm:$0xff]
      %v1737 = vld [vmem:[%s1 + $0x29b0] sm:$0xff]
      %v1738 = vld [vmem:[%s1 + $0x29b8] sm:$0xff]
      %v1739 = vld [vmem:[%s1 + $0x29c0] sm:$0xff]
      %v1740 = vld [vmem:[%s1 + $0x29c8] sm:$0xff]
      %v1741 = vld [vmem:[%s1 + $0x29d0] sm:$0xff]
      %v1742 = vld [vmem:[%s1 + $0x29d8] sm:$0xff]
      %v1743 = vld [vmem:[%s1 + $0x29e0] sm:$0xff]
      %v1744 = vld [vmem:[%s1 + $0x29e8] sm:$0xff]
      %v1745 = vld [vmem:[%s1 + $0x29f0] sm:$0xff]
      %v1746 = vld [vmem:[%s1 + $0x29f8] sm:$0xff]
      %v1747 = vld [vmem:[%s1 + $0x2a00] sm:$0xff]
      %v1748 = vld [vmem:[%s1 + $0x2a08] sm:$0xff]
      %v1749 = vld [vmem:[%s1 + $0x2a10] sm:$0xff]
      %v1750 = vld [vmem:[%s1 + $0x2a18] sm:$0xff]
      %v1751 = vld [vmem:[%s1 + $0x2a20] sm:$0xff]
      %v1752 = vld [vmem:[%s1 + $0x2a28] sm:$0xff]
      %v1753 = vld [vmem:[%s1 + $0x2a30] sm:$0xff]
      %v1754 = vld [vmem:[%s1 + $0x2a38] sm:$0xff]
      %v1755 = vld [vmem:[%s1 + $0x2a40] sm:$0xff]
      %v1756 = vld [vmem:[%s1 + $0x2a48] sm:$0xff]
      %v1757 = vld [vmem:[%s1 + $0x2a50] sm:$0xff]
      %v1758 = vld [vmem:[%s1 + $0x2a58] sm:$0xff]
      %v1759 = vld [vmem:[%s1 + $0x2a60] sm:$0xff]
      %v1760 = vld [vmem:[%s1 + $0x2a68] sm:$0xff]
      %v1761 = vld [vmem:[%s1 + $0x2a70] sm:$0xff]
      %v1762 = vld [vmem:[%s1 + $0x2a78] sm:$0xff]
      %v1763 = vld [vmem:[%s1 + $0x2a80] sm:$0xff]
      %v1764 = vld [vmem:[%s1 + $0x2a88] sm:$0xff]
      %v1765 = vld [vmem:[%s1 + $0x2a90] sm:$0xff]
      %v1766 = vld [vmem:[%s1 + $0x2a98] sm:$0xff]
      %v1767 = vld [vmem:[%s1 + $0x2aa0] sm:$0xff]
      %v1768 = vld [vmem:[%s1 + $0x2aa8] sm:$0xff]
      %v1769 = vld [vmem:[%s1 + $0x2ab0] sm:$0xff]
      %v1770 = vld [vmem:[%s1 + $0x2ab8] sm:$0xff]
      %v1771 = vld [vmem:[%s1 + $0x2ac0] sm:$0xff]
      %v1772 = vld [vmem:[%s1 + $0x2ac8] sm:$0xff]
      %v1773 = vld [vmem:[%s1 + $0x2ad0] sm:$0xff]
      %v1774 = vld [vmem:[%s1 + $0x2ad8] sm:$0xff]
      %v1775 = vld [vmem:[%s1 + $0x2ae0] sm:$0xff]
      %v1776 = vld [vmem:[%s1 + $0x2ae8] sm:$0xff]
      %v1777 = vld [vmem:[%s1 + $0x2af0] sm:$0xff]
      %v1778 = vld [vmem:[%s1 + $0x2af8] sm:$0xff]
      %v1779 = vld [vmem:[%s1 + $0x2b00] sm:$0xff]
      %v1780 = vld [vmem:[%s1 + $0x2b08] sm:$0xff]
      %v1781 = vld [vmem:[%s1 + $0x2b10] sm:$0xff]
      %v1782 = vld [vmem:[%s1 + $0x2b18] sm:$0xff]
      %v1783 = vld [vmem:[%s1 + $0x2b20] sm:$0xff]
      %v1784 = vld [vmem:[%s1 + $0x2b28] sm:$0xff]
      %v1785 = vld [vmem:[%s1 + $0x2b30] sm:$0xff]
      %v1786 = vld [vmem:[%s1 + $0x2b38] sm:$0xff]
      %v1787 = vld [vmem:[%s1 + $0x2b40] sm:$0xff]
      %v1788 = vld [vmem:[%s1 + $0x2b48] sm:$0xff]
      %v1789 = vld [vmem:[%s1 + $0x2b50] sm:$0xff]
      %v1790 = vld [vmem:[%s1 + $0x2b58] sm:$0xff]
      %v1791 = vld [vmem:[%s1 + $0x2b60] sm:$0xff]
      %v1792 = vld [vmem:[%s1 + $0x2b68] sm:$0xff]
      %v1793 = vld [vmem:[%s1 + $0x2b70] sm:$0xff]
      %v1794 = vld [vmem:[%s1 + $0x2b78] sm:$0xff]
      %v1795 = vld [vmem:[%s1 + $0x2b80] sm:$0xff]
      %v1796 = vld [vmem:[%s1 + $0x2b88] sm:$0xff]
      %v1797 = vld [vmem:[%s1 + $0x2b90] sm:$0xff]
      %v1798 = vld [vmem:[%s1 + $0x2b98] sm:$0xff]
      %v1799 = vld [vmem:[%s1 + $0x2ba0] sm:$0xff]
      %v1800 = vld [vmem:[%s1 + $0x2ba8] sm:$0xff]
      %v1801 = vld [vmem:[%s1 + $0x2bb0] sm:$0xff]
      %v1802 = vld [vmem:[%s1 + $0x2bb8] sm:$0xff]
      %v1803 = vld [vmem:[%s1 + $0x2bc0] sm:$0xff]
      %v1804 = vld [vmem:[%s1 + $0x2bc8] sm:$0xff]
      %v1805 = vld [vmem:[%s1 + $0x2bd0] sm:$0xff]
      %v1806 = vld [vmem:[%s1 + $0x2bd8] sm:$0xff]
      %v1807 = vld [vmem:[%s1 + $0x2be0] sm:$0xff]
      %v1808 = vld [vmem:[%s1 + $0x2be8] sm:$0xff]
      %v1809 = vld [vmem:[%s1 + $0x2bf0] sm:$0xff]
      %v1810 = vld [vmem:[%s1 + $0x2bf8] sm:$0xff]
      %v1811 = vld [vmem:[%s1 + $0x2c00] sm:$0xff]
      %v1812 = vld [vmem:[%s1 + $0x2c08] sm:$0xff]
      %v1813 = vld [vmem:[%s1 + $0x2c10] sm:$0xff]
      %v1814 = vld [vmem:[%s1 + $0x2c18] sm:$0xff]
      %v1815 = vld [vmem:[%s1 + $0x2c20] sm:$0xff]
      %v1816 = vld [vmem:[%s1 + $0x2c28] sm:$0xff]
      %v1817 = vld [vmem:[%s1 + $0x2c30] sm:$0xff]
      %v1818 = vld [vmem:[%s1 + $0x2c38] sm:$0xff]
      %v1819 = vld [vmem:[%s1 + $0x2c40] sm:$0xff]
      %v1820 = vld [vmem:[%s1 + $0x2c48] sm:$0xff]
      %v1821 = vld [vmem:[%s1 + $0x2c50] sm:$0xff]
      %v1822 = vld [vmem:[%s1 + $0x2c58] sm:$0xff]
      %v1823 = vld [vmem:[%s1 + $0x2c60] sm:$0xff]
      %v1824 = vld [vmem:[%s1 + $0x2c68] sm:$0xff]
      %v1825 = vld [vmem:[%s1 + $0x2c70] sm:$0xff]
      %v1826 = vld [vmem:[%s1 + $0x2c78] sm:$0xff]
      %v1827 = vld [vmem:[%s1 + $0x2c80] sm:$0xff]
      %v1828 = vld [vmem:[%s1 + $0x2c88] sm:$0xff]
      %v1829 = vld [vmem:[%s1 + $0x2c90] sm:$0xff]
      %v1830 = vld [vmem:[%s1 + $0x2c98] sm:$0xff]
      %v1831 = vld [vmem:[%s1 + $0x2ca0] sm:$0xff]
      %v1832 = vld [vmem:[%s1 + $0x2ca8] sm:$0xff]
      %v1833 = vld [vmem:[%s1 + $0x2cb0] sm:$0xff]
      %v1834 = vld [vmem:[%s1 + $0x2cb8] sm:$0xff]
      %v1835 = vld [vmem:[%s1 + $0x2cc0] sm:$0xff]
      %v1836 = vld [vmem:[%s1 + $0x2cc8] sm:$0xff]
      %v1837 = vld [vmem:[%s1 + $0x2cd0] sm:$0xff]
      %v1838 = vld [vmem:[%s1 + $0x2cd8] sm:$0xff]
      %v1839 = vld [vmem:[%s1 + $0x2ce0] sm:$0xff]
      %v1840 = vld [vmem:[%s1 + $0x2ce8] sm:$0xff]
      %v1841 = vld [vmem:[%s1 + $0x2cf0] sm:$0xff]
      %v1842 = vld [vmem:[%s1 + $0x2cf8] sm:$0xff]
      %v1843 = vld [vmem:[%s1 + $0x2d00] sm:$0xff]
      %v1844 = vld [vmem:[%s1 + $0x2d08] sm:$0xff]
      %v1845 = vld [vmem:[%s1 + $0x2d10] sm:$0xff]
      %v1846 = vld [vmem:[%s1 + $0x2d18] sm:$0xff]
      %v1847 = vld [vmem:[%s1 + $0x2d20] sm:$0xff]
      %v1848 = vld [vmem:[%s1 + $0x2d28] sm:$0xff]
      %v1849 = vld [vmem:[%s1 + $0x2d30] sm:$0xff]
      %v1850 = vld [vmem:[%s1 + $0x2d38] sm:$0xff]
      %v1851 = vld [vmem:[%s1 + $0x2d40] sm:$0xff]
      %v1852 = vld [vmem:[%s1 + $0x2d48] sm:$0xff]
      %v1853 = vld [vmem:[%s1 + $0x2d50] sm:$0xff]
      %v1854 = vld [vmem:[%s1 + $0x2d58] sm:$0xff]
      %v1855 = vld [vmem:[%s1 + $0x2d60] sm:$0xff]
      %v1856 = vld [vmem:[%s1 + $0x2d68] sm:$0xff]
      %v1857 = vld [vmem:[%s1 + $0x2d70] sm:$0xff]
      %v1858 = vld [vmem:[%s1 + $0x2d78] sm:$0xff]
      %v1859 = vld [vmem:[%s1 + $0x2d80] sm:$0xff]
      %v1860 = vld [vmem:[%s1 + $0x2d88] sm:$0xff]
      %v1861 = vld [vmem:[%s1 + $0x2d90] sm:$0xff]
      %v1862 = vld [vmem:[%s1 + $0x2d98] sm:$0xff]
      %v1863 = vld [vmem:[%s1 + $0x2da0] sm:$0xff]
      %v1864 = vld [vmem:[%s1 + $0x2da8] sm:$0xff]
      %v1865 = vld [vmem:[%s1 + $0x2db0] sm:$0xff]
      %v1866 = vld [vmem:[%s1 + $0x2db8] sm:$0xff]
      %v1867 = vld [vmem:[%s1 + $0x2dc0] sm:$0xff]
      %v1868 = vld [vmem:[%s1 + $0x2dc8] sm:$0xff]
      %v1869 = vld [vmem:[%s1 + $0x2dd0] sm:$0xff]
      %v1870 = vld [vmem:[%s1 + $0x2dd8] sm:$0xff]
      %v1871 = vld [vmem:[%s1 + $0x2de0] sm:$0xff]
      %v1872 = vld [vmem:[%s1 + $0x2de8] sm:$0xff]
      %v1873 = vld [vmem:[%s1 + $0x2df0] sm:$0xff]
      %v1874 = vld [vmem:[%s1 + $0x2df8] sm:$0xff]
      %v1875 = vld [vmem:[%s1 + $0x2e00] sm:$0xff]
      %v1876 = vld [vmem:[%s1 + $0x2e08] sm:$0xff]
      %v1877 = vld [vmem:[%s1 + $0x2e10] sm:$0xff]
      %v1878 = vld [vmem:[%s1 + $0x2e18] sm:$0xff]
      %v1879 = vld [vmem:[%s1 + $0x2e20] sm:$0xff]
      %v1880 = vld [vmem:[%s1 + $0x2e28] sm:$0xff]
      %v1881 = vld [vmem:[%s1 + $0x2e30] sm:$0xff]
      %v1882 = vld [vmem:[%s1 + $0x2e38] sm:$0xff]
      %v1883 = vld [vmem:[%s1 + $0x2e40] sm:$0xff]
      %v1884 = vld [vmem:[%s1 + $0x2e48] sm:$0xff]
      %v1885 = vld [vmem:[%s1 + $0x2e50] sm:$0xff]
      %v1886 = vld [vmem:[%s1 + $0x2e58] sm:$0xff]
      %v1887 = vld [vmem:[%s1 + $0x2e60] sm:$0xff]
      %v1888 = vld [vmem:[%s1 + $0x2e68] sm:$0xff]
      %v1889 = vld [vmem:[%s1 + $0x2e70] sm:$0xff]
      %v1890 = vld [vmem:[%s1 + $0x2e78] sm:$0xff]
      %v1891 = vld [vmem:[%s1 + $0x2e80] sm:$0xff]
      %v1892 = vld [vmem:[%s1 + $0x2e88] sm:$0xff]
      %v1893 = vld [vmem:[%s1 + $0x2e90] sm:$0xff]
      %v1894 = vld [vmem:[%s1 + $0x2e98] sm:$0xff]
      %v1895 = vld [vmem:[%s1 + $0x2ea0] sm:$0xff]
      %v1896 = vld [vmem:[%s1 + $0x2ea8] sm:$0xff]
      %v1897 = vld [vmem:[%s1 + $0x2eb0] sm:$0xff]
      %v1898 = vld [vmem:[%s1 + $0x2eb8] sm:$0xff]
      %v1899 = vld [vmem:[%s1 + $0x2ec0] sm:$0xff]
      %v1900 = vld [vmem:[%s1 + $0x2ec8] sm:$0xff]
      %v1901 = vld [vmem:[%s1 + $0x2ed0] sm:$0xff]
      %v1902 = vld [vmem:[%s1 + $0x2ed8] sm:$0xff]
      %v1903 = vld [vmem:[%s1 + $0x2ee0] sm:$0xff]
      %v1904 = vld [vmem:[%s1 + $0x2ee8] sm:$0xff]
      %v1905 = vld [vmem:[%s1 + $0x2ef0] sm:$0xff]
      %v1906 = vld [vmem:[%s1 + $0x2ef8] sm:$0xff]
      %v1907 = vld [vmem:[%s1 + $0x2f00] sm:$0xff]
      %v1908 = vld [vmem:[%s1 + $0x2f08] sm:$0xff]
      %v1909 = vld [vmem:[%s1 + $0x2f10] sm:$0xff]
      %v1910 = vld [vmem:[%s1 + $0x2f18] sm:$0xff]
      %v1911 = vld [vmem:[%s1 + $0x2f20] sm:$0xff]
      %v1912 = vld [vmem:[%s1 + $0x2f28] sm:$0xff]
      %v1913 = vld [vmem:[%s1 + $0x2f30] sm:$0xff]
      %v1914 = vld [vmem:[%s1 + $0x2f38] sm:$0xff]
      %v1915 = vld [vmem:[%s1 + $0x2f40] sm:$0xff]
      %v1916 = vld [vmem:[%s1 + $0x2f48] sm:$0xff]
      %v1917 = vld [vmem:[%s1 + $0x2f50] sm:$0xff]
      %v1918 = vld [vmem:[%s1 + $0x2f58] sm:$0xff]
      %v1919 = vld [vmem:[%s1 + $0x2f60] sm:$0xff]
      %v1920 = vld [vmem:[%s1 + $0x2f68] sm:$0xff]
      %v1921 = vld [vmem:[%s1 + $0x2f70] sm:$0xff]
      %v1922 = vld [vmem:[%s1 + $0x2f78] sm:$0xff]
      %v1923 = vld [vmem:[%s1 + $0x2f80] sm:$0xff]
      %v1924 = vld [vmem:[%s1 + $0x2f88] sm:$0xff]
      %v1925 = vld [vmem:[%s1 + $0x2f90] sm:$0xff]
      %v1926 = vld [vmem:[%s1 + $0x2f98] sm:$0xff]
      %v1927 = vld [vmem:[%s1 + $0x2fa0] sm:$0xff]
      %v1928 = vld [vmem:[%s1 + $0x2fa8] sm:$0xff]
      %v1929 = vld [vmem:[%s1 + $0x2fb0] sm:$0xff]
      %v1930 = vld [vmem:[%s1 + $0x2fb8] sm:$0xff]
      %v1931 = vld [vmem:[%s1 + $0x2fc0] sm:$0xff]
      %v1932 = vld [vmem:[%s1 + $0x2fc8] sm:$0xff]
      %v1933 = vld [vmem:[%s1 + $0x2fd0] sm:$0xff]
      %v1934 = vld [vmem:[%s1 + $0x2fd8] sm:$0xff]
      %v1935 = vld [vmem:[%s1 + $0x2fe0] sm:$0xff]
      %v1936 = vld [vmem:[%s1 + $0x2fe8] sm:$0xff]
      %v1937 = vld [vmem:[%s1 + $0x2ff0] sm:$0xff]
      %v1938 = vld [vmem:[%s1 + $0x2ff8] sm:$0xff]
      %v1939 = vld [vmem:[%s1 + $0x3000] sm:$0xff]
      %v1940 = vld [vmem:[%s1 + $0x3008] sm:$0xff]
      %v1941 = vld [vmem:[%s1 + $0x3010] sm:$0xff]
      %v1942 = vld [vmem:[%s1 + $0x3018] sm:$0xff]
      %v1943 = vld [vmem:[%s1 + $0x3020] sm:$0xff]
      %v1944 = vld [vmem:[%s1 + $0x3028] sm:$0xff]
      %v1945 = vld [vmem:[%s1 + $0x3030] sm:$0xff]
      %v1946 = vld [vmem:[%s1 + $0x3038] sm:$0xff]
      %v1947 = vld [vmem:[%s1 + $0x3040] sm:$0xff]
      %v1948 = vld [vmem:[%s1 + $0x3048] sm:$0xff]
      %v1949 = vld [vmem:[%s1 + $0x3050] sm:$0xff]
      %v1950 = vld [vmem:[%s1 + $0x3058] sm:$0xff]
      %v1951 = vld [vmem:[%s1 + $0x3060] sm:$0xff]
      %v1952 = vld [vmem:[%s1 + $0x3068] sm:$0xff]
      %v1953 = vld [vmem:[%s1 + $0x3070] sm:$0xff]
      %v1954 = vld [vmem:[%s1 + $0x3078] sm:$0xff]
      %v1955 = vld [vmem:[%s1 + $0x3080] sm:$0xff]
      %v1956 = vld [vmem:[%s1 + $0x3088] sm:$0xff]
      %v1957 = vld [vmem:[%s1 + $0x3090] sm:$0xff]
      %v1958 = vld [vmem:[%s1 + $0x3098] sm:$0xff]
      %v1959 = vld [vmem:[%s1 + $0x30a0] sm:$0xff]
      %v1960 = vld [vmem:[%s1 + $0x30a8] sm:$0xff]
      %v1961 = vld [vmem:[%s1 + $0x30b0] sm:$0xff]
      %v1962 = vld [vmem:[%s1 + $0x30b8] sm:$0xff]
      %v1963 = vld [vmem:[%s1 + $0x30c0] sm:$0xff]
      %v1964 = vld [vmem:[%s1 + $0x30c8] sm:$0xff]
      %v1965 = vld [vmem:[%s1 + $0x30d0] sm:$0xff]
      %v1966 = vld [vmem:[%s1 + $0x30d8] sm:$0xff]
      %v1967 = vld [vmem:[%s1 + $0x30e0] sm:$0xff]
      %v1968 = vld [vmem:[%s1 + $0x30e8] sm:$0xff]
      %v1969 = vld [vmem:[%s1 + $0x30f0] sm:$0xff]
      %v1970 = vld [vmem:[%s1 + $0x30f8] sm:$0xff]
      %v1971 = vld [vmem:[%s1 + $0x3100] sm:$0xff]
      %v1972 = vld [vmem:[%s1 + $0x3108] sm:$0xff]
      %v1973 = vld [vmem:[%s1 + $0x3110] sm:$0xff]
      %v1974 = vld [vmem:[%s1 + $0x3118] sm:$0xff]
      %v1975 = vld [vmem:[%s1 + $0x3120] sm:$0xff]
      %v1976 = vld [vmem:[%s1 + $0x3128] sm:$0xff]
      %v1977 = vld [vmem:[%s1 + $0x3130] sm:$0xff]
      %v1978 = vld [vmem:[%s1 + $0x3138] sm:$0xff]
      %v1979 = vld [vmem:[%s1 + $0x3140] sm:$0xff]
      %v1980 = vld [vmem:[%s1 + $0x3148] sm:$0xff]
      %v1981 = vld [vmem:[%s1 + $0x3150] sm:$0xff]
      %v1982 = vld [vmem:[%s1 + $0x3158] sm:$0xff]
      %v1983 = vld [vmem:[%s1 + $0x3160] sm:$0xff]
      %v1984 = vld [vmem:[%s1 + $0x3168] sm:$0xff]
      %v1985 = vld [vmem:[%s1 + $0x3170] sm:$0xff]
      %v1986 = vld [vmem:[%s1 + $0x3178] sm:$0xff]
      %v1987 = vld [vmem:[%s1 + $0x3180] sm:$0xff]
      %v1988 = vld [vmem:[%s1 + $0x3188] sm:$0xff]
      %v1989 = vld [vmem:[%s1 + $0x3190] sm:$0xff]
      %v1990 = vld [vmem:[%s1 + $0x3198] sm:$0xff]
      %v1991 = vld [vmem:[%s1 + $0x31a0] sm:$0xff]
      %v1992 = vld [vmem:[%s1 + $0x31a8] sm:$0xff]
      %v1993 = vld [vmem:[%s1 + $0x31b0] sm:$0xff]
      %v1994 = vld [vmem:[%s1 + $0x31b8] sm:$0xff]
      %v1995 = vld [vmem:[%s1 + $0x31c0] sm:$0xff]
      %v1996 = vld [vmem:[%s1 + $0x31c8] sm:$0xff]
      %v1997 = vld [vmem:[%s1 + $0x31d0] sm:$0xff]
      %v1998 = vld [vmem:[%s1 + $0x31d8] sm:$0xff]
      %v1999 = vld [vmem:[%s1 + $0x31e0] sm:$0xff]
      %v2000 = vld [vmem:[%s1 + $0x31e8] sm:$0xff]
      %v2001 = vld [vmem:[%s1 + $0x31f0] sm:$0xff]
      %v2002 = vld [vmem:[%s1 + $0x31f8] sm:$0xff]
      %v2003 = vld [vmem:[%s1 + $0x3200] sm:$0xff]
      %v2004 = vld [vmem:[%s1 + $0x3208] sm:$0xff]
      %v2005 = vld [vmem:[%s1 + $0x3210] sm:$0xff]
      %v2006 = vld [vmem:[%s1 + $0x3218] sm:$0xff]
      %v2007 = vld [vmem:[%s1 + $0x3220] sm:$0xff]
      %v2008 = vld [vmem:[%s1 + $0x3228] sm:$0xff]
      %v2009 = vld [vmem:[%s1 + $0x3230] sm:$0xff]
      %v2010 = vld [vmem:[%s1 + $0x3238] sm:$0xff]
      %v2011 = vld [vmem:[%s1 + $0x3240] sm:$0xff]
      %v2012 = vld [vmem:[%s1 + $0x3248] sm:$0xff]
      %v2013 = vld [vmem:[%s1 + $0x3250] sm:$0xff]
      %v2014 = vld [vmem:[%s1 + $0x3258] sm:$0xff]
      %v2015 = vld [vmem:[%s1 + $0x3260] sm:$0xff]
      %v2016 = vld [vmem:[%s1 + $0x3268] sm:$0xff]
      %v2017 = vld [vmem:[%s1 + $0x3270] sm:$0xff]
      %v2018 = vld [vmem:[%s1 + $0x3278] sm:$0xff]
      %v2019 = vld [vmem:[%s1 + $0x3280] sm:$0xff]
      %v2020 = vld [vmem:[%s1 + $0x3288] sm:$0xff]
      %v2021 = vld [vmem:[%s1 + $0x3290] sm:$0xff]
      %v2022 = vld [vmem:[%s1 + $0x3298] sm:$0xff]
      %v2023 = vld [vmem:[%s1 + $0x32a0] sm:$0xff]
      %v2024 = vld [vmem:[%s1 + $0x32a8] sm:$0xff]
      %v2025 = vld [vmem:[%s1 + $0x32b0] sm:$0xff]
      %v2026 = vld [vmem:[%s1 + $0x32b8] sm:$0xff]
      %v2027 = vld [vmem:[%s1 + $0x32c0] sm:$0xff]
      %v2028 = vld [vmem:[%s1 + $0x32c8] sm:$0xff]
      %v2029 = vld [vmem:[%s1 + $0x32d0] sm:$0xff]
      %v2030 = vld [vmem:[%s1 + $0x32d8] sm:$0xff]
      %v2031 = vld [vmem:[%s1 + $0x32e0] sm:$0xff]
      %v2032 = vld [vmem:[%s1 + $0x32e8] sm:$0xff]
      %v2033 = vld [vmem:[%s1 + $0x32f0] sm:$0xff]
      %v2034 = vld [vmem:[%s1 + $0x32f8] sm:$0xff]
      %v2035 = vld [vmem:[%s1 + $0x3300] sm:$0xff]
      %v2036 = vld [vmem:[%s1 + $0x3308] sm:$0xff]
      %v2037 = vld [vmem:[%s1 + $0x3310] sm:$0xff]
      %v2038 = vld [vmem:[%s1 + $0x3318] sm:$0xff]
      %v2039 = vld [vmem:[%s1 + $0x3320] sm:$0xff]
      %v2040 = vld [vmem:[%s1 + $0x3328] sm:$0xff]
      %v2041 = vld [vmem:[%s1 + $0x3330] sm:$0xff]
      %v2042 = vld [vmem:[%s1 + $0x3338] sm:$0xff]
      %v2043 = vld [vmem:[%s1 + $0x3340] sm:$0xff]
      %v2044 = vld [vmem:[%s1 + $0x3348] sm:$0xff]
      %v2045 = vld [vmem:[%s1 + $0x3350] sm:$0xff]
      %v2046 = vld [vmem:[%s1 + $0x3358] sm:$0xff]
      %v2047 = vld [vmem:[%s1 + $0x3360] sm:$0xff]
      %v2048 = vld [vmem:[%s1 + $0x3368] sm:$0xff]
      %v2049 = vld [vmem:[%s1 + $0x3370] sm:$0xff]
      %v2050 = vld [vmem:[%s1 + $0x3378] sm:$0xff]
      %v2051 = vld [vmem:[%s1 + $0x3380] sm:$0xff]
      %v2052 = vld [vmem:[%s1 + $0x3388] sm:$0xff]
      %v2053 = vld [vmem:[%s1 + $0x3390] sm:$0xff]
      %v2054 = vld [vmem:[%s1 + $0x3398] sm:$0xff]
      %v2055 = vld [vmem:[%s1 + $0x33a0] sm:$0xff]
      %v2056 = vld [vmem:[%s1 + $0x33a8] sm:$0xff]
      %v2057 = vld [vmem:[%s1 + $0x33b0] sm:$0xff]
      %v2058 = vld [vmem:[%s1 + $0x33b8] sm:$0xff]
      %v2059 = vld [vmem:[%s1 + $0x33c0] sm:$0xff]
      %v2060 = vld [vmem:[%s1 + $0x33c8] sm:$0xff]
      %v2061 = vld [vmem:[%s1 + $0x33d0] sm:$0xff]
      %v2062 = vld [vmem:[%s1 + $0x33d8] sm:$0xff]
      %v2063 = vld [vmem:[%s1 + $0x33e0] sm:$0xff]
      %v2064 = vld [vmem:[%s1 + $0x33e8] sm:$0xff]
      %v2065 = vld [vmem:[%s1 + $0x33f0] sm:$0xff]
      %v2066 = vld [vmem:[%s1 + $0x33f8] sm:$0xff]
      %v2067 = vld [vmem:[%s1 + $0x3400] sm:$0xff]
      %v2068 = vld [vmem:[%s1 + $0x3408] sm:$0xff]
      %v2069 = vld [vmem:[%s1 + $0x3410] sm:$0xff]
      %v2070 = vld [vmem:[%s1 + $0x3418] sm:$0xff]
      %v2071 = vld [vmem:[%s1 + $0x3420] sm:$0xff]
      %v2072 = vld [vmem:[%s1 + $0x3428] sm:$0xff]
      %v2073 = vld [vmem:[%s1 + $0x3430] sm:$0xff]
      %v2074 = vld [vmem:[%s1 + $0x3438] sm:$0xff]
      %v2075 = vld [vmem:[%s1 + $0x3440] sm:$0xff]
      %v2076 = vld [vmem:[%s1 + $0x3448] sm:$0xff]
      %v2077 = vld [vmem:[%s1 + $0x3450] sm:$0xff]
      %v2078 = vld [vmem:[%s1 + $0x3458] sm:$0xff]
      %v2079 = vld [vmem:[%s1 + $0x3460] sm:$0xff]
      %v2080 = vld [vmem:[%s1 + $0x3468] sm:$0xff]
      %v2081 = vld [vmem:[%s1 + $0x3470] sm:$0xff]
      %v2082 = vld [vmem:[%s1 + $0x3478] sm:$0xff]
      %v2083 = vld [vmem:[%s1 + $0x3480] sm:$0xff]
      %v2084 = vld [vmem:[%s1 + $0x3488] sm:$0xff]
      %v2085 = vld [vmem:[%s1 + $0x3490] sm:$0xff]
      %v2086 = vld [vmem:[%s1 + $0x3498] sm:$0xff]
      %v2087 = vld [vmem:[%s1 + $0x34a0] sm:$0xff]
      %v2088 = vld [vmem:[%s1 + $0x34a8] sm:$0xff]
      %v2089 = vld [vmem:[%s1 + $0x34b0] sm:$0xff]
      %v2090 = vld [vmem:[%s1 + $0x34b8] sm:$0xff]
      %v2091 = vld [vmem:[%s1 + $0x34c0] sm:$0xff]
      %v2092 = vld [vmem:[%s1 + $0x34c8] sm:$0xff]
      %v2093 = vld [vmem:[%s1 + $0x34d0] sm:$0xff]
      %v2094 = vld [vmem:[%s1 + $0x34d8] sm:$0xff]
      %v2095 = vld [vmem:[%s1 + $0x34e0] sm:$0xff]
      %v2096 = vld [vmem:[%s1 + $0x34e8] sm:$0xff]
      %v2097 = vld [vmem:[%s1 + $0x34f0] sm:$0xff]
      %v2098 = vld [vmem:[%s1 + $0x34f8] sm:$0xff]
      %v2099 = vld [vmem:[%s1 + $0x3500] sm:$0xff]
      %v2100 = vld [vmem:[%s1 + $0x3508] sm:$0xff]
      %v2101 = vld [vmem:[%s1 + $0x3510] sm:$0xff]
      %v2102 = vld [vmem:[%s1 + $0x3518] sm:$0xff]
      %v2103 = vld [vmem:[%s1 + $0x3520] sm:$0xff]
      %v2104 = vld [vmem:[%s1 + $0x3528] sm:$0xff]
      %v2105 = vld [vmem:[%s1 + $0x3530] sm:$0xff]
      %v2106 = vld [vmem:[%s1 + $0x3538] sm:$0xff]
      %v2107 = vld [vmem:[%s1 + $0x3540] sm:$0xff]
      %v2108 = vld [vmem:[%s1 + $0x3548] sm:$0xff]
      %v2109 = vld [vmem:[%s1 + $0x3550] sm:$0xff]
      %v2110 = vld [vmem:[%s1 + $0x3558] sm:$0xff]
      %v2111 = vld [vmem:[%s1 + $0x3560] sm:$0xff]
      %v2112 = vld [vmem:[%s1 + $0x3568] sm:$0xff]
      %v2113 = vld [vmem:[%s1 + $0x3570] sm:$0xff]
      %v2114 = vld [vmem:[%s1 + $0x3578] sm:$0xff]
      %v2115 = vld [vmem:[%s1 + $0x3580] sm:$0xff]
      %v2116 = vld [vmem:[%s1 + $0x3588] sm:$0xff]
      %v2117 = vld [vmem:[%s1 + $0x3590] sm:$0xff]
      %v2118 = vld [vmem:[%s1 + $0x3598] sm:$0xff]
      %v2119 = vld [vmem:[%s1 + $0x35a0] sm:$0xff]
      %v2120 = vld [vmem:[%s1 + $0x35a8] sm:$0xff]
      %v2121 = vld [vmem:[%s1 + $0x35b0] sm:$0xff]
      %v2122 = vld [vmem:[%s1 + $0x35b8] sm:$0xff]
      %v2123 = vld [vmem:[%s1 + $0x35c0] sm:$0xff]
      %v2124 = vld [vmem:[%s1 + $0x35c8] sm:$0xff]
      %v2125 = vld [vmem:[%s1 + $0x35d0] sm:$0xff]
      %v2126 = vld [vmem:[%s1 + $0x35d8] sm:$0xff]
      %v2127 = vld [vmem:[%s1 + $0x35e0] sm:$0xff]
      %v2128 = vld [vmem:[%s1 + $0x35e8] sm:$0xff]
      %v2129 = vld [vmem:[%s1 + $0x35f0] sm:$0xff]
      %v2130 = vld [vmem:[%s1 + $0x35f8] sm:$0xff]
      %v2131 = vld [vmem:[%s1 + $0x3600] sm:$0xff]
      %v2132 = vld [vmem:[%s1 + $0x3608] sm:$0xff]
      %v2133 = vld [vmem:[%s1 + $0x3610] sm:$0xff]
      %v2134 = vld [vmem:[%s1 + $0x3618] sm:$0xff]
      %v2135 = vld [vmem:[%s1 + $0x3620] sm:$0xff]
      %v2136 = vld [vmem:[%s1 + $0x3628] sm:$0xff]
      %v2137 = vld [vmem:[%s1 + $0x3630] sm:$0xff]
      %v2138 = vld [vmem:[%s1 + $0x3638] sm:$0xff]
      %v2139 = vld [vmem:[%s1 + $0x3640] sm:$0xff]
      %v2140 = vld [vmem:[%s1 + $0x3648] sm:$0xff]
      %v2141 = vld [vmem:[%s1 + $0x3650] sm:$0xff]
      %v2142 = vld [vmem:[%s1 + $0x3658] sm:$0xff]
      %v2143 = vld [vmem:[%s1 + $0x3660] sm:$0xff]
      %v2144 = vld [vmem:[%s1 + $0x3668] sm:$0xff]
      %v2145 = vld [vmem:[%s1 + $0x3670] sm:$0xff]
      %v2146 = vld [vmem:[%s1 + $0x3678] sm:$0xff]
      %v2147 = vld [vmem:[%s1 + $0x3680] sm:$0xff]
      %v2148 = vld [vmem:[%s1 + $0x3688] sm:$0xff]
      %v2149 = vld [vmem:[%s1 + $0x3690] sm:$0xff]
      %v2150 = vld [vmem:[%s1 + $0x3698] sm:$0xff]
      %v2151 = vld [vmem:[%s1 + $0x36a0] sm:$0xff]
      %v2152 = vld [vmem:[%s1 + $0x36a8] sm:$0xff]
      %v2153 = vld [vmem:[%s1 + $0x36b0] sm:$0xff]
      %v2154 = vld [vmem:[%s1 + $0x36b8] sm:$0xff]
      %v2155 = vld [vmem:[%s1 + $0x36c0] sm:$0xff]
      %v2156 = vld [vmem:[%s1 + $0x36c8] sm:$0xff]
      %v2157 = vld [vmem:[%s1 + $0x36d0] sm:$0xff]
      %v2158 = vld [vmem:[%s1 + $0x36d8] sm:$0xff]
      %v2159 = vld [vmem:[%s1 + $0x36e0] sm:$0xff]
      %v2160 = vld [vmem:[%s1 + $0x36e8] sm:$0xff]
      %v2161 = vld [vmem:[%s1 + $0x36f0] sm:$0xff]
      %v2162 = vld [vmem:[%s1 + $0x36f8] sm:$0xff]
      %v2163 = vld [vmem:[%s1 + $0x3700] sm:$0xff]
      %v2164 = vld [vmem:[%s1 + $0x3708] sm:$0xff]
      %v2165 = vld [vmem:[%s1 + $0x3710] sm:$0xff]
      %v2166 = vld [vmem:[%s1 + $0x3718] sm:$0xff]
      %v2167 = vld [vmem:[%s1 + $0x3720] sm:$0xff]
      %v2168 = vld [vmem:[%s1 + $0x3728] sm:$0xff]
      %v2169 = vld [vmem:[%s1 + $0x3730] sm:$0xff]
      %v2170 = vld [vmem:[%s1 + $0x3738] sm:$0xff]
      %v2171 = vld [vmem:[%s1 + $0x3740] sm:$0xff]
      %v2172 = vld [vmem:[%s1 + $0x3748] sm:$0xff]
      %v2173 = vld [vmem:[%s1 + $0x3750] sm:$0xff]
      %v2174 = vld [vmem:[%s1 + $0x3758] sm:$0xff]
      %v2175 = vld [vmem:[%s1 + $0x3760] sm:$0xff]
      %v2176 = vld [vmem:[%s1 + $0x3768] sm:$0xff]
      %v2177 = vld [vmem:[%s1 + $0x3770] sm:$0xff]
      %v2178 = vld [vmem:[%s1 + $0x3778] sm:$0xff]
      %v2179 = vld [vmem:[%s1 + $0x3780] sm:$0xff]
      %v2180 = vld [vmem:[%s1 + $0x3788] sm:$0xff]
      %v2181 = vld [vmem:[%s1 + $0x3790] sm:$0xff]
      %v2182 = vld [vmem:[%s1 + $0x3798] sm:$0xff]
      %v2183 = vld [vmem:[%s1 + $0x37a0] sm:$0xff]
      %v2184 = vld [vmem:[%s1 + $0x37a8] sm:$0xff]
      %v2185 = vld [vmem:[%s1 + $0x37b0] sm:$0xff]
      %v2186 = vld [vmem:[%s1 + $0x37b8] sm:$0xff]
      %v2187 = vld [vmem:[%s1 + $0x37c0] sm:$0xff]
      %v2188 = vld [vmem:[%s1 + $0x37c8] sm:$0xff]
      %v2189 = vld [vmem:[%s1 + $0x37d0] sm:$0xff]
      %v2190 = vld [vmem:[%s1 + $0x37d8] sm:$0xff]
      %v2191 = vld [vmem:[%s1 + $0x37e0] sm:$0xff]
      %v2192 = vld [vmem:[%s1 + $0x37e8] sm:$0xff]
      %v2193 = vld [vmem:[%s1 + $0x37f0] sm:$0xff]
      %v2194 = vld [vmem:[%s1 + $0x37f8] sm:$0xff]
      %v2195 = vld [vmem:[%s1 + $0x3800] sm:$0xff]
      %v2196 = vld [vmem:[%s1 + $0x3808] sm:$0xff]
      %v2197 = vld [vmem:[%s1 + $0x3810] sm:$0xff]
      %v2198 = vld [vmem:[%s1 + $0x3818] sm:$0xff]
      %v2199 = vld [vmem:[%s1 + $0x3820] sm:$0xff]
      %v2200 = vld [vmem:[%s1 + $0x3828] sm:$0xff]
      %v2201 = vld [vmem:[%s1 + $0x3830] sm:$0xff]
      %v2202 = vld [vmem:[%s1 + $0x3838] sm:$0xff]
      %v2203 = vld [vmem:[%s1 + $0x3840] sm:$0xff]
      %v2204 = vld [vmem:[%s1 + $0x3848] sm:$0xff]
      %v2205 = vld [vmem:[%s1 + $0x3850] sm:$0xff]
      %v2206 = vld [vmem:[%s1 + $0x3858] sm:$0xff]
      %v2207 = vld [vmem:[%s1 + $0x3860] sm:$0xff]
      %v2208 = vld [vmem:[%s1 + $0x3868] sm:$0xff]
      %v2209 = vld [vmem:[%s1 + $0x3870] sm:$0xff]
      %v2210 = vld [vmem:[%s1 + $0x3878] sm:$0xff]
      %v2211 = vld [vmem:[%s1 + $0x3880] sm:$0xff]
      %v2212 = vld [vmem:[%s1 + $0x3888] sm:$0xff]
      %v2213 = vld [vmem:[%s1 + $0x3890] sm:$0xff]
      %v2214 = vld [vmem:[%s1 + $0x3898] sm:$0xff]
      %v2215 = vld [vmem:[%s1 + $0x38a0] sm:$0xff]
      %v2216 = vld [vmem:[%s1 + $0x38a8] sm:$0xff]
      %v2217 = vld [vmem:[%s1 + $0x38b0] sm:$0xff]
      %v2218 = vld [vmem:[%s1 + $0x38b8] sm:$0xff]
      %v2219 = vld [vmem:[%s1 + $0x38c0] sm:$0xff]
      %v2220 = vld [vmem:[%s1 + $0x38c8] sm:$0xff]
      %v2221 = vld [vmem:[%s1 + $0x38d0] sm:$0xff]
      %v2222 = vld [vmem:[%s1 + $0x38d8] sm:$0xff]
      %v2223 = vld [vmem:[%s1 + $0x38e0] sm:$0xff]
      %v2224 = vld [vmem:[%s1 + $0x38e8] sm:$0xff]
      %v2225 = vld [vmem:[%s1 + $0x38f0] sm:$0xff]
      %v2226 = vld [vmem:[%s1 + $0x38f8] sm:$0xff]
      %v2227 = vld [vmem:[%s1 + $0x3900] sm:$0xff]
      %v2228 = vld [vmem:[%s1 + $0x3908] sm:$0xff]
      %v2229 = vld [vmem:[%s1 + $0x3910] sm:$0xff]
      %v2230 = vld [vmem:[%s1 + $0x3918] sm:$0xff]
      %v2231 = vld [vmem:[%s1 + $0x3920] sm:$0xff]
      %v2232 = vld [vmem:[%s1 + $0x3928] sm:$0xff]
      %v2233 = vld [vmem:[%s1 + $0x3930] sm:$0xff]
      %v2234 = vld [vmem:[%s1 + $0x3938] sm:$0xff]
      %v2235 = vld [vmem:[%s1 + $0x3940] sm:$0xff]
      %v2236 = vld [vmem:[%s1 + $0x3948] sm:$0xff]
      %v2237 = vld [vmem:[%s1 + $0x3950] sm:$0xff]
      %v2238 = vld [vmem:[%s1 + $0x3958] sm:$0xff]
      %v2239 = vld [vmem:[%s1 + $0x3960] sm:$0xff]
      %v2240 = vld [vmem:[%s1 + $0x3968] sm:$0xff]
      %v2241 = vld [vmem:[%s1 + $0x3970] sm:$0xff]
      %v2242 = vld [vmem:[%s1 + $0x3978] sm:$0xff]
      %v2243 = vld [vmem:[%s1 + $0x3980] sm:$0xff]
      %v2244 = vld [vmem:[%s1 + $0x3988] sm:$0xff]
      %v2245 = vld [vmem:[%s1 + $0x3990] sm:$0xff]
      %v2246 = vld [vmem:[%s1 + $0x3998] sm:$0xff]
      %v2247 = vld [vmem:[%s1 + $0x39a0] sm:$0xff]
      %v2248 = vld [vmem:[%s1 + $0x39a8] sm:$0xff]
      %v2249 = vld [vmem:[%s1 + $0x39b0] sm:$0xff]
      %v2250 = vld [vmem:[%s1 + $0x39b8] sm:$0xff]
      %v2251 = vld [vmem:[%s2] sm:$0x1]
      %v2253 = vlaneseq
      %v2254 = vshrl.u32 %v2253, 7
      %v2255 = vsub.s32 0, %v2254
      %v2256 = vrot.slane %v2251, %v2255
      %vm2258 = vcmask 523264
      %v2260 = vsel %vm2258, %v286, 0
      %v2263 = vsel %vm2258, %v402, 0
      %2265 = vmatprep.subr.mxu0 0.0
      %2266 = vmatpush1.msra.mxu0 %v403
      %2267 = vmatprep.subr.mxu0 0.0
      %2268 = vmatpush1.msra.mxu0 %v404
      %2269 = vmatprep.subr.mxu0 0.0
      %2270 = vmatpush1.msra.mxu0 %v405
      %2271 = vmatprep.subr.mxu0 0.0
      %2272 = vmatpush1.msra.mxu0 %v406
      %2273 = vmatprep.subr.mxu0 0.0
      %2274 = vmatpush1.msra.mxu0 %v407
      %2275 = vmatprep.subr.mxu0 0.0
      %2276 = vmatpush1.msra.mxu0 %v408
      %2277 = vmatprep.subr.mxu0 0.0
      %2278 = vmatpush1.msra.mxu0 %v409
      %2279 = vmatprep.subr.mxu0 0.0
      %2280 = vmatpush1.msra.mxu0 %v410
      %2281 = vmatprep.subr.mxu0 0.0
      %2282 = vmatpush1.msra.mxu0 %v411
      %2283 = vmatprep.subr.mxu0 0.0
      %2284 = vmatpush1.msra.mxu0 %v412
      %2285 = vmatprep.subr.mxu0 0.0
      %2286 = vmatpush1.msra.mxu0 %v413
      %2287 = vmatprep.subr.mxu0 0.0
      %2288 = vmatpush1.msra.mxu0 %v414
      %2289 = vmatprep.subr.mxu0 0.0
      %2290 = vmatpush1.msra.mxu0 %v415
      %2291 = vmatprep.subr.mxu0 0.0
      %2292 = vmatpush1.msra.mxu0 %v416
      %2293 = vmatprep.subr.mxu0 0.0
      %2294 = vmatpush1.msra.mxu0 %v417
      %2295 = vmatprep.subr.mxu0 0.0
      %2296 = vmatpush1.msra.mxu0 %v418
      %2297 = vmatprep.subr.mxu0 0.0
      %2298 = vmatpush1.msra.mxu0 %v419
      %2299 = vmatprep.subr.mxu0 0.0
      %2300 = vmatpush1.msra.mxu0 %v420
      %2301 = vmatprep.subr.mxu0 0.0
      %2302 = vmatpush1.msra.mxu0 %v421
      %2303 = vmatprep.subr.mxu0 0.0
      %2304 = vmatpush1.msra.mxu0 %v422
      %2305 = vmatprep.subr.mxu0 0.0
      %2306 = vmatpush1.msra.mxu0 %v423
      %2307 = vmatprep.subr.mxu0 0.0
      %2308 = vmatpush1.msra.mxu0 %v424
      %2309 = vmatprep.subr.mxu0 0.0
      %2310 = vmatpush1.msra.mxu0 %v425
      %2311 = vmatprep.subr.mxu0 0.0
      %2312 = vmatpush1.msra.mxu0 %v426
      %2313 = vmatprep.subr.mxu0 0.0
      %2314 = vmatpush1.msra.mxu0 %v427
      %2315 = vmatprep.subr.mxu0 0.0
      %2316 = vmatpush1.msra.mxu0 %v428
      %2317 = vmatprep.subr.mxu0 0.0
      %2318 = vmatpush1.msra.mxu0 %v429
      %2319 = vmatprep.subr.mxu0 0.0
      %2320 = vmatpush1.msra.mxu0 %v430
      %2321 = vmatprep.subr.mxu0 0.0
      %2322 = vmatpush1.msra.mxu0 %v431
      %2323 = vmatprep.subr.mxu0 0.0
      %2324 = vmatpush1.msra.mxu0 %v432
      %2325 = vmatprep.subr.mxu0 0.0
      %2326 = vmatpush1.msra.mxu0 %v433
      %2327 = vmatprep.subr.mxu0 0.0
      %2328 = vmatpush1.msra.mxu0 %v434
      %2329 = vmatprep.mubr.f32.mxu0 %v172
      %2330 = vmatmul.mubr.f32.gmra.mrb[0].mxu0 %v171
      %v2331 = vpop.f32.mrb[0].mxu0
      %v2332 = vadd.f32 %v2256, %v2331
      %v2333 = vpop.f32.mrb[0].mxu0
      %2334 = vmatprep.mubr.f32.mxu0 %v288
      %2335 = vmatmul.mubr.f32.gmra.mrb[0].mxu0 %v287
      %v2336 = vpop.f32.mrb[0].mxu0
      %v2337 = vadd.f32 %v2256, %v2336
      %v2338 = vpop.f32.mrb[0].mxu0
      %2339 = vdwg.mxu0
      %2340 = vmatprep.subr.mxu0 0.0
      %2341 = vmatpush1.msra.mxu0 %v435
      %2342 = vmatprep.subr.mxu0 0.0
      %2343 = vmatpush1.msra.mxu0 %v436
      %2344 = vmatprep.subr.mxu0 0.0
      %2345 = vmatpush1.msra.mxu0 %v437
      %2346 = vmatprep.subr.mxu0 0.0
      %2347 = vmatpush1.msra.mxu0 %v438
      %2348 = vmatprep.subr.mxu0 0.0
      %2349 = vmatpush1.msra.mxu0 %v439
      %2350 = vmatprep.subr.mxu0 0.0
      %2351 = vmatpush1.msra.mxu0 %v440
      %2352 = vmatprep.subr.mxu0 0.0
      %2353 = vmatpush1.msra.mxu0 %v441
      %2354 = vmatprep.subr.mxu0 0.0
      %2355 = vmatpush1.msra.mxu0 %v442
      %2356 = vmatprep.subr.mxu0 0.0
      %2357 = vmatpush1.msra.mxu0 %v443
      %2358 = vmatprep.subr.mxu0 0.0
      %2359 = vmatpush1.msra.mxu0 %v444
      %2360 = vmatprep.subr.mxu0 0.0
      %2361 = vmatpush1.msra.mxu0 %v445
      %2362 = vmatprep.subr.mxu0 0.0
      %2363 = vmatpush1.msra.mxu0 %v446
      %2364 = vmatprep.subr.mxu0 0.0
      %2365 = vmatpush1.msra.mxu0 %v447
      %2366 = vmatprep.subr.mxu0 0.0
      %2367 = vmatpush1.msra.mxu0 %v448
      %2368 = vmatprep.subr.mxu0 0.0
      %2369 = vmatpush1.msra.mxu0 %v449
      %2370 = vmatprep.subr.mxu0 0.0
      %2371 = vmatpush1.msra.mxu0 %v450
      %2372 = vmatprep.subr.mxu0 0.0
      %2373 = vmatpush1.msra.mxu0 %v451
      %2374 = vmatprep.subr.mxu0 0.0
      %2375 = vmatpush1.msra.mxu0 %v452
      %2376 = vmatprep.subr.mxu0 0.0
      %2377 = vmatpush1.msra.mxu0 %v453
      %2378 = vmatprep.subr.mxu0 0.0
      %2379 = vmatpush1.msra.mxu0 %v454
      %2380 = vmatprep.subr.mxu0 0.0
      %2381 = vmatpush1.msra.mxu0 %v455
      %2382 = vmatprep.subr.mxu0 0.0
      %2383 = vmatpush1.msra.mxu0 %v456
      %2384 = vmatprep.subr.mxu0 0.0
      %2385 = vmatpush1.msra.mxu0 %v457
      %2386 = vmatprep.subr.mxu0 0.0
      %2387 = vmatpush1.msra.mxu0 %v458
      %2388 = vmatprep.subr.mxu0 0.0
      %2389 = vmatpush1.msra.mxu0 %v459
      %2390 = vmatprep.subr.mxu0 0.0
      %2391 = vmatpush1.msra.mxu0 %v460
      %2392 = vmatprep.subr.mxu0 0.0
      %2393 = vmatpush1.msra.mxu0 %v461
      %2394 = vmatprep.subr.mxu0 0.0
      %2395 = vmatpush1.msra.mxu0 %v462
      %2396 = vmatprep.subr.mxu0 0.0
      %2397 = vmatpush1.msra.mxu0 %v463
      %2398 = vmatprep.subr.mxu0 0.0
      %2399 = vmatpush1.msra.mxu0 %v464
      %2400 = vmatprep.subr.mxu0 0.0
      %2401 = vmatpush1.msra.mxu0 %v465
      %2402 = vmatprep.subr.mxu0 0.0
      %2403 = vmatpush1.msra.mxu0 %v466
      %2404 = vmatprep.mubr.f32.mxu0 %v174
      %2405 = vmatmul.mubr.f32.gmra.mrb[0].mxu0 %v173
      %v2406 = vpop.f32.mrb[0].mxu0
      %v2407 = vadd.f32 %v2332, %v2406
      %v2408 = vpop.f32.mrb[0].mxu0
      %2409 = vmatprep.mubr.f32.mxu0 %v290
      %2410 = vmatmul.mubr.f32.gmra.mrb[0].mxu0 %v289
      %v2411 = vpop.f32.mrb[0].mxu0
      %v2412 = vadd.f32 %v2337, %v2411
      %v2413 = vpop.f32.mrb[0].mxu0
      %2414 = vdwg.mxu0
      %2415 = vmatprep.subr.mxu0 0.0
      %2416 = vmatpush1.msra.mxu0 %v467
      %2417 = vmatprep.subr.mxu0 0.0
      %2418 = vmatpush1.msra.mxu0 %v468
      %2419 = vmatprep.subr.mxu0 0.0
      %2420 = vmatpush1.msra.mxu0 %v469
      %2421 = vmatprep.subr.mxu0 0.0
      %2422 = vmatpush1.msra.mxu0 %v470
      %2423 = vmatprep.subr.mxu0 0.0
      %2424 = vmatpush1.msra.mxu0 %v471
      %2425 = vmatprep.subr.mxu0 0.0
      %2426 = vmatpush1.msra.mxu0 %v472
      %2427 = vmatprep.subr.mxu0 0.0
      %2428 = vmatpush1.msra.mxu0 %v473
      %2429 = vmatprep.subr.mxu0 0.0
      %2430 = vmatpush1.msra.mxu0 %v474
      %2431 = vmatprep.subr.mxu0 0.0
      %2432 = vmatpush1.msra.mxu0 %v475
      %2433 = vmatprep.subr.mxu0 0.0
      %2434 = vmatpush1.msra.mxu0 %v476
      %2435 = vmatprep.subr.mxu0 0.0
      %2436 = vmatpush1.msra.mxu0 %v477
      %2437 = vmatprep.subr.mxu0 0.0
      %2438 = vmatpush1.msra.mxu0 %v478
      %2439 = vmatprep.subr.mxu0 0.0
      %2440 = vmatpush1.msra.mxu0 %v479
      %2441 = vmatprep.subr.mxu0 0.0
      %2442 = vmatpush1.msra.mxu0 %v480
      %2443 = vmatprep.subr.mxu0 0.0
      %2444 = vmatpush1.msra.mxu0 %v481
      %2445 = vmatprep.subr.mxu0 0.0
      %2446 = vmatpush1.msra.mxu0 %v482
      %2447 = vmatprep.subr.mxu0 0.0
      %2448 = vmatpush1.msra.mxu0 %v483
      %2449 = vmatprep.subr.mxu0 0.0
      %2450 = vmatpush1.msra.mxu0 %v484
      %2451 = vmatprep.subr.mxu0 0.0
      %2452 = vmatpush1.msra.mxu0 %v485
      %2453 = vmatprep.subr.mxu0 0.0
      %2454 = vmatpush1.msra.mxu0 %v486
      %2455 = vmatprep.subr.mxu0 0.0
      %2456 = vmatpush1.msra.mxu0 %v487
      %2457 = vmatprep.subr.mxu0 0.0
      %2458 = vmatpush1.msra.mxu0 %v488
      %2459 = vmatprep.subr.mxu0 0.0
      %2460 = vmatpush1.msra.mxu0 %v489
      %2461 = vmatprep.subr.mxu0 0.0
      %2462 = vmatpush1.msra.mxu0 %v490
      %2463 = vmatprep.subr.mxu0 0.0
      %2464 = vmatpush1.msra.mxu0 %v491
      %2465 = vmatprep.subr.mxu0 0.0
      %2466 = vmatpush1.msra.mxu0 %v492
      %2467 = vmatprep.subr.mxu0 0.0
      %2468 = vmatpush1.msra.mxu0 %v493
      %2469 = vmatprep.subr.mxu0 0.0
      %2470 = vmatpush1.msra.mxu0 %v494
      %2471 = vmatprep.subr.mxu0 0.0
      %2472 = vmatpush1.msra.mxu0 %v495
      %2473 = vmatprep.subr.mxu0 0.0
      %2474 = vmatpush1.msra.mxu0 %v496
      %2475 = vmatprep.subr.mxu0 0.0
      %2476 = vmatpush1.msra.mxu0 %v497
      %2477 = vmatprep.subr.mxu0 0.0
      %2478 = vmatpush1.msra.mxu0 %v498
      %2479 = vmatprep.mubr.f32.mxu0 %v176
      %2480 = vmatmul.mubr.f32.gmra.mrb[0].mxu0 %v175
      %v2481 = vpop.f32.mrb[0].mxu0
      %v2482 = vadd.f32 %v2407, %v2481
      %v2483 = vpop.f32.mrb[0].mxu0
      %2484 = vmatprep.mubr.f32.mxu0 %v292
      %2485 = vmatmul.mubr.f32.gmra.mrb[0].mxu0 %v291
      %v2486 = vpop.f32.mrb[0].mxu0
      %v2487 = vadd.f32 %v2412, %v2486
      %v2488 = vpop.f32.mrb[0].mxu0
      %2489 = vdwg.mxu0
      %2490 = vmatprep.subr.mxu0 0.0
      %2491 = vmatpush1.msra.mxu0 %v499
      %2492 = vmatprep.subr.mxu0 0.0
      %2493 = vmatpush1.msra.mxu0 %v500
      %2494 = vmatprep.subr.mxu0 0.0
      %2495 = vmatpush1.msra.mxu0 %v501
      %2496 = vmatprep.subr.mxu0 0.0
      %2497 = vmatpush1.msra.mxu0 %v502
      %2498 = vmatprep.subr.mxu0 0.0
      %2499 = vmatpush1.msra.mxu0 %v503
      %2500 = vmatprep.subr.mxu0 0.0
      %2501 = vmatpush1.msra.mxu0 %v504
      %2502 = vmatprep.subr.mxu0 0.0
      %2503 = vmatpush1.msra.mxu0 %v505
      %2504 = vmatprep.subr.mxu0 0.0
      %2505 = vmatpush1.msra.mxu0 %v506
      %2506 = vmatprep.subr.mxu0 0.0
      %2507 = vmatpush1.msra.mxu0 %v507
      %2508 = vmatprep.subr.mxu0 0.0
      %2509 = vmatpush1.msra.mxu0 %v508
      %2510 = vmatprep.subr.mxu0 0.0
      %2511 = vmatpush1.msra.mxu0 %v509
      %2512 = vmatprep.subr.mxu0 0.0
      %2513 = vmatpush1.msra.mxu0 %v510
      %2514 = vmatprep.subr.mxu0 0.0
      %2515 = vmatpush1.msra.mxu0 %v511
      %2516 = vmatprep.subr.mxu0 0.0
      %2517 = vmatpush1.msra.mxu0 %v512
      %2518 = vmatprep.subr.mxu0 0.0
      %2519 = vmatpush1.msra.mxu0 %v513
      %2520 = vmatprep.subr.mxu0 0.0
      %2521 = vmatpush1.msra.mxu0 %v514
      %2522 = vmatprep.subr.mxu0 0.0
      %2523 = vmatpush1.msra.mxu0 %v515
      %2524 = vmatprep.subr.mxu0 0.0
      %2525 = vmatpush1.msra.mxu0 %v516
      %2526 = vmatprep.subr.mxu0 0.0
      %2527 = vmatpush1.msra.mxu0 %v517
      %2528 = vmatprep.subr.mxu0 0.0
      %2529 = vmatpush1.msra.mxu0 %v518
      %2530 = vmatprep.subr.mxu0 0.0
      %2531 = vmatpush1.msra.mxu0 %v519
      %2532 = vmatprep.subr.mxu0 0.0
      %2533 = vmatpush1.msra.mxu0 %v520
      %2534 = vmatprep.subr.mxu0 0.0
      %2535 = vmatpush1.msra.mxu0 %v521
      %2536 = vmatprep.subr.mxu0 0.0
      %2537 = vmatpush1.msra.mxu0 %v522
      %2538 = vmatprep.subr.mxu0 0.0
      %2539 = vmatpush1.msra.mxu0 %v523
      %2540 = vmatprep.subr.mxu0 0.0
      %2541 = vmatpush1.msra.mxu0 %v524
      %2542 = vmatprep.subr.mxu0 0.0
      %2543 = vmatpush1.msra.mxu0 %v525
      %2544 = vmatprep.subr.mxu0 0.0
      %2545 = vmatpush1.msra.mxu0 %v526
      %2546 = vmatprep.subr.mxu0 0.0
      %2547 = vmatpush1.msra.mxu0 %v527
      %2548 = vmatprep.subr.mxu0 0.0
      %2549 = vmatpush1.msra.mxu0 %v528
      %2550 = vmatprep.subr.mxu0 0.0
      %2551 = vmatpush1.msra.mxu0 %v529
      %2552 = vmatprep.subr.mxu0 0.0
      %2553 = vmatpush1.msra.mxu0 %v530
      %2554 = vmatprep.mubr.f32.mxu0 %v178
      %2555 = vmatmul.mubr.f32.gmra.mrb[0].mxu0 %v177
      %v2556 = vpop.f32.mrb[0].mxu0
      %v2557 = vadd.f32 %v2482, %v2556
      %v2558 = vpop.f32.mrb[0].mxu0
      %2559 = vmatprep.mubr.f32.mxu0 %v294
      %2560 = vmatmul.mubr.f32.gmra.mrb[0].mxu0 %v293
      %v2561 = vpop.f32.mrb[0].mxu0
      %v2562 = vadd.f32 %v2487, %v2561
      %v2563 = vpop.f32.mrb[0].mxu0
      %2564 = vdwg.mxu0
      %2565 = vmatprep.subr.mxu0 0.0
      %2566 = vmatpush1.msra.mxu0 %v531
      %2567 = vmatprep.subr.mxu0 0.0
      %2568 = vmatpush1.msra.mxu0 %v532
      %2569 = vmatprep.subr.mxu0 0.0
      %2570 = vmatpush1.msra.mxu0 %v533
      %2571 = vmatprep.subr.mxu0 0.0
      %2572 = vmatpush1.msra.mxu0 %v534
      %2573 = vmatprep.subr.mxu0 0.0
      %2574 = vmatpush1.msra.mxu0 %v535
      %2575 = vmatprep.subr.mxu0 0.0
      %2576 = vmatpush1.msra.mxu0 %v536
      %2577 = vmatprep.subr.mxu0 0.0
      %2578 = vmatpush1.msra.mxu0 %v537
      %2579 = vmatprep.subr.mxu0 0.0
      %2580 = vmatpush1.msra.mxu0 %v538
      %2581 = vmatprep.subr.mxu0 0.0
      %2582 = vmatpush1.msra.mxu0 %v539
      %2583 = vmatprep.subr.mxu0 0.0
      %2584 = vmatpush1.msra.mxu0 %v540
      %2585 = vmatprep.subr.mxu0 0.0
      %2586 = vmatpush1.msra.mxu0 %v541
      %2587 = vmatprep.subr.mxu0 0.0
      %2588 = vmatpush1.msra.mxu0 %v542
      %2589 = vmatprep.subr.mxu0 0.0
      %2590 = vmatpush1.msra.mxu0 %v543
      %2591 = vmatprep.subr.mxu0 0.0
      %2592 = vmatpush1.msra.mxu0 %v544
      %2593 = vmatprep.subr.mxu0 0.0
      %2594 = vmatpush1.msra.mxu0 %v545
      %2595 = vmatprep.subr.mxu0 0.0
      %2596 = vmatpush1.msra.mxu0 %v546
      %2597 = vmatprep.subr.mxu0 0.0
      %2598 = vmatpush1.msra.mxu0 %v547
      %2599 = vmatprep.subr.mxu0 0.0
      %2600 = vmatpush1.msra.mxu0 %v548
      %2601 = vmatprep.subr.mxu0 0.0
      %2602 = vmatpush1.msra.mxu0 %v549
      %2603 = vmatprep.subr.mxu0 0.0
      %2604 = vmatpush1.msra.mxu0 %v550
      %2605 = vmatprep.subr.mxu0 0.0
      %2606 = vmatpush1.msra.mxu0 %v551
      %2607 = vmatprep.subr.mxu0 0.0
      %2608 = vmatpush1.msra.mxu0 %v552
      %2609 = vmatprep.subr.mxu0 0.0
      %2610 = vmatpush1.msra.mxu0 %v553
      %2611 = vmatprep.subr.mxu0 0.0
      %2612 = vmatpush1.msra.mxu0 %v554
      %2613 = vmatprep.subr.mxu0 0.0
      %2614 = vmatpush1.msra.mxu0 %v555
      %2615 = vmatprep.subr.mxu0 0.0
      %2616 = vmatpush1.msra.mxu0 %v556
      %2617 = vmatprep.subr.mxu0 0.0
      %2618 = vmatpush1.msra.mxu0 %v557
      %2619 = vmatprep.subr.mxu0 0.0
      %2620 = vmatpush1.msra.mxu0 %v558
      %2621 = vmatprep.subr.mxu0 0.0
      %2622 = vmatpush1.msra.mxu0 %v559
      %2623 = vmatprep.subr.mxu0 0.0
      %2624 = vmatpush1.msra.mxu0 %v560
      %2625 = vmatprep.subr.mxu0 0.0
      %2626 = vmatpush1.msra.mxu0 %v561
      %2627 = vmatprep.subr.mxu0 0.0
      %2628 = vmatpush1.msra.mxu0 %v562
      %2629 = vmatprep.mubr.f32.mxu0 %v180
      %2630 = vmatmul.mubr.f32.gmra.mrb[0].mxu0 %v179
      %v2631 = vpop.f32.mrb[0].mxu0
      %v2632 = vadd.f32 %v2557, %v2631
      %v2633 = vpop.f32.mrb[0].mxu0
      %2634 = vmatprep.mubr.f32.mxu0 %v296
      %2635 = vmatmul.mubr.f32.gmra.mrb[0].mxu0 %v295
      %v2636 = vpop.f32.mrb[0].mxu0
      %v2637 = vadd.f32 %v2562, %v2636
      %v2638 = vpop.f32.mrb[0].mxu0
      %2639 = vdwg.mxu0
      %2640 = vmatprep.subr.mxu0 0.0
      %2641 = vmatpush1.msra.mxu0 %v563
      %2642 = vmatprep.subr.mxu0 0.0
      %2643 = vmatpush1.msra.mxu0 %v564
      %2644 = vmatprep.subr.mxu0 0.0
      %2645 = vmatpush1.msra.mxu0 %v565
      %2646 = vmatprep.subr.mxu0 0.0
      %2647 = vmatpush1.msra.mxu0 %v566
      %2648 = vmatprep.subr.mxu0 0.0
      %2649 = vmatpush1.msra.mxu0 %v567
      %2650 = vmatprep.subr.mxu0 0.0
      %2651 = vmatpush1.msra.mxu0 %v568
      %2652 = vmatprep.subr.mxu0 0.0
      %2653 = vmatpush1.msra.mxu0 %v569
      %2654 = vmatprep.subr.mxu0 0.0
      %2655 = vmatpush1.msra.mxu0 %v570
      %2656 = vmatprep.subr.mxu0 0.0
      %2657 = vmatpush1.msra.mxu0 %v571
      %2658 = vmatprep.subr.mxu0 0.0
      %2659 = vmatpush1.msra.mxu0 %v572
      %2660 = vmatprep.subr.mxu0 0.0
      %2661 = vmatpush1.msra.mxu0 %v573
      %2662 = vmatprep.subr.mxu0 0.0
      %2663 = vmatpush1.msra.mxu0 %v574
      %2664 = vmatprep.subr.mxu0 0.0
      %2665 = vmatpush1.msra.mxu0 %v575
      %2666 = vmatprep.subr.mxu0 0.0
      %2667 = vmatpush1.msra.mxu0 %v576
      %2668 = vmatprep.subr.mxu0 0.0
      %2669 = vmatpush1.msra.mxu0 %v577
      %2670 = vmatprep.subr.mxu0 0.0
      %2671 = vmatpush1.msra.mxu0 %v578
      %2672 = vmatprep.subr.mxu0 0.0
      %2673 = vmatpush1.msra.mxu0 %v579
      %2674 = vmatprep.subr.mxu0 0.0
      %2675 = vmatpush1.msra.mxu0 %v580
      %2676 = vmatprep.subr.mxu0 0.0
      %2677 = vmatpush1.msra.mxu0 %v581
      %2678 = vmatprep.subr.mxu0 0.0
      %2679 = vmatpush1.msra.mxu0 %v582
      %2680 = vmatprep.subr.mxu0 0.0
      %2681 = vmatpush1.msra.mxu0 %v583
      %2682 = vmatprep.subr.mxu0 0.0
      %2683 = vmatpush1.msra.mxu0 %v584
      %2684 = vmatprep.subr.mxu0 0.0
      %2685 = vmatpush1.msra.mxu0 %v585
      %2686 = vmatprep.subr.mxu0 0.0
      %2687 = vmatpush1.msra.mxu0 %v586
      %2688 = vmatprep.subr.mxu0 0.0
      %2689 = vmatpush1.msra.mxu0 %v587
      %2690 = vmatprep.subr.mxu0 0.0
      %2691 = vmatpush1.msra.mxu0 %v588
      %2692 = vmatprep.subr.mxu0 0.0
      %2693 = vmatpush1.msra.mxu0 %v589
      %2694 = vmatprep.subr.mxu0 0.0
      %2695 = vmatpush1.msra.mxu0 %v590
      %2696 = vmatprep.subr.mxu0 0.0
      %2697 = vmatpush1.msra.mxu0 %v591
      %2698 = vmatprep.subr.mxu0 0.0
      %2699 = vmatpush1.msra.mxu0 %v592
      %2700 = vmatprep.subr.mxu0 0.0
      %2701 = vmatpush1.msra.mxu0 %v593
      %2702 = vmatprep.subr.mxu0 0.0
      %2703 = vmatpush1.msra.mxu0 %v594
      %2704 = vmatprep.mubr.f32.mxu0 %v182
      %2705 = vmatmul.mubr.f32.gmra.mrb[0].mxu0 %v181
      %v2706 = vpop.f32.mrb[0].mxu0
      %v2707 = vadd.f32 %v2632, %v2706
      %v2708 = vpop.f32.mrb[0].mxu0
      %2709 = vmatprep.mubr.f32.mxu0 %v298
      %2710 = vmatmul.mubr.f32.gmra.mrb[0].mxu0 %v297
      %v2711 = vpop.f32.mrb[0].mxu0
      %v2712 = vadd.f32 %v2637, %v2711
      %v2713 = vpop.f32.mrb[0].mxu0
      %2714 = vdwg.mxu0
      %2715 = vmatprep.subr.mxu0 0.0
      %2716 = vmatpush1.msra.mxu0 %v595
      %2717 = vmatprep.subr.mxu0 0.0
      %2718 = vmatpush1.msra.mxu0 %v596
      %2719 = vmatprep.subr.mxu0 0.0
      %2720 = vmatpush1.msra.mxu0 %v597
      %2721 = vmatprep.subr.mxu0 0.0
      %2722 = vmatpush1.msra.mxu0 %v598
      %2723 = vmatprep.subr.mxu0 0.0
      %2724 = vmatpush1.msra.mxu0 %v599
      %2725 = vmatprep.subr.mxu0 0.0
      %2726 = vmatpush1.msra.mxu0 %v600
      %2727 = vmatprep.subr.mxu0 0.0
      %2728 = vmatpush1.msra.mxu0 %v601
      %2729 = vmatprep.subr.mxu0 0.0
      %2730 = vmatpush1.msra.mxu0 %v602
      %2731 = vmatprep.subr.mxu0 0.0
      %2732 = vmatpush1.msra.mxu0 %v603
      %2733 = vmatprep.subr.mxu0 0.0
      %2734 = vmatpush1.msra.mxu0 %v604
      %2735 = vmatprep.subr.mxu0 0.0
      %2736 = vmatpush1.msra.mxu0 %v605
      %2737 = vmatprep.subr.mxu0 0.0
      %2738 = vmatpush1.msra.mxu0 %v606
      %2739 = vmatprep.subr.mxu0 0.0
      %2740 = vmatpush1.msra.mxu0 %v607
      %2741 = vmatprep.subr.mxu0 0.0
      %2742 = vmatpush1.msra.mxu0 %v608
      %2743 = vmatprep.subr.mxu0 0.0
      %2744 = vmatpush1.msra.mxu0 %v609
      %2745 = vmatprep.subr.mxu0 0.0
      %2746 = vmatpush1.msra.mxu0 %v610
      %2747 = vmatprep.subr.mxu0 0.0
      %2748 = vmatpush1.msra.mxu0 %v611
      %2749 = vmatprep.subr.mxu0 0.0
      %2750 = vmatpush1.msra.mxu0 %v612
      %2751 = vmatprep.subr.mxu0 0.0
      %2752 = vmatpush1.msra.mxu0 %v613
      %2753 = vmatprep.subr.mxu0 0.0
      %2754 = vmatpush1.msra.mxu0 %v614
      %2755 = vmatprep.subr.mxu0 0.0
      %2756 = vmatpush1.msra.mxu0 %v615
      %2757 = vmatprep.subr.mxu0 0.0
      %2758 = vmatpush1.msra.mxu0 %v616
      %2759 = vmatprep.subr.mxu0 0.0
      %2760 = vmatpush1.msra.mxu0 %v617
      %2761 = vmatprep.subr.mxu0 0.0
      %2762 = vmatpush1.msra.mxu0 %v618
      %2763 = vmatprep.subr.mxu0 0.0
      %2764 = vmatpush1.msra.mxu0 %v619
      %2765 = vmatprep.subr.mxu0 0.0
      %2766 = vmatpush1.msra.mxu0 %v620
      %2767 = vmatprep.subr.mxu0 0.0
      %2768 = vmatpush1.msra.mxu0 %v621
      %2769 = vmatprep.subr.mxu0 0.0
      %2770 = vmatpush1.msra.mxu0 %v622
      %2771 = vmatprep.subr.mxu0 0.0
      %2772 = vmatpush1.msra.mxu0 %v623
      %2773 = vmatprep.subr.mxu0 0.0
      %2774 = vmatpush1.msra.mxu0 %v624
      %2775 = vmatprep.subr.mxu0 0.0
      %2776 = vmatpush1.msra.mxu0 %v625
      %2777 = vmatprep.subr.mxu0 0.0
      %2778 = vmatpush1.msra.mxu0 %v626
      %2779 = vmatprep.mubr.f32.mxu0 %v184
      %2780 = vmatmul.mubr.f32.gmra.mrb[0].mxu0 %v183
      %v2781 = vpop.f32.mrb[0].mxu0
      %v2782 = vadd.f32 %v2707, %v2781
      %v2783 = vpop.f32.mrb[0].mxu0
      %2784 = vmatprep.mubr.f32.mxu0 %v300
      %2785 = vmatmul.mubr.f32.gmra.mrb[0].mxu0 %v299
      %v2786 = vpop.f32.mrb[0].mxu0
      %v2787 = vadd.f32 %v2712, %v2786
      %v2788 = vpop.f32.mrb[0].mxu0
      %2789 = vdwg.mxu0
      %2790 = vmatprep.subr.mxu0 0.0
      %2791 = vmatpush1.msra.mxu0 %v627
      %2792 = vmatprep.subr.mxu0 0.0
      %2793 = vmatpush1.msra.mxu0 %v628
      %2794 = vmatprep.subr.mxu0 0.0
      %2795 = vmatpush1.msra.mxu0 %v629
      %2796 = vmatprep.subr.mxu0 0.0
      %2797 = vmatpush1.msra.mxu0 %v630
      %2798 = vmatprep.subr.mxu0 0.0
      %2799 = vmatpush1.msra.mxu0 %v631
      %2800 = vmatprep.subr.mxu0 0.0
      %2801 = vmatpush1.msra.mxu0 %v632
      %2802 = vmatprep.subr.mxu0 0.0
      %2803 = vmatpush1.msra.mxu0 %v633
      %2804 = vmatprep.subr.mxu0 0.0
      %2805 = vmatpush1.msra.mxu0 %v634
      %2806 = vmatprep.subr.mxu0 0.0
      %2807 = vmatpush1.msra.mxu0 %v635
      %2808 = vmatprep.subr.mxu0 0.0
      %2809 = vmatpush1.msra.mxu0 %v636
      %2810 = vmatprep.subr.mxu0 0.0
      %2811 = vmatpush1.msra.mxu0 %v637
      %2812 = vmatprep.subr.mxu0 0.0
      %2813 = vmatpush1.msra.mxu0 %v638
      %2814 = vmatprep.subr.mxu0 0.0
      %2815 = vmatpush1.msra.mxu0 %v639
      %2816 = vmatprep.subr.mxu0 0.0
      %2817 = vmatpush1.msra.mxu0 %v640
      %2818 = vmatprep.subr.mxu0 0.0
      %2819 = vmatpush1.msra.mxu0 %v641
      %2820 = vmatprep.subr.mxu0 0.0
      %2821 = vmatpush1.msra.mxu0 %v642
      %2822 = vmatprep.subr.mxu0 0.0
      %2823 = vmatpush1.msra.mxu0 %v643
      %2824 = vmatprep.subr.mxu0 0.0
      %2825 = vmatpush1.msra.mxu0 %v644
      %2826 = vmatprep.subr.mxu0 0.0
      %2827 = vmatpush1.msra.mxu0 %v645
      %2828 = vmatprep.subr.mxu0 0.0
      %2829 = vmatpush1.msra.mxu0 %v646
      %2830 = vmatprep.subr.mxu0 0.0
      %2831 = vmatpush1.msra.mxu0 %v647
      %2832 = vmatprep.subr.mxu0 0.0
      %2833 = vmatpush1.msra.mxu0 %v648
      %2834 = vmatprep.subr.mxu0 0.0
      %2835 = vmatpush1.msra.mxu0 %v649
      %2836 = vmatprep.subr.mxu0 0.0
      %2837 = vmatpush1.msra.mxu0 %v650
      %2838 = vmatprep.subr.mxu0 0.0
      %2839 = vmatpush1.msra.mxu0 %v651
      %2840 = vmatprep.subr.mxu0 0.0
      %2841 = vmatpush1.msra.mxu0 %v652
      %2842 = vmatprep.subr.mxu0 0.0
      %2843 = vmatpush1.msra.mxu0 %v653
      %2844 = vmatprep.subr.mxu0 0.0
      %2845 = vmatpush1.msra.mxu0 %v654
      %2846 = vmatprep.subr.mxu0 0.0
      %2847 = vmatpush1.msra.mxu0 %v655
      %2848 = vmatprep.subr.mxu0 0.0
      %2849 = vmatpush1.msra.mxu0 %v656
      %2850 = vmatprep.subr.mxu0 0.0
      %2851 = vmatpush1.msra.mxu0 %v657
      %2852 = vmatprep.subr.mxu0 0.0
      %2853 = vmatpush1.msra.mxu0 %v658
      %2854 = vmatprep.mubr.f32.mxu0 %v186
      %2855 = vmatmul.mubr.f32.gmra.mrb[0].mxu0 %v185
      %v2856 = vpop.f32.mrb[0].mxu0
      %v2857 = vadd.f32 %v2782, %v2856
      %v2858 = vpop.f32.mrb[0].mxu0
      %2859 = vmatprep.mubr.f32.mxu0 %v302
      %2860 = vmatmul.mubr.f32.gmra.mrb[0].mxu0 %v301
      %v2861 = vpop.f32.mrb[0].mxu0
      %v2862 = vadd.f32 %v2787, %v2861
      %v2863 = vpop.f32.mrb[0].mxu0
      %2864 = vdwg.mxu0
      %2865 = vmatprep.subr.mxu0 0.0
      %2866 = vmatpush1.msra.mxu0 %v659
      %2867 = vmatprep.subr.mxu0 0.0
      %2868 = vmatpush1.msra.mxu0 %v660
      %2869 = vmatprep.subr.mxu0 0.0
      %2870 = vmatpush1.msra.mxu0 %v661
      %2871 = vmatprep.subr.mxu0 0.0
      %2872 = vmatpush1.msra.mxu0 %v662
      %2873 = vmatprep.subr.mxu0 0.0
      %2874 = vmatpush1.msra.mxu0 %v663
      %2875 = vmatprep.subr.mxu0 0.0
      %2876 = vmatpush1.msra.mxu0 %v664
      %2877 = vmatprep.subr.mxu0 0.0
      %2878 = vmatpush1.msra.mxu0 %v665
      %2879 = vmatprep.subr.mxu0 0.0
      %2880 = vmatpush1.msra.mxu0 %v666
      %2881 = vmatprep.subr.mxu0 0.0
      %2882 = vmatpush1.msra.mxu0 %v667
      %2883 = vmatprep.subr.mxu0 0.0
      %2884 = vmatpush1.msra.mxu0 %v668
      %2885 = vmatprep.subr.mxu0 0.0
      %2886 = vmatpush1.msra.mxu0 %v669
      %2887 = vmatprep.subr.mxu0 0.0
      %2888 = vmatpush1.msra.mxu0 %v670
      %2889 = vmatprep.subr.mxu0 0.0
      %2890 = vmatpush1.msra.mxu0 %v671
      %2891 = vmatprep.subr.mxu0 0.0
      %2892 = vmatpush1.msra.mxu0 %v672
      %2893 = vmatprep.subr.mxu0 0.0
      %2894 = vmatpush1.msra.mxu0 %v673
      %2895 = vmatprep.subr.mxu0 0.0
      %2896 = vmatpush1.msra.mxu0 %v674
      %2897 = vmatprep.subr.mxu0 0.0
      %2898 = vmatpush1.msra.mxu0 %v675
      %2899 = vmatprep.subr.mxu0 0.0
      %2900 = vmatpush1.msra.mxu0 %v676
      %2901 = vmatprep.subr.mxu0 0.0
      %2902 = vmatpush1.msra.mxu0 %v677
      %2903 = vmatprep.subr.mxu0 0.0
      %2904 = vmatpush1.msra.mxu0 %v678
      %2905 = vmatprep.subr.mxu0 0.0
      %2906 = vmatpush1.msra.mxu0 %v679
      %2907 = vmatprep.subr.mxu0 0.0
      %2908 = vmatpush1.msra.mxu0 %v680
      %2909 = vmatprep.subr.mxu0 0.0
      %2910 = vmatpush1.msra.mxu0 %v681
      %2911 = vmatprep.subr.mxu0 0.0
      %2912 = vmatpush1.msra.mxu0 %v682
      %2913 = vmatprep.subr.mxu0 0.0
      %2914 = vmatpush1.msra.mxu0 %v683
      %2915 = vmatprep.subr.mxu0 0.0
      %2916 = vmatpush1.msra.mxu0 %v684
      %2917 = vmatprep.subr.mxu0 0.0
      %2918 = vmatpush1.msra.mxu0 %v685
      %2919 = vmatprep.subr.mxu0 0.0
      %2920 = vmatpush1.msra.mxu0 %v686
      %2921 = vmatprep.subr.mxu0 0.0
      %2922 = vmatpush1.msra.mxu0 %v687
      %2923 = vmatprep.subr.mxu0 0.0
      %2924 = vmatpush1.msra.mxu0 %v688
      %2925 = vmatprep.subr.mxu0 0.0
      %2926 = vmatpush1.msra.mxu0 %v689
      %2927 = vmatprep.subr.mxu0 0.0
      %2928 = vmatpush1.msra.mxu0 %v690
      %2929 = vmatprep.mubr.f32.mxu0 %v188
      %2930 = vmatmul.mubr.f32.gmra.mrb[0].mxu0 %v187
      %v2931 = vpop.f32.mrb[0].mxu0
      %v2932 = vadd.f32 %v2857, %v2931
      %v2933 = vpop.f32.mrb[0].mxu0
      %2934 = vmatprep.mubr.f32.mxu0 %v304
      %2935 = vmatmul.mubr.f32.gmra.mrb[0].mxu0 %v303
      %v2936 = vpop.f32.mrb[0].mxu0
      %v2937 = vadd.f32 %v2862, %v2936
      %v2938 = vpop.f32.mrb[0].mxu0
      %2939 = vdwg.mxu0
      %2940 = vmatprep.subr.mxu0 0.0
      %2941 = vmatpush1.msra.mxu0 %v691
      %2942 = vmatprep.subr.mxu0 0.0
      %2943 = vmatpush1.msra.mxu0 %v692
      %2944 = vmatprep.subr.mxu0 0.0
      %2945 = vmatpush1.msra.mxu0 %v693
      %2946 = vmatprep.subr.mxu0 0.0
      %2947 = vmatpush1.msra.mxu0 %v694
      %2948 = vmatprep.subr.mxu0 0.0
      %2949 = vmatpush1.msra.mxu0 %v695
      %2950 = vmatprep.subr.mxu0 0.0
      %2951 = vmatpush1.msra.mxu0 %v696
      %2952 = vmatprep.subr.mxu0 0.0
      %2953 = vmatpush1.msra.mxu0 %v697
      %2954 = vmatprep.subr.mxu0 0.0
      %2955 = vmatpush1.msra.mxu0 %v698
      %2956 = vmatprep.subr.mxu0 0.0
      %2957 = vmatpush1.msra.mxu0 %v699
      %2958 = vmatprep.subr.mxu0 0.0
      %2959 = vmatpush1.msra.mxu0 %v700
      %2960 = vmatprep.subr.mxu0 0.0
      %2961 = vmatpush1.msra.mxu0 %v701
      %2962 = vmatprep.subr.mxu0 0.0
      %2963 = vmatpush1.msra.mxu0 %v702
      %2964 = vmatprep.subr.mxu0 0.0
      %2965 = vmatpush1.msra.mxu0 %v703
      %2966 = vmatprep.subr.mxu0 0.0
      %2967 = vmatpush1.msra.mxu0 %v704
      %2968 = vmatprep.subr.mxu0 0.0
      %2969 = vmatpush1.msra.mxu0 %v705
      %2970 = vmatprep.subr.mxu0 0.0
      %2971 = vmatpush1.msra.mxu0 %v706
      %2972 = vmatprep.subr.mxu0 0.0
      %2973 = vmatpush1.msra.mxu0 %v707
      %2974 = vmatprep.subr.mxu0 0.0
      %2975 = vmatpush1.msra.mxu0 %v708
      %2976 = vmatprep.subr.mxu0 0.0
      %2977 = vmatpush1.msra.mxu0 %v709
      %2978 = vmatprep.subr.mxu0 0.0
      %2979 = vmatpush1.msra.mxu0 %v710
      %2980 = vmatprep.subr.mxu0 0.0
      %2981 = vmatpush1.msra.mxu0 %v711
      %2982 = vmatprep.subr.mxu0 0.0
      %2983 = vmatpush1.msra.mxu0 %v712
      %2984 = vmatprep.subr.mxu0 0.0
      %2985 = vmatpush1.msra.mxu0 %v713
      %2986 = vmatprep.subr.mxu0 0.0
      %2987 = vmatpush1.msra.mxu0 %v714
      %2988 = vmatprep.subr.mxu0 0.0
      %2989 = vmatpush1.msra.mxu0 %v715
      %2990 = vmatprep.subr.mxu0 0.0
      %2991 = vmatpush1.msra.mxu0 %v716
      %2992 = vmatprep.subr.mxu0 0.0
      %2993 = vmatpush1.msra.mxu0 %v717
      %2994 = vmatprep.subr.mxu0 0.0
      %2995 = vmatpush1.msra.mxu0 %v718
      %2996 = vmatprep.subr.mxu0 0.0
      %2997 = vmatpush1.msra.mxu0 %v719
      %2998 = vmatprep.subr.mxu0 0.0
      %2999 = vmatpush1.msra.mxu0 %v720
      %3000 = vmatprep.subr.mxu0 0.0
      %3001 = vmatpush1.msra.mxu0 %v721
      %3002 = vmatprep.subr.mxu0 0.0
      %3003 = vmatpush1.msra.mxu0 %v722
      %3004 = vmatprep.mubr.f32.mxu0 %v190
      %3005 = vmatmul.mubr.f32.gmra.mrb[0].mxu0 %v189
      %v3006 = vpop.f32.mrb[0].mxu0
      %v3007 = vadd.f32 %v2932, %v3006
      %v3008 = vpop.f32.mrb[0].mxu0
      %3009 = vmatprep.mubr.f32.mxu0 %v306
      %3010 = vmatmul.mubr.f32.gmra.mrb[0].mxu0 %v305
      %v3011 = vpop.f32.mrb[0].mxu0
      %v3012 = vadd.f32 %v2937, %v3011
      %v3013 = vpop.f32.mrb[0].mxu0
      %3014 = vdwg.mxu0
      %3015 = vmatprep.subr.mxu0 0.0
      %3016 = vmatpush1.msra.mxu0 %v723
      %3017 = vmatprep.subr.mxu0 0.0
      %3018 = vmatpush1.msra.mxu0 %v724
      %3019 = vmatprep.subr.mxu0 0.0
      %3020 = vmatpush1.msra.mxu0 %v725
      %3021 = vmatprep.subr.mxu0 0.0
      %3022 = vmatpush1.msra.mxu0 %v726
      %3023 = vmatprep.subr.mxu0 0.0
      %3024 = vmatpush1.msra.mxu0 %v727
      %3025 = vmatprep.subr.mxu0 0.0
      %3026 = vmatpush1.msra.mxu0 %v728
      %3027 = vmatprep.subr.mxu0 0.0
      %3028 = vmatpush1.msra.mxu0 %v729
      %3029 = vmatprep.subr.mxu0 0.0
      %3030 = vmatpush1.msra.mxu0 %v730
      %3031 = vmatprep.subr.mxu0 0.0
      %3032 = vmatpush1.msra.mxu0 %v731
      %3033 = vmatprep.subr.mxu0 0.0
      %3034 = vmatpush1.msra.mxu0 %v732
      %3035 = vmatprep.subr.mxu0 0.0
      %3036 = vmatpush1.msra.mxu0 %v733
      %3037 = vmatprep.subr.mxu0 0.0
      %3038 = vmatpush1.msra.mxu0 %v734
      %3039 = vmatprep.subr.mxu0 0.0
      %3040 = vmatpush1.msra.mxu0 %v735
      %3041 = vmatprep.subr.mxu0 0.0
      %3042 = vmatpush1.msra.mxu0 %v736
      %3043 = vmatprep.subr.mxu0 0.0
      %3044 = vmatpush1.msra.mxu0 %v737
      %3045 = vmatprep.subr.mxu0 0.0
      %3046 = vmatpush1.msra.mxu0 %v738
      %3047 = vmatprep.subr.mxu0 0.0
      %3048 = vmatpush1.msra.mxu0 %v739
      %3049 = vmatprep.subr.mxu0 0.0
      %3050 = vmatpush1.msra.mxu0 %v740
      %3051 = vmatprep.subr.mxu0 0.0
      %3052 = vmatpush1.msra.mxu0 %v741
      %3053 = vmatprep.subr.mxu0 0.0
      %3054 = vmatpush1.msra.mxu0 %v742
      %3055 = vmatprep.subr.mxu0 0.0
      %3056 = vmatpush1.msra.mxu0 %v743
      %3057 = vmatprep.subr.mxu0 0.0
      %3058 = vmatpush1.msra.mxu0 %v744
      %3059 = vmatprep.subr.mxu0 0.0
      %3060 = vmatpush1.msra.mxu0 %v745
      %3061 = vmatprep.subr.mxu0 0.0
      %3062 = vmatpush1.msra.mxu0 %v746
      %3063 = vmatprep.subr.mxu0 0.0
      %3064 = vmatpush1.msra.mxu0 %v747
      %3065 = vmatprep.subr.mxu0 0.0
      %3066 = vmatpush1.msra.mxu0 %v748
      %3067 = vmatprep.subr.mxu0 0.0
      %3068 = vmatpush1.msra.mxu0 %v749
      %3069 = vmatprep.subr.mxu0 0.0
      %3070 = vmatpush1.msra.mxu0 %v750
      %3071 = vmatprep.subr.mxu0 0.0
      %3072 = vmatpush1.msra.mxu0 %v751
      %3073 = vmatprep.subr.mxu0 0.0
      %3074 = vmatpush1.msra.mxu0 %v752
      %3075 = vmatprep.subr.mxu0 0.0
      %3076 = vmatpush1.msra.mxu0 %v753
      %3077 = vmatprep.subr.mxu0 0.0
      %3078 = vmatpush1.msra.mxu0 %v754
      %3079 = vmatprep.mubr.f32.mxu0 %v192
      %3080 = vmatmul.mubr.f32.gmra.mrb[0].mxu0 %v191
      %v3081 = vpop.f32.mrb[0].mxu0
      %v3082 = vadd.f32 %v3007, %v3081
      %v3083 = vpop.f32.mrb[0].mxu0
      %3084 = vmatprep.mubr.f32.mxu0 %v308
      %3085 = vmatmul.mubr.f32.gmra.mrb[0].mxu0 %v307
      %v3086 = vpop.f32.mrb[0].mxu0
      %v3087 = vadd.f32 %v3012, %v3086
      %v3088 = vpop.f32.mrb[0].mxu0
      %3089 = vdwg.mxu0
      %3090 = vmatprep.subr.mxu0 0.0
      %3091 = vmatpush1.msra.mxu0 %v755
      %3092 = vmatprep.subr.mxu0 0.0
      %3093 = vmatpush1.msra.mxu0 %v756
      %3094 = vmatprep.subr.mxu0 0.0
      %3095 = vmatpush1.msra.mxu0 %v757
      %3096 = vmatprep.subr.mxu0 0.0
      %3097 = vmatpush1.msra.mxu0 %v758
      %3098 = vmatprep.subr.mxu0 0.0
      %3099 = vmatpush1.msra.mxu0 %v759
      %3100 = vmatprep.subr.mxu0 0.0
      %3101 = vmatpush1.msra.mxu0 %v760
      %3102 = vmatprep.subr.mxu0 0.0
      %3103 = vmatpush1.msra.mxu0 %v761
      %3104 = vmatprep.subr.mxu0 0.0
      %3105 = vmatpush1.msra.mxu0 %v762
      %3106 = vmatprep.subr.mxu0 0.0
      %3107 = vmatpush1.msra.mxu0 %v763
      %3108 = vmatprep.subr.mxu0 0.0
      %3109 = vmatpush1.msra.mxu0 %v764
      %3110 = vmatprep.subr.mxu0 0.0
      %3111 = vmatpush1.msra.mxu0 %v765
      %3112 = vmatprep.subr.mxu0 0.0
      %3113 = vmatpush1.msra.mxu0 %v766
      %3114 = vmatprep.subr.mxu0 0.0
      %3115 = vmatpush1.msra.mxu0 %v767
      %3116 = vmatprep.subr.mxu0 0.0
      %3117 = vmatpush1.msra.mxu0 %v768
      %3118 = vmatprep.subr.mxu0 0.0
      %3119 = vmatpush1.msra.mxu0 %v769
      %3120 = vmatprep.subr.mxu0 0.0
      %3121 = vmatpush1.msra.mxu0 %v770
      %3122 = vmatprep.subr.mxu0 0.0
      %3123 = vmatpush1.msra.mxu0 %v771
      %3124 = vmatprep.subr.mxu0 0.0
      %3125 = vmatpush1.msra.mxu0 %v772
      %3126 = vmatprep.subr.mxu0 0.0
      %3127 = vmatpush1.msra.mxu0 %v773
      %3128 = vmatprep.subr.mxu0 0.0
      %3129 = vmatpush1.msra.mxu0 %v774
      %3130 = vmatprep.subr.mxu0 0.0
      %3131 = vmatpush1.msra.mxu0 %v775
      %3132 = vmatprep.subr.mxu0 0.0
      %3133 = vmatpush1.msra.mxu0 %v776
      %3134 = vmatprep.subr.mxu0 0.0
      %3135 = vmatpush1.msra.mxu0 %v777
      %3136 = vmatprep.subr.mxu0 0.0
      %3137 = vmatpush1.msra.mxu0 %v778
      %3138 = vmatprep.subr.mxu0 0.0
      %3139 = vmatpush1.msra.mxu0 %v779
      %3140 = vmatprep.subr.mxu0 0.0
      %3141 = vmatpush1.msra.mxu0 %v780
      %3142 = vmatprep.subr.mxu0 0.0
      %3143 = vmatpush1.msra.mxu0 %v781
      %3144 = vmatprep.subr.mxu0 0.0
      %3145 = vmatpush1.msra.mxu0 %v782
      %3146 = vmatprep.subr.mxu0 0.0
      %3147 = vmatpush1.msra.mxu0 %v783
      %3148 = vmatprep.subr.mxu0 0.0
      %3149 = vmatpush1.msra.mxu0 %v784
      %3150 = vmatprep.subr.mxu0 0.0
      %3151 = vmatpush1.msra.mxu0 %v785
      %3152 = vmatprep.subr.mxu0 0.0
      %3153 = vmatpush1.msra.mxu0 %v786
      %3154 = vmatprep.mubr.f32.mxu0 %v194
      %3155 = vmatmul.mubr.f32.gmra.mrb[0].mxu0 %v193
      %v3156 = vpop.f32.mrb[0].mxu0
      %v3157 = vadd.f32 %v3082, %v3156
      %v3158 = vpop.f32.mrb[0].mxu0
      %3159 = vmatprep.mubr.f32.mxu0 %v310
      %3160 = vmatmul.mubr.f32.gmra.mrb[0].mxu0 %v309
      %v3161 = vpop.f32.mrb[0].mxu0
      %v3162 = vadd.f32 %v3087, %v3161
      %v3163 = vpop.f32.mrb[0].mxu0
      %3164 = vdwg.mxu0
      %3165 = vmatprep.subr.mxu0 0.0
      %3166 = vmatpush1.msra.mxu0 %v787
      %3167 = vmatprep.subr.mxu0 0.0
      %3168 = vmatpush1.msra.mxu0 %v788
      %3169 = vmatprep.subr.mxu0 0.0
      %3170 = vmatpush1.msra.mxu0 %v789
      %3171 = vmatprep.subr.mxu0 0.0
      %3172 = vmatpush1.msra.mxu0 %v790
      %3173 = vmatprep.subr.mxu0 0.0
      %3174 = vmatpush1.msra.mxu0 %v791
      %3175 = vmatprep.subr.mxu0 0.0
      %3176 = vmatpush1.msra.mxu0 %v792
      %3177 = vmatprep.subr.mxu0 0.0
      %3178 = vmatpush1.msra.mxu0 %v793
      %3179 = vmatprep.subr.mxu0 0.0
      %3180 = vmatpush1.msra.mxu0 %v794
      %3181 = vmatprep.subr.mxu0 0.0
      %3182 = vmatpush1.msra.mxu0 %v795
      %3183 = vmatprep.subr.mxu0 0.0
      %3184 = vmatpush1.msra.mxu0 %v796
      %3185 = vmatprep.subr.mxu0 0.0
      %3186 = vmatpush1.msra.mxu0 %v797
      %3187 = vmatprep.subr.mxu0 0.0
      %3188 = vmatpush1.msra.mxu0 %v798
      %3189 = vmatprep.subr.mxu0 0.0
      %3190 = vmatpush1.msra.mxu0 %v799
      %3191 = vmatprep.subr.mxu0 0.0
      %3192 = vmatpush1.msra.mxu0 %v800
      %3193 = vmatprep.subr.mxu0 0.0
      %3194 = vmatpush1.msra.mxu0 %v801
      %3195 = vmatprep.subr.mxu0 0.0
      %3196 = vmatpush1.msra.mxu0 %v802
      %3197 = vmatprep.subr.mxu0 0.0
      %3198 = vmatpush1.msra.mxu0 %v803
      %3199 = vmatprep.subr.mxu0 0.0
      %3200 = vmatpush1.msra.mxu0 %v804
      %3201 = vmatprep.subr.mxu0 0.0
      %3202 = vmatpush1.msra.mxu0 %v805
      %3203 = vmatprep.subr.mxu0 0.0
      %3204 = vmatpush1.msra.mxu0 %v806
      %3205 = vmatprep.subr.mxu0 0.0
      %3206 = vmatpush1.msra.mxu0 %v807
      %3207 = vmatprep.subr.mxu0 0.0
      %3208 = vmatpush1.msra.mxu0 %v808
      %3209 = vmatprep.subr.mxu0 0.0
      %3210 = vmatpush1.msra.mxu0 %v809
      %3211 = vmatprep.subr.mxu0 0.0
      %3212 = vmatpush1.msra.mxu0 %v810
      %3213 = vmatprep.subr.mxu0 0.0
      %3214 = vmatpush1.msra.mxu0 %v811
      %3215 = vmatprep.subr.mxu0 0.0
      %3216 = vmatpush1.msra.mxu0 %v812
      %3217 = vmatprep.subr.mxu0 0.0
      %3218 = vmatpush1.msra.mxu0 %v813
      %3219 = vmatprep.subr.mxu0 0.0
      %3220 = vmatpush1.msra.mxu0 %v814
      %3221 = vmatprep.subr.mxu0 0.0
      %3222 = vmatpush1.msra.mxu0 %v815
      %3223 = vmatprep.subr.mxu0 0.0
      %3224 = vmatpush1.msra.mxu0 %v816
      %3225 = vmatprep.subr.mxu0 0.0
      %3226 = vmatpush1.msra.mxu0 %v817
      %3227 = vmatprep.subr.mxu0 0.0
      %3228 = vmatpush1.msra.mxu0 %v818
      %3229 = vmatprep.mubr.f32.mxu0 %v196
      %3230 = vmatmul.mubr.f32.gmra.mrb[0].mxu0 %v195
      %v3231 = vpop.f32.mrb[0].mxu0
      %v3232 = vadd.f32 %v3157, %v3231
      %v3233 = vpop.f32.mrb[0].mxu0
      %3234 = vmatprep.mubr.f32.mxu0 %v312
      %3235 = vmatmul.mubr.f32.gmra.mrb[0].mxu0 %v311
      %v3236 = vpop.f32.mrb[0].mxu0
      %v3237 = vadd.f32 %v3162, %v3236
      %v3238 = vpop.f32.mrb[0].mxu0
      %3239 = vdwg.mxu0
      %3240 = vmatprep.subr.mxu0 0.0
      %3241 = vmatpush1.msra.mxu0 %v819
      %3242 = vmatprep.subr.mxu0 0.0
      %3243 = vmatpush1.msra.mxu0 %v820
      %3244 = vmatprep.subr.mxu0 0.0
      %3245 = vmatpush1.msra.mxu0 %v821
      %3246 = vmatprep.subr.mxu0 0.0
      %3247 = vmatpush1.msra.mxu0 %v822
      %3248 = vmatprep.subr.mxu0 0.0
      %3249 = vmatpush1.msra.mxu0 %v823
      %3250 = vmatprep.subr.mxu0 0.0
      %3251 = vmatpush1.msra.mxu0 %v824
      %3252 = vmatprep.subr.mxu0 0.0
      %3253 = vmatpush1.msra.mxu0 %v825
      %3254 = vmatprep.subr.mxu0 0.0
      %3255 = vmatpush1.msra.mxu0 %v826
      %3256 = vmatprep.subr.mxu0 0.0
      %3257 = vmatpush1.msra.mxu0 %v827
      %3258 = vmatprep.subr.mxu0 0.0
      %3259 = vmatpush1.msra.mxu0 %v828
      %3260 = vmatprep.subr.mxu0 0.0
      %3261 = vmatpush1.msra.mxu0 %v829
      %3262 = vmatprep.subr.mxu0 0.0
      %3263 = vmatpush1.msra.mxu0 %v830
      %3264 = vmatprep.subr.mxu0 0.0
      %3265 = vmatpush1.msra.mxu0 %v831
      %3266 = vmatprep.subr.mxu0 0.0
      %3267 = vmatpush1.msra.mxu0 %v832
      %3268 = vmatprep.subr.mxu0 0.0
      %3269 = vmatpush1.msra.mxu0 %v833
      %3270 = vmatprep.subr.mxu0 0.0
      %3271 = vmatpush1.msra.mxu0 %v834
      %3272 = vmatprep.subr.mxu0 0.0
      %3273 = vmatpush1.msra.mxu0 %v835
      %3274 = vmatprep.subr.mxu0 0.0
      %3275 = vmatpush1.msra.mxu0 %v836
      %3276 = vmatprep.subr.mxu0 0.0
      %3277 = vmatpush1.msra.mxu0 %v837
      %3278 = vmatprep.subr.mxu0 0.0
      %3279 = vmatpush1.msra.mxu0 %v838
      %3280 = vmatprep.subr.mxu0 0.0
      %3281 = vmatpush1.msra.mxu0 %v839
      %3282 = vmatprep.subr.mxu0 0.0
      %3283 = vmatpush1.msra.mxu0 %v840
      %3284 = vmatprep.subr.mxu0 0.0
      %3285 = vmatpush1.msra.mxu0 %v841
      %3286 = vmatprep.subr.mxu0 0.0
      %3287 = vmatpush1.msra.mxu0 %v842
      %3288 = vmatprep.subr.mxu0 0.0
      %3289 = vmatpush1.msra.mxu0 %v843
      %3290 = vmatprep.subr.mxu0 0.0
      %3291 = vmatpush1.msra.mxu0 %v844
      %3292 = vmatprep.subr.mxu0 0.0
      %3293 = vmatpush1.msra.mxu0 %v845
      %3294 = vmatprep.subr.mxu0 0.0
      %3295 = vmatpush1.msra.mxu0 %v846
      %3296 = vmatprep.subr.mxu0 0.0
      %3297 = vmatpush1.msra.mxu0 %v847
      %3298 = vmatprep.subr.mxu0 0.0
      %3299 = vmatpush1.msra.mxu0 %v848
      %3300 = vmatprep.subr.mxu0 0.0
      %3301 = vmatpush1.msra.mxu0 %v849
      %3302 = vmatprep.subr.mxu0 0.0
      %3303 = vmatpush1.msra.mxu0 %v850
      %3304 = vmatprep.mubr.f32.mxu0 %v198
      %3305 = vmatmul.mubr.f32.gmra.mrb[0].mxu0 %v197
      %v3306 = vpop.f32.mrb[0].mxu0
      %v3307 = vadd.f32 %v3232, %v3306
      %v3308 = vpop.f32.mrb[0].mxu0
      %3309 = vmatprep.mubr.f32.mxu0 %v314
      %3310 = vmatmul.mubr.f32.gmra.mrb[0].mxu0 %v313
      %v3311 = vpop.f32.mrb[0].mxu0
      %v3312 = vadd.f32 %v3237, %v3311
      %v3313 = vpop.f32.mrb[0].mxu0
      %3314 = vdwg.mxu0
      %3315 = vmatprep.subr.mxu0 0.0
      %3316 = vmatpush1.msra.mxu0 %v851
      %3317 = vmatprep.subr.mxu0 0.0
      %3318 = vmatpush1.msra.mxu0 %v852
      %3319 = vmatprep.subr.mxu0 0.0
      %3320 = vmatpush1.msra.mxu0 %v853
      %3321 = vmatprep.subr.mxu0 0.0
      %3322 = vmatpush1.msra.mxu0 %v854
      %3323 = vmatprep.subr.mxu0 0.0
      %3324 = vmatpush1.msra.mxu0 %v855
      %3325 = vmatprep.subr.mxu0 0.0
      %3326 = vmatpush1.msra.mxu0 %v856
      %3327 = vmatprep.subr.mxu0 0.0
      %3328 = vmatpush1.msra.mxu0 %v857
      %3329 = vmatprep.subr.mxu0 0.0
      %3330 = vmatpush1.msra.mxu0 %v858
      %3331 = vmatprep.subr.mxu0 0.0
      %3332 = vmatpush1.msra.mxu0 %v859
      %3333 = vmatprep.subr.mxu0 0.0
      %3334 = vmatpush1.msra.mxu0 %v860
      %3335 = vmatprep.subr.mxu0 0.0
      %3336 = vmatpush1.msra.mxu0 %v861
      %3337 = vmatprep.subr.mxu0 0.0
      %3338 = vmatpush1.msra.mxu0 %v862
      %3339 = vmatprep.subr.mxu0 0.0
      %3340 = vmatpush1.msra.mxu0 %v863
      %3341 = vmatprep.subr.mxu0 0.0
      %3342 = vmatpush1.msra.mxu0 %v864
      %3343 = vmatprep.subr.mxu0 0.0
      %3344 = vmatpush1.msra.mxu0 %v865
      %3345 = vmatprep.subr.mxu0 0.0
      %3346 = vmatpush1.msra.mxu0 %v866
      %3347 = vmatprep.subr.mxu0 0.0
      %3348 = vmatpush1.msra.mxu0 %v867
      %3349 = vmatprep.subr.mxu0 0.0
      %3350 = vmatpush1.msra.mxu0 %v868
      %3351 = vmatprep.subr.mxu0 0.0
      %3352 = vmatpush1.msra.mxu0 %v869
      %3353 = vmatprep.subr.mxu0 0.0
      %3354 = vmatpush1.msra.mxu0 %v870
      %3355 = vmatprep.subr.mxu0 0.0
      %3356 = vmatpush1.msra.mxu0 %v871
      %3357 = vmatprep.subr.mxu0 0.0
      %3358 = vmatpush1.msra.mxu0 %v872
      %3359 = vmatprep.subr.mxu0 0.0
      %3360 = vmatpush1.msra.mxu0 %v873
      %3361 = vmatprep.subr.mxu0 0.0
      %3362 = vmatpush1.msra.mxu0 %v874
      %3363 = vmatprep.subr.mxu0 0.0
      %3364 = vmatpush1.msra.mxu0 %v875
      %3365 = vmatprep.subr.mxu0 0.0
      %3366 = vmatpush1.msra.mxu0 %v876
      %3367 = vmatprep.subr.mxu0 0.0
      %3368 = vmatpush1.msra.mxu0 %v877
      %3369 = vmatprep.subr.mxu0 0.0
      %3370 = vmatpush1.msra.mxu0 %v878
      %3371 = vmatprep.subr.mxu0 0.0
      %3372 = vmatpush1.msra.mxu0 %v879
      %3373 = vmatprep.subr.mxu0 0.0
      %3374 = vmatpush1.msra.mxu0 %v880
      %3375 = vmatprep.subr.mxu0 0.0
      %3376 = vmatpush1.msra.mxu0 %v881
      %3377 = vmatprep.subr.mxu0 0.0
      %3378 = vmatpush1.msra.mxu0 %v882
      %3379 = vmatprep.mubr.f32.mxu0 %v200
      %3380 = vmatmul.mubr.f32.gmra.mrb[0].mxu0 %v199
      %v3381 = vpop.f32.mrb[0].mxu0
      %v3382 = vadd.f32 %v3307, %v3381
      %v3383 = vpop.f32.mrb[0].mxu0
      %3384 = vmatprep.mubr.f32.mxu0 %v316
      %3385 = vmatmul.mubr.f32.gmra.mrb[0].mxu0 %v315
      %v3386 = vpop.f32.mrb[0].mxu0
      %v3387 = vadd.f32 %v3312, %v3386
      %v3388 = vpop.f32.mrb[0].mxu0
      %3389 = vdwg.mxu0
      %3390 = vmatprep.subr.mxu0 0.0
      %3391 = vmatpush1.msra.mxu0 %v883
      %3392 = vmatprep.subr.mxu0 0.0
      %3393 = vmatpush1.msra.mxu0 %v884
      %3394 = vmatprep.subr.mxu0 0.0
      %3395 = vmatpush1.msra.mxu0 %v885
      %3396 = vmatprep.subr.mxu0 0.0
      %3397 = vmatpush1.msra.mxu0 %v886
      %3398 = vmatprep.subr.mxu0 0.0
      %3399 = vmatpush1.msra.mxu0 %v887
      %3400 = vmatprep.subr.mxu0 0.0
      %3401 = vmatpush1.msra.mxu0 %v888
      %3402 = vmatprep.subr.mxu0 0.0
      %3403 = vmatpush1.msra.mxu0 %v889
      %3404 = vmatprep.subr.mxu0 0.0
      %3405 = vmatpush1.msra.mxu0 %v890
      %3406 = vmatprep.subr.mxu0 0.0
      %3407 = vmatpush1.msra.mxu0 %v891
      %3408 = vmatprep.subr.mxu0 0.0
      %3409 = vmatpush1.msra.mxu0 %v892
      %3410 = vmatprep.subr.mxu0 0.0
      %3411 = vmatpush1.msra.mxu0 %v893
      %3412 = vmatprep.subr.mxu0 0.0
      %3413 = vmatpush1.msra.mxu0 %v894
      %3414 = vmatprep.subr.mxu0 0.0
      %3415 = vmatpush1.msra.mxu0 %v895
      %3416 = vmatprep.subr.mxu0 0.0
      %3417 = vmatpush1.msra.mxu0 %v896
      %3418 = vmatprep.subr.mxu0 0.0
      %3419 = vmatpush1.msra.mxu0 %v897
      %3420 = vmatprep.subr.mxu0 0.0
      %3421 = vmatpush1.msra.mxu0 %v898
      %3422 = vmatprep.subr.mxu0 0.0
      %3423 = vmatpush1.msra.mxu0 %v899
      %3424 = vmatprep.subr.mxu0 0.0
      %3425 = vmatpush1.msra.mxu0 %v900
      %3426 = vmatprep.subr.mxu0 0.0
      %3427 = vmatpush1.msra.mxu0 %v901
      %3428 = vmatprep.subr.mxu0 0.0
      %3429 = vmatpush1.msra.mxu0 %v902
      %3430 = vmatprep.subr.mxu0 0.0
      %3431 = vmatpush1.msra.mxu0 %v903
      %3432 = vmatprep.subr.mxu0 0.0
      %3433 = vmatpush1.msra.mxu0 %v904
      %3434 = vmatprep.subr.mxu0 0.0
      %3435 = vmatpush1.msra.mxu0 %v905
      %3436 = vmatprep.subr.mxu0 0.0
      %3437 = vmatpush1.msra.mxu0 %v906
      %3438 = vmatprep.subr.mxu0 0.0
      %3439 = vmatpush1.msra.mxu0 %v907
      %3440 = vmatprep.subr.mxu0 0.0
      %3441 = vmatpush1.msra.mxu0 %v908
      %3442 = vmatprep.subr.mxu0 0.0
      %3443 = vmatpush1.msra.mxu0 %v909
      %3444 = vmatprep.subr.mxu0 0.0
      %3445 = vmatpush1.msra.mxu0 %v910
      %3446 = vmatprep.subr.mxu0 0.0
      %3447 = vmatpush1.msra.mxu0 %v911
      %3448 = vmatprep.subr.mxu0 0.0
      %3449 = vmatpush1.msra.mxu0 %v912
      %3450 = vmatprep.subr.mxu0 0.0
      %3451 = vmatpush1.msra.mxu0 %v913
      %3452 = vmatprep.subr.mxu0 0.0
      %3453 = vmatpush1.msra.mxu0 %v914
      %3454 = vmatprep.mubr.f32.mxu0 %v202
      %3455 = vmatmul.mubr.f32.gmra.mrb[0].mxu0 %v201
      %v3456 = vpop.f32.mrb[0].mxu0
      %v3457 = vadd.f32 %v3382, %v3456
      %v3458 = vpop.f32.mrb[0].mxu0
      %3459 = vmatprep.mubr.f32.mxu0 %v318
      %3460 = vmatmul.mubr.f32.gmra.mrb[0].mxu0 %v317
      %v3461 = vpop.f32.mrb[0].mxu0
      %v3462 = vadd.f32 %v3387, %v3461
      %v3463 = vpop.f32.mrb[0].mxu0
      %3464 = vdwg.mxu0
      %3465 = vmatprep.subr.mxu0 0.0
      %3466 = vmatpush1.msra.mxu0 %v915
      %3467 = vmatprep.subr.mxu0 0.0
      %3468 = vmatpush1.msra.mxu0 %v916
      %3469 = vmatprep.subr.mxu0 0.0
      %3470 = vmatpush1.msra.mxu0 %v917
      %3471 = vmatprep.subr.mxu0 0.0
      %3472 = vmatpush1.msra.mxu0 %v918
      %3473 = vmatprep.subr.mxu0 0.0
      %3474 = vmatpush1.msra.mxu0 %v919
      %3475 = vmatprep.subr.mxu0 0.0
      %3476 = vmatpush1.msra.mxu0 %v920
      %3477 = vmatprep.subr.mxu0 0.0
      %3478 = vmatpush1.msra.mxu0 %v921
      %3479 = vmatprep.subr.mxu0 0.0
      %3480 = vmatpush1.msra.mxu0 %v922
      %3481 = vmatprep.subr.mxu0 0.0
      %3482 = vmatpush1.msra.mxu0 %v923
      %3483 = vmatprep.subr.mxu0 0.0
      %3484 = vmatpush1.msra.mxu0 %v924
      %3485 = vmatprep.subr.mxu0 0.0
      %3486 = vmatpush1.msra.mxu0 %v925
      %3487 = vmatprep.subr.mxu0 0.0
      %3488 = vmatpush1.msra.mxu0 %v926
      %3489 = vmatprep.subr.mxu0 0.0
      %3490 = vmatpush1.msra.mxu0 %v927
      %3491 = vmatprep.subr.mxu0 0.0
      %3492 = vmatpush1.msra.mxu0 %v928
      %3493 = vmatprep.subr.mxu0 0.0
      %3494 = vmatpush1.msra.mxu0 %v929
      %3495 = vmatprep.subr.mxu0 0.0
      %3496 = vmatpush1.msra.mxu0 %v930
      %3497 = vmatprep.subr.mxu0 0.0
      %3498 = vmatpush1.msra.mxu0 %v931
      %3499 = vmatprep.subr.mxu0 0.0
      %3500 = vmatpush1.msra.mxu0 %v932
      %3501 = vmatprep.subr.mxu0 0.0
      %3502 = vmatpush1.msra.mxu0 %v933
      %3503 = vmatprep.subr.mxu0 0.0
      %3504 = vmatpush1.msra.mxu0 %v934
      %3505 = vmatprep.subr.mxu0 0.0
      %3506 = vmatpush1.msra.mxu0 %v935
      %3507 = vmatprep.subr.mxu0 0.0
      %3508 = vmatpush1.msra.mxu0 %v936
      %3509 = vmatprep.subr.mxu0 0.0
      %3510 = vmatpush1.msra.mxu0 %v937
      %3511 = vmatprep.subr.mxu0 0.0
      %3512 = vmatpush1.msra.mxu0 %v938
      %3513 = vmatprep.subr.mxu0 0.0
      %3514 = vmatpush1.msra.mxu0 %v939
      %3515 = vmatprep.subr.mxu0 0.0
      %3516 = vmatpush1.msra.mxu0 %v940
      %3517 = vmatprep.subr.mxu0 0.0
      %3518 = vmatpush1.msra.mxu0 %v941
      %3519 = vmatprep.subr.mxu0 0.0
      %3520 = vmatpush1.msra.mxu0 %v942
      %3521 = vmatprep.subr.mxu0 0.0
      %3522 = vmatpush1.msra.mxu0 %v943
      %3523 = vmatprep.subr.mxu0 0.0
      %3524 = vmatpush1.msra.mxu0 %v944
      %3525 = vmatprep.subr.mxu0 0.0
      %3526 = vmatpush1.msra.mxu0 %v945
      %3527 = vmatprep.subr.mxu0 0.0
      %3528 = vmatpush1.msra.mxu0 %v946
      %3529 = vmatprep.mubr.f32.mxu0 %v204
      %3530 = vmatmul.mubr.f32.gmra.mrb[0].mxu0 %v203
      %v3531 = vpop.f32.mrb[0].mxu0
      %v3532 = vadd.f32 %v3457, %v3531
      %v3533 = vpop.f32.mrb[0].mxu0
      %3534 = vmatprep.mubr.f32.mxu0 %v320
      %3535 = vmatmul.mubr.f32.gmra.mrb[0].mxu0 %v319
      %v3536 = vpop.f32.mrb[0].mxu0
      %v3537 = vadd.f32 %v3462, %v3536
      %v3538 = vpop.f32.mrb[0].mxu0
      %3539 = vdwg.mxu0
      %3540 = vmatprep.subr.mxu0 0.0
      %3541 = vmatpush1.msra.mxu0 %v947
      %3542 = vmatprep.subr.mxu0 0.0
      %3543 = vmatpush1.msra.mxu0 %v948
      %3544 = vmatprep.subr.mxu0 0.0
      %3545 = vmatpush1.msra.mxu0 %v949
      %3546 = vmatprep.subr.mxu0 0.0
      %3547 = vmatpush1.msra.mxu0 %v950
      %3548 = vmatprep.subr.mxu0 0.0
      %3549 = vmatpush1.msra.mxu0 %v951
      %3550 = vmatprep.subr.mxu0 0.0
      %3551 = vmatpush1.msra.mxu0 %v952
      %3552 = vmatprep.subr.mxu0 0.0
      %3553 = vmatpush1.msra.mxu0 %v953
      %3554 = vmatprep.subr.mxu0 0.0
      %3555 = vmatpush1.msra.mxu0 %v954
      %3556 = vmatprep.subr.mxu0 0.0
      %3557 = vmatpush1.msra.mxu0 %v955
      %3558 = vmatprep.subr.mxu0 0.0
      %3559 = vmatpush1.msra.mxu0 %v956
      %3560 = vmatprep.subr.mxu0 0.0
      %3561 = vmatpush1.msra.mxu0 %v957
      %3562 = vmatprep.subr.mxu0 0.0
      %3563 = vmatpush1.msra.mxu0 %v958
      %3564 = vmatprep.subr.mxu0 0.0
      %3565 = vmatpush1.msra.mxu0 %v959
      %3566 = vmatprep.subr.mxu0 0.0
      %3567 = vmatpush1.msra.mxu0 %v960
      %3568 = vmatprep.subr.mxu0 0.0
      %3569 = vmatpush1.msra.mxu0 %v961
      %3570 = vmatprep.subr.mxu0 0.0
      %3571 = vmatpush1.msra.mxu0 %v962
      %3572 = vmatprep.subr.mxu0 0.0
      %3573 = vmatpush1.msra.mxu0 %v963
      %3574 = vmatprep.subr.mxu0 0.0
      %3575 = vmatpush1.msra.mxu0 %v964
      %3576 = vmatprep.subr.mxu0 0.0
      %3577 = vmatpush1.msra.mxu0 %v965
      %3578 = vmatprep.subr.mxu0 0.0
      %3579 = vmatpush1.msra.mxu0 %v966
      %3580 = vmatprep.subr.mxu0 0.0
      %3581 = vmatpush1.msra.mxu0 %v967
      %3582 = vmatprep.subr.mxu0 0.0
      %3583 = vmatpush1.msra.mxu0 %v968
      %3584 = vmatprep.subr.mxu0 0.0
      %3585 = vmatpush1.msra.mxu0 %v969
      %3586 = vmatprep.subr.mxu0 0.0
      %3587 = vmatpush1.msra.mxu0 %v970
      %3588 = vmatprep.subr.mxu0 0.0
      %3589 = vmatpush1.msra.mxu0 %v971
      %3590 = vmatprep.subr.mxu0 0.0
      %3591 = vmatpush1.msra.mxu0 %v972
      %3592 = vmatprep.subr.mxu0 0.0
      %3593 = vmatpush1.msra.mxu0 %v973
      %3594 = vmatprep.subr.mxu0 0.0
      %3595 = vmatpush1.msra.mxu0 %v974
      %3596 = vmatprep.subr.mxu0 0.0
      %3597 = vmatpush1.msra.mxu0 %v975
      %3598 = vmatprep.subr.mxu0 0.0
      %3599 = vmatpush1.msra.mxu0 %v976
      %3600 = vmatprep.subr.mxu0 0.0
      %3601 = vmatpush1.msra.mxu0 %v977
      %3602 = vmatprep.subr.mxu0 0.0
      %3603 = vmatpush1.msra.mxu0 %v978
      %3604 = vmatprep.mubr.f32.mxu0 %v206
      %3605 = vmatmul.mubr.f32.gmra.mrb[0].mxu0 %v205
      %v3606 = vpop.f32.mrb[0].mxu0
      %v3607 = vadd.f32 %v3532, %v3606
      %v3608 = vpop.f32.mrb[0].mxu0
      %3609 = vmatprep.mubr.f32.mxu0 %v322
      %3610 = vmatmul.mubr.f32.gmra.mrb[0].mxu0 %v321
      %v3611 = vpop.f32.mrb[0].mxu0
      %v3612 = vadd.f32 %v3537, %v3611
      %v3613 = vpop.f32.mrb[0].mxu0
      %3614 = vdwg.mxu0
      %3615 = vmatprep.subr.mxu0 0.0
      %3616 = vmatpush1.msra.mxu0 %v979
      %3617 = vmatprep.subr.mxu0 0.0
      %3618 = vmatpush1.msra.mxu0 %v980
      %3619 = vmatprep.subr.mxu0 0.0
      %3620 = vmatpush1.msra.mxu0 %v981
      %3621 = vmatprep.subr.mxu0 0.0
      %3622 = vmatpush1.msra.mxu0 %v982
      %3623 = vmatprep.subr.mxu0 0.0
      %3624 = vmatpush1.msra.mxu0 %v983
      %3625 = vmatprep.subr.mxu0 0.0
      %3626 = vmatpush1.msra.mxu0 %v984
      %3627 = vmatprep.subr.mxu0 0.0
      %3628 = vmatpush1.msra.mxu0 %v985
      %3629 = vmatprep.subr.mxu0 0.0
      %3630 = vmatpush1.msra.mxu0 %v986
      %3631 = vmatprep.subr.mxu0 0.0
      %3632 = vmatpush1.msra.mxu0 %v987
      %3633 = vmatprep.subr.mxu0 0.0
      %3634 = vmatpush1.msra.mxu0 %v988
      %3635 = vmatprep.subr.mxu0 0.0
      %3636 = vmatpush1.msra.mxu0 %v989
      %3637 = vmatprep.subr.mxu0 0.0
      %3638 = vmatpush1.msra.mxu0 %v990
      %3639 = vmatprep.subr.mxu0 0.0
      %3640 = vmatpush1.msra.mxu0 %v991
      %3641 = vmatprep.subr.mxu0 0.0
      %3642 = vmatpush1.msra.mxu0 %v992
      %3643 = vmatprep.subr.mxu0 0.0
      %3644 = vmatpush1.msra.mxu0 %v993
      %3645 = vmatprep.subr.mxu0 0.0
      %3646 = vmatpush1.msra.mxu0 %v994
      %3647 = vmatprep.subr.mxu0 0.0
      %3648 = vmatpush1.msra.mxu0 %v995
      %3649 = vmatprep.subr.mxu0 0.0
      %3650 = vmatpush1.msra.mxu0 %v996
      %3651 = vmatprep.subr.mxu0 0.0
      %3652 = vmatpush1.msra.mxu0 %v997
      %3653 = vmatprep.subr.mxu0 0.0
      %3654 = vmatpush1.msra.mxu0 %v998
      %3655 = vmatprep.subr.mxu0 0.0
      %3656 = vmatpush1.msra.mxu0 %v999
      %3657 = vmatprep.subr.mxu0 0.0
      %3658 = vmatpush1.msra.mxu0 %v1000
      %3659 = vmatprep.subr.mxu0 0.0
      %3660 = vmatpush1.msra.mxu0 %v1001
      %3661 = vmatprep.subr.mxu0 0.0
      %3662 = vmatpush1.msra.mxu0 %v1002
      %3663 = vmatprep.subr.mxu0 0.0
      %3664 = vmatpush1.msra.mxu0 %v1003
      %3665 = vmatprep.subr.mxu0 0.0
      %3666 = vmatpush1.msra.mxu0 %v1004
      %3667 = vmatprep.subr.mxu0 0.0
      %3668 = vmatpush1.msra.mxu0 %v1005
      %3669 = vmatprep.subr.mxu0 0.0
      %3670 = vmatpush1.msra.mxu0 %v1006
      %3671 = vmatprep.subr.mxu0 0.0
      %3672 = vmatpush1.msra.mxu0 %v1007
      %3673 = vmatprep.subr.mxu0 0.0
      %3674 = vmatpush1.msra.mxu0 %v1008
      %3675 = vmatprep.subr.mxu0 0.0
      %3676 = vmatpush1.msra.mxu0 %v1009
      %3677 = vmatprep.subr.mxu0 0.0
      %3678 = vmatpush1.msra.mxu0 %v1010
      %3679 = vmatprep.mubr.f32.mxu0 %v208
      %3680 = vmatmul.mubr.f32.gmra.mrb[0].mxu0 %v207
      %v3681 = vpop.f32.mrb[0].mxu0
      %v3682 = vadd.f32 %v3607, %v3681
      %v3683 = vpop.f32.mrb[0].mxu0
      %3684 = vmatprep.mubr.f32.mxu0 %v324
      %3685 = vmatmul.mubr.f32.gmra.mrb[0].mxu0 %v323
      %v3686 = vpop.f32.mrb[0].mxu0
      %v3687 = vadd.f32 %v3612, %v3686
      %v3688 = vpop.f32.mrb[0].mxu0
      %3689 = vdwg.mxu0
      %3690 = vmatprep.subr.mxu0 0.0
      %3691 = vmatpush1.msra.mxu0 %v1011
      %3692 = vmatprep.subr.mxu0 0.0
      %3693 = vmatpush1.msra.mxu0 %v1012
      %3694 = vmatprep.subr.mxu0 0.0
      %3695 = vmatpush1.msra.mxu0 %v1013
      %3696 = vmatprep.subr.mxu0 0.0
      %3697 = vmatpush1.msra.mxu0 %v1014
      %3698 = vmatprep.subr.mxu0 0.0
      %3699 = vmatpush1.msra.mxu0 %v1015
      %3700 = vmatprep.subr.mxu0 0.0
      %3701 = vmatpush1.msra.mxu0 %v1016
      %3702 = vmatprep.subr.mxu0 0.0
      %3703 = vmatpush1.msra.mxu0 %v1017
      %3704 = vmatprep.subr.mxu0 0.0
      %3705 = vmatpush1.msra.mxu0 %v1018
      %3706 = vmatprep.subr.mxu0 0.0
      %3707 = vmatpush1.msra.mxu0 %v1019
      %3708 = vmatprep.subr.mxu0 0.0
      %3709 = vmatpush1.msra.mxu0 %v1020
      %3710 = vmatprep.subr.mxu0 0.0
      %3711 = vmatpush1.msra.mxu0 %v1021
      %3712 = vmatprep.subr.mxu0 0.0
      %3713 = vmatpush1.msra.mxu0 %v1022
      %3714 = vmatprep.subr.mxu0 0.0
      %3715 = vmatpush1.msra.mxu0 %v1023
      %3716 = vmatprep.subr.mxu0 0.0
      %3717 = vmatpush1.msra.mxu0 %v1024
      %3718 = vmatprep.subr.mxu0 0.0
      %3719 = vmatpush1.msra.mxu0 %v1025
      %3720 = vmatprep.subr.mxu0 0.0
      %3721 = vmatpush1.msra.mxu0 %v1026
      %3722 = vmatprep.subr.mxu0 0.0
      %3723 = vmatpush1.msra.mxu0 %v1027
      %3724 = vmatprep.subr.mxu0 0.0
      %3725 = vmatpush1.msra.mxu0 %v1028
      %3726 = vmatprep.subr.mxu0 0.0
      %3727 = vmatpush1.msra.mxu0 %v1029
      %3728 = vmatprep.subr.mxu0 0.0
      %3729 = vmatpush1.msra.mxu0 %v1030
      %3730 = vmatprep.subr.mxu0 0.0
      %3731 = vmatpush1.msra.mxu0 %v1031
      %3732 = vmatprep.subr.mxu0 0.0
      %3733 = vmatpush1.msra.mxu0 %v1032
      %3734 = vmatprep.subr.mxu0 0.0
      %3735 = vmatpush1.msra.mxu0 %v1033
      %3736 = vmatprep.subr.mxu0 0.0
      %3737 = vmatpush1.msra.mxu0 %v1034
      %3738 = vmatprep.subr.mxu0 0.0
      %3739 = vmatpush1.msra.mxu0 %v1035
      %3740 = vmatprep.subr.mxu0 0.0
      %3741 = vmatpush1.msra.mxu0 %v1036
      %3742 = vmatprep.subr.mxu0 0.0
      %3743 = vmatpush1.msra.mxu0 %v1037
      %3744 = vmatprep.subr.mxu0 0.0
      %3745 = vmatpush1.msra.mxu0 %v1038
      %3746 = vmatprep.subr.mxu0 0.0
      %3747 = vmatpush1.msra.mxu0 %v1039
      %3748 = vmatprep.subr.mxu0 0.0
      %3749 = vmatpush1.msra.mxu0 %v1040
      %3750 = vmatprep.subr.mxu0 0.0
      %3751 = vmatpush1.msra.mxu0 %v1041
      %3752 = vmatprep.subr.mxu0 0.0
      %3753 = vmatpush1.msra.mxu0 %v1042
      %3754 = vmatprep.mubr.f32.mxu0 %v210
      %3755 = vmatmul.mubr.f32.gmra.mrb[0].mxu0 %v209
      %v3756 = vpop.f32.mrb[0].mxu0
      %v3757 = vadd.f32 %v3682, %v3756
      %v3758 = vpop.f32.mrb[0].mxu0
      %3759 = vmatprep.mubr.f32.mxu0 %v326
      %3760 = vmatmul.mubr.f32.gmra.mrb[0].mxu0 %v325
      %v3761 = vpop.f32.mrb[0].mxu0
      %v3762 = vadd.f32 %v3687, %v3761
      %v3763 = vpop.f32.mrb[0].mxu0
      %3764 = vdwg.mxu0
      %3765 = vmatprep.subr.mxu0 0.0
      %3766 = vmatpush1.msra.mxu0 %v1043
      %3767 = vmatprep.subr.mxu0 0.0
      %3768 = vmatpush1.msra.mxu0 %v1044
      %3769 = vmatprep.subr.mxu0 0.0
      %3770 = vmatpush1.msra.mxu0 %v1045
      %3771 = vmatprep.subr.mxu0 0.0
      %3772 = vmatpush1.msra.mxu0 %v1046
      %3773 = vmatprep.subr.mxu0 0.0
      %3774 = vmatpush1.msra.mxu0 %v1047
      %3775 = vmatprep.subr.mxu0 0.0
      %3776 = vmatpush1.msra.mxu0 %v1048
      %3777 = vmatprep.subr.mxu0 0.0
      %3778 = vmatpush1.msra.mxu0 %v1049
      %3779 = vmatprep.subr.mxu0 0.0
      %3780 = vmatpush1.msra.mxu0 %v1050
      %3781 = vmatprep.subr.mxu0 0.0
      %3782 = vmatpush1.msra.mxu0 %v1051
      %3783 = vmatprep.subr.mxu0 0.0
      %3784 = vmatpush1.msra.mxu0 %v1052
      %3785 = vmatprep.subr.mxu0 0.0
      %3786 = vmatpush1.msra.mxu0 %v1053
      %3787 = vmatprep.subr.mxu0 0.0
      %3788 = vmatpush1.msra.mxu0 %v1054
      %3789 = vmatprep.subr.mxu0 0.0
      %3790 = vmatpush1.msra.mxu0 %v1055
      %3791 = vmatprep.subr.mxu0 0.0
      %3792 = vmatpush1.msra.mxu0 %v1056
      %3793 = vmatprep.subr.mxu0 0.0
      %3794 = vmatpush1.msra.mxu0 %v1057
      %3795 = vmatprep.subr.mxu0 0.0
      %3796 = vmatpush1.msra.mxu0 %v1058
      %3797 = vmatprep.subr.mxu0 0.0
      %3798 = vmatpush1.msra.mxu0 %v1059
      %3799 = vmatprep.subr.mxu0 0.0
      %3800 = vmatpush1.msra.mxu0 %v1060
      %3801 = vmatprep.subr.mxu0 0.0
      %3802 = vmatpush1.msra.mxu0 %v1061
      %3803 = vmatprep.subr.mxu0 0.0
      %3804 = vmatpush1.msra.mxu0 %v1062
      %3805 = vmatprep.subr.mxu0 0.0
      %3806 = vmatpush1.msra.mxu0 %v1063
      %3807 = vmatprep.subr.mxu0 0.0
      %3808 = vmatpush1.msra.mxu0 %v1064
      %3809 = vmatprep.subr.mxu0 0.0
      %3810 = vmatpush1.msra.mxu0 %v1065
      %3811 = vmatprep.subr.mxu0 0.0
      %3812 = vmatpush1.msra.mxu0 %v1066
      %3813 = vmatprep.subr.mxu0 0.0
      %3814 = vmatpush1.msra.mxu0 %v1067
      %3815 = vmatprep.subr.mxu0 0.0
      %3816 = vmatpush1.msra.mxu0 %v1068
      %3817 = vmatprep.subr.mxu0 0.0
      %3818 = vmatpush1.msra.mxu0 %v1069
      %3819 = vmatprep.subr.mxu0 0.0
      %3820 = vmatpush1.msra.mxu0 %v1070
      %3821 = vmatprep.subr.mxu0 0.0
      %3822 = vmatpush1.msra.mxu0 %v1071
      %3823 = vmatprep.subr.mxu0 0.0
      %3824 = vmatpush1.msra.mxu0 %v1072
      %3825 = vmatprep.subr.mxu0 0.0
      %3826 = vmatpush1.msra.mxu0 %v1073
      %3827 = vmatprep.subr.mxu0 0.0
      %3828 = vmatpush1.msra.mxu0 %v1074
      %3829 = vmatprep.mubr.f32.mxu0 %v212
      %3830 = vmatmul.mubr.f32.gmra.mrb[0].mxu0 %v211
      %v3831 = vpop.f32.mrb[0].mxu0
      %v3832 = vadd.f32 %v3757, %v3831
      %v3833 = vpop.f32.mrb[0].mxu0
      %3834 = vmatprep.mubr.f32.mxu0 %v328
      %3835 = vmatmul.mubr.f32.gmra.mrb[0].mxu0 %v327
      %v3836 = vpop.f32.mrb[0].mxu0
      %v3837 = vadd.f32 %v3762, %v3836
      %v3838 = vpop.f32.mrb[0].mxu0
      %3839 = vdwg.mxu0
      %3840 = vmatprep.subr.mxu0 0.0
      %3841 = vmatpush1.msra.mxu0 %v1075
      %3842 = vmatprep.subr.mxu0 0.0
      %3843 = vmatpush1.msra.mxu0 %v1076
      %3844 = vmatprep.subr.mxu0 0.0
      %3845 = vmatpush1.msra.mxu0 %v1077
      %3846 = vmatprep.subr.mxu0 0.0
      %3847 = vmatpush1.msra.mxu0 %v1078
      %3848 = vmatprep.subr.mxu0 0.0
      %3849 = vmatpush1.msra.mxu0 %v1079
      %3850 = vmatprep.subr.mxu0 0.0
      %3851 = vmatpush1.msra.mxu0 %v1080
      %3852 = vmatprep.subr.mxu0 0.0
      %3853 = vmatpush1.msra.mxu0 %v1081
      %3854 = vmatprep.subr.mxu0 0.0
      %3855 = vmatpush1.msra.mxu0 %v1082
      %3856 = vmatprep.subr.mxu0 0.0
      %3857 = vmatpush1.msra.mxu0 %v1083
      %3858 = vmatprep.subr.mxu0 0.0
      %3859 = vmatpush1.msra.mxu0 %v1084
      %3860 = vmatprep.subr.mxu0 0.0
      %3861 = vmatpush1.msra.mxu0 %v1085
      %3862 = vmatprep.subr.mxu0 0.0
      %3863 = vmatpush1.msra.mxu0 %v1086
      %3864 = vmatprep.subr.mxu0 0.0
      %3865 = vmatpush1.msra.mxu0 %v1087
      %3866 = vmatprep.subr.mxu0 0.0
      %3867 = vmatpush1.msra.mxu0 %v1088
      %3868 = vmatprep.subr.mxu0 0.0
      %3869 = vmatpush1.msra.mxu0 %v1089
      %3870 = vmatprep.subr.mxu0 0.0
      %3871 = vmatpush1.msra.mxu0 %v1090
      %3872 = vmatprep.subr.mxu0 0.0
      %3873 = vmatpush1.msra.mxu0 %v1091
      %3874 = vmatprep.subr.mxu0 0.0
      %3875 = vmatpush1.msra.mxu0 %v1092
      %3876 = vmatprep.subr.mxu0 0.0
      %3877 = vmatpush1.msra.mxu0 %v1093
      %3878 = vmatprep.subr.mxu0 0.0
      %3879 = vmatpush1.msra.mxu0 %v1094
      %3880 = vmatprep.subr.mxu0 0.0
      %3881 = vmatpush1.msra.mxu0 %v1095
      %3882 = vmatprep.subr.mxu0 0.0
      %3883 = vmatpush1.msra.mxu0 %v1096
      %3884 = vmatprep.subr.mxu0 0.0
      %3885 = vmatpush1.msra.mxu0 %v1097
      %3886 = vmatprep.subr.mxu0 0.0
      %3887 = vmatpush1.msra.mxu0 %v1098
      %3888 = vmatprep.subr.mxu0 0.0
      %3889 = vmatpush1.msra.mxu0 %v1099
      %3890 = vmatprep.subr.mxu0 0.0
      %3891 = vmatpush1.msra.mxu0 %v1100
      %3892 = vmatprep.subr.mxu0 0.0
      %3893 = vmatpush1.msra.mxu0 %v1101
      %3894 = vmatprep.subr.mxu0 0.0
      %3895 = vmatpush1.msra.mxu0 %v1102
      %3896 = vmatprep.subr.mxu0 0.0
      %3897 = vmatpush1.msra.mxu0 %v1103
      %3898 = vmatprep.subr.mxu0 0.0
      %3899 = vmatpush1.msra.mxu0 %v1104
      %3900 = vmatprep.subr.mxu0 0.0
      %3901 = vmatpush1.msra.mxu0 %v1105
      %3902 = vmatprep.subr.mxu0 0.0
      %3903 = vmatpush1.msra.mxu0 %v1106
      %3904 = vmatprep.mubr.f32.mxu0 %v214
      %3905 = vmatmul.mubr.f32.gmra.mrb[0].mxu0 %v213
      %v3906 = vpop.f32.mrb[0].mxu0
      %v3907 = vadd.f32 %v3832, %v3906
      %v3908 = vpop.f32.mrb[0].mxu0
      %3909 = vmatprep.mubr.f32.mxu0 %v330
      %3910 = vmatmul.mubr.f32.gmra.mrb[0].mxu0 %v329
      %v3911 = vpop.f32.mrb[0].mxu0
      %v3912 = vadd.f32 %v3837, %v3911
      %v3913 = vpop.f32.mrb[0].mxu0
      %3914 = vdwg.mxu0
      %3915 = vmatprep.subr.mxu0 0.0
      %3916 = vmatpush1.msra.mxu0 %v1107
      %3917 = vmatprep.subr.mxu0 0.0
      %3918 = vmatpush1.msra.mxu0 %v1108
      %3919 = vmatprep.subr.mxu0 0.0
      %3920 = vmatpush1.msra.mxu0 %v1109
      %3921 = vmatprep.subr.mxu0 0.0
      %3922 = vmatpush1.msra.mxu0 %v1110
      %3923 = vmatprep.subr.mxu0 0.0
      %3924 = vmatpush1.msra.mxu0 %v1111
      %3925 = vmatprep.subr.mxu0 0.0
      %3926 = vmatpush1.msra.mxu0 %v1112
      %3927 = vmatprep.subr.mxu0 0.0
      %3928 = vmatpush1.msra.mxu0 %v1113
      %3929 = vmatprep.subr.mxu0 0.0
      %3930 = vmatpush1.msra.mxu0 %v1114
      %3931 = vmatprep.subr.mxu0 0.0
      %3932 = vmatpush1.msra.mxu0 %v1115
      %3933 = vmatprep.subr.mxu0 0.0
      %3934 = vmatpush1.msra.mxu0 %v1116
      %3935 = vmatprep.subr.mxu0 0.0
      %3936 = vmatpush1.msra.mxu0 %v1117
      %3937 = vmatprep.subr.mxu0 0.0
      %3938 = vmatpush1.msra.mxu0 %v1118
      %3939 = vmatprep.subr.mxu0 0.0
      %3940 = vmatpush1.msra.mxu0 %v1119
      %3941 = vmatprep.subr.mxu0 0.0
      %3942 = vmatpush1.msra.mxu0 %v1120
      %3943 = vmatprep.subr.mxu0 0.0
      %3944 = vmatpush1.msra.mxu0 %v1121
      %3945 = vmatprep.subr.mxu0 0.0
      %3946 = vmatpush1.msra.mxu0 %v1122
      %3947 = vmatprep.subr.mxu0 0.0
      %3948 = vmatpush1.msra.mxu0 %v1123
      %3949 = vmatprep.subr.mxu0 0.0
      %3950 = vmatpush1.msra.mxu0 %v1124
      %3951 = vmatprep.subr.mxu0 0.0
      %3952 = vmatpush1.msra.mxu0 %v1125
      %3953 = vmatprep.subr.mxu0 0.0
      %3954 = vmatpush1.msra.mxu0 %v1126
      %3955 = vmatprep.subr.mxu0 0.0
      %3956 = vmatpush1.msra.mxu0 %v1127
      %3957 = vmatprep.subr.mxu0 0.0
      %3958 = vmatpush1.msra.mxu0 %v1128
      %3959 = vmatprep.subr.mxu0 0.0
      %3960 = vmatpush1.msra.mxu0 %v1129
      %3961 = vmatprep.subr.mxu0 0.0
      %3962 = vmatpush1.msra.mxu0 %v1130
      %3963 = vmatprep.subr.mxu0 0.0
      %3964 = vmatpush1.msra.mxu0 %v1131
      %3965 = vmatprep.subr.mxu0 0.0
      %3966 = vmatpush1.msra.mxu0 %v1132
      %3967 = vmatprep.subr.mxu0 0.0
      %3968 = vmatpush1.msra.mxu0 %v1133
      %3969 = vmatprep.subr.mxu0 0.0
      %3970 = vmatpush1.msra.mxu0 %v1134
      %3971 = vmatprep.subr.mxu0 0.0
      %3972 = vmatpush1.msra.mxu0 %v1135
      %3973 = vmatprep.subr.mxu0 0.0
      %3974 = vmatpush1.msra.mxu0 %v1136
      %3975 = vmatprep.subr.mxu0 0.0
      %3976 = vmatpush1.msra.mxu0 %v1137
      %3977 = vmatprep.subr.mxu0 0.0
      %3978 = vmatpush1.msra.mxu0 %v1138
      %3979 = vmatprep.mubr.f32.mxu0 %v216
      %3980 = vmatmul.mubr.f32.gmra.mrb[0].mxu0 %v215
      %v3981 = vpop.f32.mrb[0].mxu0
      %v3982 = vadd.f32 %v3907, %v3981
      %v3983 = vpop.f32.mrb[0].mxu0
      %3984 = vmatprep.mubr.f32.mxu0 %v332
      %3985 = vmatmul.mubr.f32.gmra.mrb[0].mxu0 %v331
      %v3986 = vpop.f32.mrb[0].mxu0
      %v3987 = vadd.f32 %v3912, %v3986
      %v3988 = vpop.f32.mrb[0].mxu0
      %3989 = vdwg.mxu0
      %3990 = vmatprep.subr.mxu0 0.0
      %3991 = vmatpush1.msra.mxu0 %v1139
      %3992 = vmatprep.subr.mxu0 0.0
      %3993 = vmatpush1.msra.mxu0 %v1140
      %3994 = vmatprep.subr.mxu0 0.0
      %3995 = vmatpush1.msra.mxu0 %v1141
      %3996 = vmatprep.subr.mxu0 0.0
      %3997 = vmatpush1.msra.mxu0 %v1142
      %3998 = vmatprep.subr.mxu0 0.0
      %3999 = vmatpush1.msra.mxu0 %v1143
      %4000 = vmatprep.subr.mxu0 0.0
      %4001 = vmatpush1.msra.mxu0 %v1144
      %4002 = vmatprep.subr.mxu0 0.0
      %4003 = vmatpush1.msra.mxu0 %v1145
      %4004 = vmatprep.subr.mxu0 0.0
      %4005 = vmatpush1.msra.mxu0 %v1146
      %4006 = vmatprep.subr.mxu0 0.0
      %4007 = vmatpush1.msra.mxu0 %v1147
      %4008 = vmatprep.subr.mxu0 0.0
      %4009 = vmatpush1.msra.mxu0 %v1148
      %4010 = vmatprep.subr.mxu0 0.0
      %4011 = vmatpush1.msra.mxu0 %v1149
      %4012 = vmatprep.subr.mxu0 0.0
      %4013 = vmatpush1.msra.mxu0 %v1150
      %4014 = vmatprep.subr.mxu0 0.0
      %4015 = vmatpush1.msra.mxu0 %v1151
      %4016 = vmatprep.subr.mxu0 0.0
      %4017 = vmatpush1.msra.mxu0 %v1152
      %4018 = vmatprep.subr.mxu0 0.0
      %4019 = vmatpush1.msra.mxu0 %v1153
      %4020 = vmatprep.subr.mxu0 0.0
      %4021 = vmatpush1.msra.mxu0 %v1154
      %4022 = vmatprep.subr.mxu0 0.0
      %4023 = vmatpush1.msra.mxu0 %v1155
      %4024 = vmatprep.subr.mxu0 0.0
      %4025 = vmatpush1.msra.mxu0 %v1156
      %4026 = vmatprep.subr.mxu0 0.0
      %4027 = vmatpush1.msra.mxu0 %v1157
      %4028 = vmatprep.subr.mxu0 0.0
      %4029 = vmatpush1.msra.mxu0 %v1158
      %4030 = vmatprep.subr.mxu0 0.0
      %4031 = vmatpush1.msra.mxu0 %v1159
      %4032 = vmatprep.subr.mxu0 0.0
      %4033 = vmatpush1.msra.mxu0 %v1160
      %4034 = vmatprep.subr.mxu0 0.0
      %4035 = vmatpush1.msra.mxu0 %v1161
      %4036 = vmatprep.subr.mxu0 0.0
      %4037 = vmatpush1.msra.mxu0 %v1162
      %4038 = vmatprep.subr.mxu0 0.0
      %4039 = vmatpush1.msra.mxu0 %v1163
      %4040 = vmatprep.subr.mxu0 0.0
      %4041 = vmatpush1.msra.mxu0 %v1164
      %4042 = vmatprep.subr.mxu0 0.0
      %4043 = vmatpush1.msra.mxu0 %v1165
      %4044 = vmatprep.subr.mxu0 0.0
      %4045 = vmatpush1.msra.mxu0 %v1166
      %4046 = vmatprep.subr.mxu0 0.0
      %4047 = vmatpush1.msra.mxu0 %v1167
      %4048 = vmatprep.subr.mxu0 0.0
      %4049 = vmatpush1.msra.mxu0 %v1168
      %4050 = vmatprep.subr.mxu0 0.0
      %4051 = vmatpush1.msra.mxu0 %v1169
      %4052 = vmatprep.subr.mxu0 0.0
      %4053 = vmatpush1.msra.mxu0 %v1170
      %4054 = vmatprep.mubr.f32.mxu0 %v218
      %4055 = vmatmul.mubr.f32.gmra.mrb[0].mxu0 %v217
      %v4056 = vpop.f32.mrb[0].mxu0
      %v4057 = vadd.f32 %v3982, %v4056
      %v4058 = vpop.f32.mrb[0].mxu0
      %4059 = vmatprep.mubr.f32.mxu0 %v334
      %4060 = vmatmul.mubr.f32.gmra.mrb[0].mxu0 %v333
      %v4061 = vpop.f32.mrb[0].mxu0
      %v4062 = vadd.f32 %v3987, %v4061
      %v4063 = vpop.f32.mrb[0].mxu0
      %4064 = vdwg.mxu0
      %4065 = vmatprep.subr.mxu0 0.0
      %4066 = vmatpush1.msra.mxu0 %v1171
      %4067 = vmatprep.subr.mxu0 0.0
      %4068 = vmatpush1.msra.mxu0 %v1172
      %4069 = vmatprep.subr.mxu0 0.0
      %4070 = vmatpush1.msra.mxu0 %v1173
      %4071 = vmatprep.subr.mxu0 0.0
      %4072 = vmatpush1.msra.mxu0 %v1174
      %4073 = vmatprep.subr.mxu0 0.0
      %4074 = vmatpush1.msra.mxu0 %v1175
      %4075 = vmatprep.subr.mxu0 0.0
      %4076 = vmatpush1.msra.mxu0 %v1176
      %4077 = vmatprep.subr.mxu0 0.0
      %4078 = vmatpush1.msra.mxu0 %v1177
      %4079 = vmatprep.subr.mxu0 0.0
      %4080 = vmatpush1.msra.mxu0 %v1178
      %4081 = vmatprep.subr.mxu0 0.0
      %4082 = vmatpush1.msra.mxu0 %v1179
      %4083 = vmatprep.subr.mxu0 0.0
      %4084 = vmatpush1.msra.mxu0 %v1180
      %4085 = vmatprep.subr.mxu0 0.0
      %4086 = vmatpush1.msra.mxu0 %v1181
      %4087 = vmatprep.subr.mxu0 0.0
      %4088 = vmatpush1.msra.mxu0 %v1182
      %4089 = vmatprep.subr.mxu0 0.0
      %4090 = vmatpush1.msra.mxu0 %v1183
      %4091 = vmatprep.subr.mxu0 0.0
      %4092 = vmatpush1.msra.mxu0 %v1184
      %4093 = vmatprep.subr.mxu0 0.0
      %4094 = vmatpush1.msra.mxu0 %v1185
      %4095 = vmatprep.subr.mxu0 0.0
      %4096 = vmatpush1.msra.mxu0 %v1186
      %4097 = vmatprep.subr.mxu0 0.0
      %4098 = vmatpush1.msra.mxu0 %v1187
      %4099 = vmatprep.subr.mxu0 0.0
      %4100 = vmatpush1.msra.mxu0 %v1188
      %4101 = vmatprep.subr.mxu0 0.0
      %4102 = vmatpush1.msra.mxu0 %v1189
      %4103 = vmatprep.subr.mxu0 0.0
      %4104 = vmatpush1.msra.mxu0 %v1190
      %4105 = vmatprep.subr.mxu0 0.0
      %4106 = vmatpush1.msra.mxu0 %v1191
      %4107 = vmatprep.subr.mxu0 0.0
      %4108 = vmatpush1.msra.mxu0 %v1192
      %4109 = vmatprep.subr.mxu0 0.0
      %4110 = vmatpush1.msra.mxu0 %v1193
      %4111 = vmatprep.subr.mxu0 0.0
      %4112 = vmatpush1.msra.mxu0 %v1194
      %4113 = vmatprep.subr.mxu0 0.0
      %4114 = vmatpush1.msra.mxu0 %v1195
      %4115 = vmatprep.subr.mxu0 0.0
      %4116 = vmatpush1.msra.mxu0 %v1196
      %4117 = vmatprep.subr.mxu0 0.0
      %4118 = vmatpush1.msra.mxu0 %v1197
      %4119 = vmatprep.subr.mxu0 0.0
      %4120 = vmatpush1.msra.mxu0 %v1198
      %4121 = vmatprep.subr.mxu0 0.0
      %4122 = vmatpush1.msra.mxu0 %v1199
      %4123 = vmatprep.subr.mxu0 0.0
      %4124 = vmatpush1.msra.mxu0 %v1200
      %4125 = vmatprep.subr.mxu0 0.0
      %4126 = vmatpush1.msra.mxu0 %v1201
      %4127 = vmatprep.subr.mxu0 0.0
      %4128 = vmatpush1.msra.mxu0 %v1202
      %4129 = vmatprep.mubr.f32.mxu0 %v220
      %4130 = vmatmul.mubr.f32.gmra.mrb[0].mxu0 %v219
      %v4131 = vpop.f32.mrb[0].mxu0
      %v4132 = vadd.f32 %v4057, %v4131
      %v4133 = vpop.f32.mrb[0].mxu0
      %4134 = vmatprep.mubr.f32.mxu0 %v336
      %4135 = vmatmul.mubr.f32.gmra.mrb[0].mxu0 %v335
      %v4136 = vpop.f32.mrb[0].mxu0
      %v4137 = vadd.f32 %v4062, %v4136
      %v4138 = vpop.f32.mrb[0].mxu0
      %4139 = vdwg.mxu0
      %4140 = vmatprep.subr.mxu0 0.0
      %4141 = vmatpush1.msra.mxu0 %v1203
      %4142 = vmatprep.subr.mxu0 0.0
      %4143 = vmatpush1.msra.mxu0 %v1204
      %4144 = vmatprep.subr.mxu0 0.0
      %4145 = vmatpush1.msra.mxu0 %v1205
      %4146 = vmatprep.subr.mxu0 0.0
      %4147 = vmatpush1.msra.mxu0 %v1206
      %4148 = vmatprep.subr.mxu0 0.0
      %4149 = vmatpush1.msra.mxu0 %v1207
      %4150 = vmatprep.subr.mxu0 0.0
      %4151 = vmatpush1.msra.mxu0 %v1208
      %4152 = vmatprep.subr.mxu0 0.0
      %4153 = vmatpush1.msra.mxu0 %v1209
      %4154 = vmatprep.subr.mxu0 0.0
      %4155 = vmatpush1.msra.mxu0 %v1210
      %4156 = vmatprep.subr.mxu0 0.0
      %4157 = vmatpush1.msra.mxu0 %v1211
      %4158 = vmatprep.subr.mxu0 0.0
      %4159 = vmatpush1.msra.mxu0 %v1212
      %4160 = vmatprep.subr.mxu0 0.0
      %4161 = vmatpush1.msra.mxu0 %v1213
      %4162 = vmatprep.subr.mxu0 0.0
      %4163 = vmatpush1.msra.mxu0 %v1214
      %4164 = vmatprep.subr.mxu0 0.0
      %4165 = vmatpush1.msra.mxu0 %v1215
      %4166 = vmatprep.subr.mxu0 0.0
      %4167 = vmatpush1.msra.mxu0 %v1216
      %4168 = vmatprep.subr.mxu0 0.0
      %4169 = vmatpush1.msra.mxu0 %v1217
      %4170 = vmatprep.subr.mxu0 0.0
      %4171 = vmatpush1.msra.mxu0 %v1218
      %4172 = vmatprep.subr.mxu0 0.0
      %4173 = vmatpush1.msra.mxu0 %v1219
      %4174 = vmatprep.subr.mxu0 0.0
      %4175 = vmatpush1.msra.mxu0 %v1220
      %4176 = vmatprep.subr.mxu0 0.0
      %4177 = vmatpush1.msra.mxu0 %v1221
      %4178 = vmatprep.subr.mxu0 0.0
      %4179 = vmatpush1.msra.mxu0 %v1222
      %4180 = vmatprep.subr.mxu0 0.0
      %4181 = vmatpush1.msra.mxu0 %v1223
      %4182 = vmatprep.subr.mxu0 0.0
      %4183 = vmatpush1.msra.mxu0 %v1224
      %4184 = vmatprep.subr.mxu0 0.0
      %4185 = vmatpush1.msra.mxu0 %v1225
      %4186 = vmatprep.subr.mxu0 0.0
      %4187 = vmatpush1.msra.mxu0 %v1226
      %4188 = vmatprep.subr.mxu0 0.0
      %4189 = vmatpush1.msra.mxu0 %v1227
      %4190 = vmatprep.subr.mxu0 0.0
      %4191 = vmatpush1.msra.mxu0 %v1228
      %4192 = vmatprep.subr.mxu0 0.0
      %4193 = vmatpush1.msra.mxu0 %v1229
      %4194 = vmatprep.subr.mxu0 0.0
      %4195 = vmatpush1.msra.mxu0 %v1230
      %4196 = vmatprep.subr.mxu0 0.0
      %4197 = vmatpush1.msra.mxu0 %v1231
      %4198 = vmatprep.subr.mxu0 0.0
      %4199 = vmatpush1.msra.mxu0 %v1232
      %4200 = vmatprep.subr.mxu0 0.0
      %4201 = vmatpush1.msra.mxu0 %v1233
      %4202 = vmatprep.subr.mxu0 0.0
      %4203 = vmatpush1.msra.mxu0 %v1234
      %4204 = vmatprep.mubr.f32.mxu0 %v222
      %4205 = vmatmul.mubr.f32.gmra.mrb[0].mxu0 %v221
      %v4206 = vpop.f32.mrb[0].mxu0
      %v4207 = vadd.f32 %v4132, %v4206
      %v4208 = vpop.f32.mrb[0].mxu0
      %4209 = vmatprep.mubr.f32.mxu0 %v338
      %4210 = vmatmul.mubr.f32.gmra.mrb[0].mxu0 %v337
      %v4211 = vpop.f32.mrb[0].mxu0
      %v4212 = vadd.f32 %v4137, %v4211
      %v4213 = vpop.f32.mrb[0].mxu0
      %4214 = vdwg.mxu0
      %4215 = vmatprep.subr.mxu0 0.0
      %4216 = vmatpush1.msra.mxu0 %v1235
      %4217 = vmatprep.subr.mxu0 0.0
      %4218 = vmatpush1.msra.mxu0 %v1236
      %4219 = vmatprep.subr.mxu0 0.0
      %4220 = vmatpush1.msra.mxu0 %v1237
      %4221 = vmatprep.subr.mxu0 0.0
      %4222 = vmatpush1.msra.mxu0 %v1238
      %4223 = vmatprep.subr.mxu0 0.0
      %4224 = vmatpush1.msra.mxu0 %v1239
      %4225 = vmatprep.subr.mxu0 0.0
      %4226 = vmatpush1.msra.mxu0 %v1240
      %4227 = vmatprep.subr.mxu0 0.0
      %4228 = vmatpush1.msra.mxu0 %v1241
      %4229 = vmatprep.subr.mxu0 0.0
      %4230 = vmatpush1.msra.mxu0 %v1242
      %4231 = vmatprep.subr.mxu0 0.0
      %4232 = vmatpush1.msra.mxu0 %v1243
      %4233 = vmatprep.subr.mxu0 0.0
      %4234 = vmatpush1.msra.mxu0 %v1244
      %4235 = vmatprep.subr.mxu0 0.0
      %4236 = vmatpush1.msra.mxu0 %v1245
      %4237 = vmatprep.subr.mxu0 0.0
      %4238 = vmatpush1.msra.mxu0 %v1246
      %4239 = vmatprep.subr.mxu0 0.0
      %4240 = vmatpush1.msra.mxu0 %v1247
      %4241 = vmatprep.subr.mxu0 0.0
      %4242 = vmatpush1.msra.mxu0 %v1248
      %4243 = vmatprep.subr.mxu0 0.0
      %4244 = vmatpush1.msra.mxu0 %v1249
      %4245 = vmatprep.subr.mxu0 0.0
      %4246 = vmatpush1.msra.mxu0 %v1250
      %4247 = vmatprep.subr.mxu0 0.0
      %4248 = vmatpush1.msra.mxu0 %v1251
      %4249 = vmatprep.subr.mxu0 0.0
      %4250 = vmatpush1.msra.mxu0 %v1252
      %4251 = vmatprep.subr.mxu0 0.0
      %4252 = vmatpush1.msra.mxu0 %v1253
      %4253 = vmatprep.subr.mxu0 0.0
      %4254 = vmatpush1.msra.mxu0 %v1254
      %4255 = vmatprep.subr.mxu0 0.0
      %4256 = vmatpush1.msra.mxu0 %v1255
      %4257 = vmatprep.subr.mxu0 0.0
      %4258 = vmatpush1.msra.mxu0 %v1256
      %4259 = vmatprep.subr.mxu0 0.0
      %4260 = vmatpush1.msra.mxu0 %v1257
      %4261 = vmatprep.subr.mxu0 0.0
      %4262 = vmatpush1.msra.mxu0 %v1258
      %4263 = vmatprep.subr.mxu0 0.0
      %4264 = vmatpush1.msra.mxu0 %v1259
      %4265 = vmatprep.subr.mxu0 0.0
      %4266 = vmatpush1.msra.mxu0 %v1260
      %4267 = vmatprep.subr.mxu0 0.0
      %4268 = vmatpush1.msra.mxu0 %v1261
      %4269 = vmatprep.subr.mxu0 0.0
      %4270 = vmatpush1.msra.mxu0 %v1262
      %4271 = vmatprep.subr.mxu0 0.0
      %4272 = vmatpush1.msra.mxu0 %v1263
      %4273 = vmatprep.subr.mxu0 0.0
      %4274 = vmatpush1.msra.mxu0 %v1264
      %4275 = vmatprep.subr.mxu0 0.0
      %4276 = vmatpush1.msra.mxu0 %v1265
      %4277 = vmatprep.subr.mxu0 0.0
      %4278 = vmatpush1.msra.mxu0 %v1266
      %4279 = vmatprep.mubr.f32.mxu0 %v224
      %4280 = vmatmul.mubr.f32.gmra.mrb[0].mxu0 %v223
      %v4281 = vpop.f32.mrb[0].mxu0
      %v4282 = vadd.f32 %v4207, %v4281
      %v4283 = vpop.f32.mrb[0].mxu0
      %4284 = vmatprep.mubr.f32.mxu0 %v340
      %4285 = vmatmul.mubr.f32.gmra.mrb[0].mxu0 %v339
      %v4286 = vpop.f32.mrb[0].mxu0
      %v4287 = vadd.f32 %v4212, %v4286
      %v4288 = vpop.f32.mrb[0].mxu0
      %4289 = vdwg.mxu0
      %4290 = vmatprep.subr.mxu0 0.0
      %4291 = vmatpush1.msra.mxu0 %v1267
      %4292 = vmatprep.subr.mxu0 0.0
      %4293 = vmatpush1.msra.mxu0 %v1268
      %4294 = vmatprep.subr.mxu0 0.0
      %4295 = vmatpush1.msra.mxu0 %v1269
      %4296 = vmatprep.subr.mxu0 0.0
      %4297 = vmatpush1.msra.mxu0 %v1270
      %4298 = vmatprep.subr.mxu0 0.0
      %4299 = vmatpush1.msra.mxu0 %v1271
      %4300 = vmatprep.subr.mxu0 0.0
      %4301 = vmatpush1.msra.mxu0 %v1272
      %4302 = vmatprep.subr.mxu0 0.0
      %4303 = vmatpush1.msra.mxu0 %v1273
      %4304 = vmatprep.subr.mxu0 0.0
      %4305 = vmatpush1.msra.mxu0 %v1274
      %4306 = vmatprep.subr.mxu0 0.0
      %4307 = vmatpush1.msra.mxu0 %v1275
      %4308 = vmatprep.subr.mxu0 0.0
      %4309 = vmatpush1.msra.mxu0 %v1276
      %4310 = vmatprep.subr.mxu0 0.0
      %4311 = vmatpush1.msra.mxu0 %v1277
      %4312 = vmatprep.subr.mxu0 0.0
      %4313 = vmatpush1.msra.mxu0 %v1278
      %4314 = vmatprep.subr.mxu0 0.0
      %4315 = vmatpush1.msra.mxu0 %v1279
      %4316 = vmatprep.subr.mxu0 0.0
      %4317 = vmatpush1.msra.mxu0 %v1280
      %4318 = vmatprep.subr.mxu0 0.0
      %4319 = vmatpush1.msra.mxu0 %v1281
      %4320 = vmatprep.subr.mxu0 0.0
      %4321 = vmatpush1.msra.mxu0 %v1282
      %4322 = vmatprep.subr.mxu0 0.0
      %4323 = vmatpush1.msra.mxu0 %v1283
      %4324 = vmatprep.subr.mxu0 0.0
      %4325 = vmatpush1.msra.mxu0 %v1284
      %4326 = vmatprep.subr.mxu0 0.0
      %4327 = vmatpush1.msra.mxu0 %v1285
      %4328 = vmatprep.subr.mxu0 0.0
      %4329 = vmatpush1.msra.mxu0 %v1286
      %4330 = vmatprep.subr.mxu0 0.0
      %4331 = vmatpush1.msra.mxu0 %v1287
      %4332 = vmatprep.subr.mxu0 0.0
      %4333 = vmatpush1.msra.mxu0 %v1288
      %4334 = vmatprep.subr.mxu0 0.0
      %4335 = vmatpush1.msra.mxu0 %v1289
      %4336 = vmatprep.subr.mxu0 0.0
      %4337 = vmatpush1.msra.mxu0 %v1290
      %4338 = vmatprep.subr.mxu0 0.0
      %4339 = vmatpush1.msra.mxu0 %v1291
      %4340 = vmatprep.subr.mxu0 0.0
      %4341 = vmatpush1.msra.mxu0 %v1292
      %4342 = vmatprep.subr.mxu0 0.0
      %4343 = vmatpush1.msra.mxu0 %v1293
      %4344 = vmatprep.subr.mxu0 0.0
      %4345 = vmatpush1.msra.mxu0 %v1294
      %4346 = vmatprep.subr.mxu0 0.0
      %4347 = vmatpush1.msra.mxu0 %v1295
      %4348 = vmatprep.subr.mxu0 0.0
      %4349 = vmatpush1.msra.mxu0 %v1296
      %4350 = vmatprep.subr.mxu0 0.0
      %4351 = vmatpush1.msra.mxu0 %v1297
      %4352 = vmatprep.subr.mxu0 0.0
      %4353 = vmatpush1.msra.mxu0 %v1298
      %4354 = vmatprep.mubr.f32.mxu0 %v226
      %4355 = vmatmul.mubr.f32.gmra.mrb[0].mxu0 %v225
      %v4356 = vpop.f32.mrb[0].mxu0
      %v4357 = vadd.f32 %v4282, %v4356
      %v4358 = vpop.f32.mrb[0].mxu0
      %4359 = vmatprep.mubr.f32.mxu0 %v342
      %4360 = vmatmul.mubr.f32.gmra.mrb[0].mxu0 %v341
      %v4361 = vpop.f32.mrb[0].mxu0
      %v4362 = vadd.f32 %v4287, %v4361
      %v4363 = vpop.f32.mrb[0].mxu0
      %4364 = vdwg.mxu0
      %4365 = vmatprep.subr.mxu0 0.0
      %4366 = vmatpush1.msra.mxu0 %v1299
      %4367 = vmatprep.subr.mxu0 0.0
      %4368 = vmatpush1.msra.mxu0 %v1300
      %4369 = vmatprep.subr.mxu0 0.0
      %4370 = vmatpush1.msra.mxu0 %v1301
      %4371 = vmatprep.subr.mxu0 0.0
      %4372 = vmatpush1.msra.mxu0 %v1302
      %4373 = vmatprep.subr.mxu0 0.0
      %4374 = vmatpush1.msra.mxu0 %v1303
      %4375 = vmatprep.subr.mxu0 0.0
      %4376 = vmatpush1.msra.mxu0 %v1304
      %4377 = vmatprep.subr.mxu0 0.0
      %4378 = vmatpush1.msra.mxu0 %v1305
      %4379 = vmatprep.subr.mxu0 0.0
      %4380 = vmatpush1.msra.mxu0 %v1306
      %4381 = vmatprep.subr.mxu0 0.0
      %4382 = vmatpush1.msra.mxu0 %v1307
      %4383 = vmatprep.subr.mxu0 0.0
      %4384 = vmatpush1.msra.mxu0 %v1308
      %4385 = vmatprep.subr.mxu0 0.0
      %4386 = vmatpush1.msra.mxu0 %v1309
      %4387 = vmatprep.subr.mxu0 0.0
      %4388 = vmatpush1.msra.mxu0 %v1310
      %4389 = vmatprep.subr.mxu0 0.0
      %4390 = vmatpush1.msra.mxu0 %v1311
      %4391 = vmatprep.subr.mxu0 0.0
      %4392 = vmatpush1.msra.mxu0 %v1312
      %4393 = vmatprep.subr.mxu0 0.0
      %4394 = vmatpush1.msra.mxu0 %v1313
      %4395 = vmatprep.subr.mxu0 0.0
      %4396 = vmatpush1.msra.mxu0 %v1314
      %4397 = vmatprep.subr.mxu0 0.0
      %4398 = vmatpush1.msra.mxu0 %v1315
      %4399 = vmatprep.subr.mxu0 0.0
      %4400 = vmatpush1.msra.mxu0 %v1316
      %4401 = vmatprep.subr.mxu0 0.0
      %4402 = vmatpush1.msra.mxu0 %v1317
      %4403 = vmatprep.subr.mxu0 0.0
      %4404 = vmatpush1.msra.mxu0 %v1318
      %4405 = vmatprep.subr.mxu0 0.0
      %4406 = vmatpush1.msra.mxu0 %v1319
      %4407 = vmatprep.subr.mxu0 0.0
      %4408 = vmatpush1.msra.mxu0 %v1320
      %4409 = vmatprep.subr.mxu0 0.0
      %4410 = vmatpush1.msra.mxu0 %v1321
      %4411 = vmatprep.subr.mxu0 0.0
      %4412 = vmatpush1.msra.mxu0 %v1322
      %4413 = vmatprep.subr.mxu0 0.0
      %4414 = vmatpush1.msra.mxu0 %v1323
      %4415 = vmatprep.subr.mxu0 0.0
      %4416 = vmatpush1.msra.mxu0 %v1324
      %4417 = vmatprep.subr.mxu0 0.0
      %4418 = vmatpush1.msra.mxu0 %v1325
      %4419 = vmatprep.subr.mxu0 0.0
      %4420 = vmatpush1.msra.mxu0 %v1326
      %4421 = vmatprep.subr.mxu0 0.0
      %4422 = vmatpush1.msra.mxu0 %v1327
      %4423 = vmatprep.subr.mxu0 0.0
      %4424 = vmatpush1.msra.mxu0 %v1328
      %4425 = vmatprep.subr.mxu0 0.0
      %4426 = vmatpush1.msra.mxu0 %v1329
      %4427 = vmatprep.subr.mxu0 0.0
      %4428 = vmatpush1.msra.mxu0 %v1330
      %4429 = vmatprep.mubr.f32.mxu0 %v228
      %4430 = vmatmul.mubr.f32.gmra.mrb[0].mxu0 %v227
      %v4431 = vpop.f32.mrb[0].mxu0
      %v4432 = vadd.f32 %v4357, %v4431
      %v4433 = vpop.f32.mrb[0].mxu0
      %4434 = vmatprep.mubr.f32.mxu0 %v344
      %4435 = vmatmul.mubr.f32.gmra.mrb[0].mxu0 %v343
      %v4436 = vpop.f32.mrb[0].mxu0
      %v4437 = vadd.f32 %v4362, %v4436
      %v4438 = vpop.f32.mrb[0].mxu0
      %4439 = vdwg.mxu0
      %4440 = vmatprep.subr.mxu0 0.0
      %4441 = vmatpush1.msra.mxu0 %v1331
      %4442 = vmatprep.subr.mxu0 0.0
      %4443 = vmatpush1.msra.mxu0 %v1332
      %4444 = vmatprep.subr.mxu0 0.0
      %4445 = vmatpush1.msra.mxu0 %v1333
      %4446 = vmatprep.subr.mxu0 0.0
      %4447 = vmatpush1.msra.mxu0 %v1334
      %4448 = vmatprep.subr.mxu0 0.0
      %4449 = vmatpush1.msra.mxu0 %v1335
      %4450 = vmatprep.subr.mxu0 0.0
      %4451 = vmatpush1.msra.mxu0 %v1336
      %4452 = vmatprep.subr.mxu0 0.0
      %4453 = vmatpush1.msra.mxu0 %v1337
      %4454 = vmatprep.subr.mxu0 0.0
      %4455 = vmatpush1.msra.mxu0 %v1338
      %4456 = vmatprep.subr.mxu0 0.0
      %4457 = vmatpush1.msra.mxu0 %v1339
      %4458 = vmatprep.subr.mxu0 0.0
      %4459 = vmatpush1.msra.mxu0 %v1340
      %4460 = vmatprep.subr.mxu0 0.0
      %4461 = vmatpush1.msra.mxu0 %v1341
      %4462 = vmatprep.subr.mxu0 0.0
      %4463 = vmatpush1.msra.mxu0 %v1342
      %4464 = vmatprep.subr.mxu0 0.0
      %4465 = vmatpush1.msra.mxu0 %v1343
      %4466 = vmatprep.subr.mxu0 0.0
      %4467 = vmatpush1.msra.mxu0 %v1344
      %4468 = vmatprep.subr.mxu0 0.0
      %4469 = vmatpush1.msra.mxu0 %v1345
      %4470 = vmatprep.subr.mxu0 0.0
      %4471 = vmatpush1.msra.mxu0 %v1346
      %4472 = vmatprep.subr.mxu0 0.0
      %4473 = vmatpush1.msra.mxu0 %v1347
      %4474 = vmatprep.subr.mxu0 0.0
      %4475 = vmatpush1.msra.mxu0 %v1348
      %4476 = vmatprep.subr.mxu0 0.0
      %4477 = vmatpush1.msra.mxu0 %v1349
      %4478 = vmatprep.subr.mxu0 0.0
      %4479 = vmatpush1.msra.mxu0 %v1350
      %4480 = vmatprep.subr.mxu0 0.0
      %4481 = vmatpush1.msra.mxu0 %v1351
      %4482 = vmatprep.subr.mxu0 0.0
      %4483 = vmatpush1.msra.mxu0 %v1352
      %4484 = vmatprep.subr.mxu0 0.0
      %4485 = vmatpush1.msra.mxu0 %v1353
      %4486 = vmatprep.subr.mxu0 0.0
      %4487 = vmatpush1.msra.mxu0 %v1354
      %4488 = vmatprep.subr.mxu0 0.0
      %4489 = vmatpush1.msra.mxu0 %v1355
      %4490 = vmatprep.subr.mxu0 0.0
      %4491 = vmatpush1.msra.mxu0 %v1356
      %4492 = vmatprep.subr.mxu0 0.0
      %4493 = vmatpush1.msra.mxu0 %v1357
      %4494 = vmatprep.subr.mxu0 0.0
      %4495 = vmatpush1.msra.mxu0 %v1358
      %4496 = vmatprep.subr.mxu0 0.0
      %4497 = vmatpush1.msra.mxu0 %v1359
      %4498 = vmatprep.subr.mxu0 0.0
      %4499 = vmatpush1.msra.mxu0 %v1360
      %4500 = vmatprep.subr.mxu0 0.0
      %4501 = vmatpush1.msra.mxu0 %v1361
      %4502 = vmatprep.subr.mxu0 0.0
      %4503 = vmatpush1.msra.mxu0 %v1362
      %4504 = vmatprep.mubr.f32.mxu0 %v230
      %4505 = vmatmul.mubr.f32.gmra.mrb[0].mxu0 %v229
      %v4506 = vpop.f32.mrb[0].mxu0
      %v4507 = vadd.f32 %v4432, %v4506
      %v4508 = vpop.f32.mrb[0].mxu0
      %4509 = vmatprep.mubr.f32.mxu0 %v346
      %4510 = vmatmul.mubr.f32.gmra.mrb[0].mxu0 %v345
      %v4511 = vpop.f32.mrb[0].mxu0
      %v4512 = vadd.f32 %v4437, %v4511
      %v4513 = vpop.f32.mrb[0].mxu0
      %4514 = vdwg.mxu0
      %4515 = vmatprep.subr.mxu0 0.0
      %4516 = vmatpush1.msra.mxu0 %v1363
      %4517 = vmatprep.subr.mxu0 0.0
      %4518 = vmatpush1.msra.mxu0 %v1364
      %4519 = vmatprep.subr.mxu0 0.0
      %4520 = vmatpush1.msra.mxu0 %v1365
      %4521 = vmatprep.subr.mxu0 0.0
      %4522 = vmatpush1.msra.mxu0 %v1366
      %4523 = vmatprep.subr.mxu0 0.0
      %4524 = vmatpush1.msra.mxu0 %v1367
      %4525 = vmatprep.subr.mxu0 0.0
      %4526 = vmatpush1.msra.mxu0 %v1368
      %4527 = vmatprep.subr.mxu0 0.0
      %4528 = vmatpush1.msra.mxu0 %v1369
      %4529 = vmatprep.subr.mxu0 0.0
      %4530 = vmatpush1.msra.mxu0 %v1370
      %4531 = vmatprep.subr.mxu0 0.0
      %4532 = vmatpush1.msra.mxu0 %v1371
      %4533 = vmatprep.subr.mxu0 0.0
      %4534 = vmatpush1.msra.mxu0 %v1372
      %4535 = vmatprep.subr.mxu0 0.0
      %4536 = vmatpush1.msra.mxu0 %v1373
      %4537 = vmatprep.subr.mxu0 0.0
      %4538 = vmatpush1.msra.mxu0 %v1374
      %4539 = vmatprep.subr.mxu0 0.0
      %4540 = vmatpush1.msra.mxu0 %v1375
      %4541 = vmatprep.subr.mxu0 0.0
      %4542 = vmatpush1.msra.mxu0 %v1376
      %4543 = vmatprep.subr.mxu0 0.0
      %4544 = vmatpush1.msra.mxu0 %v1377
      %4545 = vmatprep.subr.mxu0 0.0
      %4546 = vmatpush1.msra.mxu0 %v1378
      %4547 = vmatprep.subr.mxu0 0.0
      %4548 = vmatpush1.msra.mxu0 %v1379
      %4549 = vmatprep.subr.mxu0 0.0
      %4550 = vmatpush1.msra.mxu0 %v1380
      %4551 = vmatprep.subr.mxu0 0.0
      %4552 = vmatpush1.msra.mxu0 %v1381
      %4553 = vmatprep.subr.mxu0 0.0
      %4554 = vmatpush1.msra.mxu0 %v1382
      %4555 = vmatprep.subr.mxu0 0.0
      %4556 = vmatpush1.msra.mxu0 %v1383
      %4557 = vmatprep.subr.mxu0 0.0
      %4558 = vmatpush1.msra.mxu0 %v1384
      %4559 = vmatprep.subr.mxu0 0.0
      %4560 = vmatpush1.msra.mxu0 %v1385
      %4561 = vmatprep.subr.mxu0 0.0
      %4562 = vmatpush1.msra.mxu0 %v1386
      %4563 = vmatprep.subr.mxu0 0.0
      %4564 = vmatpush1.msra.mxu0 %v1387
      %4565 = vmatprep.subr.mxu0 0.0
      %4566 = vmatpush1.msra.mxu0 %v1388
      %4567 = vmatprep.subr.mxu0 0.0
      %4568 = vmatpush1.msra.mxu0 %v1389
      %4569 = vmatprep.subr.mxu0 0.0
      %4570 = vmatpush1.msra.mxu0 %v1390
      %4571 = vmatprep.subr.mxu0 0.0
      %4572 = vmatpush1.msra.mxu0 %v1391
      %4573 = vmatprep.subr.mxu0 0.0
      %4574 = vmatpush1.msra.mxu0 %v1392
      %4575 = vmatprep.subr.mxu0 0.0
      %4576 = vmatpush1.msra.mxu0 %v1393
      %4577 = vmatprep.subr.mxu0 0.0
      %4578 = vmatpush1.msra.mxu0 %v1394
      %4579 = vmatprep.mubr.f32.mxu0 %v232
      %4580 = vmatmul.mubr.f32.gmra.mrb[0].mxu0 %v231
      %v4581 = vpop.f32.mrb[0].mxu0
      %v4582 = vadd.f32 %v4507, %v4581
      %v4583 = vpop.f32.mrb[0].mxu0
      %4584 = vmatprep.mubr.f32.mxu0 %v348
      %4585 = vmatmul.mubr.f32.gmra.mrb[0].mxu0 %v347
      %v4586 = vpop.f32.mrb[0].mxu0
      %v4587 = vadd.f32 %v4512, %v4586
      %v4588 = vpop.f32.mrb[0].mxu0
      %4589 = vdwg.mxu0
      %4590 = vmatprep.subr.mxu0 0.0
      %4591 = vmatpush1.msra.mxu0 %v1395
      %4592 = vmatprep.subr.mxu0 0.0
      %4593 = vmatpush1.msra.mxu0 %v1396
      %4594 = vmatprep.subr.mxu0 0.0
      %4595 = vmatpush1.msra.mxu0 %v1397
      %4596 = vmatprep.subr.mxu0 0.0
      %4597 = vmatpush1.msra.mxu0 %v1398
      %4598 = vmatprep.subr.mxu0 0.0
      %4599 = vmatpush1.msra.mxu0 %v1399
      %4600 = vmatprep.subr.mxu0 0.0
      %4601 = vmatpush1.msra.mxu0 %v1400
      %4602 = vmatprep.subr.mxu0 0.0
      %4603 = vmatpush1.msra.mxu0 %v1401
      %4604 = vmatprep.subr.mxu0 0.0
      %4605 = vmatpush1.msra.mxu0 %v1402
      %4606 = vmatprep.subr.mxu0 0.0
      %4607 = vmatpush1.msra.mxu0 %v1403
      %4608 = vmatprep.subr.mxu0 0.0
      %4609 = vmatpush1.msra.mxu0 %v1404
      %4610 = vmatprep.subr.mxu0 0.0
      %4611 = vmatpush1.msra.mxu0 %v1405
      %4612 = vmatprep.subr.mxu0 0.0
      %4613 = vmatpush1.msra.mxu0 %v1406
      %4614 = vmatprep.subr.mxu0 0.0
      %4615 = vmatpush1.msra.mxu0 %v1407
      %4616 = vmatprep.subr.mxu0 0.0
      %4617 = vmatpush1.msra.mxu0 %v1408
      %4618 = vmatprep.subr.mxu0 0.0
      %4619 = vmatpush1.msra.mxu0 %v1409
      %4620 = vmatprep.subr.mxu0 0.0
      %4621 = vmatpush1.msra.mxu0 %v1410
      %4622 = vmatprep.subr.mxu0 0.0
      %4623 = vmatpush1.msra.mxu0 %v1411
      %4624 = vmatprep.subr.mxu0 0.0
      %4625 = vmatpush1.msra.mxu0 %v1412
      %4626 = vmatprep.subr.mxu0 0.0
      %4627 = vmatpush1.msra.mxu0 %v1413
      %4628 = vmatprep.subr.mxu0 0.0
      %4629 = vmatpush1.msra.mxu0 %v1414
      %4630 = vmatprep.subr.mxu0 0.0
      %4631 = vmatpush1.msra.mxu0 %v1415
      %4632 = vmatprep.subr.mxu0 0.0
      %4633 = vmatpush1.msra.mxu0 %v1416
      %4634 = vmatprep.subr.mxu0 0.0
      %4635 = vmatpush1.msra.mxu0 %v1417
      %4636 = vmatprep.subr.mxu0 0.0
      %4637 = vmatpush1.msra.mxu0 %v1418
      %4638 = vmatprep.subr.mxu0 0.0
      %4639 = vmatpush1.msra.mxu0 %v1419
      %4640 = vmatprep.subr.mxu0 0.0
      %4641 = vmatpush1.msra.mxu0 %v1420
      %4642 = vmatprep.subr.mxu0 0.0
      %4643 = vmatpush1.msra.mxu0 %v1421
      %4644 = vmatprep.subr.mxu0 0.0
      %4645 = vmatpush1.msra.mxu0 %v1422
      %4646 = vmatprep.subr.mxu0 0.0
      %4647 = vmatpush1.msra.mxu0 %v1423
      %4648 = vmatprep.subr.mxu0 0.0
      %4649 = vmatpush1.msra.mxu0 %v1424
      %4650 = vmatprep.subr.mxu0 0.0
      %4651 = vmatpush1.msra.mxu0 %v1425
      %4652 = vmatprep.subr.mxu0 0.0
      %4653 = vmatpush1.msra.mxu0 %v1426
      %4654 = vmatprep.mubr.f32.mxu0 %v234
      %4655 = vmatmul.mubr.f32.gmra.mrb[0].mxu0 %v233
      %v4656 = vpop.f32.mrb[0].mxu0
      %v4657 = vadd.f32 %v4582, %v4656
      %v4658 = vpop.f32.mrb[0].mxu0
      %4659 = vmatprep.mubr.f32.mxu0 %v350
      %4660 = vmatmul.mubr.f32.gmra.mrb[0].mxu0 %v349
      %v4661 = vpop.f32.mrb[0].mxu0
      %v4662 = vadd.f32 %v4587, %v4661
      %v4663 = vpop.f32.mrb[0].mxu0
      %4664 = vdwg.mxu0
      %4665 = vmatprep.subr.mxu0 0.0
      %4666 = vmatpush1.msra.mxu0 %v1427
      %4667 = vmatprep.subr.mxu0 0.0
      %4668 = vmatpush1.msra.mxu0 %v1428
      %4669 = vmatprep.subr.mxu0 0.0
      %4670 = vmatpush1.msra.mxu0 %v1429
      %4671 = vmatprep.subr.mxu0 0.0
      %4672 = vmatpush1.msra.mxu0 %v1430
      %4673 = vmatprep.subr.mxu0 0.0
      %4674 = vmatpush1.msra.mxu0 %v1431
      %4675 = vmatprep.subr.mxu0 0.0
      %4676 = vmatpush1.msra.mxu0 %v1432
      %4677 = vmatprep.subr.mxu0 0.0
      %4678 = vmatpush1.msra.mxu0 %v1433
      %4679 = vmatprep.subr.mxu0 0.0
      %4680 = vmatpush1.msra.mxu0 %v1434
      %4681 = vmatprep.subr.mxu0 0.0
      %4682 = vmatpush1.msra.mxu0 %v1435
      %4683 = vmatprep.subr.mxu0 0.0
      %4684 = vmatpush1.msra.mxu0 %v1436
      %4685 = vmatprep.subr.mxu0 0.0
      %4686 = vmatpush1.msra.mxu0 %v1437
      %4687 = vmatprep.subr.mxu0 0.0
      %4688 = vmatpush1.msra.mxu0 %v1438
      %4689 = vmatprep.subr.mxu0 0.0
      %4690 = vmatpush1.msra.mxu0 %v1439
      %4691 = vmatprep.subr.mxu0 0.0
      %4692 = vmatpush1.msra.mxu0 %v1440
      %4693 = vmatprep.subr.mxu0 0.0
      %4694 = vmatpush1.msra.mxu0 %v1441
      %4695 = vmatprep.subr.mxu0 0.0
      %4696 = vmatpush1.msra.mxu0 %v1442
      %4697 = vmatprep.subr.mxu0 0.0
      %4698 = vmatpush1.msra.mxu0 %v1443
      %4699 = vmatprep.subr.mxu0 0.0
      %4700 = vmatpush1.msra.mxu0 %v1444
      %4701 = vmatprep.subr.mxu0 0.0
      %4702 = vmatpush1.msra.mxu0 %v1445
      %4703 = vmatprep.subr.mxu0 0.0
      %4704 = vmatpush1.msra.mxu0 %v1446
      %4705 = vmatprep.subr.mxu0 0.0
      %4706 = vmatpush1.msra.mxu0 %v1447
      %4707 = vmatprep.subr.mxu0 0.0
      %4708 = vmatpush1.msra.mxu0 %v1448
      %4709 = vmatprep.subr.mxu0 0.0
      %4710 = vmatpush1.msra.mxu0 %v1449
      %4711 = vmatprep.subr.mxu0 0.0
      %4712 = vmatpush1.msra.mxu0 %v1450
      %4713 = vmatprep.subr.mxu0 0.0
      %4714 = vmatpush1.msra.mxu0 %v1451
      %4715 = vmatprep.subr.mxu0 0.0
      %4716 = vmatpush1.msra.mxu0 %v1452
      %4717 = vmatprep.subr.mxu0 0.0
      %4718 = vmatpush1.msra.mxu0 %v1453
      %4719 = vmatprep.subr.mxu0 0.0
      %4720 = vmatpush1.msra.mxu0 %v1454
      %4721 = vmatprep.subr.mxu0 0.0
      %4722 = vmatpush1.msra.mxu0 %v1455
      %4723 = vmatprep.subr.mxu0 0.0
      %4724 = vmatpush1.msra.mxu0 %v1456
      %4725 = vmatprep.subr.mxu0 0.0
      %4726 = vmatpush1.msra.mxu0 %v1457
      %4727 = vmatprep.subr.mxu0 0.0
      %4728 = vmatpush1.msra.mxu0 %v1458
      %4729 = vmatprep.mubr.f32.mxu0 %v236
      %4730 = vmatmul.mubr.f32.gmra.mrb[0].mxu0 %v235
      %v4731 = vpop.f32.mrb[0].mxu0
      %v4732 = vadd.f32 %v4657, %v4731
      %v4733 = vpop.f32.mrb[0].mxu0
      %4734 = vmatprep.mubr.f32.mxu0 %v352
      %4735 = vmatmul.mubr.f32.gmra.mrb[0].mxu0 %v351
      %v4736 = vpop.f32.mrb[0].mxu0
      %v4737 = vadd.f32 %v4662, %v4736
      %v4738 = vpop.f32.mrb[0].mxu0
      %4739 = vdwg.mxu0
      %4740 = vmatprep.subr.mxu0 0.0
      %4741 = vmatpush1.msra.mxu0 %v1459
      %4742 = vmatprep.subr.mxu0 0.0
      %4743 = vmatpush1.msra.mxu0 %v1460
      %4744 = vmatprep.subr.mxu0 0.0
      %4745 = vmatpush1.msra.mxu0 %v1461
      %4746 = vmatprep.subr.mxu0 0.0
      %4747 = vmatpush1.msra.mxu0 %v1462
      %4748 = vmatprep.subr.mxu0 0.0
      %4749 = vmatpush1.msra.mxu0 %v1463
      %4750 = vmatprep.subr.mxu0 0.0
      %4751 = vmatpush1.msra.mxu0 %v1464
      %4752 = vmatprep.subr.mxu0 0.0
      %4753 = vmatpush1.msra.mxu0 %v1465
      %4754 = vmatprep.subr.mxu0 0.0
      %4755 = vmatpush1.msra.mxu0 %v1466
      %4756 = vmatprep.subr.mxu0 0.0
      %4757 = vmatpush1.msra.mxu0 %v1467
      %4758 = vmatprep.subr.mxu0 0.0
      %4759 = vmatpush1.msra.mxu0 %v1468
      %4760 = vmatprep.subr.mxu0 0.0
      %4761 = vmatpush1.msra.mxu0 %v1469
      %4762 = vmatprep.subr.mxu0 0.0
      %4763 = vmatpush1.msra.mxu0 %v1470
      %4764 = vmatprep.subr.mxu0 0.0
      %4765 = vmatpush1.msra.mxu0 %v1471
      %4766 = vmatprep.subr.mxu0 0.0
      %4767 = vmatpush1.msra.mxu0 %v1472
      %4768 = vmatprep.subr.mxu0 0.0
      %4769 = vmatpush1.msra.mxu0 %v1473
      %4770 = vmatprep.subr.mxu0 0.0
      %4771 = vmatpush1.msra.mxu0 %v1474
      %4772 = vmatprep.subr.mxu0 0.0
      %4773 = vmatpush1.msra.mxu0 %v1475
      %4774 = vmatprep.subr.mxu0 0.0
      %4775 = vmatpush1.msra.mxu0 %v1476
      %4776 = vmatprep.subr.mxu0 0.0
      %4777 = vmatpush1.msra.mxu0 %v1477
      %4778 = vmatprep.subr.mxu0 0.0
      %4779 = vmatpush1.msra.mxu0 %v1478
      %4780 = vmatprep.subr.mxu0 0.0
      %4781 = vmatpush1.msra.mxu0 %v1479
      %4782 = vmatprep.subr.mxu0 0.0
      %4783 = vmatpush1.msra.mxu0 %v1480
      %4784 = vmatprep.subr.mxu0 0.0
      %4785 = vmatpush1.msra.mxu0 %v1481
      %4786 = vmatprep.subr.mxu0 0.0
      %4787 = vmatpush1.msra.mxu0 %v1482
      %4788 = vmatprep.subr.mxu0 0.0
      %4789 = vmatpush1.msra.mxu0 %v1483
      %4790 = vmatprep.subr.mxu0 0.0
      %4791 = vmatpush1.msra.mxu0 %v1484
      %4792 = vmatprep.subr.mxu0 0.0
      %4793 = vmatpush1.msra.mxu0 %v1485
      %4794 = vmatprep.subr.mxu0 0.0
      %4795 = vmatpush1.msra.mxu0 %v1486
      %4796 = vmatprep.subr.mxu0 0.0
      %4797 = vmatpush1.msra.mxu0 %v1487
      %4798 = vmatprep.subr.mxu0 0.0
      %4799 = vmatpush1.msra.mxu0 %v1488
      %4800 = vmatprep.subr.mxu0 0.0
      %4801 = vmatpush1.msra.mxu0 %v1489
      %4802 = vmatprep.subr.mxu0 0.0
      %4803 = vmatpush1.msra.mxu0 %v1490
      %4804 = vmatprep.mubr.f32.mxu0 %v238
      %4805 = vmatmul.mubr.f32.gmra.mrb[0].mxu0 %v237
      %v4806 = vpop.f32.mrb[0].mxu0
      %v4807 = vadd.f32 %v4732, %v4806
      %v4808 = vpop.f32.mrb[0].mxu0
      %4809 = vmatprep.mubr.f32.mxu0 %v354
      %4810 = vmatmul.mubr.f32.gmra.mrb[0].mxu0 %v353
      %v4811 = vpop.f32.mrb[0].mxu0
      %v4812 = vadd.f32 %v4737, %v4811
      %v4813 = vpop.f32.mrb[0].mxu0
      %4814 = vdwg.mxu0
      %4815 = vmatprep.subr.mxu0 0.0
      %4816 = vmatpush1.msra.mxu0 %v1491
      %4817 = vmatprep.subr.mxu0 0.0
      %4818 = vmatpush1.msra.mxu0 %v1492
      %4819 = vmatprep.subr.mxu0 0.0
      %4820 = vmatpush1.msra.mxu0 %v1493
      %4821 = vmatprep.subr.mxu0 0.0
      %4822 = vmatpush1.msra.mxu0 %v1494
      %4823 = vmatprep.subr.mxu0 0.0
      %4824 = vmatpush1.msra.mxu0 %v1495
      %4825 = vmatprep.subr.mxu0 0.0
      %4826 = vmatpush1.msra.mxu0 %v1496
      %4827 = vmatprep.subr.mxu0 0.0
      %4828 = vmatpush1.msra.mxu0 %v1497
      %4829 = vmatprep.subr.mxu0 0.0
      %4830 = vmatpush1.msra.mxu0 %v1498
      %4831 = vmatprep.subr.mxu0 0.0
      %4832 = vmatpush1.msra.mxu0 %v1499
      %4833 = vmatprep.subr.mxu0 0.0
      %4834 = vmatpush1.msra.mxu0 %v1500
      %4835 = vmatprep.subr.mxu0 0.0
      %4836 = vmatpush1.msra.mxu0 %v1501
      %4837 = vmatprep.subr.mxu0 0.0
      %4838 = vmatpush1.msra.mxu0 %v1502
      %4839 = vmatprep.subr.mxu0 0.0
      %4840 = vmatpush1.msra.mxu0 %v1503
      %4841 = vmatprep.subr.mxu0 0.0
      %4842 = vmatpush1.msra.mxu0 %v1504
      %4843 = vmatprep.subr.mxu0 0.0
      %4844 = vmatpush1.msra.mxu0 %v1505
      %4845 = vmatprep.subr.mxu0 0.0
      %4846 = vmatpush1.msra.mxu0 %v1506
      %4847 = vmatprep.subr.mxu0 0.0
      %4848 = vmatpush1.msra.mxu0 %v1507
      %4849 = vmatprep.subr.mxu0 0.0
      %4850 = vmatpush1.msra.mxu0 %v1508
      %4851 = vmatprep.subr.mxu0 0.0
      %4852 = vmatpush1.msra.mxu0 %v1509
      %4853 = vmatprep.subr.mxu0 0.0
      %4854 = vmatpush1.msra.mxu0 %v1510
      %4855 = vmatprep.subr.mxu0 0.0
      %4856 = vmatpush1.msra.mxu0 %v1511
      %4857 = vmatprep.subr.mxu0 0.0
      %4858 = vmatpush1.msra.mxu0 %v1512
      %4859 = vmatprep.subr.mxu0 0.0
      %4860 = vmatpush1.msra.mxu0 %v1513
      %4861 = vmatprep.subr.mxu0 0.0
      %4862 = vmatpush1.msra.mxu0 %v1514
      %4863 = vmatprep.subr.mxu0 0.0
      %4864 = vmatpush1.msra.mxu0 %v1515
      %4865 = vmatprep.subr.mxu0 0.0
      %4866 = vmatpush1.msra.mxu0 %v1516
      %4867 = vmatprep.subr.mxu0 0.0
      %4868 = vmatpush1.msra.mxu0 %v1517
      %4869 = vmatprep.subr.mxu0 0.0
      %4870 = vmatpush1.msra.mxu0 %v1518
      %4871 = vmatprep.subr.mxu0 0.0
      %4872 = vmatpush1.msra.mxu0 %v1519
      %4873 = vmatprep.subr.mxu0 0.0
      %4874 = vmatpush1.msra.mxu0 %v1520
      %4875 = vmatprep.subr.mxu0 0.0
      %4876 = vmatpush1.msra.mxu0 %v1521
      %4877 = vmatprep.subr.mxu0 0.0
      %4878 = vmatpush1.msra.mxu0 %v1522
      %4879 = vmatprep.mubr.f32.mxu0 %v240
      %4880 = vmatmul.mubr.f32.gmra.mrb[0].mxu0 %v239
      %v4881 = vpop.f32.mrb[0].mxu0
      %v4882 = vadd.f32 %v4807, %v4881
      %v4883 = vpop.f32.mrb[0].mxu0
      %4884 = vmatprep.mubr.f32.mxu0 %v356
      %4885 = vmatmul.mubr.f32.gmra.mrb[0].mxu0 %v355
      %v4886 = vpop.f32.mrb[0].mxu0
      %v4887 = vadd.f32 %v4812, %v4886
      %v4888 = vpop.f32.mrb[0].mxu0
      %4889 = vdwg.mxu0
      %4890 = vmatprep.subr.mxu0 0.0
      %4891 = vmatpush1.msra.mxu0 %v1523
      %4892 = vmatprep.subr.mxu0 0.0
      %4893 = vmatpush1.msra.mxu0 %v1524
      %4894 = vmatprep.subr.mxu0 0.0
      %4895 = vmatpush1.msra.mxu0 %v1525
      %4896 = vmatprep.subr.mxu0 0.0
      %4897 = vmatpush1.msra.mxu0 %v1526
      %4898 = vmatprep.subr.mxu0 0.0
      %4899 = vmatpush1.msra.mxu0 %v1527
      %4900 = vmatprep.subr.mxu0 0.0
      %4901 = vmatpush1.msra.mxu0 %v1528
      %4902 = vmatprep.subr.mxu0 0.0
      %4903 = vmatpush1.msra.mxu0 %v1529
      %4904 = vmatprep.subr.mxu0 0.0
      %4905 = vmatpush1.msra.mxu0 %v1530
      %4906 = vmatprep.subr.mxu0 0.0
      %4907 = vmatpush1.msra.mxu0 %v1531
      %4908 = vmatprep.subr.mxu0 0.0
      %4909 = vmatpush1.msra.mxu0 %v1532
      %4910 = vmatprep.subr.mxu0 0.0
      %4911 = vmatpush1.msra.mxu0 %v1533
      %4912 = vmatprep.subr.mxu0 0.0
      %4913 = vmatpush1.msra.mxu0 %v1534
      %4914 = vmatprep.subr.mxu0 0.0
      %4915 = vmatpush1.msra.mxu0 %v1535
      %4916 = vmatprep.subr.mxu0 0.0
      %4917 = vmatpush1.msra.mxu0 %v1536
      %4918 = vmatprep.subr.mxu0 0.0
      %4919 = vmatpush1.msra.mxu0 %v1537
      %4920 = vmatprep.subr.mxu0 0.0
      %4921 = vmatpush1.msra.mxu0 %v1538
      %4922 = vmatprep.subr.mxu0 0.0
      %4923 = vmatpush1.msra.mxu0 %v1539
      %4924 = vmatprep.subr.mxu0 0.0
      %4925 = vmatpush1.msra.mxu0 %v1540
      %4926 = vmatprep.subr.mxu0 0.0
      %4927 = vmatpush1.msra.mxu0 %v1541
      %4928 = vmatprep.subr.mxu0 0.0
      %4929 = vmatpush1.msra.mxu0 %v1542
      %4930 = vmatprep.subr.mxu0 0.0
      %4931 = vmatpush1.msra.mxu0 %v1543
      %4932 = vmatprep.subr.mxu0 0.0
      %4933 = vmatpush1.msra.mxu0 %v1544
      %4934 = vmatprep.subr.mxu0 0.0
      %4935 = vmatpush1.msra.mxu0 %v1545
      %4936 = vmatprep.subr.mxu0 0.0
      %4937 = vmatpush1.msra.mxu0 %v1546
      %4938 = vmatprep.subr.mxu0 0.0
      %4939 = vmatpush1.msra.mxu0 %v1547
      %4940 = vmatprep.subr.mxu0 0.0
      %4941 = vmatpush1.msra.mxu0 %v1548
      %4942 = vmatprep.subr.mxu0 0.0
      %4943 = vmatpush1.msra.mxu0 %v1549
      %4944 = vmatprep.subr.mxu0 0.0
      %4945 = vmatpush1.msra.mxu0 %v1550
      %4946 = vmatprep.subr.mxu0 0.0
      %4947 = vmatpush1.msra.mxu0 %v1551
      %4948 = vmatprep.subr.mxu0 0.0
      %4949 = vmatpush1.msra.mxu0 %v1552
      %4950 = vmatprep.subr.mxu0 0.0
      %4951 = vmatpush1.msra.mxu0 %v1553
      %4952 = vmatprep.subr.mxu0 0.0
      %4953 = vmatpush1.msra.mxu0 %v1554
      %4954 = vmatprep.mubr.f32.mxu0 %v242
      %4955 = vmatmul.mubr.f32.gmra.mrb[0].mxu0 %v241
      %v4956 = vpop.f32.mrb[0].mxu0
      %v4957 = vadd.f32 %v4882, %v4956
      %v4958 = vpop.f32.mrb[0].mxu0
      %4959 = vmatprep.mubr.f32.mxu0 %v358
      %4960 = vmatmul.mubr.f32.gmra.mrb[0].mxu0 %v357
      %v4961 = vpop.f32.mrb[0].mxu0
      %v4962 = vadd.f32 %v4887, %v4961
      %v4963 = vpop.f32.mrb[0].mxu0
      %4964 = vdwg.mxu0
      %4965 = vmatprep.subr.mxu0 0.0
      %4966 = vmatpush1.msra.mxu0 %v1555
      %4967 = vmatprep.subr.mxu0 0.0
      %4968 = vmatpush1.msra.mxu0 %v1556
      %4969 = vmatprep.subr.mxu0 0.0
      %4970 = vmatpush1.msra.mxu0 %v1557
      %4971 = vmatprep.subr.mxu0 0.0
      %4972 = vmatpush1.msra.mxu0 %v1558
      %4973 = vmatprep.subr.mxu0 0.0
      %4974 = vmatpush1.msra.mxu0 %v1559
      %4975 = vmatprep.subr.mxu0 0.0
      %4976 = vmatpush1.msra.mxu0 %v1560
      %4977 = vmatprep.subr.mxu0 0.0
      %4978 = vmatpush1.msra.mxu0 %v1561
      %4979 = vmatprep.subr.mxu0 0.0
      %4980 = vmatpush1.msra.mxu0 %v1562
      %4981 = vmatprep.subr.mxu0 0.0
      %4982 = vmatpush1.msra.mxu0 %v1563
      %4983 = vmatprep.subr.mxu0 0.0
      %4984 = vmatpush1.msra.mxu0 %v1564
      %4985 = vmatprep.subr.mxu0 0.0
      %4986 = vmatpush1.msra.mxu0 %v1565
      %4987 = vmatprep.subr.mxu0 0.0
      %4988 = vmatpush1.msra.mxu0 %v1566
      %4989 = vmatprep.subr.mxu0 0.0
      %4990 = vmatpush1.msra.mxu0 %v1567
      %4991 = vmatprep.subr.mxu0 0.0
      %4992 = vmatpush1.msra.mxu0 %v1568
      %4993 = vmatprep.subr.mxu0 0.0
      %4994 = vmatpush1.msra.mxu0 %v1569
      %4995 = vmatprep.subr.mxu0 0.0
      %4996 = vmatpush1.msra.mxu0 %v1570
      %4997 = vmatprep.subr.mxu0 0.0
      %4998 = vmatpush1.msra.mxu0 %v1571
      %4999 = vmatprep.subr.mxu0 0.0
      %5000 = vmatpush1.msra.mxu0 %v1572
      %5001 = vmatprep.subr.mxu0 0.0
      %5002 = vmatpush1.msra.mxu0 %v1573
      %5003 = vmatprep.subr.mxu0 0.0
      %5004 = vmatpush1.msra.mxu0 %v1574
      %5005 = vmatprep.subr.mxu0 0.0
      %5006 = vmatpush1.msra.mxu0 %v1575
      %5007 = vmatprep.subr.mxu0 0.0
      %5008 = vmatpush1.msra.mxu0 %v1576
      %5009 = vmatprep.subr.mxu0 0.0
      %5010 = vmatpush1.msra.mxu0 %v1577
      %5011 = vmatprep.subr.mxu0 0.0
      %5012 = vmatpush1.msra.mxu0 %v1578
      %5013 = vmatprep.subr.mxu0 0.0
      %5014 = vmatpush1.msra.mxu0 %v1579
      %5015 = vmatprep.subr.mxu0 0.0
      %5016 = vmatpush1.msra.mxu0 %v1580
      %5017 = vmatprep.subr.mxu0 0.0
      %5018 = vmatpush1.msra.mxu0 %v1581
      %5019 = vmatprep.subr.mxu0 0.0
      %5020 = vmatpush1.msra.mxu0 %v1582
      %5021 = vmatprep.subr.mxu0 0.0
      %5022 = vmatpush1.msra.mxu0 %v1583
      %5023 = vmatprep.subr.mxu0 0.0
      %5024 = vmatpush1.msra.mxu0 %v1584
      %5025 = vmatprep.subr.mxu0 0.0
      %5026 = vmatpush1.msra.mxu0 %v1585
      %5027 = vmatprep.subr.mxu0 0.0
      %5028 = vmatpush1.msra.mxu0 %v1586
      %5029 = vmatprep.mubr.f32.mxu0 %v244
      %5030 = vmatmul.mubr.f32.gmra.mrb[0].mxu0 %v243
      %v5031 = vpop.f32.mrb[0].mxu0
      %v5032 = vadd.f32 %v4957, %v5031
      %v5033 = vpop.f32.mrb[0].mxu0
      %5034 = vmatprep.mubr.f32.mxu0 %v360
      %5035 = vmatmul.mubr.f32.gmra.mrb[0].mxu0 %v359
      %v5036 = vpop.f32.mrb[0].mxu0
      %v5037 = vadd.f32 %v4962, %v5036
      %v5038 = vpop.f32.mrb[0].mxu0
      %5039 = vdwg.mxu0
      %5040 = vmatprep.subr.mxu0 0.0
      %5041 = vmatpush1.msra.mxu0 %v1587
      %5042 = vmatprep.subr.mxu0 0.0
      %5043 = vmatpush1.msra.mxu0 %v1588
      %5044 = vmatprep.subr.mxu0 0.0
      %5045 = vmatpush1.msra.mxu0 %v1589
      %5046 = vmatprep.subr.mxu0 0.0
      %5047 = vmatpush1.msra.mxu0 %v1590
      %5048 = vmatprep.subr.mxu0 0.0
      %5049 = vmatpush1.msra.mxu0 %v1591
      %5050 = vmatprep.subr.mxu0 0.0
      %5051 = vmatpush1.msra.mxu0 %v1592
      %5052 = vmatprep.subr.mxu0 0.0
      %5053 = vmatpush1.msra.mxu0 %v1593
      %5054 = vmatprep.subr.mxu0 0.0
      %5055 = vmatpush1.msra.mxu0 %v1594
      %5056 = vmatprep.subr.mxu0 0.0
      %5057 = vmatpush1.msra.mxu0 %v1595
      %5058 = vmatprep.subr.mxu0 0.0
      %5059 = vmatpush1.msra.mxu0 %v1596
      %5060 = vmatprep.subr.mxu0 0.0
      %5061 = vmatpush1.msra.mxu0 %v1597
      %5062 = vmatprep.subr.mxu0 0.0
      %5063 = vmatpush1.msra.mxu0 %v1598
      %5064 = vmatprep.subr.mxu0 0.0
      %5065 = vmatpush1.msra.mxu0 %v1599
      %5066 = vmatprep.subr.mxu0 0.0
      %5067 = vmatpush1.msra.mxu0 %v1600
      %5068 = vmatprep.subr.mxu0 0.0
      %5069 = vmatpush1.msra.mxu0 %v1601
      %5070 = vmatprep.subr.mxu0 0.0
      %5071 = vmatpush1.msra.mxu0 %v1602
      %5072 = vmatprep.subr.mxu0 0.0
      %5073 = vmatpush1.msra.mxu0 %v1603
      %5074 = vmatprep.subr.mxu0 0.0
      %5075 = vmatpush1.msra.mxu0 %v1604
      %5076 = vmatprep.subr.mxu0 0.0
      %5077 = vmatpush1.msra.mxu0 %v1605
      %5078 = vmatprep.subr.mxu0 0.0
      %5079 = vmatpush1.msra.mxu0 %v1606
      %5080 = vmatprep.subr.mxu0 0.0
      %5081 = vmatpush1.msra.mxu0 %v1607
      %5082 = vmatprep.subr.mxu0 0.0
      %5083 = vmatpush1.msra.mxu0 %v1608
      %5084 = vmatprep.subr.mxu0 0.0
      %5085 = vmatpush1.msra.mxu0 %v1609
      %5086 = vmatprep.subr.mxu0 0.0
      %5087 = vmatpush1.msra.mxu0 %v1610
      %5088 = vmatprep.subr.mxu0 0.0
      %5089 = vmatpush1.msra.mxu0 %v1611
      %5090 = vmatprep.subr.mxu0 0.0
      %5091 = vmatpush1.msra.mxu0 %v1612
      %5092 = vmatprep.subr.mxu0 0.0
      %5093 = vmatpush1.msra.mxu0 %v1613
      %5094 = vmatprep.subr.mxu0 0.0
      %5095 = vmatpush1.msra.mxu0 %v1614
      %5096 = vmatprep.subr.mxu0 0.0
      %5097 = vmatpush1.msra.mxu0 %v1615
      %5098 = vmatprep.subr.mxu0 0.0
      %5099 = vmatpush1.msra.mxu0 %v1616
      %5100 = vmatprep.subr.mxu0 0.0
      %5101 = vmatpush1.msra.mxu0 %v1617
      %5102 = vmatprep.subr.mxu0 0.0
      %5103 = vmatpush1.msra.mxu0 %v1618
      %5104 = vmatprep.mubr.f32.mxu0 %v246
      %5105 = vmatmul.mubr.f32.gmra.mrb[0].mxu0 %v245
      %v5106 = vpop.f32.mrb[0].mxu0
      %v5107 = vadd.f32 %v5032, %v5106
      %v5108 = vpop.f32.mrb[0].mxu0
      %5109 = vmatprep.mubr.f32.mxu0 %v362
      %5110 = vmatmul.mubr.f32.gmra.mrb[0].mxu0 %v361
      %v5111 = vpop.f32.mrb[0].mxu0
      %v5112 = vadd.f32 %v5037, %v5111
      %v5113 = vpop.f32.mrb[0].mxu0
      %5114 = vdwg.mxu0
      %5115 = vmatprep.subr.mxu0 0.0
      %5116 = vmatpush1.msra.mxu0 %v1619
      %5117 = vmatprep.subr.mxu0 0.0
      %5118 = vmatpush1.msra.mxu0 %v1620
      %5119 = vmatprep.subr.mxu0 0.0
      %5120 = vmatpush1.msra.mxu0 %v1621
      %5121 = vmatprep.subr.mxu0 0.0
      %5122 = vmatpush1.msra.mxu0 %v1622
      %5123 = vmatprep.subr.mxu0 0.0
      %5124 = vmatpush1.msra.mxu0 %v1623
      %5125 = vmatprep.subr.mxu0 0.0
      %5126 = vmatpush1.msra.mxu0 %v1624
      %5127 = vmatprep.subr.mxu0 0.0
      %5128 = vmatpush1.msra.mxu0 %v1625
      %5129 = vmatprep.subr.mxu0 0.0
      %5130 = vmatpush1.msra.mxu0 %v1626
      %5131 = vmatprep.subr.mxu0 0.0
      %5132 = vmatpush1.msra.mxu0 %v1627
      %5133 = vmatprep.subr.mxu0 0.0
      %5134 = vmatpush1.msra.mxu0 %v1628
      %5135 = vmatprep.subr.mxu0 0.0
      %5136 = vmatpush1.msra.mxu0 %v1629
      %5137 = vmatprep.subr.mxu0 0.0
      %5138 = vmatpush1.msra.mxu0 %v1630
      %5139 = vmatprep.subr.mxu0 0.0
      %5140 = vmatpush1.msra.mxu0 %v1631
      %5141 = vmatprep.subr.mxu0 0.0
      %5142 = vmatpush1.msra.mxu0 %v1632
      %5143 = vmatprep.subr.mxu0 0.0
      %5144 = vmatpush1.msra.mxu0 %v1633
      %5145 = vmatprep.subr.mxu0 0.0
      %5146 = vmatpush1.msra.mxu0 %v1634
      %5147 = vmatprep.subr.mxu0 0.0
      %5148 = vmatpush1.msra.mxu0 %v1635
      %5149 = vmatprep.subr.mxu0 0.0
      %5150 = vmatpush1.msra.mxu0 %v1636
      %5151 = vmatprep.subr.mxu0 0.0
      %5152 = vmatpush1.msra.mxu0 %v1637
      %5153 = vmatprep.subr.mxu0 0.0
      %5154 = vmatpush1.msra.mxu0 %v1638
      %5155 = vmatprep.subr.mxu0 0.0
      %5156 = vmatpush1.msra.mxu0 %v1639
      %5157 = vmatprep.subr.mxu0 0.0
      %5158 = vmatpush1.msra.mxu0 %v1640
      %5159 = vmatprep.subr.mxu0 0.0
      %5160 = vmatpush1.msra.mxu0 %v1641
      %5161 = vmatprep.subr.mxu0 0.0
      %5162 = vmatpush1.msra.mxu0 %v1642
      %5163 = vmatprep.subr.mxu0 0.0
      %5164 = vmatpush1.msra.mxu0 %v1643
      %5165 = vmatprep.subr.mxu0 0.0
      %5166 = vmatpush1.msra.mxu0 %v1644
      %5167 = vmatprep.subr.mxu0 0.0
      %5168 = vmatpush1.msra.mxu0 %v1645
      %5169 = vmatprep.subr.mxu0 0.0
      %5170 = vmatpush1.msra.mxu0 %v1646
      %5171 = vmatprep.subr.mxu0 0.0
      %5172 = vmatpush1.msra.mxu0 %v1647
      %5173 = vmatprep.subr.mxu0 0.0
      %5174 = vmatpush1.msra.mxu0 %v1648
      %5175 = vmatprep.subr.mxu0 0.0
      %5176 = vmatpush1.msra.mxu0 %v1649
      %5177 = vmatprep.subr.mxu0 0.0
      %5178 = vmatpush1.msra.mxu0 %v1650
      %5179 = vmatprep.mubr.f32.mxu0 %v248
      %5180 = vmatmul.mubr.f32.gmra.mrb[0].mxu0 %v247
      %v5181 = vpop.f32.mrb[0].mxu0
      %v5182 = vadd.f32 %v5107, %v5181
      %v5183 = vpop.f32.mrb[0].mxu0
      %5184 = vmatprep.mubr.f32.mxu0 %v364
      %5185 = vmatmul.mubr.f32.gmra.mrb[0].mxu0 %v363
      %v5186 = vpop.f32.mrb[0].mxu0
      %v5187 = vadd.f32 %v5112, %v5186
      %v5188 = vpop.f32.mrb[0].mxu0
      %5189 = vdwg.mxu0
      %5190 = vmatprep.subr.mxu0 0.0
      %5191 = vmatpush1.msra.mxu0 %v1651
      %5192 = vmatprep.subr.mxu0 0.0
      %5193 = vmatpush1.msra.mxu0 %v1652
      %5194 = vmatprep.subr.mxu0 0.0
      %5195 = vmatpush1.msra.mxu0 %v1653
      %5196 = vmatprep.subr.mxu0 0.0
      %5197 = vmatpush1.msra.mxu0 %v1654
      %5198 = vmatprep.subr.mxu0 0.0
      %5199 = vmatpush1.msra.mxu0 %v1655
      %5200 = vmatprep.subr.mxu0 0.0
      %5201 = vmatpush1.msra.mxu0 %v1656
      %5202 = vmatprep.subr.mxu0 0.0
      %5203 = vmatpush1.msra.mxu0 %v1657
      %5204 = vmatprep.subr.mxu0 0.0
      %5205 = vmatpush1.msra.mxu0 %v1658
      %5206 = vmatprep.subr.mxu0 0.0
      %5207 = vmatpush1.msra.mxu0 %v1659
      %5208 = vmatprep.subr.mxu0 0.0
      %5209 = vmatpush1.msra.mxu0 %v1660
      %5210 = vmatprep.subr.mxu0 0.0
      %5211 = vmatpush1.msra.mxu0 %v1661
      %5212 = vmatprep.subr.mxu0 0.0
      %5213 = vmatpush1.msra.mxu0 %v1662
      %5214 = vmatprep.subr.mxu0 0.0
      %5215 = vmatpush1.msra.mxu0 %v1663
      %5216 = vmatprep.subr.mxu0 0.0
      %5217 = vmatpush1.msra.mxu0 %v1664
      %5218 = vmatprep.subr.mxu0 0.0
      %5219 = vmatpush1.msra.mxu0 %v1665
      %5220 = vmatprep.subr.mxu0 0.0
      %5221 = vmatpush1.msra.mxu0 %v1666
      %5222 = vmatprep.subr.mxu0 0.0
      %5223 = vmatpush1.msra.mxu0 %v1667
      %5224 = vmatprep.subr.mxu0 0.0
      %5225 = vmatpush1.msra.mxu0 %v1668
      %5226 = vmatprep.subr.mxu0 0.0
      %5227 = vmatpush1.msra.mxu0 %v1669
      %5228 = vmatprep.subr.mxu0 0.0
      %5229 = vmatpush1.msra.mxu0 %v1670
      %5230 = vmatprep.subr.mxu0 0.0
      %5231 = vmatpush1.msra.mxu0 %v1671
      %5232 = vmatprep.subr.mxu0 0.0
      %5233 = vmatpush1.msra.mxu0 %v1672
      %5234 = vmatprep.subr.mxu0 0.0
      %5235 = vmatpush1.msra.mxu0 %v1673
      %5236 = vmatprep.subr.mxu0 0.0
      %5237 = vmatpush1.msra.mxu0 %v1674
      %5238 = vmatprep.subr.mxu0 0.0
      %5239 = vmatpush1.msra.mxu0 %v1675
      %5240 = vmatprep.subr.mxu0 0.0
      %5241 = vmatpush1.msra.mxu0 %v1676
      %5242 = vmatprep.subr.mxu0 0.0
      %5243 = vmatpush1.msra.mxu0 %v1677
      %5244 = vmatprep.subr.mxu0 0.0
      %5245 = vmatpush1.msra.mxu0 %v1678
      %5246 = vmatprep.subr.mxu0 0.0
      %5247 = vmatpush1.msra.mxu0 %v1679
      %5248 = vmatprep.subr.mxu0 0.0
      %5249 = vmatpush1.msra.mxu0 %v1680
      %5250 = vmatprep.subr.mxu0 0.0
      %5251 = vmatpush1.msra.mxu0 %v1681
      %5252 = vmatprep.subr.mxu0 0.0
      %5253 = vmatpush1.msra.mxu0 %v1682
      %5254 = vmatprep.mubr.f32.mxu0 %v250
      %5255 = vmatmul.mubr.f32.gmra.mrb[0].mxu0 %v249
      %v5256 = vpop.f32.mrb[0].mxu0
      %v5257 = vadd.f32 %v5182, %v5256
      %v5258 = vpop.f32.mrb[0].mxu0
      %5259 = vmatprep.mubr.f32.mxu0 %v366
      %5260 = vmatmul.mubr.f32.gmra.mrb[0].mxu0 %v365
      %v5261 = vpop.f32.mrb[0].mxu0
      %v5262 = vadd.f32 %v5187, %v5261
      %v5263 = vpop.f32.mrb[0].mxu0
      %5264 = vdwg.mxu0
      %5265 = vmatprep.subr.mxu0 0.0
      %5266 = vmatpush1.msra.mxu0 %v1683
      %5267 = vmatprep.subr.mxu0 0.0
      %5268 = vmatpush1.msra.mxu0 %v1684
      %5269 = vmatprep.subr.mxu0 0.0
      %5270 = vmatpush1.msra.mxu0 %v1685
      %5271 = vmatprep.subr.mxu0 0.0
      %5272 = vmatpush1.msra.mxu0 %v1686
      %5273 = vmatprep.subr.mxu0 0.0
      %5274 = vmatpush1.msra.mxu0 %v1687
      %5275 = vmatprep.subr.mxu0 0.0
      %5276 = vmatpush1.msra.mxu0 %v1688
      %5277 = vmatprep.subr.mxu0 0.0
      %5278 = vmatpush1.msra.mxu0 %v1689
      %5279 = vmatprep.subr.mxu0 0.0
      %5280 = vmatpush1.msra.mxu0 %v1690
      %5281 = vmatprep.subr.mxu0 0.0
      %5282 = vmatpush1.msra.mxu0 %v1691
      %5283 = vmatprep.subr.mxu0 0.0
      %5284 = vmatpush1.msra.mxu0 %v1692
      %5285 = vmatprep.subr.mxu0 0.0
      %5286 = vmatpush1.msra.mxu0 %v1693
      %5287 = vmatprep.subr.mxu0 0.0
      %5288 = vmatpush1.msra.mxu0 %v1694
      %5289 = vmatprep.subr.mxu0 0.0
      %5290 = vmatpush1.msra.mxu0 %v1695
      %5291 = vmatprep.subr.mxu0 0.0
      %5292 = vmatpush1.msra.mxu0 %v1696
      %5293 = vmatprep.subr.mxu0 0.0
      %5294 = vmatpush1.msra.mxu0 %v1697
      %5295 = vmatprep.subr.mxu0 0.0
      %5296 = vmatpush1.msra.mxu0 %v1698
      %5297 = vmatprep.subr.mxu0 0.0
      %5298 = vmatpush1.msra.mxu0 %v1699
      %5299 = vmatprep.subr.mxu0 0.0
      %5300 = vmatpush1.msra.mxu0 %v1700
      %5301 = vmatprep.subr.mxu0 0.0
      %5302 = vmatpush1.msra.mxu0 %v1701
      %5303 = vmatprep.subr.mxu0 0.0
      %5304 = vmatpush1.msra.mxu0 %v1702
      %5305 = vmatprep.subr.mxu0 0.0
      %5306 = vmatpush1.msra.mxu0 %v1703
      %5307 = vmatprep.subr.mxu0 0.0
      %5308 = vmatpush1.msra.mxu0 %v1704
      %5309 = vmatprep.subr.mxu0 0.0
      %5310 = vmatpush1.msra.mxu0 %v1705
      %5311 = vmatprep.subr.mxu0 0.0
      %5312 = vmatpush1.msra.mxu0 %v1706
      %5313 = vmatprep.subr.mxu0 0.0
      %5314 = vmatpush1.msra.mxu0 %v1707
      %5315 = vmatprep.subr.mxu0 0.0
      %5316 = vmatpush1.msra.mxu0 %v1708
      %5317 = vmatprep.subr.mxu0 0.0
      %5318 = vmatpush1.msra.mxu0 %v1709
      %5319 = vmatprep.subr.mxu0 0.0
      %5320 = vmatpush1.msra.mxu0 %v1710
      %5321 = vmatprep.subr.mxu0 0.0
      %5322 = vmatpush1.msra.mxu0 %v1711
      %5323 = vmatprep.subr.mxu0 0.0
      %5324 = vmatpush1.msra.mxu0 %v1712
      %5325 = vmatprep.subr.mxu0 0.0
      %5326 = vmatpush1.msra.mxu0 %v1713
      %5327 = vmatprep.subr.mxu0 0.0
      %5328 = vmatpush1.msra.mxu0 %v1714
      %5329 = vmatprep.mubr.f32.mxu0 %v252
      %5330 = vmatmul.mubr.f32.gmra.mrb[0].mxu0 %v251
      %v5331 = vpop.f32.mrb[0].mxu0
      %v5332 = vadd.f32 %v5257, %v5331
      %v5333 = vpop.f32.mrb[0].mxu0
      %5334 = vmatprep.mubr.f32.mxu0 %v368
      %5335 = vmatmul.mubr.f32.gmra.mrb[0].mxu0 %v367
      %v5336 = vpop.f32.mrb[0].mxu0
      %v5337 = vadd.f32 %v5262, %v5336
      %v5338 = vpop.f32.mrb[0].mxu0
      %5339 = vdwg.mxu0
      %5340 = vmatprep.subr.mxu0 0.0
      %5341 = vmatpush1.msra.mxu0 %v1715
      %5342 = vmatprep.subr.mxu0 0.0
      %5343 = vmatpush1.msra.mxu0 %v1716
      %5344 = vmatprep.subr.mxu0 0.0
      %5345 = vmatpush1.msra.mxu0 %v1717
      %5346 = vmatprep.subr.mxu0 0.0
      %5347 = vmatpush1.msra.mxu0 %v1718
      %5348 = vmatprep.subr.mxu0 0.0
      %5349 = vmatpush1.msra.mxu0 %v1719
      %5350 = vmatprep.subr.mxu0 0.0
      %5351 = vmatpush1.msra.mxu0 %v1720
      %5352 = vmatprep.subr.mxu0 0.0
      %5353 = vmatpush1.msra.mxu0 %v1721
      %5354 = vmatprep.subr.mxu0 0.0
      %5355 = vmatpush1.msra.mxu0 %v1722
      %5356 = vmatprep.subr.mxu0 0.0
      %5357 = vmatpush1.msra.mxu0 %v1723
      %5358 = vmatprep.subr.mxu0 0.0
      %5359 = vmatpush1.msra.mxu0 %v1724
      %5360 = vmatprep.subr.mxu0 0.0
      %5361 = vmatpush1.msra.mxu0 %v1725
      %5362 = vmatprep.subr.mxu0 0.0
      %5363 = vmatpush1.msra.mxu0 %v1726
      %5364 = vmatprep.subr.mxu0 0.0
      %5365 = vmatpush1.msra.mxu0 %v1727
      %5366 = vmatprep.subr.mxu0 0.0
      %5367 = vmatpush1.msra.mxu0 %v1728
      %5368 = vmatprep.subr.mxu0 0.0
      %5369 = vmatpush1.msra.mxu0 %v1729
      %5370 = vmatprep.subr.mxu0 0.0
      %5371 = vmatpush1.msra.mxu0 %v1730
      %5372 = vmatprep.subr.mxu0 0.0
      %5373 = vmatpush1.msra.mxu0 %v1731
      %5374 = vmatprep.subr.mxu0 0.0
      %5375 = vmatpush1.msra.mxu0 %v1732
      %5376 = vmatprep.subr.mxu0 0.0
      %5377 = vmatpush1.msra.mxu0 %v1733
      %5378 = vmatprep.subr.mxu0 0.0
      %5379 = vmatpush1.msra.mxu0 %v1734
      %5380 = vmatprep.subr.mxu0 0.0
      %5381 = vmatpush1.msra.mxu0 %v1735
      %5382 = vmatprep.subr.mxu0 0.0
      %5383 = vmatpush1.msra.mxu0 %v1736
      %5384 = vmatprep.subr.mxu0 0.0
      %5385 = vmatpush1.msra.mxu0 %v1737
      %5386 = vmatprep.subr.mxu0 0.0
      %5387 = vmatpush1.msra.mxu0 %v1738
      %5388 = vmatprep.subr.mxu0 0.0
      %5389 = vmatpush1.msra.mxu0 %v1739
      %5390 = vmatprep.subr.mxu0 0.0
      %5391 = vmatpush1.msra.mxu0 %v1740
      %5392 = vmatprep.subr.mxu0 0.0
      %5393 = vmatpush1.msra.mxu0 %v1741
      %5394 = vmatprep.subr.mxu0 0.0
      %5395 = vmatpush1.msra.mxu0 %v1742
      %5396 = vmatprep.subr.mxu0 0.0
      %5397 = vmatpush1.msra.mxu0 %v1743
      %5398 = vmatprep.subr.mxu0 0.0
      %5399 = vmatpush1.msra.mxu0 %v1744
      %5400 = vmatprep.subr.mxu0 0.0
      %5401 = vmatpush1.msra.mxu0 %v1745
      %5402 = vmatprep.subr.mxu0 0.0
      %5403 = vmatpush1.msra.mxu0 %v1746
      %5404 = vmatprep.mubr.f32.mxu0 %v254
      %5405 = vmatmul.mubr.f32.gmra.mrb[0].mxu0 %v253
      %v5406 = vpop.f32.mrb[0].mxu0
      %v5407 = vadd.f32 %v5332, %v5406
      %v5408 = vpop.f32.mrb[0].mxu0
      %5409 = vmatprep.mubr.f32.mxu0 %v370
      %5410 = vmatmul.mubr.f32.gmra.mrb[0].mxu0 %v369
      %v5411 = vpop.f32.mrb[0].mxu0
      %v5412 = vadd.f32 %v5337, %v5411
      %v5413 = vpop.f32.mrb[0].mxu0
      %5414 = vdwg.mxu0
      %5415 = vmatprep.subr.mxu0 0.0
      %5416 = vmatpush1.msra.mxu0 %v1747
      %5417 = vmatprep.subr.mxu0 0.0
      %5418 = vmatpush1.msra.mxu0 %v1748
      %5419 = vmatprep.subr.mxu0 0.0
      %5420 = vmatpush1.msra.mxu0 %v1749
      %5421 = vmatprep.subr.mxu0 0.0
      %5422 = vmatpush1.msra.mxu0 %v1750
      %5423 = vmatprep.subr.mxu0 0.0
      %5424 = vmatpush1.msra.mxu0 %v1751
      %5425 = vmatprep.subr.mxu0 0.0
      %5426 = vmatpush1.msra.mxu0 %v1752
      %5427 = vmatprep.subr.mxu0 0.0
      %5428 = vmatpush1.msra.mxu0 %v1753
      %5429 = vmatprep.subr.mxu0 0.0
      %5430 = vmatpush1.msra.mxu0 %v1754
      %5431 = vmatprep.subr.mxu0 0.0
      %5432 = vmatpush1.msra.mxu0 %v1755
      %5433 = vmatprep.subr.mxu0 0.0
      %5434 = vmatpush1.msra.mxu0 %v1756
      %5435 = vmatprep.subr.mxu0 0.0
      %5436 = vmatpush1.msra.mxu0 %v1757
      %5437 = vmatprep.subr.mxu0 0.0
      %5438 = vmatpush1.msra.mxu0 %v1758
      %5439 = vmatprep.subr.mxu0 0.0
      %5440 = vmatpush1.msra.mxu0 %v1759
      %5441 = vmatprep.subr.mxu0 0.0
      %5442 = vmatpush1.msra.mxu0 %v1760
      %5443 = vmatprep.subr.mxu0 0.0
      %5444 = vmatpush1.msra.mxu0 %v1761
      %5445 = vmatprep.subr.mxu0 0.0
      %5446 = vmatpush1.msra.mxu0 %v1762
      %5447 = vmatprep.subr.mxu0 0.0
      %5448 = vmatpush1.msra.mxu0 %v1763
      %5449 = vmatprep.subr.mxu0 0.0
      %5450 = vmatpush1.msra.mxu0 %v1764
      %5451 = vmatprep.subr.mxu0 0.0
      %5452 = vmatpush1.msra.mxu0 %v1765
      %5453 = vmatprep.subr.mxu0 0.0
      %5454 = vmatpush1.msra.mxu0 %v1766
      %5455 = vmatprep.subr.mxu0 0.0
      %5456 = vmatpush1.msra.mxu0 %v1767
      %5457 = vmatprep.subr.mxu0 0.0
      %5458 = vmatpush1.msra.mxu0 %v1768
      %5459 = vmatprep.subr.mxu0 0.0
      %5460 = vmatpush1.msra.mxu0 %v1769
      %5461 = vmatprep.subr.mxu0 0.0
      %5462 = vmatpush1.msra.mxu0 %v1770
      %5463 = vmatprep.subr.mxu0 0.0
      %5464 = vmatpush1.msra.mxu0 %v1771
      %5465 = vmatprep.subr.mxu0 0.0
      %5466 = vmatpush1.msra.mxu0 %v1772
      %5467 = vmatprep.subr.mxu0 0.0
      %5468 = vmatpush1.msra.mxu0 %v1773
      %5469 = vmatprep.subr.mxu0 0.0
      %5470 = vmatpush1.msra.mxu0 %v1774
      %5471 = vmatprep.subr.mxu0 0.0
      %5472 = vmatpush1.msra.mxu0 %v1775
      %5473 = vmatprep.subr.mxu0 0.0
      %5474 = vmatpush1.msra.mxu0 %v1776
      %5475 = vmatprep.subr.mxu0 0.0
      %5476 = vmatpush1.msra.mxu0 %v1777
      %5477 = vmatprep.subr.mxu0 0.0
      %5478 = vmatpush1.msra.mxu0 %v1778
      %5479 = vmatprep.mubr.f32.mxu0 %v256
      %5480 = vmatmul.mubr.f32.gmra.mrb[0].mxu0 %v255
      %v5481 = vpop.f32.mrb[0].mxu0
      %v5482 = vadd.f32 %v5407, %v5481
      %v5483 = vpop.f32.mrb[0].mxu0
      %5484 = vmatprep.mubr.f32.mxu0 %v372
      %5485 = vmatmul.mubr.f32.gmra.mrb[0].mxu0 %v371
      %v5486 = vpop.f32.mrb[0].mxu0
      %v5487 = vadd.f32 %v5412, %v5486
      %v5488 = vpop.f32.mrb[0].mxu0
      %5489 = vdwg.mxu0
      %5490 = vmatprep.subr.mxu0 0.0
      %5491 = vmatpush1.msra.mxu0 %v1779
      %5492 = vmatprep.subr.mxu0 0.0
      %5493 = vmatpush1.msra.mxu0 %v1780
      %5494 = vmatprep.subr.mxu0 0.0
      %5495 = vmatpush1.msra.mxu0 %v1781
      %5496 = vmatprep.subr.mxu0 0.0
      %5497 = vmatpush1.msra.mxu0 %v1782
      %5498 = vmatprep.subr.mxu0 0.0
      %5499 = vmatpush1.msra.mxu0 %v1783
      %5500 = vmatprep.subr.mxu0 0.0
      %5501 = vmatpush1.msra.mxu0 %v1784
      %5502 = vmatprep.subr.mxu0 0.0
      %5503 = vmatpush1.msra.mxu0 %v1785
      %5504 = vmatprep.subr.mxu0 0.0
      %5505 = vmatpush1.msra.mxu0 %v1786
      %5506 = vmatprep.subr.mxu0 0.0
      %5507 = vmatpush1.msra.mxu0 %v1787
      %5508 = vmatprep.subr.mxu0 0.0
      %5509 = vmatpush1.msra.mxu0 %v1788
      %5510 = vmatprep.subr.mxu0 0.0
      %5511 = vmatpush1.msra.mxu0 %v1789
      %5512 = vmatprep.subr.mxu0 0.0
      %5513 = vmatpush1.msra.mxu0 %v1790
      %5514 = vmatprep.subr.mxu0 0.0
      %5515 = vmatpush1.msra.mxu0 %v1791
      %5516 = vmatprep.subr.mxu0 0.0
      %5517 = vmatpush1.msra.mxu0 %v1792
      %5518 = vmatprep.subr.mxu0 0.0
      %5519 = vmatpush1.msra.mxu0 %v1793
      %5520 = vmatprep.subr.mxu0 0.0
      %5521 = vmatpush1.msra.mxu0 %v1794
      %5522 = vmatprep.subr.mxu0 0.0
      %5523 = vmatpush1.msra.mxu0 %v1795
      %5524 = vmatprep.subr.mxu0 0.0
      %5525 = vmatpush1.msra.mxu0 %v1796
      %5526 = vmatprep.subr.mxu0 0.0
      %5527 = vmatpush1.msra.mxu0 %v1797
      %5528 = vmatprep.subr.mxu0 0.0
      %5529 = vmatpush1.msra.mxu0 %v1798
      %5530 = vmatprep.subr.mxu0 0.0
      %5531 = vmatpush1.msra.mxu0 %v1799
      %5532 = vmatprep.subr.mxu0 0.0
      %5533 = vmatpush1.msra.mxu0 %v1800
      %5534 = vmatprep.subr.mxu0 0.0
      %5535 = vmatpush1.msra.mxu0 %v1801
      %5536 = vmatprep.subr.mxu0 0.0
      %5537 = vmatpush1.msra.mxu0 %v1802
      %5538 = vmatprep.subr.mxu0 0.0
      %5539 = vmatpush1.msra.mxu0 %v1803
      %5540 = vmatprep.subr.mxu0 0.0
      %5541 = vmatpush1.msra.mxu0 %v1804
      %5542 = vmatprep.subr.mxu0 0.0
      %5543 = vmatpush1.msra.mxu0 %v1805
      %5544 = vmatprep.subr.mxu0 0.0
      %5545 = vmatpush1.msra.mxu0 %v1806
      %5546 = vmatprep.subr.mxu0 0.0
      %5547 = vmatpush1.msra.mxu0 %v1807
      %5548 = vmatprep.subr.mxu0 0.0
      %5549 = vmatpush1.msra.mxu0 %v1808
      %5550 = vmatprep.subr.mxu0 0.0
      %5551 = vmatpush1.msra.mxu0 %v1809
      %5552 = vmatprep.subr.mxu0 0.0
      %5553 = vmatpush1.msra.mxu0 %v1810
      %5554 = vmatprep.mubr.f32.mxu0 %v258
      %5555 = vmatmul.mubr.f32.gmra.mrb[0].mxu0 %v257
      %v5556 = vpop.f32.mrb[0].mxu0
      %v5557 = vadd.f32 %v5482, %v5556
      %v5558 = vpop.f32.mrb[0].mxu0
      %5559 = vmatprep.mubr.f32.mxu0 %v374
      %5560 = vmatmul.mubr.f32.gmra.mrb[0].mxu0 %v373
      %v5561 = vpop.f32.mrb[0].mxu0
      %v5562 = vadd.f32 %v5487, %v5561
      %v5563 = vpop.f32.mrb[0].mxu0
      %5564 = vdwg.mxu0
      %5565 = vmatprep.subr.mxu0 0.0
      %5566 = vmatpush1.msra.mxu0 %v1811
      %5567 = vmatprep.subr.mxu0 0.0
      %5568 = vmatpush1.msra.mxu0 %v1812
      %5569 = vmatprep.subr.mxu0 0.0
      %5570 = vmatpush1.msra.mxu0 %v1813
      %5571 = vmatprep.subr.mxu0 0.0
      %5572 = vmatpush1.msra.mxu0 %v1814
      %5573 = vmatprep.subr.mxu0 0.0
      %5574 = vmatpush1.msra.mxu0 %v1815
      %5575 = vmatprep.subr.mxu0 0.0
      %5576 = vmatpush1.msra.mxu0 %v1816
      %5577 = vmatprep.subr.mxu0 0.0
      %5578 = vmatpush1.msra.mxu0 %v1817
      %5579 = vmatprep.subr.mxu0 0.0
      %5580 = vmatpush1.msra.mxu0 %v1818
      %5581 = vmatprep.subr.mxu0 0.0
      %5582 = vmatpush1.msra.mxu0 %v1819
      %5583 = vmatprep.subr.mxu0 0.0
      %5584 = vmatpush1.msra.mxu0 %v1820
      %5585 = vmatprep.subr.mxu0 0.0
      %5586 = vmatpush1.msra.mxu0 %v1821
      %5587 = vmatprep.subr.mxu0 0.0
      %5588 = vmatpush1.msra.mxu0 %v1822
      %5589 = vmatprep.subr.mxu0 0.0
      %5590 = vmatpush1.msra.mxu0 %v1823
      %5591 = vmatprep.subr.mxu0 0.0
      %5592 = vmatpush1.msra.mxu0 %v1824
      %5593 = vmatprep.subr.mxu0 0.0
      %5594 = vmatpush1.msra.mxu0 %v1825
      %5595 = vmatprep.subr.mxu0 0.0
      %5596 = vmatpush1.msra.mxu0 %v1826
      %5597 = vmatprep.subr.mxu0 0.0
      %5598 = vmatpush1.msra.mxu0 %v1827
      %5599 = vmatprep.subr.mxu0 0.0
      %5600 = vmatpush1.msra.mxu0 %v1828
      %5601 = vmatprep.subr.mxu0 0.0
      %5602 = vmatpush1.msra.mxu0 %v1829
      %5603 = vmatprep.subr.mxu0 0.0
      %5604 = vmatpush1.msra.mxu0 %v1830
      %5605 = vmatprep.subr.mxu0 0.0
      %5606 = vmatpush1.msra.mxu0 %v1831
      %5607 = vmatprep.subr.mxu0 0.0
      %5608 = vmatpush1.msra.mxu0 %v1832
      %5609 = vmatprep.subr.mxu0 0.0
      %5610 = vmatpush1.msra.mxu0 %v1833
      %5611 = vmatprep.subr.mxu0 0.0
      %5612 = vmatpush1.msra.mxu0 %v1834
      %5613 = vmatprep.subr.mxu0 0.0
      %5614 = vmatpush1.msra.mxu0 %v1835
      %5615 = vmatprep.subr.mxu0 0.0
      %5616 = vmatpush1.msra.mxu0 %v1836
      %5617 = vmatprep.subr.mxu0 0.0
      %5618 = vmatpush1.msra.mxu0 %v1837
      %5619 = vmatprep.subr.mxu0 0.0
      %5620 = vmatpush1.msra.mxu0 %v1838
      %5621 = vmatprep.subr.mxu0 0.0
      %5622 = vmatpush1.msra.mxu0 %v1839
      %5623 = vmatprep.subr.mxu0 0.0
      %5624 = vmatpush1.msra.mxu0 %v1840
      %5625 = vmatprep.subr.mxu0 0.0
      %5626 = vmatpush1.msra.mxu0 %v1841
      %5627 = vmatprep.subr.mxu0 0.0
      %5628 = vmatpush1.msra.mxu0 %v1842
      %5629 = vmatprep.mubr.f32.mxu0 %v260
      %5630 = vmatmul.mubr.f32.gmra.mrb[0].mxu0 %v259
      %v5631 = vpop.f32.mrb[0].mxu0
      %v5632 = vadd.f32 %v5557, %v5631
      %v5633 = vpop.f32.mrb[0].mxu0
      %5634 = vmatprep.mubr.f32.mxu0 %v376
      %5635 = vmatmul.mubr.f32.gmra.mrb[0].mxu0 %v375
      %v5636 = vpop.f32.mrb[0].mxu0
      %v5637 = vadd.f32 %v5562, %v5636
      %v5638 = vpop.f32.mrb[0].mxu0
      %5639 = vdwg.mxu0
      %5640 = vmatprep.subr.mxu0 0.0
      %5641 = vmatpush1.msra.mxu0 %v1843
      %5642 = vmatprep.subr.mxu0 0.0
      %5643 = vmatpush1.msra.mxu0 %v1844
      %5644 = vmatprep.subr.mxu0 0.0
      %5645 = vmatpush1.msra.mxu0 %v1845
      %5646 = vmatprep.subr.mxu0 0.0
      %5647 = vmatpush1.msra.mxu0 %v1846
      %5648 = vmatprep.subr.mxu0 0.0
      %5649 = vmatpush1.msra.mxu0 %v1847
      %5650 = vmatprep.subr.mxu0 0.0
      %5651 = vmatpush1.msra.mxu0 %v1848
      %5652 = vmatprep.subr.mxu0 0.0
      %5653 = vmatpush1.msra.mxu0 %v1849
      %5654 = vmatprep.subr.mxu0 0.0
      %5655 = vmatpush1.msra.mxu0 %v1850
      %5656 = vmatprep.subr.mxu0 0.0
      %5657 = vmatpush1.msra.mxu0 %v1851
      %5658 = vmatprep.subr.mxu0 0.0
      %5659 = vmatpush1.msra.mxu0 %v1852
      %5660 = vmatprep.subr.mxu0 0.0
      %5661 = vmatpush1.msra.mxu0 %v1853
      %5662 = vmatprep.subr.mxu0 0.0
      %5663 = vmatpush1.msra.mxu0 %v1854
      %5664 = vmatprep.subr.mxu0 0.0
      %5665 = vmatpush1.msra.mxu0 %v1855
      %5666 = vmatprep.subr.mxu0 0.0
      %5667 = vmatpush1.msra.mxu0 %v1856
      %5668 = vmatprep.subr.mxu0 0.0
      %5669 = vmatpush1.msra.mxu0 %v1857
      %5670 = vmatprep.subr.mxu0 0.0
      %5671 = vmatpush1.msra.mxu0 %v1858
      %5672 = vmatprep.subr.mxu0 0.0
      %5673 = vmatpush1.msra.mxu0 %v1859
      %5674 = vmatprep.subr.mxu0 0.0
      %5675 = vmatpush1.msra.mxu0 %v1860
      %5676 = vmatprep.subr.mxu0 0.0
      %5677 = vmatpush1.msra.mxu0 %v1861
      %5678 = vmatprep.subr.mxu0 0.0
      %5679 = vmatpush1.msra.mxu0 %v1862
      %5680 = vmatprep.subr.mxu0 0.0
      %5681 = vmatpush1.msra.mxu0 %v1863
      %5682 = vmatprep.subr.mxu0 0.0
      %5683 = vmatpush1.msra.mxu0 %v1864
      %5684 = vmatprep.subr.mxu0 0.0
      %5685 = vmatpush1.msra.mxu0 %v1865
      %5686 = vmatprep.subr.mxu0 0.0
      %5687 = vmatpush1.msra.mxu0 %v1866
      %5688 = vmatprep.subr.mxu0 0.0
      %5689 = vmatpush1.msra.mxu0 %v1867
      %5690 = vmatprep.subr.mxu0 0.0
      %5691 = vmatpush1.msra.mxu0 %v1868
      %5692 = vmatprep.subr.mxu0 0.0
      %5693 = vmatpush1.msra.mxu0 %v1869
      %5694 = vmatprep.subr.mxu0 0.0
      %5695 = vmatpush1.msra.mxu0 %v1870
      %5696 = vmatprep.subr.mxu0 0.0
      %5697 = vmatpush1.msra.mxu0 %v1871
      %5698 = vmatprep.subr.mxu0 0.0
      %5699 = vmatpush1.msra.mxu0 %v1872
      %5700 = vmatprep.subr.mxu0 0.0
      %5701 = vmatpush1.msra.mxu0 %v1873
      %5702 = vmatprep.subr.mxu0 0.0
      %5703 = vmatpush1.msra.mxu0 %v1874
      %5704 = vmatprep.mubr.f32.mxu0 %v262
      %5705 = vmatmul.mubr.f32.gmra.mrb[0].mxu0 %v261
      %v5706 = vpop.f32.mrb[0].mxu0
      %v5707 = vadd.f32 %v5632, %v5706
      %v5708 = vpop.f32.mrb[0].mxu0
      %5709 = vmatprep.mubr.f32.mxu0 %v378
      %5710 = vmatmul.mubr.f32.gmra.mrb[0].mxu0 %v377
      %v5711 = vpop.f32.mrb[0].mxu0
      %v5712 = vadd.f32 %v5637, %v5711
      %v5713 = vpop.f32.mrb[0].mxu0
      %5714 = vdwg.mxu0
      %5715 = vmatprep.subr.mxu0 0.0
      %5716 = vmatpush1.msra.mxu0 %v1875
      %5717 = vmatprep.subr.mxu0 0.0
      %5718 = vmatpush1.msra.mxu0 %v1876
      %5719 = vmatprep.subr.mxu0 0.0
      %5720 = vmatpush1.msra.mxu0 %v1877
      %5721 = vmatprep.subr.mxu0 0.0
      %5722 = vmatpush1.msra.mxu0 %v1878
      %5723 = vmatprep.subr.mxu0 0.0
      %5724 = vmatpush1.msra.mxu0 %v1879
      %5725 = vmatprep.subr.mxu0 0.0
      %5726 = vmatpush1.msra.mxu0 %v1880
      %5727 = vmatprep.subr.mxu0 0.0
      %5728 = vmatpush1.msra.mxu0 %v1881
      %5729 = vmatprep.subr.mxu0 0.0
      %5730 = vmatpush1.msra.mxu0 %v1882
      %5731 = vmatprep.subr.mxu0 0.0
      %5732 = vmatpush1.msra.mxu0 %v1883
      %5733 = vmatprep.subr.mxu0 0.0
      %5734 = vmatpush1.msra.mxu0 %v1884
      %5735 = vmatprep.subr.mxu0 0.0
      %5736 = vmatpush1.msra.mxu0 %v1885
      %5737 = vmatprep.subr.mxu0 0.0
      %5738 = vmatpush1.msra.mxu0 %v1886
      %5739 = vmatprep.subr.mxu0 0.0
      %5740 = vmatpush1.msra.mxu0 %v1887
      %5741 = vmatprep.subr.mxu0 0.0
      %5742 = vmatpush1.msra.mxu0 %v1888
      %5743 = vmatprep.subr.mxu0 0.0
      %5744 = vmatpush1.msra.mxu0 %v1889
      %5745 = vmatprep.subr.mxu0 0.0
      %5746 = vmatpush1.msra.mxu0 %v1890
      %5747 = vmatprep.subr.mxu0 0.0
      %5748 = vmatpush1.msra.mxu0 %v1891
      %5749 = vmatprep.subr.mxu0 0.0
      %5750 = vmatpush1.msra.mxu0 %v1892
      %5751 = vmatprep.subr.mxu0 0.0
      %5752 = vmatpush1.msra.mxu0 %v1893
      %5753 = vmatprep.subr.mxu0 0.0
      %5754 = vmatpush1.msra.mxu0 %v1894
      %5755 = vmatprep.subr.mxu0 0.0
      %5756 = vmatpush1.msra.mxu0 %v1895
      %5757 = vmatprep.subr.mxu0 0.0
      %5758 = vmatpush1.msra.mxu0 %v1896
      %5759 = vmatprep.subr.mxu0 0.0
      %5760 = vmatpush1.msra.mxu0 %v1897
      %5761 = vmatprep.subr.mxu0 0.0
      %5762 = vmatpush1.msra.mxu0 %v1898
      %5763 = vmatprep.subr.mxu0 0.0
      %5764 = vmatpush1.msra.mxu0 %v1899
      %5765 = vmatprep.subr.mxu0 0.0
      %5766 = vmatpush1.msra.mxu0 %v1900
      %5767 = vmatprep.subr.mxu0 0.0
      %5768 = vmatpush1.msra.mxu0 %v1901
      %5769 = vmatprep.subr.mxu0 0.0
      %5770 = vmatpush1.msra.mxu0 %v1902
      %5771 = vmatprep.subr.mxu0 0.0
      %5772 = vmatpush1.msra.mxu0 %v1903
      %5773 = vmatprep.subr.mxu0 0.0
      %5774 = vmatpush1.msra.mxu0 %v1904
      %5775 = vmatprep.subr.mxu0 0.0
      %5776 = vmatpush1.msra.mxu0 %v1905
      %5777 = vmatprep.subr.mxu0 0.0
      %5778 = vmatpush1.msra.mxu0 %v1906
      %5779 = vmatprep.mubr.f32.mxu0 %v264
      %5780 = vmatmul.mubr.f32.gmra.mrb[0].mxu0 %v263
      %v5781 = vpop.f32.mrb[0].mxu0
      %v5782 = vadd.f32 %v5707, %v5781
      %v5783 = vpop.f32.mrb[0].mxu0
      %5784 = vmatprep.mubr.f32.mxu0 %v380
      %5785 = vmatmul.mubr.f32.gmra.mrb[0].mxu0 %v379
      %v5786 = vpop.f32.mrb[0].mxu0
      %v5787 = vadd.f32 %v5712, %v5786
      %v5788 = vpop.f32.mrb[0].mxu0
      %5789 = vdwg.mxu0
      %5790 = vmatprep.subr.mxu0 0.0
      %5791 = vmatpush1.msra.mxu0 %v1907
      %5792 = vmatprep.subr.mxu0 0.0
      %5793 = vmatpush1.msra.mxu0 %v1908
      %5794 = vmatprep.subr.mxu0 0.0
      %5795 = vmatpush1.msra.mxu0 %v1909
      %5796 = vmatprep.subr.mxu0 0.0
      %5797 = vmatpush1.msra.mxu0 %v1910
      %5798 = vmatprep.subr.mxu0 0.0
      %5799 = vmatpush1.msra.mxu0 %v1911
      %5800 = vmatprep.subr.mxu0 0.0
      %5801 = vmatpush1.msra.mxu0 %v1912
      %5802 = vmatprep.subr.mxu0 0.0
      %5803 = vmatpush1.msra.mxu0 %v1913
      %5804 = vmatprep.subr.mxu0 0.0
      %5805 = vmatpush1.msra.mxu0 %v1914
      %5806 = vmatprep.subr.mxu0 0.0
      %5807 = vmatpush1.msra.mxu0 %v1915
      %5808 = vmatprep.subr.mxu0 0.0
      %5809 = vmatpush1.msra.mxu0 %v1916
      %5810 = vmatprep.subr.mxu0 0.0
      %5811 = vmatpush1.msra.mxu0 %v1917
      %5812 = vmatprep.subr.mxu0 0.0
      %5813 = vmatpush1.msra.mxu0 %v1918
      %5814 = vmatprep.subr.mxu0 0.0
      %5815 = vmatpush1.msra.mxu0 %v1919
      %5816 = vmatprep.subr.mxu0 0.0
      %5817 = vmatpush1.msra.mxu0 %v1920
      %5818 = vmatprep.subr.mxu0 0.0
      %5819 = vmatpush1.msra.mxu0 %v1921
      %5820 = vmatprep.subr.mxu0 0.0
      %5821 = vmatpush1.msra.mxu0 %v1922
      %5822 = vmatprep.subr.mxu0 0.0
      %5823 = vmatpush1.msra.mxu0 %v1923
      %5824 = vmatprep.subr.mxu0 0.0
      %5825 = vmatpush1.msra.mxu0 %v1924
      %5826 = vmatprep.subr.mxu0 0.0
      %5827 = vmatpush1.msra.mxu0 %v1925
      %5828 = vmatprep.subr.mxu0 0.0
      %5829 = vmatpush1.msra.mxu0 %v1926
      %5830 = vmatprep.subr.mxu0 0.0
      %5831 = vmatpush1.msra.mxu0 %v1927
      %5832 = vmatprep.subr.mxu0 0.0
      %5833 = vmatpush1.msra.mxu0 %v1928
      %5834 = vmatprep.subr.mxu0 0.0
      %5835 = vmatpush1.msra.mxu0 %v1929
      %5836 = vmatprep.subr.mxu0 0.0
      %5837 = vmatpush1.msra.mxu0 %v1930
      %5838 = vmatprep.subr.mxu0 0.0
      %5839 = vmatpush1.msra.mxu0 %v1931
      %5840 = vmatprep.subr.mxu0 0.0
      %5841 = vmatpush1.msra.mxu0 %v1932
      %5842 = vmatprep.subr.mxu0 0.0
      %5843 = vmatpush1.msra.mxu0 %v1933
      %5844 = vmatprep.subr.mxu0 0.0
      %5845 = vmatpush1.msra.mxu0 %v1934
      %5846 = vmatprep.subr.mxu0 0.0
      %5847 = vmatpush1.msra.mxu0 %v1935
      %5848 = vmatprep.subr.mxu0 0.0
      %5849 = vmatpush1.msra.mxu0 %v1936
      %5850 = vmatprep.subr.mxu0 0.0
      %5851 = vmatpush1.msra.mxu0 %v1937
      %5852 = vmatprep.subr.mxu0 0.0
      %5853 = vmatpush1.msra.mxu0 %v1938
      %5854 = vmatprep.mubr.f32.mxu0 %v266
      %5855 = vmatmul.mubr.f32.gmra.mrb[0].mxu0 %v265
      %v5856 = vpop.f32.mrb[0].mxu0
      %v5857 = vadd.f32 %v5782, %v5856
      %v5858 = vpop.f32.mrb[0].mxu0
      %5859 = vmatprep.mubr.f32.mxu0 %v382
      %5860 = vmatmul.mubr.f32.gmra.mrb[0].mxu0 %v381
      %v5861 = vpop.f32.mrb[0].mxu0
      %v5862 = vadd.f32 %v5787, %v5861
      %v5863 = vpop.f32.mrb[0].mxu0
      %5864 = vdwg.mxu0
      %5865 = vmatprep.subr.mxu0 0.0
      %5866 = vmatpush1.msra.mxu0 %v1939
      %5867 = vmatprep.subr.mxu0 0.0
      %5868 = vmatpush1.msra.mxu0 %v1940
      %5869 = vmatprep.subr.mxu0 0.0
      %5870 = vmatpush1.msra.mxu0 %v1941
      %5871 = vmatprep.subr.mxu0 0.0
      %5872 = vmatpush1.msra.mxu0 %v1942
      %5873 = vmatprep.subr.mxu0 0.0
      %5874 = vmatpush1.msra.mxu0 %v1943
      %5875 = vmatprep.subr.mxu0 0.0
      %5876 = vmatpush1.msra.mxu0 %v1944
      %5877 = vmatprep.subr.mxu0 0.0
      %5878 = vmatpush1.msra.mxu0 %v1945
      %5879 = vmatprep.subr.mxu0 0.0
      %5880 = vmatpush1.msra.mxu0 %v1946
      %5881 = vmatprep.subr.mxu0 0.0
      %5882 = vmatpush1.msra.mxu0 %v1947
      %5883 = vmatprep.subr.mxu0 0.0
      %5884 = vmatpush1.msra.mxu0 %v1948
      %5885 = vmatprep.subr.mxu0 0.0
      %5886 = vmatpush1.msra.mxu0 %v1949
      %5887 = vmatprep.subr.mxu0 0.0
      %5888 = vmatpush1.msra.mxu0 %v1950
      %5889 = vmatprep.subr.mxu0 0.0
      %5890 = vmatpush1.msra.mxu0 %v1951
      %5891 = vmatprep.subr.mxu0 0.0
      %5892 = vmatpush1.msra.mxu0 %v1952
      %5893 = vmatprep.subr.mxu0 0.0
      %5894 = vmatpush1.msra.mxu0 %v1953
      %5895 = vmatprep.subr.mxu0 0.0
      %5896 = vmatpush1.msra.mxu0 %v1954
      %5897 = vmatprep.subr.mxu0 0.0
      %5898 = vmatpush1.msra.mxu0 %v1955
      %5899 = vmatprep.subr.mxu0 0.0
      %5900 = vmatpush1.msra.mxu0 %v1956
      %5901 = vmatprep.subr.mxu0 0.0
      %5902 = vmatpush1.msra.mxu0 %v1957
      %5903 = vmatprep.subr.mxu0 0.0
      %5904 = vmatpush1.msra.mxu0 %v1958
      %5905 = vmatprep.subr.mxu0 0.0
      %5906 = vmatpush1.msra.mxu0 %v1959
      %5907 = vmatprep.subr.mxu0 0.0
      %5908 = vmatpush1.msra.mxu0 %v1960
      %5909 = vmatprep.subr.mxu0 0.0
      %5910 = vmatpush1.msra.mxu0 %v1961
      %5911 = vmatprep.subr.mxu0 0.0
      %5912 = vmatpush1.msra.mxu0 %v1962
      %5913 = vmatprep.subr.mxu0 0.0
      %5914 = vmatpush1.msra.mxu0 %v1963
      %5915 = vmatprep.subr.mxu0 0.0
      %5916 = vmatpush1.msra.mxu0 %v1964
      %5917 = vmatprep.subr.mxu0 0.0
      %5918 = vmatpush1.msra.mxu0 %v1965
      %5919 = vmatprep.subr.mxu0 0.0
      %5920 = vmatpush1.msra.mxu0 %v1966
      %5921 = vmatprep.subr.mxu0 0.0
      %5922 = vmatpush1.msra.mxu0 %v1967
      %5923 = vmatprep.subr.mxu0 0.0
      %5924 = vmatpush1.msra.mxu0 %v1968
      %5925 = vmatprep.subr.mxu0 0.0
      %5926 = vmatpush1.msra.mxu0 %v1969
      %5927 = vmatprep.subr.mxu0 0.0
      %5928 = vmatpush1.msra.mxu0 %v1970
      %5929 = vmatprep.mubr.f32.mxu0 %v268
      %5930 = vmatmul.mubr.f32.gmra.mrb[0].mxu0 %v267
      %v5931 = vpop.f32.mrb[0].mxu0
      %v5932 = vadd.f32 %v5857, %v5931
      %v5933 = vpop.f32.mrb[0].mxu0
      %5934 = vmatprep.mubr.f32.mxu0 %v384
      %5935 = vmatmul.mubr.f32.gmra.mrb[0].mxu0 %v383
      %v5936 = vpop.f32.mrb[0].mxu0
      %v5937 = vadd.f32 %v5862, %v5936
      %v5938 = vpop.f32.mrb[0].mxu0
      %5939 = vdwg.mxu0
      %5940 = vmatprep.subr.mxu0 0.0
      %5941 = vmatpush1.msra.mxu0 %v1971
      %5942 = vmatprep.subr.mxu0 0.0
      %5943 = vmatpush1.msra.mxu0 %v1972
      %5944 = vmatprep.subr.mxu0 0.0
      %5945 = vmatpush1.msra.mxu0 %v1973
      %5946 = vmatprep.subr.mxu0 0.0
      %5947 = vmatpush1.msra.mxu0 %v1974
      %5948 = vmatprep.subr.mxu0 0.0
      %5949 = vmatpush1.msra.mxu0 %v1975
      %5950 = vmatprep.subr.mxu0 0.0
      %5951 = vmatpush1.msra.mxu0 %v1976
      %5952 = vmatprep.subr.mxu0 0.0
      %5953 = vmatpush1.msra.mxu0 %v1977
      %5954 = vmatprep.subr.mxu0 0.0
      %5955 = vmatpush1.msra.mxu0 %v1978
      %5956 = vmatprep.subr.mxu0 0.0
      %5957 = vmatpush1.msra.mxu0 %v1979
      %5958 = vmatprep.subr.mxu0 0.0
      %5959 = vmatpush1.msra.mxu0 %v1980
      %5960 = vmatprep.subr.mxu0 0.0
      %5961 = vmatpush1.msra.mxu0 %v1981
      %5962 = vmatprep.subr.mxu0 0.0
      %5963 = vmatpush1.msra.mxu0 %v1982
      %5964 = vmatprep.subr.mxu0 0.0
      %5965 = vmatpush1.msra.mxu0 %v1983
      %5966 = vmatprep.subr.mxu0 0.0
      %5967 = vmatpush1.msra.mxu0 %v1984
      %5968 = vmatprep.subr.mxu0 0.0
      %5969 = vmatpush1.msra.mxu0 %v1985
      %5970 = vmatprep.subr.mxu0 0.0
      %5971 = vmatpush1.msra.mxu0 %v1986
      %5972 = vmatprep.subr.mxu0 0.0
      %5973 = vmatpush1.msra.mxu0 %v1987
      %5974 = vmatprep.subr.mxu0 0.0
      %5975 = vmatpush1.msra.mxu0 %v1988
      %5976 = vmatprep.subr.mxu0 0.0
      %5977 = vmatpush1.msra.mxu0 %v1989
      %5978 = vmatprep.subr.mxu0 0.0
      %5979 = vmatpush1.msra.mxu0 %v1990
      %5980 = vmatprep.subr.mxu0 0.0
      %5981 = vmatpush1.msra.mxu0 %v1991
      %5982 = vmatprep.subr.mxu0 0.0
      %5983 = vmatpush1.msra.mxu0 %v1992
      %5984 = vmatprep.subr.mxu0 0.0
      %5985 = vmatpush1.msra.mxu0 %v1993
      %5986 = vmatprep.subr.mxu0 0.0
      %5987 = vmatpush1.msra.mxu0 %v1994
      %5988 = vmatprep.subr.mxu0 0.0
      %5989 = vmatpush1.msra.mxu0 %v1995
      %5990 = vmatprep.subr.mxu0 0.0
      %5991 = vmatpush1.msra.mxu0 %v1996
      %5992 = vmatprep.subr.mxu0 0.0
      %5993 = vmatpush1.msra.mxu0 %v1997
      %5994 = vmatprep.subr.mxu0 0.0
      %5995 = vmatpush1.msra.mxu0 %v1998
      %5996 = vmatprep.subr.mxu0 0.0
      %5997 = vmatpush1.msra.mxu0 %v1999
      %5998 = vmatprep.subr.mxu0 0.0
      %5999 = vmatpush1.msra.mxu0 %v2000
      %6000 = vmatprep.subr.mxu0 0.0
      %6001 = vmatpush1.msra.mxu0 %v2001
      %6002 = vmatprep.subr.mxu0 0.0
      %6003 = vmatpush1.msra.mxu0 %v2002
      %6004 = vmatprep.mubr.f32.mxu0 %v270
      %6005 = vmatmul.mubr.f32.gmra.mrb[0].mxu0 %v269
      %v6006 = vpop.f32.mrb[0].mxu0
      %v6007 = vadd.f32 %v5932, %v6006
      %v6008 = vpop.f32.mrb[0].mxu0
      %6009 = vmatprep.mubr.f32.mxu0 %v386
      %6010 = vmatmul.mubr.f32.gmra.mrb[0].mxu0 %v385
      %v6011 = vpop.f32.mrb[0].mxu0
      %v6012 = vadd.f32 %v5937, %v6011
      %v6013 = vpop.f32.mrb[0].mxu0
      %6014 = vdwg.mxu0
      %6015 = vmatprep.subr.mxu0 0.0
      %6016 = vmatpush1.msra.mxu0 %v2003
      %6017 = vmatprep.subr.mxu0 0.0
      %6018 = vmatpush1.msra.mxu0 %v2004
      %6019 = vmatprep.subr.mxu0 0.0
      %6020 = vmatpush1.msra.mxu0 %v2005
      %6021 = vmatprep.subr.mxu0 0.0
      %6022 = vmatpush1.msra.mxu0 %v2006
      %6023 = vmatprep.subr.mxu0 0.0
      %6024 = vmatpush1.msra.mxu0 %v2007
      %6025 = vmatprep.subr.mxu0 0.0
      %6026 = vmatpush1.msra.mxu0 %v2008
      %6027 = vmatprep.subr.mxu0 0.0
      %6028 = vmatpush1.msra.mxu0 %v2009
      %6029 = vmatprep.subr.mxu0 0.0
      %6030 = vmatpush1.msra.mxu0 %v2010
      %6031 = vmatprep.subr.mxu0 0.0
      %6032 = vmatpush1.msra.mxu0 %v2011
      %6033 = vmatprep.subr.mxu0 0.0
      %6034 = vmatpush1.msra.mxu0 %v2012
      %6035 = vmatprep.subr.mxu0 0.0
      %6036 = vmatpush1.msra.mxu0 %v2013
      %6037 = vmatprep.subr.mxu0 0.0
      %6038 = vmatpush1.msra.mxu0 %v2014
      %6039 = vmatprep.subr.mxu0 0.0
      %6040 = vmatpush1.msra.mxu0 %v2015
      %6041 = vmatprep.subr.mxu0 0.0
      %6042 = vmatpush1.msra.mxu0 %v2016
      %6043 = vmatprep.subr.mxu0 0.0
      %6044 = vmatpush1.msra.mxu0 %v2017
      %6045 = vmatprep.subr.mxu0 0.0
      %6046 = vmatpush1.msra.mxu0 %v2018
      %6047 = vmatprep.subr.mxu0 0.0
      %6048 = vmatpush1.msra.mxu0 %v2019
      %6049 = vmatprep.subr.mxu0 0.0
      %6050 = vmatpush1.msra.mxu0 %v2020
      %6051 = vmatprep.subr.mxu0 0.0
      %6052 = vmatpush1.msra.mxu0 %v2021
      %6053 = vmatprep.subr.mxu0 0.0
      %6054 = vmatpush1.msra.mxu0 %v2022
      %6055 = vmatprep.subr.mxu0 0.0
      %6056 = vmatpush1.msra.mxu0 %v2023
      %6057 = vmatprep.subr.mxu0 0.0
      %6058 = vmatpush1.msra.mxu0 %v2024
      %6059 = vmatprep.subr.mxu0 0.0
      %6060 = vmatpush1.msra.mxu0 %v2025
      %6061 = vmatprep.subr.mxu0 0.0
      %6062 = vmatpush1.msra.mxu0 %v2026
      %6063 = vmatprep.subr.mxu0 0.0
      %6064 = vmatpush1.msra.mxu0 %v2027
      %6065 = vmatprep.subr.mxu0 0.0
      %6066 = vmatpush1.msra.mxu0 %v2028
      %6067 = vmatprep.subr.mxu0 0.0
      %6068 = vmatpush1.msra.mxu0 %v2029
      %6069 = vmatprep.subr.mxu0 0.0
      %6070 = vmatpush1.msra.mxu0 %v2030
      %6071 = vmatprep.subr.mxu0 0.0
      %6072 = vmatpush1.msra.mxu0 %v2031
      %6073 = vmatprep.subr.mxu0 0.0
      %6074 = vmatpush1.msra.mxu0 %v2032
      %6075 = vmatprep.subr.mxu0 0.0
      %6076 = vmatpush1.msra.mxu0 %v2033
      %6077 = vmatprep.subr.mxu0 0.0
      %6078 = vmatpush1.msra.mxu0 %v2034
      %6079 = vmatprep.mubr.f32.mxu0 %v272
      %6080 = vmatmul.mubr.f32.gmra.mrb[0].mxu0 %v271
      %v6081 = vpop.f32.mrb[0].mxu0
      %v6082 = vadd.f32 %v6007, %v6081
      %v6083 = vpop.f32.mrb[0].mxu0
      %6084 = vmatprep.mubr.f32.mxu0 %v388
      %6085 = vmatmul.mubr.f32.gmra.mrb[0].mxu0 %v387
      %v6086 = vpop.f32.mrb[0].mxu0
      %v6087 = vadd.f32 %v6012, %v6086
      %v6088 = vpop.f32.mrb[0].mxu0
      %6089 = vdwg.mxu0
      %6090 = vmatprep.subr.mxu0 0.0
      %6091 = vmatpush1.msra.mxu0 %v2035
      %6092 = vmatprep.subr.mxu0 0.0
      %6093 = vmatpush1.msra.mxu0 %v2036
      %6094 = vmatprep.subr.mxu0 0.0
      %6095 = vmatpush1.msra.mxu0 %v2037
      %6096 = vmatprep.subr.mxu0 0.0
      %6097 = vmatpush1.msra.mxu0 %v2038
      %6098 = vmatprep.subr.mxu0 0.0
      %6099 = vmatpush1.msra.mxu0 %v2039
      %6100 = vmatprep.subr.mxu0 0.0
      %6101 = vmatpush1.msra.mxu0 %v2040
      %6102 = vmatprep.subr.mxu0 0.0
      %6103 = vmatpush1.msra.mxu0 %v2041
      %6104 = vmatprep.subr.mxu0 0.0
      %6105 = vmatpush1.msra.mxu0 %v2042
      %6106 = vmatprep.subr.mxu0 0.0
      %6107 = vmatpush1.msra.mxu0 %v2043
      %6108 = vmatprep.subr.mxu0 0.0
      %6109 = vmatpush1.msra.mxu0 %v2044
      %6110 = vmatprep.subr.mxu0 0.0
      %6111 = vmatpush1.msra.mxu0 %v2045
      %6112 = vmatprep.subr.mxu0 0.0
      %6113 = vmatpush1.msra.mxu0 %v2046
      %6114 = vmatprep.subr.mxu0 0.0
      %6115 = vmatpush1.msra.mxu0 %v2047
      %6116 = vmatprep.subr.mxu0 0.0
      %6117 = vmatpush1.msra.mxu0 %v2048
      %6118 = vmatprep.subr.mxu0 0.0
      %6119 = vmatpush1.msra.mxu0 %v2049
      %6120 = vmatprep.subr.mxu0 0.0
      %6121 = vmatpush1.msra.mxu0 %v2050
      %6122 = vmatprep.subr.mxu0 0.0
      %6123 = vmatpush1.msra.mxu0 %v2051
      %6124 = vmatprep.subr.mxu0 0.0
      %6125 = vmatpush1.msra.mxu0 %v2052
      %6126 = vmatprep.subr.mxu0 0.0
      %6127 = vmatpush1.msra.mxu0 %v2053
      %6128 = vmatprep.subr.mxu0 0.0
      %6129 = vmatpush1.msra.mxu0 %v2054
      %6130 = vmatprep.subr.mxu0 0.0
      %6131 = vmatpush1.msra.mxu0 %v2055
      %6132 = vmatprep.subr.mxu0 0.0
      %6133 = vmatpush1.msra.mxu0 %v2056
      %6134 = vmatprep.subr.mxu0 0.0
      %6135 = vmatpush1.msra.mxu0 %v2057
      %6136 = vmatprep.subr.mxu0 0.0
      %6137 = vmatpush1.msra.mxu0 %v2058
      %6138 = vmatprep.subr.mxu0 0.0
      %6139 = vmatpush1.msra.mxu0 %v2059
      %6140 = vmatprep.subr.mxu0 0.0
      %6141 = vmatpush1.msra.mxu0 %v2060
      %6142 = vmatprep.subr.mxu0 0.0
      %6143 = vmatpush1.msra.mxu0 %v2061
      %6144 = vmatprep.subr.mxu0 0.0
      %6145 = vmatpush1.msra.mxu0 %v2062
      %6146 = vmatprep.subr.mxu0 0.0
      %6147 = vmatpush1.msra.mxu0 %v2063
      %6148 = vmatprep.subr.mxu0 0.0
      %6149 = vmatpush1.msra.mxu0 %v2064
      %6150 = vmatprep.subr.mxu0 0.0
      %6151 = vmatpush1.msra.mxu0 %v2065
      %6152 = vmatprep.subr.mxu0 0.0
      %6153 = vmatpush1.msra.mxu0 %v2066
      %6154 = vmatprep.mubr.f32.mxu0 %v274
      %6155 = vmatmul.mubr.f32.gmra.mrb[0].mxu0 %v273
      %v6156 = vpop.f32.mrb[0].mxu0
      %v6157 = vadd.f32 %v6082, %v6156
      %v6158 = vpop.f32.mrb[0].mxu0
      %6159 = vmatprep.mubr.f32.mxu0 %v390
      %6160 = vmatmul.mubr.f32.gmra.mrb[0].mxu0 %v389
      %v6161 = vpop.f32.mrb[0].mxu0
      %v6162 = vadd.f32 %v6087, %v6161
      %v6163 = vpop.f32.mrb[0].mxu0
      %6164 = vdwg.mxu0
      %6165 = vmatprep.subr.mxu0 0.0
      %6166 = vmatpush1.msra.mxu0 %v2067
      %6167 = vmatprep.subr.mxu0 0.0
      %6168 = vmatpush1.msra.mxu0 %v2068
      %6169 = vmatprep.subr.mxu0 0.0
      %6170 = vmatpush1.msra.mxu0 %v2069
      %6171 = vmatprep.subr.mxu0 0.0
      %6172 = vmatpush1.msra.mxu0 %v2070
      %6173 = vmatprep.subr.mxu0 0.0
      %6174 = vmatpush1.msra.mxu0 %v2071
      %6175 = vmatprep.subr.mxu0 0.0
      %6176 = vmatpush1.msra.mxu0 %v2072
      %6177 = vmatprep.subr.mxu0 0.0
      %6178 = vmatpush1.msra.mxu0 %v2073
      %6179 = vmatprep.subr.mxu0 0.0
      %6180 = vmatpush1.msra.mxu0 %v2074
      %6181 = vmatprep.subr.mxu0 0.0
      %6182 = vmatpush1.msra.mxu0 %v2075
      %6183 = vmatprep.subr.mxu0 0.0
      %6184 = vmatpush1.msra.mxu0 %v2076
      %6185 = vmatprep.subr.mxu0 0.0
      %6186 = vmatpush1.msra.mxu0 %v2077
      %6187 = vmatprep.subr.mxu0 0.0
      %6188 = vmatpush1.msra.mxu0 %v2078
      %6189 = vmatprep.subr.mxu0 0.0
      %6190 = vmatpush1.msra.mxu0 %v2079
      %6191 = vmatprep.subr.mxu0 0.0
      %6192 = vmatpush1.msra.mxu0 %v2080
      %6193 = vmatprep.subr.mxu0 0.0
      %6194 = vmatpush1.msra.mxu0 %v2081
      %6195 = vmatprep.subr.mxu0 0.0
      %6196 = vmatpush1.msra.mxu0 %v2082
      %6197 = vmatprep.subr.mxu0 0.0
      %6198 = vmatpush1.msra.mxu0 %v2083
      %6199 = vmatprep.subr.mxu0 0.0
      %6200 = vmatpush1.msra.mxu0 %v2084
      %6201 = vmatprep.subr.mxu0 0.0
      %6202 = vmatpush1.msra.mxu0 %v2085
      %6203 = vmatprep.subr.mxu0 0.0
      %6204 = vmatpush1.msra.mxu0 %v2086
      %6205 = vmatprep.subr.mxu0 0.0
      %6206 = vmatpush1.msra.mxu0 %v2087
      %6207 = vmatprep.subr.mxu0 0.0
      %6208 = vmatpush1.msra.mxu0 %v2088
      %6209 = vmatprep.subr.mxu0 0.0
      %6210 = vmatpush1.msra.mxu0 %v2089
      %6211 = vmatprep.subr.mxu0 0.0
      %6212 = vmatpush1.msra.mxu0 %v2090
      %6213 = vmatprep.subr.mxu0 0.0
      %6214 = vmatpush1.msra.mxu0 %v2091
      %6215 = vmatprep.subr.mxu0 0.0
      %6216 = vmatpush1.msra.mxu0 %v2092
      %6217 = vmatprep.subr.mxu0 0.0
      %6218 = vmatpush1.msra.mxu0 %v2093
      %6219 = vmatprep.subr.mxu0 0.0
      %6220 = vmatpush1.msra.mxu0 %v2094
      %6221 = vmatprep.subr.mxu0 0.0
      %6222 = vmatpush1.msra.mxu0 %v2095
      %6223 = vmatprep.subr.mxu0 0.0
      %6224 = vmatpush1.msra.mxu0 %v2096
      %6225 = vmatprep.subr.mxu0 0.0
      %6226 = vmatpush1.msra.mxu0 %v2097
      %6227 = vmatprep.subr.mxu0 0.0
      %6228 = vmatpush1.msra.mxu0 %v2098
      %6229 = vmatprep.mubr.f32.mxu0 %v276
      %6230 = vmatmul.mubr.f32.gmra.mrb[0].mxu0 %v275
      %v6231 = vpop.f32.mrb[0].mxu0
      %v6232 = vadd.f32 %v6157, %v6231
      %v6233 = vpop.f32.mrb[0].mxu0
      %6234 = vmatprep.mubr.f32.mxu0 %v392
      %6235 = vmatmul.mubr.f32.gmra.mrb[0].mxu0 %v391
      %v6236 = vpop.f32.mrb[0].mxu0
      %v6237 = vadd.f32 %v6162, %v6236
      %v6238 = vpop.f32.mrb[0].mxu0
      %6239 = vdwg.mxu0
      %6240 = vmatprep.subr.mxu0 0.0
      %6241 = vmatpush1.msra.mxu0 %v2099
      %6242 = vmatprep.subr.mxu0 0.0
      %6243 = vmatpush1.msra.mxu0 %v2100
      %6244 = vmatprep.subr.mxu0 0.0
      %6245 = vmatpush1.msra.mxu0 %v2101
      %6246 = vmatprep.subr.mxu0 0.0
      %6247 = vmatpush1.msra.mxu0 %v2102
      %6248 = vmatprep.subr.mxu0 0.0
      %6249 = vmatpush1.msra.mxu0 %v2103
      %6250 = vmatprep.subr.mxu0 0.0
      %6251 = vmatpush1.msra.mxu0 %v2104
      %6252 = vmatprep.subr.mxu0 0.0
      %6253 = vmatpush1.msra.mxu0 %v2105
      %6254 = vmatprep.subr.mxu0 0.0
      %6255 = vmatpush1.msra.mxu0 %v2106
      %6256 = vmatprep.subr.mxu0 0.0
      %6257 = vmatpush1.msra.mxu0 %v2107
      %6258 = vmatprep.subr.mxu0 0.0
      %6259 = vmatpush1.msra.mxu0 %v2108
      %6260 = vmatprep.subr.mxu0 0.0
      %6261 = vmatpush1.msra.mxu0 %v2109
      %6262 = vmatprep.subr.mxu0 0.0
      %6263 = vmatpush1.msra.mxu0 %v2110
      %6264 = vmatprep.subr.mxu0 0.0
      %6265 = vmatpush1.msra.mxu0 %v2111
      %6266 = vmatprep.subr.mxu0 0.0
      %6267 = vmatpush1.msra.mxu0 %v2112
      %6268 = vmatprep.subr.mxu0 0.0
      %6269 = vmatpush1.msra.mxu0 %v2113
      %6270 = vmatprep.subr.mxu0 0.0
      %6271 = vmatpush1.msra.mxu0 %v2114
      %6272 = vmatprep.subr.mxu0 0.0
      %6273 = vmatpush1.msra.mxu0 %v2115
      %6274 = vmatprep.subr.mxu0 0.0
      %6275 = vmatpush1.msra.mxu0 %v2116
      %6276 = vmatprep.subr.mxu0 0.0
      %6277 = vmatpush1.msra.mxu0 %v2117
      %6278 = vmatprep.subr.mxu0 0.0
      %6279 = vmatpush1.msra.mxu0 %v2118
      %6280 = vmatprep.subr.mxu0 0.0
      %6281 = vmatpush1.msra.mxu0 %v2119
      %6282 = vmatprep.subr.mxu0 0.0
      %6283 = vmatpush1.msra.mxu0 %v2120
      %6284 = vmatprep.subr.mxu0 0.0
      %6285 = vmatpush1.msra.mxu0 %v2121
      %6286 = vmatprep.subr.mxu0 0.0
      %6287 = vmatpush1.msra.mxu0 %v2122
      %6288 = vmatprep.subr.mxu0 0.0
      %6289 = vmatpush1.msra.mxu0 %v2123
      %6290 = vmatprep.subr.mxu0 0.0
      %6291 = vmatpush1.msra.mxu0 %v2124
      %6292 = vmatprep.subr.mxu0 0.0
      %6293 = vmatpush1.msra.mxu0 %v2125
      %6294 = vmatprep.subr.mxu0 0.0
      %6295 = vmatpush1.msra.mxu0 %v2126
      %6296 = vmatprep.subr.mxu0 0.0
      %6297 = vmatpush1.msra.mxu0 %v2127
      %6298 = vmatprep.subr.mxu0 0.0
      %6299 = vmatpush1.msra.mxu0 %v2128
      %6300 = vmatprep.subr.mxu0 0.0
      %6301 = vmatpush1.msra.mxu0 %v2129
      %6302 = vmatprep.subr.mxu0 0.0
      %6303 = vmatpush1.msra.mxu0 %v2130
      %6304 = vmatprep.mubr.f32.mxu0 %v278
      %6305 = vmatmul.mubr.f32.gmra.mrb[0].mxu0 %v277
      %v6306 = vpop.f32.mrb[0].mxu0
      %v6307 = vadd.f32 %v6232, %v6306
      %v6308 = vpop.f32.mrb[0].mxu0
      %6309 = vmatprep.mubr.f32.mxu0 %v394
      %6310 = vmatmul.mubr.f32.gmra.mrb[0].mxu0 %v393
      %v6311 = vpop.f32.mrb[0].mxu0
      %v6312 = vadd.f32 %v6237, %v6311
      %v6313 = vpop.f32.mrb[0].mxu0
      %6314 = vdwg.mxu0
      %6315 = vmatprep.subr.mxu0 0.0
      %6316 = vmatpush1.msra.mxu0 %v2131
      %6317 = vmatprep.subr.mxu0 0.0
      %6318 = vmatpush1.msra.mxu0 %v2132
      %6319 = vmatprep.subr.mxu0 0.0
      %6320 = vmatpush1.msra.mxu0 %v2133
      %6321 = vmatprep.subr.mxu0 0.0
      %6322 = vmatpush1.msra.mxu0 %v2134
      %6323 = vmatprep.subr.mxu0 0.0
      %6324 = vmatpush1.msra.mxu0 %v2135
      %6325 = vmatprep.subr.mxu0 0.0
      %6326 = vmatpush1.msra.mxu0 %v2136
      %6327 = vmatprep.subr.mxu0 0.0
      %6328 = vmatpush1.msra.mxu0 %v2137
      %6329 = vmatprep.subr.mxu0 0.0
      %6330 = vmatpush1.msra.mxu0 %v2138
      %6331 = vmatprep.subr.mxu0 0.0
      %6332 = vmatpush1.msra.mxu0 %v2139
      %6333 = vmatprep.subr.mxu0 0.0
      %6334 = vmatpush1.msra.mxu0 %v2140
      %6335 = vmatprep.subr.mxu0 0.0
      %6336 = vmatpush1.msra.mxu0 %v2141
      %6337 = vmatprep.subr.mxu0 0.0
      %6338 = vmatpush1.msra.mxu0 %v2142
      %6339 = vmatprep.subr.mxu0 0.0
      %6340 = vmatpush1.msra.mxu0 %v2143
      %6341 = vmatprep.subr.mxu0 0.0
      %6342 = vmatpush1.msra.mxu0 %v2144
      %6343 = vmatprep.subr.mxu0 0.0
      %6344 = vmatpush1.msra.mxu0 %v2145
      %6345 = vmatprep.subr.mxu0 0.0
      %6346 = vmatpush1.msra.mxu0 %v2146
      %6347 = vmatprep.subr.mxu0 0.0
      %6348 = vmatpush1.msra.mxu0 %v2147
      %6349 = vmatprep.subr.mxu0 0.0
      %6350 = vmatpush1.msra.mxu0 %v2148
      %6351 = vmatprep.subr.mxu0 0.0
      %6352 = vmatpush1.msra.mxu0 %v2149
      %6353 = vmatprep.subr.mxu0 0.0
      %6354 = vmatpush1.msra.mxu0 %v2150
      %6355 = vmatprep.subr.mxu0 0.0
      %6356 = vmatpush1.msra.mxu0 %v2151
      %6357 = vmatprep.subr.mxu0 0.0
      %6358 = vmatpush1.msra.mxu0 %v2152
      %6359 = vmatprep.subr.mxu0 0.0
      %6360 = vmatpush1.msra.mxu0 %v2153
      %6361 = vmatprep.subr.mxu0 0.0
      %6362 = vmatpush1.msra.mxu0 %v2154
      %6363 = vmatprep.subr.mxu0 0.0
      %6364 = vmatpush1.msra.mxu0 %v2155
      %6365 = vmatprep.subr.mxu0 0.0
      %6366 = vmatpush1.msra.mxu0 %v2156
      %6367 = vmatprep.subr.mxu0 0.0
      %6368 = vmatpush1.msra.mxu0 %v2157
      %6369 = vmatprep.subr.mxu0 0.0
      %6370 = vmatpush1.msra.mxu0 %v2158
      %6371 = vmatprep.subr.mxu0 0.0
      %6372 = vmatpush1.msra.mxu0 %v2159
      %6373 = vmatprep.subr.mxu0 0.0
      %6374 = vmatpush1.msra.mxu0 %v2160
      %6375 = vmatprep.subr.mxu0 0.0
      %6376 = vmatpush1.msra.mxu0 %v2161
      %6377 = vmatprep.subr.mxu0 0.0
      %6378 = vmatpush1.msra.mxu0 %v2162
      %6379 = vmatprep.mubr.f32.mxu0 %v280
      %6380 = vmatmul.mubr.f32.gmra.mrb[0].mxu0 %v279
      %v6381 = vpop.f32.mrb[0].mxu0
      %v6382 = vadd.f32 %v6307, %v6381
      %v6383 = vpop.f32.mrb[0].mxu0
      %6384 = vmatprep.mubr.f32.mxu0 %v396
      %6385 = vmatmul.mubr.f32.gmra.mrb[0].mxu0 %v395
      %v6386 = vpop.f32.mrb[0].mxu0
      %v6387 = vadd.f32 %v6312, %v6386
      %v6388 = vpop.f32.mrb[0].mxu0
      %6389 = vdwg.mxu0
      %6390 = vmatprep.subr.mxu0 0.0
      %6391 = vmatpush1.msra.mxu0 %v2163
      %6392 = vmatprep.subr.mxu0 0.0
      %6393 = vmatpush1.msra.mxu0 %v2164
      %6394 = vmatprep.subr.mxu0 0.0
      %6395 = vmatpush1.msra.mxu0 %v2165
      %6396 = vmatprep.subr.mxu0 0.0
      %6397 = vmatpush1.msra.mxu0 %v2166
      %6398 = vmatprep.subr.mxu0 0.0
      %6399 = vmatpush1.msra.mxu0 %v2167
      %6400 = vmatprep.subr.mxu0 0.0
      %6401 = vmatpush1.msra.mxu0 %v2168
      %6402 = vmatprep.subr.mxu0 0.0
      %6403 = vmatpush1.msra.mxu0 %v2169
      %6404 = vmatprep.subr.mxu0 0.0
      %6405 = vmatpush1.msra.mxu0 %v2170
      %6406 = vmatprep.subr.mxu0 0.0
      %6407 = vmatpush1.msra.mxu0 %v2171
      %6408 = vmatprep.subr.mxu0 0.0
      %6409 = vmatpush1.msra.mxu0 %v2172
      %6410 = vmatprep.subr.mxu0 0.0
      %6411 = vmatpush1.msra.mxu0 %v2173
      %6412 = vmatprep.subr.mxu0 0.0
      %6413 = vmatpush1.msra.mxu0 %v2174
      %6414 = vmatprep.subr.mxu0 0.0
      %6415 = vmatpush1.msra.mxu0 %v2175
      %6416 = vmatprep.subr.mxu0 0.0
      %6417 = vmatpush1.msra.mxu0 %v2176
      %6418 = vmatprep.subr.mxu0 0.0
      %6419 = vmatpush1.msra.mxu0 %v2177
      %6420 = vmatprep.subr.mxu0 0.0
      %6421 = vmatpush1.msra.mxu0 %v2178
      %6422 = vmatprep.subr.mxu0 0.0
      %6423 = vmatpush1.msra.mxu0 %v2179
      %6424 = vmatprep.subr.mxu0 0.0
      %6425 = vmatpush1.msra.mxu0 %v2180
      %6426 = vmatprep.subr.mxu0 0.0
      %6427 = vmatpush1.msra.mxu0 %v2181
      %6428 = vmatprep.subr.mxu0 0.0
      %6429 = vmatpush1.msra.mxu0 %v2182
      %6430 = vmatprep.subr.mxu0 0.0
      %6431 = vmatpush1.msra.mxu0 %v2183
      %6432 = vmatprep.subr.mxu0 0.0
      %6433 = vmatpush1.msra.mxu0 %v2184
      %6434 = vmatprep.subr.mxu0 0.0
      %6435 = vmatpush1.msra.mxu0 %v2185
      %6436 = vmatprep.subr.mxu0 0.0
      %6437 = vmatpush1.msra.mxu0 %v2186
      %6438 = vmatprep.subr.mxu0 0.0
      %6439 = vmatpush1.msra.mxu0 %v2187
      %6440 = vmatprep.subr.mxu0 0.0
      %6441 = vmatpush1.msra.mxu0 %v2188
      %6442 = vmatprep.subr.mxu0 0.0
      %6443 = vmatpush1.msra.mxu0 %v2189
      %6444 = vmatprep.subr.mxu0 0.0
      %6445 = vmatpush1.msra.mxu0 %v2190
      %6446 = vmatprep.subr.mxu0 0.0
      %6447 = vmatpush1.msra.mxu0 %v2191
      %6448 = vmatprep.subr.mxu0 0.0
      %6449 = vmatpush1.msra.mxu0 %v2192
      %6450 = vmatprep.subr.mxu0 0.0
      %6451 = vmatpush1.msra.mxu0 %v2193
      %6452 = vmatprep.subr.mxu0 0.0
      %6453 = vmatpush1.msra.mxu0 %v2194
      %6454 = vmatprep.mubr.f32.mxu0 %v282
      %6455 = vmatmul.mubr.f32.gmra.mrb[0].mxu0 %v281
      %v6456 = vpop.f32.mrb[0].mxu0
      %v6457 = vadd.f32 %v6382, %v6456
      %v6458 = vpop.f32.mrb[0].mxu0
      %6459 = vmatprep.mubr.f32.mxu0 %v398
      %6460 = vmatmul.mubr.f32.gmra.mrb[0].mxu0 %v397
      %v6461 = vpop.f32.mrb[0].mxu0
      %v6462 = vadd.f32 %v6387, %v6461
      %v6463 = vpop.f32.mrb[0].mxu0
      %6464 = vdwg.mxu0
      %6465 = vmatprep.subr.mxu0 0.0
      %6466 = vmatpush1.msra.mxu0 %v2195
      %6467 = vmatprep.subr.mxu0 0.0
      %6468 = vmatpush1.msra.mxu0 %v2196
      %6469 = vmatprep.subr.mxu0 0.0
      %6470 = vmatpush1.msra.mxu0 %v2197
      %6471 = vmatprep.subr.mxu0 0.0
      %6472 = vmatpush1.msra.mxu0 %v2198
      %6473 = vmatprep.subr.mxu0 0.0
      %6474 = vmatpush1.msra.mxu0 %v2199
      %6475 = vmatprep.subr.mxu0 0.0
      %6476 = vmatpush1.msra.mxu0 %v2200
      %6477 = vmatprep.subr.mxu0 0.0
      %6478 = vmatpush1.msra.mxu0 %v2201
      %6479 = vmatprep.subr.mxu0 0.0
      %6480 = vmatpush1.msra.mxu0 %v2202
      %6481 = vmatprep.subr.mxu0 0.0
      %6482 = vmatpush1.msra.mxu0 %v2203
      %6483 = vmatprep.subr.mxu0 0.0
      %6484 = vmatpush1.msra.mxu0 %v2204
      %6485 = vmatprep.subr.mxu0 0.0
      %6486 = vmatpush1.msra.mxu0 %v2205
      %6487 = vmatprep.subr.mxu0 0.0
      %6488 = vmatpush1.msra.mxu0 %v2206
      %6489 = vmatprep.subr.mxu0 0.0
      %6490 = vmatpush1.msra.mxu0 %v2207
      %6491 = vmatprep.subr.mxu0 0.0
      %6492 = vmatpush1.msra.mxu0 %v2208
      %6493 = vmatprep.subr.mxu0 0.0
      %6494 = vmatpush1.msra.mxu0 %v2209
      %6495 = vmatprep.subr.mxu0 0.0
      %6496 = vmatpush1.msra.mxu0 %v2210
      %6497 = vmatprep.subr.mxu0 0.0
      %6498 = vmatpush1.msra.mxu0 %v2211
      %6499 = vmatprep.subr.mxu0 0.0
      %6500 = vmatpush1.msra.mxu0 %v2212
      %6501 = vmatprep.subr.mxu0 0.0
      %6502 = vmatpush1.msra.mxu0 %v2213
      %6503 = vmatprep.subr.mxu0 0.0
      %6504 = vmatpush1.msra.mxu0 %v2214
      %6505 = vmatprep.subr.mxu0 0.0
      %6506 = vmatpush1.msra.mxu0 %v2215
      %6507 = vmatprep.subr.mxu0 0.0
      %6508 = vmatpush1.msra.mxu0 %v2216
      %6509 = vmatprep.subr.mxu0 0.0
      %6510 = vmatpush1.msra.mxu0 %v2217
      %6511 = vmatprep.subr.mxu0 0.0
      %6512 = vmatpush1.msra.mxu0 %v2218
      %6513 = vmatprep.subr.mxu0 0.0
      %6514 = vmatpush1.msra.mxu0 %v2219
      %6515 = vmatprep.subr.mxu0 0.0
      %6516 = vmatpush1.msra.mxu0 %v2220
      %6517 = vmatprep.subr.mxu0 0.0
      %6518 = vmatpush1.msra.mxu0 %v2221
      %6519 = vmatprep.subr.mxu0 0.0
      %6520 = vmatpush1.msra.mxu0 %v2222
      %6521 = vmatprep.subr.mxu0 0.0
      %6522 = vmatpush1.msra.mxu0 %v2223
      %6523 = vmatprep.subr.mxu0 0.0
      %6524 = vmatpush1.msra.mxu0 %v2224
      %6525 = vmatprep.subr.mxu0 0.0
      %6526 = vmatpush1.msra.mxu0 %v2225
      %6527 = vmatprep.subr.mxu0 0.0
      %6528 = vmatpush1.msra.mxu0 %v2226
      %6529 = vmatprep.mubr.f32.mxu0 %v284
      %6530 = vmatmul.mubr.f32.gmra.mrb[0].mxu0 %v283
      %v6531 = vpop.f32.mrb[0].mxu0
      %v6532 = vadd.f32 %v6457, %v6531
      %v6533 = vpop.f32.mrb[0].mxu0
      %6534 = vmatprep.mubr.f32.mxu0 %v400
      %6535 = vmatmul.mubr.f32.gmra.mrb[0].mxu0 %v399
      %v6536 = vpop.f32.mrb[0].mxu0
      %v6537 = vadd.f32 %v6462, %v6536
      %v6538 = vpop.f32.mrb[0].mxu0
      %6539 = vdwg.mxu0
      %6540 = vmatprep.subr.mxu0 0.0
      %6541 = vmatpush1.msra.mxu0 %v2227
      %6542 = vmatprep.subr.mxu0 0.0
      %6543 = vmatpush1.msra.mxu0 %v2228
      %6544 = vmatprep.subr.mxu0 0.0
      %6545 = vmatpush1.msra.mxu0 %v2229
      %6546 = vmatprep.subr.mxu0 0.0
      %6547 = vmatpush1.msra.mxu0 %v2230
      %6548 = vmatprep.subr.mxu0 0.0
      %6549 = vmatpush1.msra.mxu0 %v2231
      %6550 = vmatprep.subr.mxu0 0.0
      %6551 = vmatpush1.msra.mxu0 %v2232
      %6552 = vmatprep.subr.mxu0 0.0
      %6553 = vmatpush1.msra.mxu0 %v2233
      %6554 = vmatprep.subr.mxu0 0.0
      %6555 = vmatpush1.msra.mxu0 %v2234
      %6556 = vmatprep.subr.mxu0 0.0
      %6557 = vmatpush1.msra.mxu0 %v2235
      %6558 = vmatprep.subr.mxu0 0.0
      %6559 = vmatpush1.msra.mxu0 %v2236
      %6560 = vmatprep.subr.mxu0 0.0
      %6561 = vmatpush1.msra.mxu0 %v2237
      %6562 = vmatprep.subr.mxu0 0.0
      %6563 = vmatpush1.msra.mxu0 %v2238
      %6564 = vmatprep.subr.mxu0 0.0
      %6565 = vmatpush1.msra.mxu0 %v2239
      %6566 = vmatprep.subr.mxu0 0.0
      %6567 = vmatpush1.msra.mxu0 %v2240
      %6568 = vmatprep.subr.mxu0 0.0
      %6569 = vmatpush1.msra.mxu0 %v2241
      %6570 = vmatprep.subr.mxu0 0.0
      %6571 = vmatpush1.msra.mxu0 %v2242
      %6572 = vmatprep.subr.mxu0 0.0
      %6573 = vmatpush1.msra.mxu0 %v2243
      %6574 = vmatprep.subr.mxu0 0.0
      %6575 = vmatpush1.msra.mxu0 %v2244
      %6576 = vmatprep.subr.mxu0 0.0
      %6577 = vmatpush1.msra.mxu0 %v2245
      %6578 = vmatprep.subr.mxu0 0.0
      %6579 = vmatpush1.msra.mxu0 %v2246
      %6580 = vmatprep.subr.mxu0 0.0
      %6581 = vmatpush1.msra.mxu0 %v2247
      %6582 = vmatprep.subr.mxu0 0.0
      %6583 = vmatpush1.msra.mxu0 %v2248
      %6584 = vmatprep.subr.mxu0 0.0
      %6585 = vmatpush1.msra.mxu0 %v2249
      %6586 = vmatprep.subr.mxu0 0.0
      %6587 = vmatpush1.msra.mxu0 %v2250
      %6588 = vmatprep.subr.mxu0 0.0
      %6589 = vmatpush1.msra.mxu0 0.0
      %6590 = vmatprep.subr.mxu0 0.0
      %6591 = vmatpush1.msra.mxu0 0.0
      %6592 = vmatprep.subr.mxu0 0.0
      %6593 = vmatpush1.msra.mxu0 0.0
      %6594 = vmatprep.subr.mxu0 0.0
      %6595 = vmatpush1.msra.mxu0 0.0
      %6596 = vmatprep.subr.mxu0 0.0
      %6597 = vmatpush1.msra.mxu0 0.0
      %6598 = vmatprep.subr.mxu0 0.0
      %6599 = vmatpush1.msra.mxu0 0.0
      %6600 = vmatprep.subr.mxu0 0.0
      %6601 = vmatpush1.msra.mxu0 0.0
      %6602 = vmatprep.subr.mxu0 0.0
      %6603 = vmatpush1.msra.mxu0 0.0
      %6604 = vmatprep.mubr.f32.mxu0 %v2260
      %6605 = vmatmul.mubr.f32.gmra.mrb[0].mxu0 %v285
      %v6606 = vpop.f32.mrb[0].mxu0
      %v6607 = vadd.f32 %v6532, %v6606
      %v6608 = vpop.f32.mrb[0].mxu0
      %6609 = vmatprep.mubr.f32.mxu0 %v2263
      %6610 = vmatmul.mubr.f32.gmra.mrb[0].mxu0 %v401
      %v6611 = vpop.f32.mrb[0].mxu0
      %v6612 = vadd.f32 %v6537, %v6611
      %v6613 = vpop.f32.mrb[0].mxu0
      %6614 = vdwg.mxu0
      %vm6615 = vcmp.gt.f32.partialorder %v6607, 0.0
      %vm6616 = vcmp.gt.f32.partialorder %v6612, 0.0
      %v6617 = vmul.f32 %v6607, 0.08553692
      %v6618 = vmul.f32 %v6612, 0.08553692
      %v6619 = vsel %vm6615, %v6607, %v6617
      %v6620 = vsel %vm6616, %v6612, %v6618
      %vm6621 = vcmask 179200
      %6622 = vst.msk [vmem:[%s170] sm:$0xff] %vm6621, %v6619
      %vm6623 = vcmask 174080
      %6624 = vst.msk [vmem:[%s170 + $0x8] sm:$0x7] %vm6623, %v6620
      %p6625 = scmp.lt.s32.totalorder %s14, 1
      %s6626 = scalar_select %p6625, %s14, 1
      %s6627 = smul.addr %s6626, 2
      %s6628 = smul.addr %s6627, 8
      %s6629 = scalar_lea.vmem %s3, %s6628
      // Predicated region
      $region33: #{conv_leaky_forward.1} parent=31 // pred_check
        %p6630 = pneg %p100
      $region34: #{conv_leaky_forward.1} parent=31 // pred_check_branch
        %6632 = sbr.rel (%p6630) target = $region36
      $region35: #{conv_leaky_forward.1} parent=31 // pred_region
        _
      $region36: #{conv_leaky_forward.1} parent=31 // pred_fallthru
        _
    $region32: #{conv_leaky_forward.1} parent=5 // pred_fallthru
      _
    %p6633 = scmp.le.s32.totalorder 2, %s9
    // Predicated region
    $region37: #{conv_leaky_forward.1} parent=5 // pred_check
      %p6634 = pneg %p6633
    $region38: #{conv_leaky_forward.1} parent=5 // pred_check_branch
      %6636 = sbr.rel (%p6634) target = $region40
    $region39: #{conv_leaky_forward.1} parent=5 // pred_region
      %s6637 = ssub.s32 %s9, 2
      // Predicated region
      $region41: #{conv_leaky_forward.1} parent=39 // pred_check
        %p6638 = pneg %p106
      $region42: #{conv_leaky_forward.1} parent=39 // pred_check_branch
        %6640 = sbr.rel (%p6638) target = $region44
      $region43: #{conv_leaky_forward.1} parent=39 // pred_region
        %p6641 = scmp.lt.s32.totalorder %s15, 1
        %s6642 = scalar_select %p6641, %s15, 1
        %s6643 = smul.addr %s6642, 2
        %s6644 = smul.addr %s6643, 8
        %s6645 = scalar_lea.vmem %s3, %s6644
      $region44: #{conv_leaky_forward.1} parent=39 // pred_fallthru
        _
    $region40: #{conv_leaky_forward.1} parent=5 // pred_fallthru
      _
  $region6: #{conv_leaky_forward.1} parent=0 // loop_footer
    %s13 = sadd.s32 1, %s9
  $region7: #{conv_leaky_forward.1} parent=0 // loop_footer_branch
    %8 = sbr.rel target = $region3
  $region8: #{conv_leaky_forward.1} parent=0 // loop_exit
    _

</llo_original>
